<compile_context>
chip_gen: v6e
topology: v6e:2x2x1
jax: 0.10.0
libtpu: 0.0.40
codegen_flags: <defaults>
</compile_context>

<pallas_src>
import functools

import numpy as np
import jax
import jax.numpy as jnp
from jax import lax
from jax.experimental import pallas as pl
from jax.experimental.pallas import tpu as pltpu

PLANES = 8           # `planes` argument of FirstStage
EXPANSION = 4        # FirstStage.expansion
OUT_CHANNELS = 4     # `out_channels` argument of FirstStage
HALO = 8             # zero halo rows on each side of every width segment


# ---------------------------------------------------------------------------
# The fused kernel (one grid step == NF batch elements, fully VMEM resident)
# ---------------------------------------------------------------------------
def _first_stage_kernel(xk_ref,
                        c1, c2, c3, c4, c5, c6, c7,
                        b1, b2, b3, b4, b5, b6, b7,
                        sy1, sy2, sy3,
                        o_ref,
                        p1, p2, p3, x2s, x3s, x4s, x5s,
                        *, nf, widths):
    W1, W2, W3, W4 = widths
    G = HALO
    f32 = jnp.float32
    bf16 = jnp.bfloat16

    def per(W):                          # segment period of a buffer
        return W + 2 * G

    # ---- zero only the halo row blocks (they are read but never written) ----
    for ref, W in ((p1, W1), (p2, W2), (p3, W3),
                   (x2s, W2), (x3s, W3), (x4s, W4), (x5s, W4)):
        P = per(W)
        z = jnp.zeros((G, ref.shape[1]), ref.dtype)
        for n in range(nf):
            ref[n * P:n * P + G, :] = z
            ref[n * P + G + W:(n + 1) * P, :] = z

    def conv(src_ref, c_ref, b_ref, relu=True):
        # src_ref rows = (batch-folded) padded width, lanes = y*Cin + c.
        # c_ref[dx] folds (dy, Cin) -> (y, Cout).  Output row i <-> buffer row i+G.
        K = c_ref.shape[0]
        pad = (K - 1) // 2
        Mout = src_ref.shape[0] - 2 * G
        base = G - pad
        terms = [jnp.dot(src_ref[base + dx:base + dx + Mout, :], c_ref[dx],
                         preferred_element_type=f32)
                 for dx in range(K)]
        while len(terms) > 1:            # pairwise tree reduction
            nxt = [terms[i] + terms[i + 1] for i in range(0, len(terms) - 1, 2)]
            if len(terms) % 2:
                nxt.append(terms[-1])
            terms = nxt
        acc = terms[0] + b_ref[...]      # bias fused
        if relu:
            acc = jnp.maximum(acc, 0.0)
        return acc                       # (Mout, H*Cout) f32 value

    def pool_into(a, W, p_ref, sy_ref, dst_ref, Wn):
        # 3x3 / stride-2 / pad-1 maxpool, writing the next conv's padded input.
        P, Pn = per(W), per(Wn)
        # valid rows of `a` for fold slot n live at [n*P, n*P + W)
        for n in range(nf):
            p_ref[n * P + G:n * P + G + W, :] = a[n * P:n * P + W, :]
        cnt = (nf - 1) * (P // 2) + W // 2
        # width 3-window max + stride-2 decimation: three strided sublane reads
        r0 = p_ref[pl.ds(G - 1, cnt, stride=2), :]
        r1 = p_ref[pl.ds(G, cnt, stride=2), :]
        r2 = p_ref[pl.ds(G + 1, cnt, stride=2), :]
        rm = jnp.maximum(jnp.maximum(r0, r1), r2).astype(bf16)
        # height 3-window max + stride-2 decimation: exact 0/1 selection matmuls
        pooled = jnp.maximum(
            jnp.maximum(jnp.dot(rm, sy_ref[0], preferred_element_type=f32),
                        jnp.dot(rm, sy_ref[1], preferred_element_type=f32)),
            jnp.dot(rm, sy_ref[2], preferred_element_type=f32))
        for n in range(nf):
            dst_ref[n * Pn + G:n * Pn + G + Wn, :] = \
                pooled[n * (P // 2):n * (P // 2) + Wn, :].astype(dst_ref.dtype)

    # conv1(9x9)+relu + pool1
    a1 = conv(xk_ref, c1, b1)
    pool_into(a1, W1, p1, sy1, x2s, W2)
    # conv2(9x9)+relu + pool2
    a2 = conv(x2s, c2, b2)
    pool_into(a2, W2, p2, sy2, x3s, W3)
    # conv3(9x9)+relu + pool3
    a3 = conv(x3s, c3, b3)
    pool_into(a3, W3, p3, sy3, x4s, W4)
    # conv4(5x5)+relu
    a4 = conv(x4s, c4, b4)
    P4 = per(W4)
    for n in range(nf):
        x5s[n * P4 + G:n * P4 + G + W4, :] = a4[n * P4:n * P4 + W4, :].astype(x5s.dtype)
    # conv5(9x9)+relu
    a5 = conv(x5s, c5, b5)
    # conv6(1x1)+relu, conv7(1x1) (no relu)
    a6 = jnp.maximum(jnp.dot(a5.astype(bf16), c6[0],
                             preferred_element_type=f32) + b6[...], 0.0)
    o_ref[...] = jnp.dot(a6.astype(bf16), c7[0],
                         preferred_element_type=f32) + b7[...]


# ---------------------------------------------------------------------------
# Host-side weight / pooling-matrix preparation (done once)
# ---------------------------------------------------------------------------
def _build_conv_mats(w_oihw, b, H, pad):
    """C[dx, yr*Cin + c, y*Cout + o] = w[o, c, yr - y + pad, dx]  (banded, bf16)."""
    w = np.asarray(w_oihw, np.float32)
    Cout, Cin, K, _ = w.shape
    C = np.zeros((K, H * Cin, H * Cout), np.float32)
    for dx in range(K):
        for y in range(H):
            for dy in range(K):
                yr = y + dy - pad
                if 0 <= yr < H:
                    C[dx, yr * Cin:(yr + 1) * Cin,
                         y * Cout:(y + 1) * Cout] = w[:, :, dy, dx].T
    bias_row = np.tile(np.asarray(b, np.float32), H)[None, :]     # (1, H*Cout)
    return jnp.asarray(C, jnp.bfloat16), jnp.asarray(bias_row, jnp.float32)


def _build_pool_sel(H, C):
    """Exact 0/1 selection matrices for the height part of MaxPool(3, 2, 1)."""
    Hh = H // 2
    Sy = np.zeros((3, H * C, Hh * C), np.float32)
    for d, dy in enumerate((-1, 0, 1)):
        for j in range(Hh):
            y = 2 * j + dy
            if 0 <= y < H:
                for o in range(C):
                    Sy[d, y * C + o, j * C + o] = 1.0
    return jnp.asarray(Sy, jnp.bfloat16)


def prepare_params(params, H):
    hs = [H, H // 2, H // 4, H // 8, H // 8, H // 8, H // 8]
    pads = [4, 4, 4, 2, 4, 0, 0]
    cs, bs = [], []
    for (w, b), h, pad in zip(params, hs, pads):
        C, brow = _build_conv_mats(w, b, h, pad)
        cs.append(C)
        bs.append(brow)
    sys_ = [_build_pool_sel(h, PLANES) for h in (H, H // 2, H // 4)]
    return tuple(cs) + tuple(bs) + tuple(sys_)


# ---------------------------------------------------------------------------
# Pallas wrapper
# ---------------------------------------------------------------------------
@functools.partial(jax.jit, static_argnames=("batch_fold",))
def first_stage_pallas(x, prep, batch_fold=None):
    """x: (N, 3, H, W) NCHW, like the PyTorch module.  Returns (N, 4, H/8, W/8)."""
    N, Cin0, H, W = x.shape
    assert H % 8 == 0 and W % 8 == 0
    G = HALO
    nf = N if batch_fold is None else batch_fold
    assert N % nf == 0
    W1, W2, W3, W4 = W, W // 2, W // 4, W // 8
    H1, H2, H3, H4 = H, H // 2, H // 4, H // 8
    P1, P4 = W1 + 2 * G, W4 + 2 * G
    Mtot1 = nf * P1
    Mout_tail = nf * P4 - 2 * G

    # (N, C, H, W) -> batch-folded (N//nf, nf*(W+2G), H*C): rows = padded width
    # segments (zero halos), lanes = y*C + c.
    xw = jnp.transpose(x, (0, 3, 2, 1)).reshape(N, W, H * Cin0)
    xw = jnp.pad(xw, ((0, 0), (G, G), (0, 0)))
    xk = xw.reshape(N // nf, Mtot1, H * Cin0).astype(jnp.bfloat16)

    def shared(a):
        nd = a.ndim
        return pl.BlockSpec(a.shape, lambda g, _nd=nd: (0,) * _nd)

    in_specs = [pl.BlockSpec((None, Mtot1, H1 * Cin0), lambda g: (g, 0, 0))]
    in_specs += [shared(a) for a in prep]

    kernel = functools.partial(_first_stage_kernel, nf=nf,
                               widths=(W1, W2, W3, W4))

    out_raw = pl.pallas_call(
        kernel,
        out_shape=jax.ShapeDtypeStruct((N // nf, Mout_tail, H4 * OUT_CHANNELS),
                                       jnp.float32),
        grid=(N // nf,),
        in_specs=in_specs,
        out_specs=pl.BlockSpec((None, Mout_tail, H4 * OUT_CHANNELS),
                               lambda g: (g, 0, 0)),
        scratch_shapes=[
            pltpu.VMEM((nf * (W1 + 2 * G), H1 * PLANES), jnp.float32),   # p1
            pltpu.VMEM((nf * (W2 + 2 * G), H2 * PLANES), jnp.float32),   # p2
            pltpu.VMEM((nf * (W3 + 2 * G), H3 * PLANES), jnp.float32),   # p3
            pltpu.VMEM((nf * (W2 + 2 * G), H2 * PLANES), jnp.bfloat16),  # x2s
            pltpu.VMEM((nf * (W3 + 2 * G), H3 * PLANES), jnp.bfloat16),  # x3s
            pltpu.VMEM((nf * (W4 + 2 * G), H4 * PLANES), jnp.bfloat16),  # x4s
            pltpu.VMEM((nf * (W4 + 2 * G), H4 * (PLANES // EXPANSION)),
                       jnp.bfloat16),                                    # x5s
        ],
        compiler_params=pltpu.CompilerParams(dimension_semantics=("parallel",)),
    )(xk, *prep)

    # pull the valid rows of each fold slot back out (tiny host-side glue)
    blocks = [out_raw[:, n * P4:n * P4 + W4, :] for n in range(nf)]
    out = jnp.stack(blocks, axis=1).reshape(N, W4, H4, OUT_CHANNELS)
    return jnp.transpose(out, (0, 3, 2, 1))          # (N, OUT, H/8, W/8)


# ---------------------------------------------------------------------------
# Pure-JAX reference (mirrors the PyTorch module) and parameter init
# ---------------------------------------------------------------------------
def first_stage_ref(x, params):
    out = x
    for i, (w, b) in enumerate(params):
        K = w.shape[-1]
        pad = (K - 1) // 2
        out = lax.conv_general_dilated(
            out, w, window_strides=(1, 1), padding=((pad, pad), (pad, pad)),
            dimension_numbers=("NCHW", "OIHW", "NCHW"),
            precision=lax.Precision.HIGHEST)
        out = out + b[None, :, None, None]
        if i < 6:
            out = jax.nn.relu(out)
        if i in (0, 1, 2):
            out = lax.reduce_window(out, -jnp.inf, lax.max,
                                    (1, 1, 3, 3), (1, 1, 2, 2),
                                    ((0, 0), (0, 0), (1, 1), (1, 1)))
    return out


def init_params(key):
    defs = [
        (9, 3, PLANES),
        (9, PLANES, PLANES),
        (9, PLANES, PLANES),
        (5, PLANES, PLANES // EXPANSION),
        (9, PLANES // EXPANSION, PLANES * EXPANSION),
        (1, PLANES * EXPANSION, PLANES * EXPANSION),
        (1, PLANES * EXPANSION, OUT_CHANNELS),
    ]
    params = []
    for i, (K, cin, cout) in enumerate(defs):
        kw, kb = jax.random.split(jax.random.fold_in(key, i))
        w = jax.random.normal(kw, (cout, cin, K, K), jnp.float32) / np.sqrt(K * K * cin)
        b = 0.1 * jax.random.normal(kb, (cout,), jnp.float32)
        params.append((w, b))
    return params


if __name__ == "__main__":
    key = jax.random.PRNGKey(0)
    params = init_params(jax.random.fold_in(key, 123))
    # NCHW input, same as the PyTorch module: (2, 3, 16, 64).
    x = jax.random.normal(jax.random.fold_in(key, 7), (2, 3, 16, 64), jnp.float32)

    prep = prepare_params(params, 16)
    out = jax.block_until_ready(first_stage_pallas(x, prep))

    ref = first_stage_ref(x, params)
    np.testing.assert_allclose(np.asarray(out), np.asarray(ref), rtol=5e-2, atol=5e-2)

    print("KERNEL_OK")
</pallas_src>

<mosaic_0001>
module attributes {stable_mosaic.version = 11 : i64} {
  func.func @_first_stage_kernel(%arg0: i32, %arg1: memref<1x160x48xbf16, #tpu.memory_space<vmem>>, %arg2: memref<9x48x128xbf16, #tpu.memory_space<vmem>>, %arg3: memref<9x64x64xbf16, #tpu.memory_space<vmem>>, %arg4: memref<9x32x32xbf16, #tpu.memory_space<vmem>>, %arg5: memref<5x16x4xbf16, #tpu.memory_space<vmem>>, %arg6: memref<9x4x64xbf16, #tpu.memory_space<vmem>>, %arg7: memref<1x64x64xbf16, #tpu.memory_space<vmem>>, %arg8: memref<1x64x8xbf16, #tpu.memory_space<vmem>>, %arg9: memref<1x128xf32, #tpu.memory_space<vmem>>, %arg10: memref<1x64xf32, #tpu.memory_space<vmem>>, %arg11: memref<1x32xf32, #tpu.memory_space<vmem>>, %arg12: memref<1x4xf32, #tpu.memory_space<vmem>>, %arg13: memref<1x64xf32, #tpu.memory_space<vmem>>, %arg14: memref<1x64xf32, #tpu.memory_space<vmem>>, %arg15: memref<1x8xf32, #tpu.memory_space<vmem>>, %arg16: memref<3x128x64xbf16, #tpu.memory_space<vmem>>, %arg17: memref<3x64x32xbf16, #tpu.memory_space<vmem>>, %arg18: memref<3x32x16xbf16, #tpu.memory_space<vmem>>, %arg19: memref<1x32x8xf32, #tpu.memory_space<vmem>>, %arg20: memref<160x128xf32, #tpu.memory_space<vmem>>, %arg21: memref<96x64xf32, #tpu.memory_space<vmem>>, %arg22: memref<64x32xf32, #tpu.memory_space<vmem>>, %arg23: memref<96x64xbf16, #tpu.memory_space<vmem>>, %arg24: memref<64x32xbf16, #tpu.memory_space<vmem>>, %arg25: memref<48x16xbf16, #tpu.memory_space<vmem>>, %arg26: memref<48x4xbf16, #tpu.memory_space<vmem>>) attributes {dimension_semantics = [#tpu.dimension_semantics<parallel>], iteration_bounds = array<i64: 1>, scalar_prefetch = 0 : i64, scratch_operands = 7 : i64, tpu.core_type = #tpu.core_type<tc>, window_params = [{transform_indices = @transform_0, window_bounds = array<i64: 1, 160, 48>}, {pipeline_mode = #tpu.pipeline_mode<synchronous>, transform_indices = @transform_1, window_bounds = array<i64: 9, 48, 128>}, {pipeline_mode = #tpu.pipeline_mode<synchronous>, transform_indices = @transform_2, window_bounds = array<i64: 9, 64, 64>}, {pipeline_mode = #tpu.pipeline_mode<synchronous>, transform_indices = @transform_3, window_bounds = array<i64: 9, 32, 32>}, {pipeline_mode = #tpu.pipeline_mode<synchronous>, transform_indices = @transform_4, window_bounds = array<i64: 5, 16, 4>}, {pipeline_mode = #tpu.pipeline_mode<synchronous>, transform_indices = @transform_5, window_bounds = array<i64: 9, 4, 64>}, {pipeline_mode = #tpu.pipeline_mode<synchronous>, transform_indices = @transform_6, window_bounds = array<i64: 1, 64, 64>}, {pipeline_mode = #tpu.pipeline_mode<synchronous>, transform_indices = @transform_7, window_bounds = array<i64: 1, 64, 8>}, {pipeline_mode = #tpu.pipeline_mode<synchronous>, transform_indices = @transform_8, window_bounds = array<i64: 1, 128>}, {pipeline_mode = #tpu.pipeline_mode<synchronous>, transform_indices = @transform_9, window_bounds = array<i64: 1, 64>}, {pipeline_mode = #tpu.pipeline_mode<synchronous>, transform_indices = @transform_10, window_bounds = array<i64: 1, 32>}, {pipeline_mode = #tpu.pipeline_mode<synchronous>, transform_indices = @transform_11, window_bounds = array<i64: 1, 4>}, {pipeline_mode = #tpu.pipeline_mode<synchronous>, transform_indices = @transform_12, window_bounds = array<i64: 1, 64>}, {pipeline_mode = #tpu.pipeline_mode<synchronous>, transform_indices = @transform_13, window_bounds = array<i64: 1, 64>}, {pipeline_mode = #tpu.pipeline_mode<synchronous>, transform_indices = @transform_14, window_bounds = array<i64: 1, 8>}, {pipeline_mode = #tpu.pipeline_mode<synchronous>, transform_indices = @transform_15, window_bounds = array<i64: 3, 128, 64>}, {pipeline_mode = #tpu.pipeline_mode<synchronous>, transform_indices = @transform_16, window_bounds = array<i64: 3, 64, 32>}, {pipeline_mode = #tpu.pipeline_mode<synchronous>, transform_indices = @transform_17, window_bounds = array<i64: 3, 32, 16>}, {transform_indices = @transform_18, window_bounds = array<i64: 1, 32, 8>}]} {
    %cst = arith.constant 0.000000e+00 : f32
    %0 = vector.broadcast %cst : f32 to vector<8x128xf32>
    %c0 = arith.constant 0 : index
    %c0_0 = arith.constant 0 : index
    %1 = vector.load %arg20[%c0, %c0_0] : memref<160x128xf32, #tpu.memory_space<vmem>>, vector<8x128xf32>
    tpu.vector_store %arg20[%c0, %c0_0], %0 {strides = array<i32>} : memref<160x128xf32, #tpu.memory_space<vmem>>, vector<8x128xf32>,
    %c72 = arith.constant 72 : index
    %c0_1 = arith.constant 0 : index
    %2 = vector.load %arg20[%c72, %c0_1] : memref<160x128xf32, #tpu.memory_space<vmem>>, vector<8x128xf32>
    tpu.vector_store %arg20[%c72, %c0_1], %0 {strides = array<i32>} : memref<160x128xf32, #tpu.memory_space<vmem>>, vector<8x128xf32>,
    %c80 = arith.constant 80 : index
    %c0_2 = arith.constant 0 : index
    %3 = vector.load %arg20[%c80, %c0_2] : memref<160x128xf32, #tpu.memory_space<vmem>>, vector<8x128xf32>
    tpu.vector_store %arg20[%c80, %c0_2], %0 {strides = array<i32>} : memref<160x128xf32, #tpu.memory_space<vmem>>, vector<8x128xf32>,
    %c152 = arith.constant 152 : index
    %c0_3 = arith.constant 0 : index
    %4 = vector.load %arg20[%c152, %c0_3] : memref<160x128xf32, #tpu.memory_space<vmem>>, vector<8x128xf32>
    tpu.vector_store %arg20[%c152, %c0_3], %0 {strides = array<i32>} : memref<160x128xf32, #tpu.memory_space<vmem>>, vector<8x128xf32>,
    %cst_4 = arith.constant 0.000000e+00 : f32
    %5 = vector.broadcast %cst_4 : f32 to vector<8x64xf32>
    %c0_5 = arith.constant 0 : index
    %c0_6 = arith.constant 0 : index
    %6 = vector.load %arg21[%c0_5, %c0_6] : memref<96x64xf32, #tpu.memory_space<vmem>>, vector<8x64xf32>
    tpu.vector_store %arg21[%c0_5, %c0_6], %5 {strides = array<i32>} : memref<96x64xf32, #tpu.memory_space<vmem>>, vector<8x64xf32>,
    %c40 = arith.constant 40 : index
    %c0_7 = arith.constant 0 : index
    %7 = vector.load %arg21[%c40, %c0_7] : memref<96x64xf32, #tpu.memory_space<vmem>>, vector<8x64xf32>
    tpu.vector_store %arg21[%c40, %c0_7], %5 {strides = array<i32>} : memref<96x64xf32, #tpu.memory_space<vmem>>, vector<8x64xf32>,
    %c48 = arith.constant 48 : index
    %c0_8 = arith.constant 0 : index
    %8 = vector.load %arg21[%c48, %c0_8] : memref<96x64xf32, #tpu.memory_space<vmem>>, vector<8x64xf32>
    tpu.vector_store %arg21[%c48, %c0_8], %5 {strides = array<i32>} : memref<96x64xf32, #tpu.memory_space<vmem>>, vector<8x64xf32>,
    %c88 = arith.constant 88 : index
    %c0_9 = arith.constant 0 : index
    %9 = vector.load %arg21[%c88, %c0_9] : memref<96x64xf32, #tpu.memory_space<vmem>>, vector<8x64xf32>
    tpu.vector_store %arg21[%c88, %c0_9], %5 {strides = array<i32>} : memref<96x64xf32, #tpu.memory_space<vmem>>, vector<8x64xf32>,
    %cst_10 = arith.constant 0.000000e+00 : f32
    %10 = vector.broadcast %cst_10 : f32 to vector<8x32xf32>
    %c0_11 = arith.constant 0 : index
    %c0_12 = arith.constant 0 : index
    %11 = vector.load %arg22[%c0_11, %c0_12] : memref<64x32xf32, #tpu.memory_space<vmem>>, vector<8x32xf32>
    tpu.vector_store %arg22[%c0_11, %c0_12], %10 {strides = array<i32>} : memref<64x32xf32, #tpu.memory_space<vmem>>, vector<8x32xf32>,
    %c24 = arith.constant 24 : index
    %c0_13 = arith.constant 0 : index
    %12 = vector.load %arg22[%c24, %c0_13] : memref<64x32xf32, #tpu.memory_space<vmem>>, vector<8x32xf32>
    tpu.vector_store %arg22[%c24, %c0_13], %10 {strides = array<i32>} : memref<64x32xf32, #tpu.memory_space<vmem>>, vector<8x32xf32>,
    %c32 = arith.constant 32 : index
    %c0_14 = arith.constant 0 : index
    %13 = vector.load %arg22[%c32, %c0_14] : memref<64x32xf32, #tpu.memory_space<vmem>>, vector<8x32xf32>
    tpu.vector_store %arg22[%c32, %c0_14], %10 {strides = array<i32>} : memref<64x32xf32, #tpu.memory_space<vmem>>, vector<8x32xf32>,
    %c56 = arith.constant 56 : index
    %c0_15 = arith.constant 0 : index
    %14 = vector.load %arg22[%c56, %c0_15] : memref<64x32xf32, #tpu.memory_space<vmem>>, vector<8x32xf32>
    tpu.vector_store %arg22[%c56, %c0_15], %10 {strides = array<i32>} : memref<64x32xf32, #tpu.memory_space<vmem>>, vector<8x32xf32>,
    %cst_16 = arith.constant 0.000000e+00 : bf16
    %15 = vector.broadcast %cst_16 : bf16 to vector<8x64xbf16>
    %c0_17 = arith.constant 0 : index
    %c0_18 = arith.constant 0 : index
    %16 = vector.load %arg23[%c0_17, %c0_18] : memref<96x64xbf16, #tpu.memory_space<vmem>>, vector<8x64xbf16>
    tpu.vector_store %arg23[%c0_17, %c0_18], %15 {strides = array<i32>} : memref<96x64xbf16, #tpu.memory_space<vmem>>, vector<8x64xbf16>,
    %c40_19 = arith.constant 40 : index
    %c0_20 = arith.constant 0 : index
    %17 = vector.load %arg23[%c40_19, %c0_20] : memref<96x64xbf16, #tpu.memory_space<vmem>>, vector<8x64xbf16>
    tpu.vector_store %arg23[%c40_19, %c0_20], %15 {strides = array<i32>} : memref<96x64xbf16, #tpu.memory_space<vmem>>, vector<8x64xbf16>,
    %c48_21 = arith.constant 48 : index
    %c0_22 = arith.constant 0 : index
    %18 = vector.load %arg23[%c48_21, %c0_22] : memref<96x64xbf16, #tpu.memory_space<vmem>>, vector<8x64xbf16>
    tpu.vector_store %arg23[%c48_21, %c0_22], %15 {strides = array<i32>} : memref<96x64xbf16, #tpu.memory_space<vmem>>, vector<8x64xbf16>,
    %c88_23 = arith.constant 88 : index
    %c0_24 = arith.constant 0 : index
    %19 = vector.load %arg23[%c88_23, %c0_24] : memref<96x64xbf16, #tpu.memory_space<vmem>>, vector<8x64xbf16>
    tpu.vector_store %arg23[%c88_23, %c0_24], %15 {strides = array<i32>} : memref<96x64xbf16, #tpu.memory_space<vmem>>, vector<8x64xbf16>,
    %cst_25 = arith.constant 0.000000e+00 : bf16
    %20 = vector.broadcast %cst_25 : bf16 to vector<8x32xbf16>
    %c0_26 = arith.constant 0 : index
    %c0_27 = arith.constant 0 : index
    %21 = vector.load %arg24[%c0_26, %c0_27] : memref<64x32xbf16, #tpu.memory_space<vmem>>, vector<8x32xbf16>
    tpu.vector_store %arg24[%c0_26, %c0_27], %20 {strides = array<i32>} : memref<64x32xbf16, #tpu.memory_space<vmem>>, vector<8x32xbf16>,
    %c24_28 = arith.constant 24 : index
    %c0_29 = arith.constant 0 : index
    %22 = vector.load %arg24[%c24_28, %c0_29] : memref<64x32xbf16, #tpu.memory_space<vmem>>, vector<8x32xbf16>
    tpu.vector_store %arg24[%c24_28, %c0_29], %20 {strides = array<i32>} : memref<64x32xbf16, #tpu.memory_space<vmem>>, vector<8x32xbf16>,
    %c32_30 = arith.constant 32 : index
    %c0_31 = arith.constant 0 : index
    %23 = vector.load %arg24[%c32_30, %c0_31] : memref<64x32xbf16, #tpu.memory_space<vmem>>, vector<8x32xbf16>
    tpu.vector_store %arg24[%c32_30, %c0_31], %20 {strides = array<i32>} : memref<64x32xbf16, #tpu.memory_space<vmem>>, vector<8x32xbf16>,
    %c56_32 = arith.constant 56 : index
    %c0_33 = arith.constant 0 : index
    %24 = vector.load %arg24[%c56_32, %c0_33] : memref<64x32xbf16, #tpu.memory_space<vmem>>, vector<8x32xbf16>
    tpu.vector_store %arg24[%c56_32, %c0_33], %20 {strides = array<i32>} : memref<64x32xbf16, #tpu.memory_space<vmem>>, vector<8x32xbf16>,
    %cst_34 = arith.constant 0.000000e+00 : bf16
    %25 = vector.broadcast %cst_34 : bf16 to vector<8x16xbf16>
    %c0_35 = arith.constant 0 : index
    %c0_36 = arith.constant 0 : index
    %26 = vector.load %arg25[%c0_35, %c0_36] : memref<48x16xbf16, #tpu.memory_space<vmem>>, vector<8x16xbf16>
    tpu.vector_store %arg25[%c0_35, %c0_36], %25 {strides = array<i32>} : memref<48x16xbf16, #tpu.memory_space<vmem>>, vector<8x16xbf16>,
    %c16 = arith.constant 16 : index
    %c0_37 = arith.constant 0 : index
    %27 = vector.load %arg25[%c16, %c0_37] : memref<48x16xbf16, #tpu.memory_space<vmem>>, vector<8x16xbf16>
    tpu.vector_store %arg25[%c16, %c0_37], %25 {strides = array<i32>} : memref<48x16xbf16, #tpu.memory_space<vmem>>, vector<8x16xbf16>,
    %c24_38 = arith.constant 24 : index
    %c0_39 = arith.constant 0 : index
    %28 = vector.load %arg25[%c24_38, %c0_39] : memref<48x16xbf16, #tpu.memory_space<vmem>>, vector<8x16xbf16>
    tpu.vector_store %arg25[%c24_38, %c0_39], %25 {strides = array<i32>} : memref<48x16xbf16, #tpu.memory_space<vmem>>, vector<8x16xbf16>,
    %c40_40 = arith.constant 40 : index
    %c0_41 = arith.constant 0 : index
    %29 = vector.load %arg25[%c40_40, %c0_41] : memref<48x16xbf16, #tpu.memory_space<vmem>>, vector<8x16xbf16>
    tpu.vector_store %arg25[%c40_40, %c0_41], %25 {strides = array<i32>} : memref<48x16xbf16, #tpu.memory_space<vmem>>, vector<8x16xbf16>,
    %cst_42 = arith.constant 0.000000e+00 : bf16
    %30 = vector.broadcast %cst_42 : bf16 to vector<8x4xbf16>
    %c0_43 = arith.constant 0 : index
    %c0_44 = arith.constant 0 : index
    %31 = vector.load %arg26[%c0_43, %c0_44] : memref<48x4xbf16, #tpu.memory_space<vmem>>, vector<8x4xbf16>
    tpu.vector_store %arg26[%c0_43, %c0_44], %30 {strides = array<i32>} : memref<48x4xbf16, #tpu.memory_space<vmem>>, vector<8x4xbf16>,
    %c16_45 = arith.constant 16 : index
    %c0_46 = arith.constant 0 : index
    %32 = vector.load %arg26[%c16_45, %c0_46] : memref<48x4xbf16, #tpu.memory_space<vmem>>, vector<8x4xbf16>
    tpu.vector_store %arg26[%c16_45, %c0_46], %30 {strides = array<i32>} : memref<48x4xbf16, #tpu.memory_space<vmem>>, vector<8x4xbf16>,
    %c24_47 = arith.constant 24 : index
    %c0_48 = arith.constant 0 : index
    %33 = vector.load %arg26[%c24_47, %c0_48] : memref<48x4xbf16, #tpu.memory_space<vmem>>, vector<8x4xbf16>
    tpu.vector_store %arg26[%c24_47, %c0_48], %30 {strides = array<i32>} : memref<48x4xbf16, #tpu.memory_space<vmem>>, vector<8x4xbf16>,
    %c40_49 = arith.constant 40 : index
    %c0_50 = arith.constant 0 : index
    %34 = vector.load %arg26[%c40_49, %c0_50] : memref<48x4xbf16, #tpu.memory_space<vmem>>, vector<8x4xbf16>
    tpu.vector_store %arg26[%c40_49, %c0_50], %30 {strides = array<i32>} : memref<48x4xbf16, #tpu.memory_space<vmem>>, vector<8x4xbf16>,
    %c0_51 = arith.constant 0 : index
    %c4 = arith.constant 4 : index
    %c0_52 = arith.constant 0 : index
    %35 = vector.load %arg1[%c0_51, %c4, %c0_52] : memref<1x160x48xbf16, #tpu.memory_space<vmem>>, vector<1x144x48xbf16>
    %36 = vector.shape_cast %35 : vector<1x144x48xbf16> to vector<144x48xbf16>
    %c0_53 = arith.constant 0 : index
    %c0_54 = arith.constant 0 : index
    %c0_55 = arith.constant 0 : index
    %37 = vector.load %arg2[%c0_53, %c0_54, %c0_55] : memref<9x48x128xbf16, #tpu.memory_space<vmem>>, vector<1x48x128xbf16>
    %38 = vector.shape_cast %37 : vector<1x48x128xbf16> to vector<48x128xbf16>
    %cst_56 = arith.constant dense<0.000000e+00> : vector<144x128xf32>
    %39 = tpu.matmul %36, %38, %cst_56 {dimension_numbers = #tpu.dot_dimension_numbers<[1], [0], [0], [1], [0, 0, 1, 1], [], []>} : vector<144x48xbf16>, vector<48x128xbf16>, vector<144x128xf32> -> vector<144x128xf32>
    %c0_57 = arith.constant 0 : index
    %c5 = arith.constant 5 : index
    %c0_58 = arith.constant 0 : index
    %40 = vector.load %arg1[%c0_57, %c5, %c0_58] : memref<1x160x48xbf16, #tpu.memory_space<vmem>>, vector<1x144x48xbf16>
    %41 = vector.shape_cast %40 : vector<1x144x48xbf16> to vector<144x48xbf16>
    %c1 = arith.constant 1 : index
    %c0_59 = arith.constant 0 : index
    %c0_60 = arith.constant 0 : index
    %42 = vector.load %arg2[%c1, %c0_59, %c0_60] : memref<9x48x128xbf16, #tpu.memory_space<vmem>>, vector<1x48x128xbf16>
    %43 = vector.shape_cast %42 : vector<1x48x128xbf16> to vector<48x128xbf16>
    %cst_61 = arith.constant dense<0.000000e+00> : vector<144x128xf32>
    %44 = tpu.matmul %41, %43, %cst_61 {dimension_numbers = #tpu.dot_dimension_numbers<[1], [0], [0], [1], [0, 0, 1, 1], [], []>} : vector<144x48xbf16>, vector<48x128xbf16>, vector<144x128xf32> -> vector<144x128xf32>
    %c0_62 = arith.constant 0 : index
    %c6 = arith.constant 6 : index
    %c0_63 = arith.constant 0 : index
    %45 = vector.load %arg1[%c0_62, %c6, %c0_63] : memref<1x160x48xbf16, #tpu.memory_space<vmem>>, vector<1x144x48xbf16>
    %46 = vector.shape_cast %45 : vector<1x144x48xbf16> to vector<144x48xbf16>
    %c2 = arith.constant 2 : index
    %c0_64 = arith.constant 0 : index
    %c0_65 = arith.constant 0 : index
    %47 = vector.load %arg2[%c2, %c0_64, %c0_65] : memref<9x48x128xbf16, #tpu.memory_space<vmem>>, vector<1x48x128xbf16>
    %48 = vector.shape_cast %47 : vector<1x48x128xbf16> to vector<48x128xbf16>
    %cst_66 = arith.constant dense<0.000000e+00> : vector<144x128xf32>
    %49 = tpu.matmul %46, %48, %cst_66 {dimension_numbers = #tpu.dot_dimension_numbers<[1], [0], [0], [1], [0, 0, 1, 1], [], []>} : vector<144x48xbf16>, vector<48x128xbf16>, vector<144x128xf32> -> vector<144x128xf32>
    %c0_67 = arith.constant 0 : index
    %c7 = arith.constant 7 : index
    %c0_68 = arith.constant 0 : index
    %50 = vector.load %arg1[%c0_67, %c7, %c0_68] : memref<1x160x48xbf16, #tpu.memory_space<vmem>>, vector<1x144x48xbf16>
    %51 = vector.shape_cast %50 : vector<1x144x48xbf16> to vector<144x48xbf16>
    %c3 = arith.constant 3 : index
    %c0_69 = arith.constant 0 : index
    %c0_70 = arith.constant 0 : index
    %52 = vector.load %arg2[%c3, %c0_69, %c0_70] : memref<9x48x128xbf16, #tpu.memory_space<vmem>>, vector<1x48x128xbf16>
    %53 = vector.shape_cast %52 : vector<1x48x128xbf16> to vector<48x128xbf16>
    %cst_71 = arith.constant dense<0.000000e+00> : vector<144x128xf32>
    %54 = tpu.matmul %51, %53, %cst_71 {dimension_numbers = #tpu.dot_dimension_numbers<[1], [0], [0], [1], [0, 0, 1, 1], [], []>} : vector<144x48xbf16>, vector<48x128xbf16>, vector<144x128xf32> -> vector<144x128xf32>
    %c0_72 = arith.constant 0 : index
    %c8 = arith.constant 8 : index
    %c0_73 = arith.constant 0 : index
    %55 = vector.load %arg1[%c0_72, %c8, %c0_73] : memref<1x160x48xbf16, #tpu.memory_space<vmem>>, vector<1x144x48xbf16>
    %56 = vector.shape_cast %55 : vector<1x144x48xbf16> to vector<144x48xbf16>
    %c4_74 = arith.constant 4 : index
    %c0_75 = arith.constant 0 : index
    %c0_76 = arith.constant 0 : index
    %57 = vector.load %arg2[%c4_74, %c0_75, %c0_76] : memref<9x48x128xbf16, #tpu.memory_space<vmem>>, vector<1x48x128xbf16>
    %58 = vector.shape_cast %57 : vector<1x48x128xbf16> to vector<48x128xbf16>
    %cst_77 = arith.constant dense<0.000000e+00> : vector<144x128xf32>
    %59 = tpu.matmul %56, %58, %cst_77 {dimension_numbers = #tpu.dot_dimension_numbers<[1], [0], [0], [1], [0, 0, 1, 1], [], []>} : vector<144x48xbf16>, vector<48x128xbf16>, vector<144x128xf32> -> vector<144x128xf32>
    %c0_78 = arith.constant 0 : index
    %c9 = arith.constant 9 : index
    %c0_79 = arith.constant 0 : index
    %60 = vector.load %arg1[%c0_78, %c9, %c0_79] : memref<1x160x48xbf16, #tpu.memory_space<vmem>>, vector<1x144x48xbf16>
    %61 = vector.shape_cast %60 : vector<1x144x48xbf16> to vector<144x48xbf16>
    %c5_80 = arith.constant 5 : index
    %c0_81 = arith.constant 0 : index
    %c0_82 = arith.constant 0 : index
    %62 = vector.load %arg2[%c5_80, %c0_81, %c0_82] : memref<9x48x128xbf16, #tpu.memory_space<vmem>>, vector<1x48x128xbf16>
    %63 = vector.shape_cast %62 : vector<1x48x128xbf16> to vector<48x128xbf16>
    %cst_83 = arith.constant dense<0.000000e+00> : vector<144x128xf32>
    %64 = tpu.matmul %61, %63, %cst_83 {dimension_numbers = #tpu.dot_dimension_numbers<[1], [0], [0], [1], [0, 0, 1, 1], [], []>} : vector<144x48xbf16>, vector<48x128xbf16>, vector<144x128xf32> -> vector<144x128xf32>
    %c0_84 = arith.constant 0 : index
    %c10 = arith.constant 10 : index
    %c0_85 = arith.constant 0 : index
    %65 = vector.load %arg1[%c0_84, %c10, %c0_85] : memref<1x160x48xbf16, #tpu.memory_space<vmem>>, vector<1x144x48xbf16>
    %66 = vector.shape_cast %65 : vector<1x144x48xbf16> to vector<144x48xbf16>
    %c6_86 = arith.constant 6 : index
    %c0_87 = arith.constant 0 : index
    %c0_88 = arith.constant 0 : index
    %67 = vector.load %arg2[%c6_86, %c0_87, %c0_88] : memref<9x48x128xbf16, #tpu.memory_space<vmem>>, vector<1x48x128xbf16>
    %68 = vector.shape_cast %67 : vector<1x48x128xbf16> to vector<48x128xbf16>
    %cst_89 = arith.constant dense<0.000000e+00> : vector<144x128xf32>
    %69 = tpu.matmul %66, %68, %cst_89 {dimension_numbers = #tpu.dot_dimension_numbers<[1], [0], [0], [1], [0, 0, 1, 1], [], []>} : vector<144x48xbf16>, vector<48x128xbf16>, vector<144x128xf32> -> vector<144x128xf32>
    %c0_90 = arith.constant 0 : index
    %c11 = arith.constant 11 : index
    %c0_91 = arith.constant 0 : index
    %70 = vector.load %arg1[%c0_90, %c11, %c0_91] : memref<1x160x48xbf16, #tpu.memory_space<vmem>>, vector<1x144x48xbf16>
    %71 = vector.shape_cast %70 : vector<1x144x48xbf16> to vector<144x48xbf16>
    %c7_92 = arith.constant 7 : index
    %c0_93 = arith.constant 0 : index
    %c0_94 = arith.constant 0 : index
    %72 = vector.load %arg2[%c7_92, %c0_93, %c0_94] : memref<9x48x128xbf16, #tpu.memory_space<vmem>>, vector<1x48x128xbf16>
    %73 = vector.shape_cast %72 : vector<1x48x128xbf16> to vector<48x128xbf16>
    %cst_95 = arith.constant dense<0.000000e+00> : vector<144x128xf32>
    %74 = tpu.matmul %71, %73, %cst_95 {dimension_numbers = #tpu.dot_dimension_numbers<[1], [0], [0], [1], [0, 0, 1, 1], [], []>} : vector<144x48xbf16>, vector<48x128xbf16>, vector<144x128xf32> -> vector<144x128xf32>
    %c0_96 = arith.constant 0 : index
    %c12 = arith.constant 12 : index
    %c0_97 = arith.constant 0 : index
    %75 = vector.load %arg1[%c0_96, %c12, %c0_97] : memref<1x160x48xbf16, #tpu.memory_space<vmem>>, vector<1x144x48xbf16>
    %76 = vector.shape_cast %75 : vector<1x144x48xbf16> to vector<144x48xbf16>
    %c8_98 = arith.constant 8 : index
    %c0_99 = arith.constant 0 : index
    %c0_100 = arith.constant 0 : index
    %77 = vector.load %arg2[%c8_98, %c0_99, %c0_100] : memref<9x48x128xbf16, #tpu.memory_space<vmem>>, vector<1x48x128xbf16>
    %78 = vector.shape_cast %77 : vector<1x48x128xbf16> to vector<48x128xbf16>
    %cst_101 = arith.constant dense<0.000000e+00> : vector<144x128xf32>
    %79 = tpu.matmul %76, %78, %cst_101 {dimension_numbers = #tpu.dot_dimension_numbers<[1], [0], [0], [1], [0, 0, 1, 1], [], []>} : vector<144x48xbf16>, vector<48x128xbf16>, vector<144x128xf32> -> vector<144x128xf32>
    %80 = arith.addf %39, %44 : vector<144x128xf32>
    %81 = arith.addf %49, %54 : vector<144x128xf32>
    %82 = arith.addf %59, %64 : vector<144x128xf32>
    %83 = arith.addf %69, %74 : vector<144x128xf32>
    %84 = arith.addf %80, %81 : vector<144x128xf32>
    %85 = arith.addf %82, %83 : vector<144x128xf32>
    %86 = arith.addf %84, %85 : vector<144x128xf32>
    %87 = arith.addf %86, %79 : vector<144x128xf32>
    %c0_102 = arith.constant 0 : index
    %c0_103 = arith.constant 0 : index
    %88 = vector.load %arg9[%c0_102, %c0_103] : memref<1x128xf32, #tpu.memory_space<vmem>>, vector<1x128xf32>
    %89 = vector.broadcast %88 : vector<1x128xf32> to vector<144x128xf32>
    %90 = arith.addf %87, %89 : vector<144x128xf32>
    %cst_104 = arith.constant 0.000000e+00 : f32
    %91 = vector.broadcast %cst_104 : f32 to vector<144x128xf32>
    %92 = arith.maximumf %90, %91 : vector<144x128xf32>
    %93 = vector.extract_strided_slice %92 {offsets = [0, 0], sizes = [64, 128], strides = [1, 1]} : vector<144x128xf32> to vector<64x128xf32>
    %c8_105 = arith.constant 8 : index
    %c0_106 = arith.constant 0 : index
    %94 = vector.load %arg20[%c8_105, %c0_106] : memref<160x128xf32, #tpu.memory_space<vmem>>, vector<64x128xf32>
    tpu.vector_store %arg20[%c8_105, %c0_106], %93 {strides = array<i32>} : memref<160x128xf32, #tpu.memory_space<vmem>>, vector<64x128xf32>,
    %95 = vector.extract_strided_slice %92 {offsets = [80, 0], sizes = [64, 128], strides = [1, 1]} : vector<144x128xf32> to vector<64x128xf32>
    %c88_107 = arith.constant 88 : index
    %c0_108 = arith.constant 0 : index
    %96 = vector.load %arg20[%c88_107, %c0_108] : memref<160x128xf32, #tpu.memory_space<vmem>>, vector<64x128xf32>
    tpu.vector_store %arg20[%c88_107, %c0_108], %95 {strides = array<i32>} : memref<160x128xf32, #tpu.memory_space<vmem>>, vector<64x128xf32>,
    %c7_109 = arith.constant 7 : index
    %c0_110 = arith.constant 0 : index
    %97 = tpu.strided_load %arg20[%c7_109, %c0_110] {strides = array<i32: 2, 1>} : memref<160x128xf32, #tpu.memory_space<vmem>>, vector<72x128xf32>
    %c8_111 = arith.constant 8 : index
    %c0_112 = arith.constant 0 : index
    %98 = tpu.strided_load %arg20[%c8_111, %c0_112] {strides = array<i32: 2, 1>} : memref<160x128xf32, #tpu.memory_space<vmem>>, vector<72x128xf32>
    %c9_113 = arith.constant 9 : index
    %c0_114 = arith.constant 0 : index
    %99 = tpu.strided_load %arg20[%c9_113, %c0_114] {strides = array<i32: 2, 1>} : memref<160x128xf32, #tpu.memory_space<vmem>>, vector<72x128xf32>
    %100 = arith.maximumf %97, %98 : vector<72x128xf32>
    %101 = arith.maximumf %100, %99 : vector<72x128xf32>
    %102 = arith.truncf %101 : vector<72x128xf32> to vector<72x128xbf16>
    %c0_115 = arith.constant 0 : index
    %c0_116 = arith.constant 0 : index
    %c0_117 = arith.constant 0 : index
    %103 = vector.load %arg16[%c0_115, %c0_116, %c0_117] : memref<3x128x64xbf16, #tpu.memory_space<vmem>>, vector<1x128x64xbf16>
    %104 = vector.shape_cast %103 : vector<1x128x64xbf16> to vector<128x64xbf16>
    %cst_118 = arith.constant dense<0.000000e+00> : vector<72x64xf32>
    %105 = tpu.matmul %102, %104, %cst_118 {dimension_numbers = #tpu.dot_dimension_numbers<[1], [0], [0], [1], [0, 0, 1, 1], [], []>} : vector<72x128xbf16>, vector<128x64xbf16>, vector<72x64xf32> -> vector<72x64xf32>
    %c1_119 = arith.constant 1 : index
    %c0_120 = arith.constant 0 : index
    %c0_121 = arith.constant 0 : index
    %106 = vector.load %arg16[%c1_119, %c0_120, %c0_121] : memref<3x128x64xbf16, #tpu.memory_space<vmem>>, vector<1x128x64xbf16>
    %107 = vector.shape_cast %106 : vector<1x128x64xbf16> to vector<128x64xbf16>
    %cst_122 = arith.constant dense<0.000000e+00> : vector<72x64xf32>
    %108 = tpu.matmul %102, %107, %cst_122 {dimension_numbers = #tpu.dot_dimension_numbers<[1], [0], [0], [1], [0, 0, 1, 1], [], []>} : vector<72x128xbf16>, vector<128x64xbf16>, vector<72x64xf32> -> vector<72x64xf32>
    %109 = arith.maximumf %105, %108 : vector<72x64xf32>
    %c2_123 = arith.constant 2 : index
    %c0_124 = arith.constant 0 : index
    %c0_125 = arith.constant 0 : index
    %110 = vector.load %arg16[%c2_123, %c0_124, %c0_125] : memref<3x128x64xbf16, #tpu.memory_space<vmem>>, vector<1x128x64xbf16>
    %111 = vector.shape_cast %110 : vector<1x128x64xbf16> to vector<128x64xbf16>
    %cst_126 = arith.constant dense<0.000000e+00> : vector<72x64xf32>
    %112 = tpu.matmul %102, %111, %cst_126 {dimension_numbers = #tpu.dot_dimension_numbers<[1], [0], [0], [1], [0, 0, 1, 1], [], []>} : vector<72x128xbf16>, vector<128x64xbf16>, vector<72x64xf32> -> vector<72x64xf32>
    %113 = arith.maximumf %109, %112 : vector<72x64xf32>
    %114 = vector.extract_strided_slice %113 {offsets = [0, 0], sizes = [32, 64], strides = [1, 1]} : vector<72x64xf32> to vector<32x64xf32>
    %115 = arith.truncf %114 : vector<32x64xf32> to vector<32x64xbf16>
    %c8_127 = arith.constant 8 : index
    %c0_128 = arith.constant 0 : index
    %116 = vector.load %arg23[%c8_127, %c0_128] : memref<96x64xbf16, #tpu.memory_space<vmem>>, vector<32x64xbf16>
    tpu.vector_store %arg23[%c8_127, %c0_128], %115 {strides = array<i32>} : memref<96x64xbf16, #tpu.memory_space<vmem>>, vector<32x64xbf16>,
    %117 = vector.extract_strided_slice %113 {offsets = [40, 0], sizes = [32, 64], strides = [1, 1]} : vector<72x64xf32> to vector<32x64xf32>
    %118 = arith.truncf %117 : vector<32x64xf32> to vector<32x64xbf16>
    %c56_129 = arith.constant 56 : index
    %c0_130 = arith.constant 0 : index
    %119 = vector.load %arg23[%c56_129, %c0_130] : memref<96x64xbf16, #tpu.memory_space<vmem>>, vector<32x64xbf16>
    tpu.vector_store %arg23[%c56_129, %c0_130], %118 {strides = array<i32>} : memref<96x64xbf16, #tpu.memory_space<vmem>>, vector<32x64xbf16>,
    %c4_131 = arith.constant 4 : index
    %c0_132 = arith.constant 0 : index
    %120 = vector.load %arg23[%c4_131, %c0_132] : memref<96x64xbf16, #tpu.memory_space<vmem>>, vector<80x64xbf16>
    %c0_133 = arith.constant 0 : index
    %c0_134 = arith.constant 0 : index
    %c0_135 = arith.constant 0 : index
    %121 = vector.load %arg3[%c0_133, %c0_134, %c0_135] : memref<9x64x64xbf16, #tpu.memory_space<vmem>>, vector<1x64x64xbf16>
    %122 = vector.shape_cast %121 : vector<1x64x64xbf16> to vector<64x64xbf16>
    %cst_136 = arith.constant dense<0.000000e+00> : vector<80x64xf32>
    %123 = tpu.matmul %120, %122, %cst_136 {dimension_numbers = #tpu.dot_dimension_numbers<[1], [0], [0], [1], [0, 0, 1, 1], [], []>} : vector<80x64xbf16>, vector<64x64xbf16>, vector<80x64xf32> -> vector<80x64xf32>
    %c5_137 = arith.constant 5 : index
    %c0_138 = arith.constant 0 : index
    %124 = vector.load %arg23[%c5_137, %c0_138] : memref<96x64xbf16, #tpu.memory_space<vmem>>, vector<80x64xbf16>
    %c1_139 = arith.constant 1 : index
    %c0_140 = arith.constant 0 : index
    %c0_141 = arith.constant 0 : index
    %125 = vector.load %arg3[%c1_139, %c0_140, %c0_141] : memref<9x64x64xbf16, #tpu.memory_space<vmem>>, vector<1x64x64xbf16>
    %126 = vector.shape_cast %125 : vector<1x64x64xbf16> to vector<64x64xbf16>
    %cst_142 = arith.constant dense<0.000000e+00> : vector<80x64xf32>
    %127 = tpu.matmul %124, %126, %cst_142 {dimension_numbers = #tpu.dot_dimension_numbers<[1], [0], [0], [1], [0, 0, 1, 1], [], []>} : vector<80x64xbf16>, vector<64x64xbf16>, vector<80x64xf32> -> vector<80x64xf32>
    %c6_143 = arith.constant 6 : index
    %c0_144 = arith.constant 0 : index
    %128 = vector.load %arg23[%c6_143, %c0_144] : memref<96x64xbf16, #tpu.memory_space<vmem>>, vector<80x64xbf16>
    %c2_145 = arith.constant 2 : index
    %c0_146 = arith.constant 0 : index
    %c0_147 = arith.constant 0 : index
    %129 = vector.load %arg3[%c2_145, %c0_146, %c0_147] : memref<9x64x64xbf16, #tpu.memory_space<vmem>>, vector<1x64x64xbf16>
    %130 = vector.shape_cast %129 : vector<1x64x64xbf16> to vector<64x64xbf16>
    %cst_148 = arith.constant dense<0.000000e+00> : vector<80x64xf32>
    %131 = tpu.matmul %128, %130, %cst_148 {dimension_numbers = #tpu.dot_dimension_numbers<[1], [0], [0], [1], [0, 0, 1, 1], [], []>} : vector<80x64xbf16>, vector<64x64xbf16>, vector<80x64xf32> -> vector<80x64xf32>
    %c7_149 = arith.constant 7 : index
    %c0_150 = arith.constant 0 : index
    %132 = vector.load %arg23[%c7_149, %c0_150] : memref<96x64xbf16, #tpu.memory_space<vmem>>, vector<80x64xbf16>
    %c3_151 = arith.constant 3 : index
    %c0_152 = arith.constant 0 : index
    %c0_153 = arith.constant 0 : index
    %133 = vector.load %arg3[%c3_151, %c0_152, %c0_153] : memref<9x64x64xbf16, #tpu.memory_space<vmem>>, vector<1x64x64xbf16>
    %134 = vector.shape_cast %133 : vector<1x64x64xbf16> to vector<64x64xbf16>
    %cst_154 = arith.constant dense<0.000000e+00> : vector<80x64xf32>
    %135 = tpu.matmul %132, %134, %cst_154 {dimension_numbers = #tpu.dot_dimension_numbers<[1], [0], [0], [1], [0, 0, 1, 1], [], []>} : vector<80x64xbf16>, vector<64x64xbf16>, vector<80x64xf32> -> vector<80x64xf32>
    %c8_155 = arith.constant 8 : index
    %c0_156 = arith.constant 0 : index
    %136 = vector.load %arg23[%c8_155, %c0_156] : memref<96x64xbf16, #tpu.memory_space<vmem>>, vector<80x64xbf16>
    %c4_157 = arith.constant 4 : index
    %c0_158 = arith.constant 0 : index
    %c0_159 = arith.constant 0 : index
    %137 = vector.load %arg3[%c4_157, %c0_158, %c0_159] : memref<9x64x64xbf16, #tpu.memory_space<vmem>>, vector<1x64x64xbf16>
    %138 = vector.shape_cast %137 : vector<1x64x64xbf16> to vector<64x64xbf16>
    %cst_160 = arith.constant dense<0.000000e+00> : vector<80x64xf32>
    %139 = tpu.matmul %136, %138, %cst_160 {dimension_numbers = #tpu.dot_dimension_numbers<[1], [0], [0], [1], [0, 0, 1, 1], [], []>} : vector<80x64xbf16>, vector<64x64xbf16>, vector<80x64xf32> -> vector<80x64xf32>
    %c9_161 = arith.constant 9 : index
    %c0_162 = arith.constant 0 : index
    %140 = vector.load %arg23[%c9_161, %c0_162] : memref<96x64xbf16, #tpu.memory_space<vmem>>, vector<80x64xbf16>
    %c5_163 = arith.constant 5 : index
    %c0_164 = arith.constant 0 : index
    %c0_165 = arith.constant 0 : index
    %141 = vector.load %arg3[%c5_163, %c0_164, %c0_165] : memref<9x64x64xbf16, #tpu.memory_space<vmem>>, vector<1x64x64xbf16>
    %142 = vector.shape_cast %141 : vector<1x64x64xbf16> to vector<64x64xbf16>
    %cst_166 = arith.constant dense<0.000000e+00> : vector<80x64xf32>
    %143 = tpu.matmul %140, %142, %cst_166 {dimension_numbers = #tpu.dot_dimension_numbers<[1], [0], [0], [1], [0, 0, 1, 1], [], []>} : vector<80x64xbf16>, vector<64x64xbf16>, vector<80x64xf32> -> vector<80x64xf32>
    %c10_167 = arith.constant 10 : index
    %c0_168 = arith.constant 0 : index
    %144 = vector.load %arg23[%c10_167, %c0_168] : memref<96x64xbf16, #tpu.memory_space<vmem>>, vector<80x64xbf16>
    %c6_169 = arith.constant 6 : index
    %c0_170 = arith.constant 0 : index
    %c0_171 = arith.constant 0 : index
    %145 = vector.load %arg3[%c6_169, %c0_170, %c0_171] : memref<9x64x64xbf16, #tpu.memory_space<vmem>>, vector<1x64x64xbf16>
    %146 = vector.shape_cast %145 : vector<1x64x64xbf16> to vector<64x64xbf16>
    %cst_172 = arith.constant dense<0.000000e+00> : vector<80x64xf32>
    %147 = tpu.matmul %144, %146, %cst_172 {dimension_numbers = #tpu.dot_dimension_numbers<[1], [0], [0], [1], [0, 0, 1, 1], [], []>} : vector<80x64xbf16>, vector<64x64xbf16>, vector<80x64xf32> -> vector<80x64xf32>
    %c11_173 = arith.constant 11 : index
    %c0_174 = arith.constant 0 : index
    %148 = vector.load %arg23[%c11_173, %c0_174] : memref<96x64xbf16, #tpu.memory_space<vmem>>, vector<80x64xbf16>
    %c7_175 = arith.constant 7 : index
    %c0_176 = arith.constant 0 : index
    %c0_177 = arith.constant 0 : index
    %149 = vector.load %arg3[%c7_175, %c0_176, %c0_177] : memref<9x64x64xbf16, #tpu.memory_space<vmem>>, vector<1x64x64xbf16>
    %150 = vector.shape_cast %149 : vector<1x64x64xbf16> to vector<64x64xbf16>
    %cst_178 = arith.constant dense<0.000000e+00> : vector<80x64xf32>
    %151 = tpu.matmul %148, %150, %cst_178 {dimension_numbers = #tpu.dot_dimension_numbers<[1], [0], [0], [1], [0, 0, 1, 1], [], []>} : vector<80x64xbf16>, vector<64x64xbf16>, vector<80x64xf32> -> vector<80x64xf32>
    %c12_179 = arith.constant 12 : index
    %c0_180 = arith.constant 0 : index
    %152 = vector.load %arg23[%c12_179, %c0_180] : memref<96x64xbf16, #tpu.memory_space<vmem>>, vector<80x64xbf16>
    %c8_181 = arith.constant 8 : index
    %c0_182 = arith.constant 0 : index
    %c0_183 = arith.constant 0 : index
    %153 = vector.load %arg3[%c8_181, %c0_182, %c0_183] : memref<9x64x64xbf16, #tpu.memory_space<vmem>>, vector<1x64x64xbf16>
    %154 = vector.shape_cast %153 : vector<1x64x64xbf16> to vector<64x64xbf16>
    %cst_184 = arith.constant dense<0.000000e+00> : vector<80x64xf32>
    %155 = tpu.matmul %152, %154, %cst_184 {dimension_numbers = #tpu.dot_dimension_numbers<[1], [0], [0], [1], [0, 0, 1, 1], [], []>} : vector<80x64xbf16>, vector<64x64xbf16>, vector<80x64xf32> -> vector<80x64xf32>
    %156 = arith.addf %123, %127 : vector<80x64xf32>
    %157 = arith.addf %131, %135 : vector<80x64xf32>
    %158 = arith.addf %139, %143 : vector<80x64xf32>
    %159 = arith.addf %147, %151 : vector<80x64xf32>
    %160 = arith.addf %156, %157 : vector<80x64xf32>
    %161 = arith.addf %158, %159 : vector<80x64xf32>
    %162 = arith.addf %160, %161 : vector<80x64xf32>
    %163 = arith.addf %162, %155 : vector<80x64xf32>
    %c0_185 = arith.constant 0 : index
    %c0_186 = arith.constant 0 : index
    %164 = vector.load %arg10[%c0_185, %c0_186] : memref<1x64xf32, #tpu.memory_space<vmem>>, vector<1x64xf32>
    %165 = vector.broadcast %164 : vector<1x64xf32> to vector<80x64xf32>
    %166 = arith.addf %163, %165 : vector<80x64xf32>
    %cst_187 = arith.constant 0.000000e+00 : f32
    %167 = vector.broadcast %cst_187 : f32 to vector<80x64xf32>
    %168 = arith.maximumf %166, %167 : vector<80x64xf32>
    %169 = vector.extract_strided_slice %168 {offsets = [0, 0], sizes = [32, 64], strides = [1, 1]} : vector<80x64xf32> to vector<32x64xf32>
    %c8_188 = arith.constant 8 : index
    %c0_189 = arith.constant 0 : index
    %170 = vector.load %arg21[%c8_188, %c0_189] : memref<96x64xf32, #tpu.memory_space<vmem>>, vector<32x64xf32>
    tpu.vector_store %arg21[%c8_188, %c0_189], %169 {strides = array<i32>} : memref<96x64xf32, #tpu.memory_space<vmem>>, vector<32x64xf32>,
    %171 = vector.extract_strided_slice %168 {offsets = [48, 0], sizes = [32, 64], strides = [1, 1]} : vector<80x64xf32> to vector<32x64xf32>
    %c56_190 = arith.constant 56 : index
    %c0_191 = arith.constant 0 : index
    %172 = vector.load %arg21[%c56_190, %c0_191] : memref<96x64xf32, #tpu.memory_space<vmem>>, vector<32x64xf32>
    tpu.vector_store %arg21[%c56_190, %c0_191], %171 {strides = array<i32>} : memref<96x64xf32, #tpu.memory_space<vmem>>, vector<32x64xf32>,
    %c7_192 = arith.constant 7 : index
    %c0_193 = arith.constant 0 : index
    %173 = tpu.strided_load %arg21[%c7_192, %c0_193] {strides = array<i32: 2, 1>} : memref<96x64xf32, #tpu.memory_space<vmem>>, vector<40x64xf32>
    %c8_194 = arith.constant 8 : index
    %c0_195 = arith.constant 0 : index
    %174 = tpu.strided_load %arg21[%c8_194, %c0_195] {strides = array<i32: 2, 1>} : memref<96x64xf32, #tpu.memory_space<vmem>>, vector<40x64xf32>
    %c9_196 = arith.constant 9 : index
    %c0_197 = arith.constant 0 : index
    %175 = tpu.strided_load %arg21[%c9_196, %c0_197] {strides = array<i32: 2, 1>} : memref<96x64xf32, #tpu.memory_space<vmem>>, vector<40x64xf32>
    %176 = arith.maximumf %173, %174 : vector<40x64xf32>
    %177 = arith.maximumf %176, %175 : vector<40x64xf32>
    %178 = arith.truncf %177 : vector<40x64xf32> to vector<40x64xbf16>
    %c0_198 = arith.constant 0 : index
    %c0_199 = arith.constant 0 : index
    %c0_200 = arith.constant 0 : index
    %179 = vector.load %arg17[%c0_198, %c0_199, %c0_200] : memref<3x64x32xbf16, #tpu.memory_space<vmem>>, vector<1x64x32xbf16>
    %180 = vector.shape_cast %179 : vector<1x64x32xbf16> to vector<64x32xbf16>
    %cst_201 = arith.constant dense<0.000000e+00> : vector<40x32xf32>
    %181 = tpu.matmul %178, %180, %cst_201 {dimension_numbers = #tpu.dot_dimension_numbers<[1], [0], [0], [1], [0, 0, 1, 1], [], []>} : vector<40x64xbf16>, vector<64x32xbf16>, vector<40x32xf32> -> vector<40x32xf32>
    %c1_202 = arith.constant 1 : index
    %c0_203 = arith.constant 0 : index
    %c0_204 = arith.constant 0 : index
    %182 = vector.load %arg17[%c1_202, %c0_203, %c0_204] : memref<3x64x32xbf16, #tpu.memory_space<vmem>>, vector<1x64x32xbf16>
    %183 = vector.shape_cast %182 : vector<1x64x32xbf16> to vector<64x32xbf16>
    %cst_205 = arith.constant dense<0.000000e+00> : vector<40x32xf32>
    %184 = tpu.matmul %178, %183, %cst_205 {dimension_numbers = #tpu.dot_dimension_numbers<[1], [0], [0], [1], [0, 0, 1, 1], [], []>} : vector<40x64xbf16>, vector<64x32xbf16>, vector<40x32xf32> -> vector<40x32xf32>
    %185 = arith.maximumf %181, %184 : vector<40x32xf32>
    %c2_206 = arith.constant 2 : index
    %c0_207 = arith.constant 0 : index
    %c0_208 = arith.constant 0 : index
    %186 = vector.load %arg17[%c2_206, %c0_207, %c0_208] : memref<3x64x32xbf16, #tpu.memory_space<vmem>>, vector<1x64x32xbf16>
    %187 = vector.shape_cast %186 : vector<1x64x32xbf16> to vector<64x32xbf16>
    %cst_209 = arith.constant dense<0.000000e+00> : vector<40x32xf32>
    %188 = tpu.matmul %178, %187, %cst_209 {dimension_numbers = #tpu.dot_dimension_numbers<[1], [0], [0], [1], [0, 0, 1, 1], [], []>} : vector<40x64xbf16>, vector<64x32xbf16>, vector<40x32xf32> -> vector<40x32xf32>
    %189 = arith.maximumf %185, %188 : vector<40x32xf32>
    %190 = vector.extract_strided_slice %189 {offsets = [0, 0], sizes = [16, 32], strides = [1, 1]} : vector<40x32xf32> to vector<16x32xf32>
    %191 = arith.truncf %190 : vector<16x32xf32> to vector<16x32xbf16>
    %c8_210 = arith.constant 8 : index
    %c0_211 = arith.constant 0 : index
    %192 = vector.load %arg24[%c8_210, %c0_211] : memref<64x32xbf16, #tpu.memory_space<vmem>>, vector<16x32xbf16>
    tpu.vector_store %arg24[%c8_210, %c0_211], %191 {strides = array<i32>} : memref<64x32xbf16, #tpu.memory_space<vmem>>, vector<16x32xbf16>,
    %193 = vector.extract_strided_slice %189 {offsets = [24, 0], sizes = [16, 32], strides = [1, 1]} : vector<40x32xf32> to vector<16x32xf32>
    %194 = arith.truncf %193 : vector<16x32xf32> to vector<16x32xbf16>
    %c40_212 = arith.constant 40 : index
    %c0_213 = arith.constant 0 : index
    %195 = vector.load %arg24[%c40_212, %c0_213] : memref<64x32xbf16, #tpu.memory_space<vmem>>, vector<16x32xbf16>
    tpu.vector_store %arg24[%c40_212, %c0_213], %194 {strides = array<i32>} : memref<64x32xbf16, #tpu.memory_space<vmem>>, vector<16x32xbf16>,
    %c4_214 = arith.constant 4 : index
    %c0_215 = arith.constant 0 : index
    %196 = vector.load %arg24[%c4_214, %c0_215] : memref<64x32xbf16, #tpu.memory_space<vmem>>, vector<48x32xbf16>
    %c0_216 = arith.constant 0 : index
    %c0_217 = arith.constant 0 : index
    %c0_218 = arith.constant 0 : index
    %197 = vector.load %arg4[%c0_216, %c0_217, %c0_218] : memref<9x32x32xbf16, #tpu.memory_space<vmem>>, vector<1x32x32xbf16>
    %198 = vector.shape_cast %197 : vector<1x32x32xbf16> to vector<32x32xbf16>
    %cst_219 = arith.constant dense<0.000000e+00> : vector<48x32xf32>
    %199 = tpu.matmul %196, %198, %cst_219 {dimension_numbers = #tpu.dot_dimension_numbers<[1], [0], [0], [1], [0, 0, 1, 1], [], []>} : vector<48x32xbf16>, vector<32x32xbf16>, vector<48x32xf32> -> vector<48x32xf32>
    %c5_220 = arith.constant 5 : index
    %c0_221 = arith.constant 0 : index
    %200 = vector.load %arg24[%c5_220, %c0_221] : memref<64x32xbf16, #tpu.memory_space<vmem>>, vector<48x32xbf16>
    %c1_222 = arith.constant 1 : index
    %c0_223 = arith.constant 0 : index
    %c0_224 = arith.constant 0 : index
    %201 = vector.load %arg4[%c1_222, %c0_223, %c0_224] : memref<9x32x32xbf16, #tpu.memory_space<vmem>>, vector<1x32x32xbf16>
    %202 = vector.shape_cast %201 : vector<1x32x32xbf16> to vector<32x32xbf16>
    %cst_225 = arith.constant dense<0.000000e+00> : vector<48x32xf32>
    %203 = tpu.matmul %200, %202, %cst_225 {dimension_numbers = #tpu.dot_dimension_numbers<[1], [0], [0], [1], [0, 0, 1, 1], [], []>} : vector<48x32xbf16>, vector<32x32xbf16>, vector<48x32xf32> -> vector<48x32xf32>
    %c6_226 = arith.constant 6 : index
    %c0_227 = arith.constant 0 : index
    %204 = vector.load %arg24[%c6_226, %c0_227] : memref<64x32xbf16, #tpu.memory_space<vmem>>, vector<48x32xbf16>
    %c2_228 = arith.constant 2 : index
    %c0_229 = arith.constant 0 : index
    %c0_230 = arith.constant 0 : index
    %205 = vector.load %arg4[%c2_228, %c0_229, %c0_230] : memref<9x32x32xbf16, #tpu.memory_space<vmem>>, vector<1x32x32xbf16>
    %206 = vector.shape_cast %205 : vector<1x32x32xbf16> to vector<32x32xbf16>
    %cst_231 = arith.constant dense<0.000000e+00> : vector<48x32xf32>
    %207 = tpu.matmul %204, %206, %cst_231 {dimension_numbers = #tpu.dot_dimension_numbers<[1], [0], [0], [1], [0, 0, 1, 1], [], []>} : vector<48x32xbf16>, vector<32x32xbf16>, vector<48x32xf32> -> vector<48x32xf32>
    %c7_232 = arith.constant 7 : index
    %c0_233 = arith.constant 0 : index
    %208 = vector.load %arg24[%c7_232, %c0_233] : memref<64x32xbf16, #tpu.memory_space<vmem>>, vector<48x32xbf16>
    %c3_234 = arith.constant 3 : index
    %c0_235 = arith.constant 0 : index
    %c0_236 = arith.constant 0 : index
    %209 = vector.load %arg4[%c3_234, %c0_235, %c0_236] : memref<9x32x32xbf16, #tpu.memory_space<vmem>>, vector<1x32x32xbf16>
    %210 = vector.shape_cast %209 : vector<1x32x32xbf16> to vector<32x32xbf16>
    %cst_237 = arith.constant dense<0.000000e+00> : vector<48x32xf32>
    %211 = tpu.matmul %208, %210, %cst_237 {dimension_numbers = #tpu.dot_dimension_numbers<[1], [0], [0], [1], [0, 0, 1, 1], [], []>} : vector<48x32xbf16>, vector<32x32xbf16>, vector<48x32xf32> -> vector<48x32xf32>
    %c8_238 = arith.constant 8 : index
    %c0_239 = arith.constant 0 : index
    %212 = vector.load %arg24[%c8_238, %c0_239] : memref<64x32xbf16, #tpu.memory_space<vmem>>, vector<48x32xbf16>
    %c4_240 = arith.constant 4 : index
    %c0_241 = arith.constant 0 : index
    %c0_242 = arith.constant 0 : index
    %213 = vector.load %arg4[%c4_240, %c0_241, %c0_242] : memref<9x32x32xbf16, #tpu.memory_space<vmem>>, vector<1x32x32xbf16>
    %214 = vector.shape_cast %213 : vector<1x32x32xbf16> to vector<32x32xbf16>
    %cst_243 = arith.constant dense<0.000000e+00> : vector<48x32xf32>
    %215 = tpu.matmul %212, %214, %cst_243 {dimension_numbers = #tpu.dot_dimension_numbers<[1], [0], [0], [1], [0, 0, 1, 1], [], []>} : vector<48x32xbf16>, vector<32x32xbf16>, vector<48x32xf32> -> vector<48x32xf32>
    %c9_244 = arith.constant 9 : index
    %c0_245 = arith.constant 0 : index
    %216 = vector.load %arg24[%c9_244, %c0_245] : memref<64x32xbf16, #tpu.memory_space<vmem>>, vector<48x32xbf16>
    %c5_246 = arith.constant 5 : index
    %c0_247 = arith.constant 0 : index
    %c0_248 = arith.constant 0 : index
    %217 = vector.load %arg4[%c5_246, %c0_247, %c0_248] : memref<9x32x32xbf16, #tpu.memory_space<vmem>>, vector<1x32x32xbf16>
    %218 = vector.shape_cast %217 : vector<1x32x32xbf16> to vector<32x32xbf16>
    %cst_249 = arith.constant dense<0.000000e+00> : vector<48x32xf32>
    %219 = tpu.matmul %216, %218, %cst_249 {dimension_numbers = #tpu.dot_dimension_numbers<[1], [0], [0], [1], [0, 0, 1, 1], [], []>} : vector<48x32xbf16>, vector<32x32xbf16>, vector<48x32xf32> -> vector<48x32xf32>
    %c10_250 = arith.constant 10 : index
    %c0_251 = arith.constant 0 : index
    %220 = vector.load %arg24[%c10_250, %c0_251] : memref<64x32xbf16, #tpu.memory_space<vmem>>, vector<48x32xbf16>
    %c6_252 = arith.constant 6 : index
    %c0_253 = arith.constant 0 : index
    %c0_254 = arith.constant 0 : index
    %221 = vector.load %arg4[%c6_252, %c0_253, %c0_254] : memref<9x32x32xbf16, #tpu.memory_space<vmem>>, vector<1x32x32xbf16>
    %222 = vector.shape_cast %221 : vector<1x32x32xbf16> to vector<32x32xbf16>
    %cst_255 = arith.constant dense<0.000000e+00> : vector<48x32xf32>
    %223 = tpu.matmul %220, %222, %cst_255 {dimension_numbers = #tpu.dot_dimension_numbers<[1], [0], [0], [1], [0, 0, 1, 1], [], []>} : vector<48x32xbf16>, vector<32x32xbf16>, vector<48x32xf32> -> vector<48x32xf32>
    %c11_256 = arith.constant 11 : index
    %c0_257 = arith.constant 0 : index
    %224 = vector.load %arg24[%c11_256, %c0_257] : memref<64x32xbf16, #tpu.memory_space<vmem>>, vector<48x32xbf16>
    %c7_258 = arith.constant 7 : index
    %c0_259 = arith.constant 0 : index
    %c0_260 = arith.constant 0 : index
    %225 = vector.load %arg4[%c7_258, %c0_259, %c0_260] : memref<9x32x32xbf16, #tpu.memory_space<vmem>>, vector<1x32x32xbf16>
    %226 = vector.shape_cast %225 : vector<1x32x32xbf16> to vector<32x32xbf16>
    %cst_261 = arith.constant dense<0.000000e+00> : vector<48x32xf32>
    %227 = tpu.matmul %224, %226, %cst_261 {dimension_numbers = #tpu.dot_dimension_numbers<[1], [0], [0], [1], [0, 0, 1, 1], [], []>} : vector<48x32xbf16>, vector<32x32xbf16>, vector<48x32xf32> -> vector<48x32xf32>
    %c12_262 = arith.constant 12 : index
    %c0_263 = arith.constant 0 : index
    %228 = vector.load %arg24[%c12_262, %c0_263] : memref<64x32xbf16, #tpu.memory_space<vmem>>, vector<48x32xbf16>
    %c8_264 = arith.constant 8 : index
    %c0_265 = arith.constant 0 : index
    %c0_266 = arith.constant 0 : index
    %229 = vector.load %arg4[%c8_264, %c0_265, %c0_266] : memref<9x32x32xbf16, #tpu.memory_space<vmem>>, vector<1x32x32xbf16>
    %230 = vector.shape_cast %229 : vector<1x32x32xbf16> to vector<32x32xbf16>
    %cst_267 = arith.constant dense<0.000000e+00> : vector<48x32xf32>
    %231 = tpu.matmul %228, %230, %cst_267 {dimension_numbers = #tpu.dot_dimension_numbers<[1], [0], [0], [1], [0, 0, 1, 1], [], []>} : vector<48x32xbf16>, vector<32x32xbf16>, vector<48x32xf32> -> vector<48x32xf32>
    %232 = arith.addf %199, %203 : vector<48x32xf32>
    %233 = arith.addf %207, %211 : vector<48x32xf32>
    %234 = arith.addf %215, %219 : vector<48x32xf32>
    %235 = arith.addf %223, %227 : vector<48x32xf32>
    %236 = arith.addf %232, %233 : vector<48x32xf32>
    %237 = arith.addf %234, %235 : vector<48x32xf32>
    %238 = arith.addf %236, %237 : vector<48x32xf32>
    %239 = arith.addf %238, %231 : vector<48x32xf32>
    %c0_268 = arith.constant 0 : index
    %c0_269 = arith.constant 0 : index
    %240 = vector.load %arg11[%c0_268, %c0_269] : memref<1x32xf32, #tpu.memory_space<vmem>>, vector<1x32xf32>
    %241 = vector.broadcast %240 : vector<1x32xf32> to vector<48x32xf32>
    %242 = arith.addf %239, %241 : vector<48x32xf32>
    %cst_270 = arith.constant 0.000000e+00 : f32
    %243 = vector.broadcast %cst_270 : f32 to vector<48x32xf32>
    %244 = arith.maximumf %242, %243 : vector<48x32xf32>
    %245 = vector.extract_strided_slice %244 {offsets = [0, 0], sizes = [16, 32], strides = [1, 1]} : vector<48x32xf32> to vector<16x32xf32>
    %c8_271 = arith.constant 8 : index
    %c0_272 = arith.constant 0 : index
    %246 = vector.load %arg22[%c8_271, %c0_272] : memref<64x32xf32, #tpu.memory_space<vmem>>, vector<16x32xf32>
    tpu.vector_store %arg22[%c8_271, %c0_272], %245 {strides = array<i32>} : memref<64x32xf32, #tpu.memory_space<vmem>>, vector<16x32xf32>,
    %247 = vector.extract_strided_slice %244 {offsets = [32, 0], sizes = [16, 32], strides = [1, 1]} : vector<48x32xf32> to vector<16x32xf32>
    %c40_273 = arith.constant 40 : index
    %c0_274 = arith.constant 0 : index
    %248 = vector.load %arg22[%c40_273, %c0_274] : memref<64x32xf32, #tpu.memory_space<vmem>>, vector<16x32xf32>
    tpu.vector_store %arg22[%c40_273, %c0_274], %247 {strides = array<i32>} : memref<64x32xf32, #tpu.memory_space<vmem>>, vector<16x32xf32>,
    %c7_275 = arith.constant 7 : index
    %c0_276 = arith.constant 0 : index
    %249 = tpu.strided_load %arg22[%c7_275, %c0_276] {strides = array<i32: 2, 1>} : memref<64x32xf32, #tpu.memory_space<vmem>>, vector<24x32xf32>
    %c8_277 = arith.constant 8 : index
    %c0_278 = arith.constant 0 : index
    %250 = tpu.strided_load %arg22[%c8_277, %c0_278] {strides = array<i32: 2, 1>} : memref<64x32xf32, #tpu.memory_space<vmem>>, vector<24x32xf32>
    %c9_279 = arith.constant 9 : index
    %c0_280 = arith.constant 0 : index
    %251 = tpu.strided_load %arg22[%c9_279, %c0_280] {strides = array<i32: 2, 1>} : memref<64x32xf32, #tpu.memory_space<vmem>>, vector<24x32xf32>
    %252 = arith.maximumf %249, %250 : vector<24x32xf32>
    %253 = arith.maximumf %252, %251 : vector<24x32xf32>
    %254 = arith.truncf %253 : vector<24x32xf32> to vector<24x32xbf16>
    %c0_281 = arith.constant 0 : index
    %c0_282 = arith.constant 0 : index
    %c0_283 = arith.constant 0 : index
    %255 = vector.load %arg18[%c0_281, %c0_282, %c0_283] : memref<3x32x16xbf16, #tpu.memory_space<vmem>>, vector<1x32x16xbf16>
    %256 = vector.shape_cast %255 : vector<1x32x16xbf16> to vector<32x16xbf16>
    %cst_284 = arith.constant dense<0.000000e+00> : vector<24x16xf32>
    %257 = tpu.matmul %254, %256, %cst_284 {dimension_numbers = #tpu.dot_dimension_numbers<[1], [0], [0], [1], [0, 0, 1, 1], [], []>} : vector<24x32xbf16>, vector<32x16xbf16>, vector<24x16xf32> -> vector<24x16xf32>
    %c1_285 = arith.constant 1 : index
    %c0_286 = arith.constant 0 : index
    %c0_287 = arith.constant 0 : index
    %258 = vector.load %arg18[%c1_285, %c0_286, %c0_287] : memref<3x32x16xbf16, #tpu.memory_space<vmem>>, vector<1x32x16xbf16>
    %259 = vector.shape_cast %258 : vector<1x32x16xbf16> to vector<32x16xbf16>
    %cst_288 = arith.constant dense<0.000000e+00> : vector<24x16xf32>
    %260 = tpu.matmul %254, %259, %cst_288 {dimension_numbers = #tpu.dot_dimension_numbers<[1], [0], [0], [1], [0, 0, 1, 1], [], []>} : vector<24x32xbf16>, vector<32x16xbf16>, vector<24x16xf32> -> vector<24x16xf32>
    %261 = arith.maximumf %257, %260 : vector<24x16xf32>
    %c2_289 = arith.constant 2 : index
    %c0_290 = arith.constant 0 : index
    %c0_291 = arith.constant 0 : index
    %262 = vector.load %arg18[%c2_289, %c0_290, %c0_291] : memref<3x32x16xbf16, #tpu.memory_space<vmem>>, vector<1x32x16xbf16>
    %263 = vector.shape_cast %262 : vector<1x32x16xbf16> to vector<32x16xbf16>
    %cst_292 = arith.constant dense<0.000000e+00> : vector<24x16xf32>
    %264 = tpu.matmul %254, %263, %cst_292 {dimension_numbers = #tpu.dot_dimension_numbers<[1], [0], [0], [1], [0, 0, 1, 1], [], []>} : vector<24x32xbf16>, vector<32x16xbf16>, vector<24x16xf32> -> vector<24x16xf32>
    %265 = arith.maximumf %261, %264 : vector<24x16xf32>
    %266 = vector.extract_strided_slice %265 {offsets = [0, 0], sizes = [8, 16], strides = [1, 1]} : vector<24x16xf32> to vector<8x16xf32>
    %267 = arith.truncf %266 : vector<8x16xf32> to vector<8x16xbf16>
    %c8_293 = arith.constant 8 : index
    %c0_294 = arith.constant 0 : index
    %268 = vector.load %arg25[%c8_293, %c0_294] : memref<48x16xbf16, #tpu.memory_space<vmem>>, vector<8x16xbf16>
    tpu.vector_store %arg25[%c8_293, %c0_294], %267 {strides = array<i32>} : memref<48x16xbf16, #tpu.memory_space<vmem>>, vector<8x16xbf16>,
    %269 = vector.extract_strided_slice %265 {offsets = [16, 0], sizes = [8, 16], strides = [1, 1]} : vector<24x16xf32> to vector<8x16xf32>
    %270 = arith.truncf %269 : vector<8x16xf32> to vector<8x16xbf16>
    %c32_295 = arith.constant 32 : index
    %c0_296 = arith.constant 0 : index
    %271 = vector.load %arg25[%c32_295, %c0_296] : memref<48x16xbf16, #tpu.memory_space<vmem>>, vector<8x16xbf16>
    tpu.vector_store %arg25[%c32_295, %c0_296], %270 {strides = array<i32>} : memref<48x16xbf16, #tpu.memory_space<vmem>>, vector<8x16xbf16>,
    %c6_297 = arith.constant 6 : index
    %c0_298 = arith.constant 0 : index
    %272 = vector.load %arg25[%c6_297, %c0_298] : memref<48x16xbf16, #tpu.memory_space<vmem>>, vector<32x16xbf16>
    %c0_299 = arith.constant 0 : index
    %c0_300 = arith.constant 0 : index
    %c0_301 = arith.constant 0 : index
    %273 = vector.load %arg5[%c0_299, %c0_300, %c0_301] : memref<5x16x4xbf16, #tpu.memory_space<vmem>>, vector<1x16x4xbf16>
    %274 = vector.shape_cast %273 : vector<1x16x4xbf16> to vector<16x4xbf16>
    %cst_302 = arith.constant dense<0.000000e+00> : vector<32x4xf32>
    %275 = tpu.matmul %272, %274, %cst_302 {dimension_numbers = #tpu.dot_dimension_numbers<[1], [0], [0], [1], [0, 0, 1, 1], [], []>} : vector<32x16xbf16>, vector<16x4xbf16>, vector<32x4xf32> -> vector<32x4xf32>
    %c7_303 = arith.constant 7 : index
    %c0_304 = arith.constant 0 : index
    %276 = vector.load %arg25[%c7_303, %c0_304] : memref<48x16xbf16, #tpu.memory_space<vmem>>, vector<32x16xbf16>
    %c1_305 = arith.constant 1 : index
    %c0_306 = arith.constant 0 : index
    %c0_307 = arith.constant 0 : index
    %277 = vector.load %arg5[%c1_305, %c0_306, %c0_307] : memref<5x16x4xbf16, #tpu.memory_space<vmem>>, vector<1x16x4xbf16>
    %278 = vector.shape_cast %277 : vector<1x16x4xbf16> to vector<16x4xbf16>
    %cst_308 = arith.constant dense<0.000000e+00> : vector<32x4xf32>
    %279 = tpu.matmul %276, %278, %cst_308 {dimension_numbers = #tpu.dot_dimension_numbers<[1], [0], [0], [1], [0, 0, 1, 1], [], []>} : vector<32x16xbf16>, vector<16x4xbf16>, vector<32x4xf32> -> vector<32x4xf32>
    %c8_309 = arith.constant 8 : index
    %c0_310 = arith.constant 0 : index
    %280 = vector.load %arg25[%c8_309, %c0_310] : memref<48x16xbf16, #tpu.memory_space<vmem>>, vector<32x16xbf16>
    %c2_311 = arith.constant 2 : index
    %c0_312 = arith.constant 0 : index
    %c0_313 = arith.constant 0 : index
    %281 = vector.load %arg5[%c2_311, %c0_312, %c0_313] : memref<5x16x4xbf16, #tpu.memory_space<vmem>>, vector<1x16x4xbf16>
    %282 = vector.shape_cast %281 : vector<1x16x4xbf16> to vector<16x4xbf16>
    %cst_314 = arith.constant dense<0.000000e+00> : vector<32x4xf32>
    %283 = tpu.matmul %280, %282, %cst_314 {dimension_numbers = #tpu.dot_dimension_numbers<[1], [0], [0], [1], [0, 0, 1, 1], [], []>} : vector<32x16xbf16>, vector<16x4xbf16>, vector<32x4xf32> -> vector<32x4xf32>
    %c9_315 = arith.constant 9 : index
    %c0_316 = arith.constant 0 : index
    %284 = vector.load %arg25[%c9_315, %c0_316] : memref<48x16xbf16, #tpu.memory_space<vmem>>, vector<32x16xbf16>
    %c3_317 = arith.constant 3 : index
    %c0_318 = arith.constant 0 : index
    %c0_319 = arith.constant 0 : index
    %285 = vector.load %arg5[%c3_317, %c0_318, %c0_319] : memref<5x16x4xbf16, #tpu.memory_space<vmem>>, vector<1x16x4xbf16>
    %286 = vector.shape_cast %285 : vector<1x16x4xbf16> to vector<16x4xbf16>
    %cst_320 = arith.constant dense<0.000000e+00> : vector<32x4xf32>
    %287 = tpu.matmul %284, %286, %cst_320 {dimension_numbers = #tpu.dot_dimension_numbers<[1], [0], [0], [1], [0, 0, 1, 1], [], []>} : vector<32x16xbf16>, vector<16x4xbf16>, vector<32x4xf32> -> vector<32x4xf32>
    %c10_321 = arith.constant 10 : index
    %c0_322 = arith.constant 0 : index
    %288 = vector.load %arg25[%c10_321, %c0_322] : memref<48x16xbf16, #tpu.memory_space<vmem>>, vector<32x16xbf16>
    %c4_323 = arith.constant 4 : index
    %c0_324 = arith.constant 0 : index
    %c0_325 = arith.constant 0 : index
    %289 = vector.load %arg5[%c4_323, %c0_324, %c0_325] : memref<5x16x4xbf16, #tpu.memory_space<vmem>>, vector<1x16x4xbf16>
    %290 = vector.shape_cast %289 : vector<1x16x4xbf16> to vector<16x4xbf16>
    %cst_326 = arith.constant dense<0.000000e+00> : vector<32x4xf32>
    %291 = tpu.matmul %288, %290, %cst_326 {dimension_numbers = #tpu.dot_dimension_numbers<[1], [0], [0], [1], [0, 0, 1, 1], [], []>} : vector<32x16xbf16>, vector<16x4xbf16>, vector<32x4xf32> -> vector<32x4xf32>
    %292 = arith.addf %275, %279 : vector<32x4xf32>
    %293 = arith.addf %283, %287 : vector<32x4xf32>
    %294 = arith.addf %292, %293 : vector<32x4xf32>
    %295 = arith.addf %294, %291 : vector<32x4xf32>
    %c0_327 = arith.constant 0 : index
    %c0_328 = arith.constant 0 : index
    %296 = vector.load %arg12[%c0_327, %c0_328] : memref<1x4xf32, #tpu.memory_space<vmem>>, vector<1x4xf32>
    %297 = vector.broadcast %296 : vector<1x4xf32> to vector<32x4xf32>
    %298 = arith.addf %295, %297 : vector<32x4xf32>
    %cst_329 = arith.constant 0.000000e+00 : f32
    %299 = vector.broadcast %cst_329 : f32 to vector<32x4xf32>
    %300 = arith.maximumf %298, %299 : vector<32x4xf32>
    %301 = vector.extract_strided_slice %300 {offsets = [0, 0], sizes = [8, 4], strides = [1, 1]} : vector<32x4xf32> to vector<8x4xf32>
    %302 = arith.truncf %301 : vector<8x4xf32> to vector<8x4xbf16>
    %c8_330 = arith.constant 8 : index
    %c0_331 = arith.constant 0 : index
    %303 = vector.load %arg26[%c8_330, %c0_331] : memref<48x4xbf16, #tpu.memory_space<vmem>>, vector<8x4xbf16>
    tpu.vector_store %arg26[%c8_330, %c0_331], %302 {strides = array<i32>} : memref<48x4xbf16, #tpu.memory_space<vmem>>, vector<8x4xbf16>,
    %304 = vector.extract_strided_slice %300 {offsets = [24, 0], sizes = [8, 4], strides = [1, 1]} : vector<32x4xf32> to vector<8x4xf32>
    %305 = arith.truncf %304 : vector<8x4xf32> to vector<8x4xbf16>
    %c32_332 = arith.constant 32 : index
    %c0_333 = arith.constant 0 : index
    %306 = vector.load %arg26[%c32_332, %c0_333] : memref<48x4xbf16, #tpu.memory_space<vmem>>, vector<8x4xbf16>
    tpu.vector_store %arg26[%c32_332, %c0_333], %305 {strides = array<i32>} : memref<48x4xbf16, #tpu.memory_space<vmem>>, vector<8x4xbf16>,
    %c4_334 = arith.constant 4 : index
    %c0_335 = arith.constant 0 : index
    %307 = vector.load %arg26[%c4_334, %c0_335] : memref<48x4xbf16, #tpu.memory_space<vmem>>, vector<32x4xbf16>
    %c0_336 = arith.constant 0 : index
    %c0_337 = arith.constant 0 : index
    %c0_338 = arith.constant 0 : index
    %308 = vector.load %arg6[%c0_336, %c0_337, %c0_338] : memref<9x4x64xbf16, #tpu.memory_space<vmem>>, vector<1x4x64xbf16>
    %309 = vector.shape_cast %308 : vector<1x4x64xbf16> to vector<4x64xbf16>
    %cst_339 = arith.constant dense<0.000000e+00> : vector<32x64xf32>
    %310 = tpu.matmul %307, %309, %cst_339 {dimension_numbers = #tpu.dot_dimension_numbers<[1], [0], [0], [1], [0, 0, 1, 1], [], []>} : vector<32x4xbf16>, vector<4x64xbf16>, vector<32x64xf32> -> vector<32x64xf32>
    %c5_340 = arith.constant 5 : index
    %c0_341 = arith.constant 0 : index
    %311 = vector.load %arg26[%c5_340, %c0_341] : memref<48x4xbf16, #tpu.memory_space<vmem>>, vector<32x4xbf16>
    %c1_342 = arith.constant 1 : index
    %c0_343 = arith.constant 0 : index
    %c0_344 = arith.constant 0 : index
    %312 = vector.load %arg6[%c1_342, %c0_343, %c0_344] : memref<9x4x64xbf16, #tpu.memory_space<vmem>>, vector<1x4x64xbf16>
    %313 = vector.shape_cast %312 : vector<1x4x64xbf16> to vector<4x64xbf16>
    %cst_345 = arith.constant dense<0.000000e+00> : vector<32x64xf32>
    %314 = tpu.matmul %311, %313, %cst_345 {dimension_numbers = #tpu.dot_dimension_numbers<[1], [0], [0], [1], [0, 0, 1, 1], [], []>} : vector<32x4xbf16>, vector<4x64xbf16>, vector<32x64xf32> -> vector<32x64xf32>
    %c6_346 = arith.constant 6 : index
    %c0_347 = arith.constant 0 : index
    %315 = vector.load %arg26[%c6_346, %c0_347] : memref<48x4xbf16, #tpu.memory_space<vmem>>, vector<32x4xbf16>
    %c2_348 = arith.constant 2 : index
    %c0_349 = arith.constant 0 : index
    %c0_350 = arith.constant 0 : index
    %316 = vector.load %arg6[%c2_348, %c0_349, %c0_350] : memref<9x4x64xbf16, #tpu.memory_space<vmem>>, vector<1x4x64xbf16>
    %317 = vector.shape_cast %316 : vector<1x4x64xbf16> to vector<4x64xbf16>
    %cst_351 = arith.constant dense<0.000000e+00> : vector<32x64xf32>
    %318 = tpu.matmul %315, %317, %cst_351 {dimension_numbers = #tpu.dot_dimension_numbers<[1], [0], [0], [1], [0, 0, 1, 1], [], []>} : vector<32x4xbf16>, vector<4x64xbf16>, vector<32x64xf32> -> vector<32x64xf32>
    %c7_352 = arith.constant 7 : index
    %c0_353 = arith.constant 0 : index
    %319 = vector.load %arg26[%c7_352, %c0_353] : memref<48x4xbf16, #tpu.memory_space<vmem>>, vector<32x4xbf16>
    %c3_354 = arith.constant 3 : index
    %c0_355 = arith.constant 0 : index
    %c0_356 = arith.constant 0 : index
    %320 = vector.load %arg6[%c3_354, %c0_355, %c0_356] : memref<9x4x64xbf16, #tpu.memory_space<vmem>>, vector<1x4x64xbf16>
    %321 = vector.shape_cast %320 : vector<1x4x64xbf16> to vector<4x64xbf16>
    %cst_357 = arith.constant dense<0.000000e+00> : vector<32x64xf32>
    %322 = tpu.matmul %319, %321, %cst_357 {dimension_numbers = #tpu.dot_dimension_numbers<[1], [0], [0], [1], [0, 0, 1, 1], [], []>} : vector<32x4xbf16>, vector<4x64xbf16>, vector<32x64xf32> -> vector<32x64xf32>
    %c8_358 = arith.constant 8 : index
    %c0_359 = arith.constant 0 : index
    %323 = vector.load %arg26[%c8_358, %c0_359] : memref<48x4xbf16, #tpu.memory_space<vmem>>, vector<32x4xbf16>
    %c4_360 = arith.constant 4 : index
    %c0_361 = arith.constant 0 : index
    %c0_362 = arith.constant 0 : index
    %324 = vector.load %arg6[%c4_360, %c0_361, %c0_362] : memref<9x4x64xbf16, #tpu.memory_space<vmem>>, vector<1x4x64xbf16>
    %325 = vector.shape_cast %324 : vector<1x4x64xbf16> to vector<4x64xbf16>
    %cst_363 = arith.constant dense<0.000000e+00> : vector<32x64xf32>
    %326 = tpu.matmul %323, %325, %cst_363 {dimension_numbers = #tpu.dot_dimension_numbers<[1], [0], [0], [1], [0, 0, 1, 1], [], []>} : vector<32x4xbf16>, vector<4x64xbf16>, vector<32x64xf32> -> vector<32x64xf32>
    %c9_364 = arith.constant 9 : index
    %c0_365 = arith.constant 0 : index
    %327 = vector.load %arg26[%c9_364, %c0_365] : memref<48x4xbf16, #tpu.memory_space<vmem>>, vector<32x4xbf16>
    %c5_366 = arith.constant 5 : index
    %c0_367 = arith.constant 0 : index
    %c0_368 = arith.constant 0 : index
    %328 = vector.load %arg6[%c5_366, %c0_367, %c0_368] : memref<9x4x64xbf16, #tpu.memory_space<vmem>>, vector<1x4x64xbf16>
    %329 = vector.shape_cast %328 : vector<1x4x64xbf16> to vector<4x64xbf16>
    %cst_369 = arith.constant dense<0.000000e+00> : vector<32x64xf32>
    %330 = tpu.matmul %327, %329, %cst_369 {dimension_numbers = #tpu.dot_dimension_numbers<[1], [0], [0], [1], [0, 0, 1, 1], [], []>} : vector<32x4xbf16>, vector<4x64xbf16>, vector<32x64xf32> -> vector<32x64xf32>
    %c10_370 = arith.constant 10 : index
    %c0_371 = arith.constant 0 : index
    %331 = vector.load %arg26[%c10_370, %c0_371] : memref<48x4xbf16, #tpu.memory_space<vmem>>, vector<32x4xbf16>
    %c6_372 = arith.constant 6 : index
    %c0_373 = arith.constant 0 : index
    %c0_374 = arith.constant 0 : index
    %332 = vector.load %arg6[%c6_372, %c0_373, %c0_374] : memref<9x4x64xbf16, #tpu.memory_space<vmem>>, vector<1x4x64xbf16>
    %333 = vector.shape_cast %332 : vector<1x4x64xbf16> to vector<4x64xbf16>
    %cst_375 = arith.constant dense<0.000000e+00> : vector<32x64xf32>
    %334 = tpu.matmul %331, %333, %cst_375 {dimension_numbers = #tpu.dot_dimension_numbers<[1], [0], [0], [1], [0, 0, 1, 1], [], []>} : vector<32x4xbf16>, vector<4x64xbf16>, vector<32x64xf32> -> vector<32x64xf32>
    %c11_376 = arith.constant 11 : index
    %c0_377 = arith.constant 0 : index
    %335 = vector.load %arg26[%c11_376, %c0_377] : memref<48x4xbf16, #tpu.memory_space<vmem>>, vector<32x4xbf16>
    %c7_378 = arith.constant 7 : index
    %c0_379 = arith.constant 0 : index
    %c0_380 = arith.constant 0 : index
    %336 = vector.load %arg6[%c7_378, %c0_379, %c0_380] : memref<9x4x64xbf16, #tpu.memory_space<vmem>>, vector<1x4x64xbf16>
    %337 = vector.shape_cast %336 : vector<1x4x64xbf16> to vector<4x64xbf16>
    %cst_381 = arith.constant dense<0.000000e+00> : vector<32x64xf32>
    %338 = tpu.matmul %335, %337, %cst_381 {dimension_numbers = #tpu.dot_dimension_numbers<[1], [0], [0], [1], [0, 0, 1, 1], [], []>} : vector<32x4xbf16>, vector<4x64xbf16>, vector<32x64xf32> -> vector<32x64xf32>
    %c12_382 = arith.constant 12 : index
    %c0_383 = arith.constant 0 : index
    %339 = vector.load %arg26[%c12_382, %c0_383] : memref<48x4xbf16, #tpu.memory_space<vmem>>, vector<32x4xbf16>
    %c8_384 = arith.constant 8 : index
    %c0_385 = arith.constant 0 : index
    %c0_386 = arith.constant 0 : index
    %340 = vector.load %arg6[%c8_384, %c0_385, %c0_386] : memref<9x4x64xbf16, #tpu.memory_space<vmem>>, vector<1x4x64xbf16>
    %341 = vector.shape_cast %340 : vector<1x4x64xbf16> to vector<4x64xbf16>
    %cst_387 = arith.constant dense<0.000000e+00> : vector<32x64xf32>
    %342 = tpu.matmul %339, %341, %cst_387 {dimension_numbers = #tpu.dot_dimension_numbers<[1], [0], [0], [1], [0, 0, 1, 1], [], []>} : vector<32x4xbf16>, vector<4x64xbf16>, vector<32x64xf32> -> vector<32x64xf32>
    %343 = arith.addf %310, %314 : vector<32x64xf32>
    %344 = arith.addf %318, %322 : vector<32x64xf32>
    %345 = arith.addf %326, %330 : vector<32x64xf32>
    %346 = arith.addf %334, %338 : vector<32x64xf32>
    %347 = arith.addf %343, %344 : vector<32x64xf32>
    %348 = arith.addf %345, %346 : vector<32x64xf32>
    %349 = arith.addf %347, %348 : vector<32x64xf32>
    %350 = arith.addf %349, %342 : vector<32x64xf32>
    %c0_388 = arith.constant 0 : index
    %c0_389 = arith.constant 0 : index
    %351 = vector.load %arg13[%c0_388, %c0_389] : memref<1x64xf32, #tpu.memory_space<vmem>>, vector<1x64xf32>
    %352 = vector.broadcast %351 : vector<1x64xf32> to vector<32x64xf32>
    %353 = arith.addf %350, %352 : vector<32x64xf32>
    %cst_390 = arith.constant 0.000000e+00 : f32
    %354 = vector.broadcast %cst_390 : f32 to vector<32x64xf32>
    %355 = arith.maximumf %353, %354 : vector<32x64xf32>
    %356 = arith.truncf %355 : vector<32x64xf32> to vector<32x64xbf16>
    %c0_391 = arith.constant 0 : index
    %c0_392 = arith.constant 0 : index
    %c0_393 = arith.constant 0 : index
    %357 = vector.load %arg7[%c0_391, %c0_392, %c0_393] : memref<1x64x64xbf16, #tpu.memory_space<vmem>>, vector<1x64x64xbf16>
    %358 = vector.shape_cast %357 : vector<1x64x64xbf16> to vector<64x64xbf16>
    %cst_394 = arith.constant dense<0.000000e+00> : vector<32x64xf32>
    %359 = tpu.matmul %356, %358, %cst_394 {dimension_numbers = #tpu.dot_dimension_numbers<[1], [0], [0], [1], [0, 0, 1, 1], [], []>} : vector<32x64xbf16>, vector<64x64xbf16>, vector<32x64xf32> -> vector<32x64xf32>
    %c0_395 = arith.constant 0 : index
    %c0_396 = arith.constant 0 : index
    %360 = vector.load %arg14[%c0_395, %c0_396] : memref<1x64xf32, #tpu.memory_space<vmem>>, vector<1x64xf32>
    %361 = vector.broadcast %360 : vector<1x64xf32> to vector<32x64xf32>
    %362 = arith.addf %359, %361 : vector<32x64xf32>
    %cst_397 = arith.constant 0.000000e+00 : f32
    %363 = vector.broadcast %cst_397 : f32 to vector<32x64xf32>
    %364 = arith.maximumf %362, %363 : vector<32x64xf32>
    %365 = arith.truncf %364 : vector<32x64xf32> to vector<32x64xbf16>
    %c0_398 = arith.constant 0 : index
    %c0_399 = arith.constant 0 : index
    %c0_400 = arith.constant 0 : index
    %366 = vector.load %arg8[%c0_398, %c0_399, %c0_400] : memref<1x64x8xbf16, #tpu.memory_space<vmem>>, vector<1x64x8xbf16>
    %367 = vector.shape_cast %366 : vector<1x64x8xbf16> to vector<64x8xbf16>
    %cst_401 = arith.constant dense<0.000000e+00> : vector<32x8xf32>
    %368 = tpu.matmul %365, %367, %cst_401 {dimension_numbers = #tpu.dot_dimension_numbers<[1], [0], [0], [1], [0, 0, 1, 1], [], []>} : vector<32x64xbf16>, vector<64x8xbf16>, vector<32x8xf32> -> vector<32x8xf32>
    %c0_402 = arith.constant 0 : index
    %c0_403 = arith.constant 0 : index
    %369 = vector.load %arg15[%c0_402, %c0_403] : memref<1x8xf32, #tpu.memory_space<vmem>>, vector<1x8xf32>
    %370 = vector.broadcast %369 : vector<1x8xf32> to vector<32x8xf32>
    %371 = arith.addf %368, %370 : vector<32x8xf32>
    %c0_404 = arith.constant 0 : index
    %c0_405 = arith.constant 0 : index
    %c0_406 = arith.constant 0 : index
    %372 = vector.load %arg19[%c0_404, %c0_405, %c0_406] : memref<1x32x8xf32, #tpu.memory_space<vmem>>, vector<1x32x8xf32>
    %373 = vector.shape_cast %372 : vector<1x32x8xf32> to vector<32x8xf32>
    %374 = vector.shape_cast %371 : vector<32x8xf32> to vector<1x32x8xf32>
    tpu.vector_store %arg19[%c0_404, %c0_405, %c0_406], %374 {strides = array<i32>} : memref<1x32x8xf32, #tpu.memory_space<vmem>>, vector<1x32x8xf32>,
    return
  }
  func.func @transform_0(%arg0: i32) -> (i32, i32, i32) {
    %c0_i32 = arith.constant 0 : i32
    %c0_i32_0 = arith.constant 0 : i32
    %c0_i32_1 = arith.constant 0 : i32
    return %arg0, %c0_i32, %c0_i32_0 : i32, i32, i32
  }
  func.func @transform_1(%arg0: i32) -> (i32, i32, i32) {
    %c0_i32 = arith.constant 0 : i32
    %c0_i32_0 = arith.constant 0 : i32
    %c0_i32_1 = arith.constant 0 : i32
    %c0_i32_2 = arith.constant 0 : i32
    return %c0_i32, %c0_i32_0, %c0_i32_1 : i32, i32, i32
  }
  func.func @transform_2(%arg0: i32) -> (i32, i32, i32) {
    %c0_i32 = arith.constant 0 : i32
    %c0_i32_0 = arith.constant 0 : i32
    %c0_i32_1 = arith.constant 0 : i32
    %c0_i32_2 = arith.constant 0 : i32
    return %c0_i32, %c0_i32_0, %c0_i32_1 : i32, i32, i32
  }
  func.func @transform_3(%arg0: i32) -> (i32, i32, i32) {
    %c0_i32 = arith.constant 0 : i32
    %c0_i32_0 = arith.constant 0 : i32
    %c0_i32_1 = arith.constant 0 : i32
    %c0_i32_2 = arith.constant 0 : i32
    return %c0_i32, %c0_i32_0, %c0_i32_1 : i32, i32, i32
  }
  func.func @transform_4(%arg0: i32) -> (i32, i32, i32) {
    %c0_i32 = arith.constant 0 : i32
    %c0_i32_0 = arith.constant 0 : i32
    %c0_i32_1 = arith.constant 0 : i32
    %c0_i32_2 = arith.constant 0 : i32
    return %c0_i32, %c0_i32_0, %c0_i32_1 : i32, i32, i32
  }
  func.func @transform_5(%arg0: i32) -> (i32, i32, i32) {
    %c0_i32 = arith.constant 0 : i32
    %c0_i32_0 = arith.constant 0 : i32
    %c0_i32_1 = arith.constant 0 : i32
    %c0_i32_2 = arith.constant 0 : i32
    return %c0_i32, %c0_i32_0, %c0_i32_1 : i32, i32, i32
  }
  func.func @transform_6(%arg0: i32) -> (i32, i32, i32) {
    %c0_i32 = arith.constant 0 : i32
    %c0_i32_0 = arith.constant 0 : i32
    %c0_i32_1 = arith.constant 0 : i32
    %c0_i32_2 = arith.constant 0 : i32
    return %c0_i32, %c0_i32_0, %c0_i32_1 : i32, i32, i32
  }
  func.func @transform_7(%arg0: i32) -> (i32, i32, i32) {
    %c0_i32 = arith.constant 0 : i32
    %c0_i32_0 = arith.constant 0 : i32
    %c0_i32_1 = arith.constant 0 : i32
    %c0_i32_2 = arith.constant 0 : i32
    return %c0_i32, %c0_i32_0, %c0_i32_1 : i32, i32, i32
  }
  func.func @transform_8(%arg0: i32) -> (i32, i32) {
    %c0_i32 = arith.constant 0 : i32
    %c0_i32_0 = arith.constant 0 : i32
    %c0_i32_1 = arith.constant 0 : i32
    return %c0_i32, %c0_i32_0 : i32, i32
  }
  func.func @transform_9(%arg0: i32) -> (i32, i32) {
    %c0_i32 = arith.constant 0 : i32
    %c0_i32_0 = arith.constant 0 : i32
    %c0_i32_1 = arith.constant 0 : i32
    return %c0_i32, %c0_i32_0 : i32, i32
  }
  func.func @transform_10(%arg0: i32) -> (i32, i32) {
    %c0_i32 = arith.constant 0 : i32
    %c0_i32_0 = arith.constant 0 : i32
    %c0_i32_1 = arith.constant 0 : i32
    return %c0_i32, %c0_i32_0 : i32, i32
  }
  func.func @transform_11(%arg0: i32) -> (i32, i32) {
    %c0_i32 = arith.constant 0 : i32
    %c0_i32_0 = arith.constant 0 : i32
    %c0_i32_1 = arith.constant 0 : i32
    return %c0_i32, %c0_i32_0 : i32, i32
  }
  func.func @transform_12(%arg0: i32) -> (i32, i32) {
    %c0_i32 = arith.constant 0 : i32
    %c0_i32_0 = arith.constant 0 : i32
    %c0_i32_1 = arith.constant 0 : i32
    return %c0_i32, %c0_i32_0 : i32, i32
  }
  func.func @transform_13(%arg0: i32) -> (i32, i32) {
    %c0_i32 = arith.constant 0 : i32
    %c0_i32_0 = arith.constant 0 : i32
    %c0_i32_1 = arith.constant 0 : i32
    return %c0_i32, %c0_i32_0 : i32, i32
  }
  func.func @transform_14(%arg0: i32) -> (i32, i32) {
    %c0_i32 = arith.constant 0 : i32
    %c0_i32_0 = arith.constant 0 : i32
    %c0_i32_1 = arith.constant 0 : i32
    return %c0_i32, %c0_i32_0 : i32, i32
  }
  func.func @transform_15(%arg0: i32) -> (i32, i32, i32) {
    %c0_i32 = arith.constant 0 : i32
    %c0_i32_0 = arith.constant 0 : i32
    %c0_i32_1 = arith.constant 0 : i32
    %c0_i32_2 = arith.constant 0 : i32
    return %c0_i32, %c0_i32_0, %c0_i32_1 : i32, i32, i32
  }
  func.func @transform_16(%arg0: i32) -> (i32, i32, i32) {
    %c0_i32 = arith.constant 0 : i32
    %c0_i32_0 = arith.constant 0 : i32
    %c0_i32_1 = arith.constant 0 : i32
    %c0_i32_2 = arith.constant 0 : i32
    return %c0_i32, %c0_i32_0, %c0_i32_1 : i32, i32, i32
  }
  func.func @transform_17(%arg0: i32) -> (i32, i32, i32) {
    %c0_i32 = arith.constant 0 : i32
    %c0_i32_0 = arith.constant 0 : i32
    %c0_i32_1 = arith.constant 0 : i32
    %c0_i32_2 = arith.constant 0 : i32
    return %c0_i32, %c0_i32_0, %c0_i32_1 : i32, i32, i32
  }
  func.func @transform_18(%arg0: i32) -> (i32, i32, i32) {
    %c0_i32 = arith.constant 0 : i32
    %c0_i32_0 = arith.constant 0 : i32
    %c0_i32_1 = arith.constant 0 : i32
    return %arg0, %c0_i32, %c0_i32_0 : i32, i32, i32
  }
}

</mosaic_0001>

<llo_original>
// kernel: first_stage_pallas.1
$region0: #{first_stage_pallas.1}
  #allocation0 [shape = 'u32[]', space=smem, size = 0x4, offset = 0x4, fixed_abs, tag = 'smem constant byte address 0x4 - core index']
  #allocation1 [shape = 'u32[144,128]{1,0:T(1,128)}', space=vmem, size = 0x12000, scoped, tag = 'internal scratch']
  #allocation2 [shape = 'f32[160,128]{1,0:T(8,128)}', space=vmem, size = 0x14000, scoped, tag = 'scratch operand']
  #allocation3 [shape = 'f32[96,64]{1,0:T(8,128)}', space=vmem, size = 0xc000, scoped, tag = 'scratch operand']
  #allocation4 [shape = 'f32[64,32]{1,0:T(8,128)}', space=vmem, size = 0x8000, scoped, tag = 'scratch operand']
  #allocation5 [shape = 'bf16[96,64]{1,0:T(8,128)(2,1)}', space=vmem, size = 0x6000, scoped, tag = 'scratch operand']
  #allocation6 [shape = 'bf16[64,32]{1,0:T(8,128)(2,1)}', space=vmem, size = 0x4000, scoped, tag = 'scratch operand']
  #allocation7 [shape = 'bf16[48,16]{1,0:T(8,128)(2,1)}', space=vmem, size = 0x3000, scoped, tag = 'scratch operand']
  #allocation8 [shape = 'bf16[48,4]{1,0:T(8,128)(2,1)}', space=vmem, size = 0x3000, scoped, tag = 'scratch operand']
  %s0 = inlined_call_operand.vmem [shape: bf16[1,160,48], index: 0, kind: input, shape index: {}]
  %s1 = inlined_call_operand.vmem [shape: bf16[9,48,128], index: 1, kind: input, shape index: {}]
  %s2 = inlined_call_operand.vmem [shape: bf16[9,64,64], index: 2, kind: input, shape index: {}]
  %s3 = inlined_call_operand.vmem [shape: bf16[9,32,32], index: 3, kind: input, shape index: {}]
  %s4 = inlined_call_operand.vmem [shape: bf16[5,16,4], index: 4, kind: input, shape index: {}]
  %s5 = inlined_call_operand.vmem [shape: bf16[9,4,64], index: 5, kind: input, shape index: {}]
  %s6 = inlined_call_operand.vmem [shape: bf16[1,64,64], index: 6, kind: input, shape index: {}]
  %s7 = inlined_call_operand.vmem [shape: bf16[1,64,8], index: 7, kind: input, shape index: {}]
  %s8 = inlined_call_operand.vmem [shape: f32[1,128], index: 8, kind: input, shape index: {}]
  %s9 = inlined_call_operand.vmem [shape: f32[1,64], index: 9, kind: input, shape index: {}]
  %s10 = inlined_call_operand.vmem [shape: f32[1,32], index: 10, kind: input, shape index: {}]
  %s11 = inlined_call_operand.vmem [shape: f32[1,4], index: 11, kind: input, shape index: {}]
  %s12 = inlined_call_operand.vmem [shape: f32[1,64], index: 12, kind: input, shape index: {}]
  %s13 = inlined_call_operand.vmem [shape: f32[1,64], index: 13, kind: input, shape index: {}]
  %s14 = inlined_call_operand.vmem [shape: f32[1,8], index: 14, kind: input, shape index: {}]
  %s15 = inlined_call_operand.vmem [shape: bf16[3,128,64], index: 15, kind: input, shape index: {}]
  %s16 = inlined_call_operand.vmem [shape: bf16[3,64,32], index: 16, kind: input, shape index: {}]
  %s17 = inlined_call_operand.vmem [shape: bf16[3,32,16], index: 17, kind: input, shape index: {}]
  %s18 = inlined_call_operand.vmem [shape: f32[1,32,8], index: 18, kind: output, shape index: {}]
  %s19 = sld [smem:[#allocation0]]
  $region82: #{first_stage_pallas.1} parent=0
    _
  %s21 = ssub.s32 1, %s19
  %s22 = scalar_select 0, %s21, %s19
  // Predicated region
  $region2: #{first_stage_pallas.1} parent=0 // pred_check
    _
  $region3: #{first_stage_pallas.1} parent=0 // pred_check_branch
    %24 = sbr.rel (0) target = $region5
  $region4: #{first_stage_pallas.1} parent=0 // pred_region
    _
  $region5: #{first_stage_pallas.1} parent=0 // pred_fallthru
    _
  // Predicated region
  $region6: #{first_stage_pallas.1} parent=0 // pred_check
    _
  $region7: #{first_stage_pallas.1} parent=0 // pred_check_branch
    %26 = sbr.rel (0) target = $region9
  $region8: #{first_stage_pallas.1} parent=0 // pred_region
    _
  $region9: #{first_stage_pallas.1} parent=0 // pred_fallthru
    _
  // Predicated region
  $region10: #{first_stage_pallas.1} parent=0 // pred_check
    _
  $region11: #{first_stage_pallas.1} parent=0 // pred_check_branch
    %28 = sbr.rel (0) target = $region13
  $region12: #{first_stage_pallas.1} parent=0 // pred_region
    _
  $region13: #{first_stage_pallas.1} parent=0 // pred_fallthru
    _
  // Predicated region
  $region14: #{first_stage_pallas.1} parent=0 // pred_check
    _
  $region15: #{first_stage_pallas.1} parent=0 // pred_check_branch
    %30 = sbr.rel (0) target = $region17
  $region16: #{first_stage_pallas.1} parent=0 // pred_region
    _
  $region17: #{first_stage_pallas.1} parent=0 // pred_fallthru
    _
  // Predicated region
  $region18: #{first_stage_pallas.1} parent=0 // pred_check
    _
  $region19: #{first_stage_pallas.1} parent=0 // pred_check_branch
    %32 = sbr.rel (0) target = $region21
  $region20: #{first_stage_pallas.1} parent=0 // pred_region
    _
  $region21: #{first_stage_pallas.1} parent=0 // pred_fallthru
    _
  // Predicated region
  $region22: #{first_stage_pallas.1} parent=0 // pred_check
    _
  $region23: #{first_stage_pallas.1} parent=0 // pred_check_branch
    %34 = sbr.rel (0) target = $region25
  $region24: #{first_stage_pallas.1} parent=0 // pred_region
    _
  $region25: #{first_stage_pallas.1} parent=0 // pred_fallthru
    _
  // Predicated region
  $region26: #{first_stage_pallas.1} parent=0 // pred_check
    _
  $region27: #{first_stage_pallas.1} parent=0 // pred_check_branch
    %36 = sbr.rel (0) target = $region29
  $region28: #{first_stage_pallas.1} parent=0 // pred_region
    _
  $region29: #{first_stage_pallas.1} parent=0 // pred_fallthru
    _
  // Predicated region
  $region30: #{first_stage_pallas.1} parent=0 // pred_check
    _
  $region31: #{first_stage_pallas.1} parent=0 // pred_check_branch
    %38 = sbr.rel (0) target = $region33
  $region32: #{first_stage_pallas.1} parent=0 // pred_region
    _
  $region33: #{first_stage_pallas.1} parent=0 // pred_fallthru
    _
  // Predicated region
  $region34: #{first_stage_pallas.1} parent=0 // pred_check
    _
  $region35: #{first_stage_pallas.1} parent=0 // pred_check_branch
    %40 = sbr.rel (0) target = $region37
  $region36: #{first_stage_pallas.1} parent=0 // pred_region
    _
  $region37: #{first_stage_pallas.1} parent=0 // pred_fallthru
    _
  // Predicated region
  $region38: #{first_stage_pallas.1} parent=0 // pred_check
    _
  $region39: #{first_stage_pallas.1} parent=0 // pred_check_branch
    %42 = sbr.rel (0) target = $region41
  $region40: #{first_stage_pallas.1} parent=0 // pred_region
    _
  $region41: #{first_stage_pallas.1} parent=0 // pred_fallthru
    _
  // Predicated region
  $region42: #{first_stage_pallas.1} parent=0 // pred_check
    _
  $region43: #{first_stage_pallas.1} parent=0 // pred_check_branch
    %44 = sbr.rel (0) target = $region45
  $region44: #{first_stage_pallas.1} parent=0 // pred_region
    _
  $region45: #{first_stage_pallas.1} parent=0 // pred_fallthru
    _
  // Predicated region
  $region46: #{first_stage_pallas.1} parent=0 // pred_check
    _
  $region47: #{first_stage_pallas.1} parent=0 // pred_check_branch
    %46 = sbr.rel (0) target = $region49
  $region48: #{first_stage_pallas.1} parent=0 // pred_region
    _
  $region49: #{first_stage_pallas.1} parent=0 // pred_fallthru
    _
  // Predicated region
  $region50: #{first_stage_pallas.1} parent=0 // pred_check
    _
  $region51: #{first_stage_pallas.1} parent=0 // pred_check_branch
    %48 = sbr.rel (0) target = $region53
  $region52: #{first_stage_pallas.1} parent=0 // pred_region
    _
  $region53: #{first_stage_pallas.1} parent=0 // pred_fallthru
    _
  // Predicated region
  $region54: #{first_stage_pallas.1} parent=0 // pred_check
    _
  $region55: #{first_stage_pallas.1} parent=0 // pred_check_branch
    %50 = sbr.rel (0) target = $region57
  $region56: #{first_stage_pallas.1} parent=0 // pred_region
    _
  $region57: #{first_stage_pallas.1} parent=0 // pred_fallthru
    _
  // Predicated region
  $region58: #{first_stage_pallas.1} parent=0 // pred_check
    _
  $region59: #{first_stage_pallas.1} parent=0 // pred_check_branch
    %52 = sbr.rel (0) target = $region61
  $region60: #{first_stage_pallas.1} parent=0 // pred_region
    _
  $region61: #{first_stage_pallas.1} parent=0 // pred_fallthru
    _
  // Predicated region
  $region62: #{first_stage_pallas.1} parent=0 // pred_check
    _
  $region63: #{first_stage_pallas.1} parent=0 // pred_check_branch
    %54 = sbr.rel (0) target = $region65
  $region64: #{first_stage_pallas.1} parent=0 // pred_region
    _
  $region65: #{first_stage_pallas.1} parent=0 // pred_fallthru
    _
  // Predicated region
  $region66: #{first_stage_pallas.1} parent=0 // pred_check
    _
  $region67: #{first_stage_pallas.1} parent=0 // pred_check_branch
    %56 = sbr.rel (0) target = $region69
  $region68: #{first_stage_pallas.1} parent=0 // pred_region
    _
  $region69: #{first_stage_pallas.1} parent=0 // pred_fallthru
    _
  // Predicated region
  $region70: #{first_stage_pallas.1} parent=0 // pred_check
    _
  $region71: #{first_stage_pallas.1} parent=0 // pred_check_branch
    %58 = sbr.rel (0) target = $region73
  $region72: #{first_stage_pallas.1} parent=0 // pred_region
    _
  $region73: #{first_stage_pallas.1} parent=0 // pred_fallthru
    _
  %60 = vst [vmem:[#allocation2] sm:$0xff] 0.0
  %61 = vst [vmem:[#allocation2 + $0x48] sm:$0xff] 0.0
  %62 = vst [vmem:[#allocation2 + $0x50] sm:$0xff] 0.0
  %63 = vst [vmem:[#allocation2 + $0x98] sm:$0xff] 0.0
  %vm64 = vcmask 523264
  %65 = vst.msk [vmem:[#allocation3] sm:$0xff] %vm64, 0.0
  %66 = vst.msk [vmem:[#allocation3 + $0x28] sm:$0xff] %vm64, 0.0
  %67 = vst.msk [vmem:[#allocation3 + $0x30] sm:$0xff] %vm64, 0.0
  %68 = vst.msk [vmem:[#allocation3 + $0x58] sm:$0xff] %vm64, 0.0
  %vm69 = vcmask 261120
  %70 = vst.msk [vmem:[#allocation4] sm:$0xff] %vm69, 0.0
  %71 = vst.msk [vmem:[#allocation4 + $0x18] sm:$0xff] %vm69, 0.0
  %72 = vst.msk [vmem:[#allocation4 + $0x20] sm:$0xff] %vm69, 0.0
  %73 = vst.msk [vmem:[#allocation4 + $0x38] sm:$0xff] %vm69, 0.0
  %vm74 = vcmask 519168
  %75 = vst.msk [vmem:[#allocation5] sm:$0xf] %vm74, 0
  %76 = vst.msk [vmem:[#allocation5 + $0x14] sm:$0xf] %vm74, 0
  %77 = vst.msk [vmem:[#allocation5 + $0x18] sm:$0xf] %vm74, 0
  %78 = vst.msk [vmem:[#allocation5 + $0x2c] sm:$0xf] %vm74, 0
  %vm79 = vcmask 257024
  %80 = vst.msk [vmem:[#allocation6] sm:$0xf] %vm79, 0
  %81 = vst.msk [vmem:[#allocation6 + $0xc] sm:$0xf] %vm79, 0
  %82 = vst.msk [vmem:[#allocation6 + $0x10] sm:$0xf] %vm79, 0
  %83 = vst.msk [vmem:[#allocation6 + $0x1c] sm:$0xf] %vm79, 0
  %vm84 = vcmask 125952
  %85 = vst.msk [vmem:[#allocation7] sm:$0xf] %vm84, 0
  %86 = vst.msk [vmem:[#allocation7 + $0x8] sm:$0xf] %vm84, 0
  %87 = vst.msk [vmem:[#allocation7 + $0xc] sm:$0xf] %vm84, 0
  %88 = vst.msk [vmem:[#allocation7 + $0x14] sm:$0xf] %vm84, 0
  %vm89 = vcmask 27648
  %90 = vst.msk [vmem:[#allocation8] sm:$0xf] %vm89, 0
  %91 = vst.msk [vmem:[#allocation8 + $0x8] sm:$0xf] %vm89, 0
  %92 = vst.msk [vmem:[#allocation8 + $0xc] sm:$0xf] %vm89, 0
  %93 = vst.msk [vmem:[#allocation8 + $0x14] sm:$0xf] %vm89, 0
  %v94 = vld [vmem:[%s0] sm:$0xc]
  %v95 = vld [vmem:[%s0 + $0x4] sm:$0xf]
  %v96 = vld [vmem:[%s0 + $0x8] sm:$0xf]
  %v97 = vld [vmem:[%s0 + $0xc] sm:$0xf]
  %v98 = vld [vmem:[%s0 + $0x10] sm:$0xf]
  %v99 = vld [vmem:[%s0 + $0x14] sm:$0xf]
  %v100 = vld [vmem:[%s0 + $0x18] sm:$0xf]
  %v101 = vld [vmem:[%s0 + $0x1c] sm:$0xf]
  %v102 = vld [vmem:[%s0 + $0x20] sm:$0xf]
  %v103 = vld [vmem:[%s0 + $0x24] sm:$0xf]
  %v104 = vld [vmem:[%s0 + $0x28] sm:$0xf]
  %v105 = vld [vmem:[%s0 + $0x2c] sm:$0xf]
  %v106 = vld [vmem:[%s0 + $0x30] sm:$0xf]
  %v107 = vld [vmem:[%s0 + $0x34] sm:$0xf]
  %v108 = vld [vmem:[%s0 + $0x38] sm:$0xf]
  %v109 = vld [vmem:[%s0 + $0x3c] sm:$0xf]
  %v110 = vld [vmem:[%s0 + $0x40] sm:$0xf]
  %v111 = vld [vmem:[%s0 + $0x44] sm:$0xf]
  %v112 = vld [vmem:[%s0 + $0x48] sm:$0x3]
  %v113 = vld [vmem:[%s1] sm:$0xf]
  %v114 = vld [vmem:[%s1 + $0x4] sm:$0xf]
  %v115 = vld [vmem:[%s1 + $0x8] sm:$0xf]
  %v116 = vld [vmem:[%s1 + $0xc] sm:$0xf]
  %v117 = vld [vmem:[%s1 + $0x10] sm:$0xf]
  %v118 = vld [vmem:[%s1 + $0x14] sm:$0xf]
  %v119 = vld [vmem:[%s0 + $0x48] sm:$0x7]
  %s120 = scalar_lea.vmem %s1, 24
  %v121 = vld [vmem:[%s120] sm:$0xf]
  %v122 = vld [vmem:[%s120 + $0x4] sm:$0xf]
  %v123 = vld [vmem:[%s120 + $0x8] sm:$0xf]
  %v124 = vld [vmem:[%s120 + $0xc] sm:$0xf]
  %v125 = vld [vmem:[%s120 + $0x10] sm:$0xf]
  %v126 = vld [vmem:[%s120 + $0x14] sm:$0xf]
  %v146 = vunpack.c.l.b16 %v94
  %v147 = vunpack.c.l.b16 %v95
  %v148 = vunpack.c.l.b16 %v96
  %v149 = vunpack.c.l.b16 %v97
  %v150 = vunpack.c.l.b16 %v98
  %v151 = vunpack.c.l.b16 %v99
  %v152 = vunpack.c.l.b16 %v100
  %v153 = vunpack.c.l.b16 %v101
  %v154 = vunpack.c.l.b16 %v102
  %v155 = vunpack.c.l.b16 %v103
  %v156 = vunpack.c.l.b16 %v104
  %v157 = vunpack.c.l.b16 %v105
  %v158 = vunpack.c.l.b16 %v106
  %v159 = vunpack.c.l.b16 %v107
  %v160 = vunpack.c.l.b16 %v108
  %v161 = vunpack.c.l.b16 %v109
  %v162 = vunpack.c.l.b16 %v110
  %v163 = vunpack.c.l.b16 %v111
  %v164 = vunpack.c.l.b16 %v119
  %v165 = vpack.c.b16 %v147, %v146
  %v166 = vpack.c.b16 %v149, %v148
  %v167 = vpack.c.b16 %v151, %v150
  %v168 = vpack.c.b16 %v153, %v152
  %v169 = vpack.c.b16 %v155, %v154
  %v170 = vpack.c.b16 %v157, %v156
  %v171 = vpack.c.b16 %v159, %v158
  %v172 = vpack.c.b16 %v161, %v160
  %v173 = vpack.c.b16 %v163, %v162
  %v174 = vpack.c.b16 %v164, %v164
  %vm175 = vsmask.f32 5376
  %v177 = vshrl.u32 %v165, 16
  %v179 = vrot.slane %v177, 2
  %v180 = vshll.u32 %v165, 16
  %v182 = vrot.slane %v180, 3
  %v183 = vor.u32 %v179, %v182
  %v185 = vshrl.u32 %v166, 16
  %v187 = vrot.slane %v185, 2
  %v188 = vshll.u32 %v166, 16
  %v190 = vrot.slane %v188, 3
  %v191 = vor.u32 %v187, %v190
  %v192 = vsel %vm175, %v183, %v191
  %v194 = vshrl.u32 %v167, 16
  %v196 = vrot.slane %v194, 2
  %v197 = vshll.u32 %v167, 16
  %v199 = vrot.slane %v197, 3
  %v200 = vor.u32 %v196, %v199
  %v201 = vsel %vm175, %v191, %v200
  %v203 = vshrl.u32 %v168, 16
  %v205 = vrot.slane %v203, 2
  %v206 = vshll.u32 %v168, 16
  %v208 = vrot.slane %v206, 3
  %v209 = vor.u32 %v205, %v208
  %v210 = vsel %vm175, %v200, %v209
  %v212 = vshrl.u32 %v169, 16
  %v214 = vrot.slane %v212, 2
  %v215 = vshll.u32 %v169, 16
  %v217 = vrot.slane %v215, 3
  %v218 = vor.u32 %v214, %v217
  %v219 = vsel %vm175, %v209, %v218
  %v221 = vshrl.u32 %v170, 16
  %v223 = vrot.slane %v221, 2
  %v224 = vshll.u32 %v170, 16
  %v226 = vrot.slane %v224, 3
  %v227 = vor.u32 %v223, %v226
  %v228 = vsel %vm175, %v218, %v227
  %v230 = vshrl.u32 %v171, 16
  %v232 = vrot.slane %v230, 2
  %v233 = vshll.u32 %v171, 16
  %v235 = vrot.slane %v233, 3
  %v236 = vor.u32 %v232, %v235
  %v237 = vsel %vm175, %v227, %v236
  %v239 = vshrl.u32 %v172, 16
  %v241 = vrot.slane %v239, 2
  %v242 = vshll.u32 %v172, 16
  %v244 = vrot.slane %v242, 3
  %v245 = vor.u32 %v241, %v244
  %v246 = vsel %vm175, %v236, %v245
  %v248 = vshrl.u32 %v173, 16
  %v250 = vrot.slane %v248, 2
  %v251 = vshll.u32 %v173, 16
  %v253 = vrot.slane %v251, 3
  %v254 = vor.u32 %v250, %v253
  %v255 = vsel %vm175, %v245, %v254
  %v257 = vshrl.u32 %v174, 16
  %v259 = vrot.slane %v257, 2
  %v260 = vshll.u32 %v174, 16
  %v262 = vrot.slane %v260, 3
  %v263 = vor.u32 %v259, %v262
  %v264 = vsel %vm175, %v254, %v263
  %v271 = vunpack.c.l.b16 %v121
  %v272 = vunpack.c.l.b16 %v122
  %v273 = vunpack.c.l.b16 %v123
  %v274 = vunpack.c.l.b16 %v124
  %v275 = vunpack.c.l.b16 %v125
  %v276 = vunpack.c.l.b16 %v126
  %v277 = vpack.c.b16 %v272, %v271
  %v278 = vpack.c.b16 %v274, %v273
  %v279 = vpack.c.b16 %v276, %v275
  %vm283 = vcmask 392192
  %v285 = vsel %vm283, %v192, 0
  %v288 = vsel %vm283, %v201, 0
  %v291 = vsel %vm283, %v210, 0
  %v294 = vsel %vm283, %v219, 0
  %v297 = vsel %vm283, %v228, 0
  %v300 = vsel %vm283, %v237, 0
  %v303 = vsel %vm283, %v246, 0
  %v306 = vsel %vm283, %v255, 0
  %v309 = vsel %vm283, %v264, 0
  %311 = vmatprep.subr.bf16.mxu0 0
  %312 = vmatpush1.bf16.msra.mxu0 0
  %313 = vmatprep.subr.bf16.mxu0 0
  %314 = vmatpush1.bf16.msra.mxu0 0
  %315 = vmatprep.subr.bf16.mxu0 0
  %316 = vmatpush1.bf16.msra.mxu0 0
  %317 = vmatprep.subr.bf16.mxu0 0
  %318 = vmatpush1.bf16.msra.mxu0 0
  %319 = vmatprep.subr.bf16.mxu0 0
  %320 = vmatpush1.bf16.msra.mxu0 0
  %321 = vmatprep.subr.bf16.mxu0 0
  %322 = vmatpush1.bf16.msra.mxu0 %v279
  %323 = vmatprep.subr.bf16.mxu0 0
  %324 = vmatpush1.bf16.msra.mxu0 %v278
  %325 = vmatprep.subr.bf16.mxu0 0
  %326 = vmatpush1.bf16.msra.mxu0 %v277
  %327 = vmatprep.subr.bf16.mxu0 0
  %328 = vmatpush2.bf16.msra.mxu0 0
  %329 = vmatprep.subr.bf16.mxu0 0
  %330 = vmatpush2.bf16.msra.mxu0 0
  %331 = vmatprep.subr.bf16.mxu0 0
  %332 = vmatpush2.bf16.msra.mxu0 0
  %333 = vmatprep.subr.bf16.mxu0 0
  %334 = vmatpush2.bf16.msra.mxu0 0
  %335 = vmatprep.subr.bf16.mxu0 0
  %336 = vmatpush2.bf16.msra.mxu0 0
  %337 = vmatprep.subr.bf16.mxu0 0
  %338 = vmatpush2.bf16.msra.mxu0 0
  %339 = vmatprep.subr.bf16.mxu0 0
  %340 = vmatpush2.bf16.msra.mxu0 0
  %341 = vmatprep.subr.bf16.mxu0 0
  %342 = vmatpush2.bf16.msra.mxu0 0
  %343 = vmatprep.mubr.bf16.mxu0 0
  %344 = vmatmul.mubr.bf16.gmra.mxu0 %v285
  %v345 = vpop.f32.mrf.mxu0
  %v346 = vadd.f32 0.0, %v345
  %v347 = vpop.f32.mrf.mxu0
  %v348 = vpop.f32.mrf.mxu0
  %v349 = vadd.f32 0.0, %v348
  %v350 = vpop.f32.mrf.mxu0
  %351 = vmatprep.mubr.bf16.mxu0 0
  %352 = vmatmul.mubr.bf16.gmra.mxu0 %v288
  %v353 = vpop.f32.mrf.mxu0
  %v354 = vadd.f32 0.0, %v353
  %v355 = vpop.f32.mrf.mxu0
  %v356 = vpop.f32.mrf.mxu0
  %v357 = vadd.f32 0.0, %v356
  %v358 = vpop.f32.mrf.mxu0
  %359 = vmatprep.mubr.bf16.mxu0 0
  %360 = vmatmul.mubr.bf16.gmra.mxu0 %v291
  %v361 = vpop.f32.mrf.mxu0
  %v362 = vadd.f32 0.0, %v361
  %v363 = vpop.f32.mrf.mxu0
  %v364 = vpop.f32.mrf.mxu0
  %v365 = vadd.f32 0.0, %v364
  %v366 = vpop.f32.mrf.mxu0
  %367 = vmatprep.mubr.bf16.mxu0 0
  %368 = vmatmul.mubr.bf16.gmra.mxu0 %v294
  %v369 = vpop.f32.mrf.mxu0
  %v370 = vadd.f32 0.0, %v369
  %v371 = vpop.f32.mrf.mxu0
  %v372 = vpop.f32.mrf.mxu0
  %v373 = vadd.f32 0.0, %v372
  %v374 = vpop.f32.mrf.mxu0
  %375 = vmatprep.mubr.bf16.mxu0 0
  %376 = vmatmul.mubr.bf16.gmra.mxu0 %v297
  %v377 = vpop.f32.mrf.mxu0
  %v378 = vpop.f32.mrf.mxu0
  %v379 = vpop.f32.mrf.mxu0
  %v380 = vpop.f32.mrf.mxu0
  %381 = vmatprep.mubr.bf16.mxu0 0
  %382 = vmatmul.mubr.bf16.gmra.mxu0 %v300
  %v383 = vpop.f32.mrf.mxu0
  %v384 = vadd.f32 0.0, %v383
  %v385 = vpop.f32.mrf.mxu0
  %v386 = vpop.f32.mrf.mxu0
  %v387 = vadd.f32 0.0, %v386
  %v388 = vpop.f32.mrf.mxu0
  %389 = vmatprep.mubr.bf16.mxu0 0
  %390 = vmatmul.mubr.bf16.gmra.mxu0 %v303
  %v391 = vpop.f32.mrf.mxu0
  %v392 = vadd.f32 0.0, %v391
  %v393 = vpop.f32.mrf.mxu0
  %v394 = vpop.f32.mrf.mxu0
  %v395 = vadd.f32 0.0, %v394
  %v396 = vpop.f32.mrf.mxu0
  %397 = vmatprep.mubr.bf16.mxu0 0
  %398 = vmatmul.mubr.bf16.gmra.mxu0 %v306
  %v399 = vpop.f32.mrf.mxu0
  %v400 = vadd.f32 0.0, %v399
  %v401 = vpop.f32.mrf.mxu0
  %v402 = vpop.f32.mrf.mxu0
  %v403 = vadd.f32 0.0, %v402
  %v404 = vpop.f32.mrf.mxu0
  %405 = vmatprep.mubr.bf16.mxu0 0
  %406 = vmatmul.mubr.bf16.gmra.mxu0 %v309
  %v407 = vpop.f32.mrf.mxu0
  %v408 = vadd.f32 0.0, %v407
  %v409 = vpop.f32.mrf.mxu0
  %v410 = vpop.f32.mrf.mxu0
  %v411 = vadd.f32 0.0, %v410
  %v412 = vpop.f32.mrf.mxu0
  %413 = vdwg.mxu0
  %v414 = vld [vmem:[%s0] sm:$0x8]
  %s415 = scalar_lea.vmem %s1, 48
  %v416 = vld [vmem:[%s415] sm:$0xf]
  %v417 = vld [vmem:[%s415 + $0x4] sm:$0xf]
  %v418 = vld [vmem:[%s415 + $0x8] sm:$0xf]
  %v419 = vld [vmem:[%s415 + $0xc] sm:$0xf]
  %v420 = vld [vmem:[%s415 + $0x10] sm:$0xf]
  %v421 = vld [vmem:[%s415 + $0x14] sm:$0xf]
  %v422 = vld [vmem:[%s0 + $0x48] sm:$0xf]
  %s423 = scalar_lea.vmem %s1, 72
  %v424 = vld [vmem:[%s423] sm:$0xf]
  %v425 = vld [vmem:[%s423 + $0x4] sm:$0xf]
  %v426 = vld [vmem:[%s423 + $0x8] sm:$0xf]
  %v427 = vld [vmem:[%s423 + $0xc] sm:$0xf]
  %v428 = vld [vmem:[%s423 + $0x10] sm:$0xf]
  %v429 = vld [vmem:[%s423 + $0x14] sm:$0xf]
  %v432 = vunpack.c.l.b16 %v414
  %v433 = vunpack.c.l.b16 %v422
  %v434 = vpack.c.b16 %v147, %v432
  %v435 = vpack.c.b16 %v433, %v433
  %vm436 = vsmask.f32 4352
  %v438 = vshrl.u32 %v434, 16
  %v440 = vrot.slane %v438, 3
  %v441 = vshll.u32 %v434, 16
  %v443 = vrot.slane %v441, 4
  %v444 = vor.u32 %v440, %v443
  %v445 = vrot.slane %v185, 3
  %v446 = vrot.slane %v188, 4
  %v447 = vor.u32 %v445, %v446
  %v448 = vsel %vm436, %v444, %v447
  %v449 = vrot.slane %v194, 3
  %v450 = vrot.slane %v197, 4
  %v451 = vor.u32 %v449, %v450
  %v452 = vsel %vm436, %v447, %v451
  %v453 = vrot.slane %v203, 3
  %v454 = vrot.slane %v206, 4
  %v455 = vor.u32 %v453, %v454
  %v456 = vsel %vm436, %v451, %v455
  %v457 = vrot.slane %v212, 3
  %v458 = vrot.slane %v215, 4
  %v459 = vor.u32 %v457, %v458
  %v460 = vsel %vm436, %v455, %v459
  %v461 = vrot.slane %v221, 3
  %v462 = vrot.slane %v224, 4
  %v463 = vor.u32 %v461, %v462
  %v464 = vsel %vm436, %v459, %v463
  %v465 = vrot.slane %v230, 3
  %v466 = vrot.slane %v233, 4
  %v467 = vor.u32 %v465, %v466
  %v468 = vsel %vm436, %v463, %v467
  %v469 = vrot.slane %v239, 3
  %v470 = vrot.slane %v242, 4
  %v471 = vor.u32 %v469, %v470
  %v472 = vsel %vm436, %v467, %v471
  %v473 = vrot.slane %v248, 3
  %v474 = vrot.slane %v251, 4
  %v475 = vor.u32 %v473, %v474
  %v476 = vsel %vm436, %v471, %v475
  %v478 = vshrl.u32 %v435, 16
  %v480 = vrot.slane %v478, 3
  %v481 = vshll.u32 %v435, 16
  %v483 = vrot.slane %v481, 4
  %v484 = vor.u32 %v480, %v483
  %v485 = vsel %vm436, %v475, %v484
  %v492 = vunpack.c.l.b16 %v424
  %v493 = vunpack.c.l.b16 %v425
  %v494 = vunpack.c.l.b16 %v426
  %v495 = vunpack.c.l.b16 %v427
  %v496 = vunpack.c.l.b16 %v428
  %v497 = vunpack.c.l.b16 %v429
  %v498 = vpack.c.b16 %v493, %v492
  %v499 = vpack.c.b16 %v495, %v494
  %v500 = vpack.c.b16 %v497, %v496
  %v505 = vsel %vm283, %v448, 0
  %v508 = vsel %vm283, %v452, 0
  %v511 = vsel %vm283, %v456, 0
  %v514 = vsel %vm283, %v460, 0
  %v517 = vsel %vm283, %v464, 0
  %v520 = vsel %vm283, %v468, 0
  %v523 = vsel %vm283, %v472, 0
  %v526 = vsel %vm283, %v476, 0
  %v529 = vsel %vm283, %v485, 0
  %531 = vmatprep.subr.bf16.mxu0 0
  %532 = vmatpush1.bf16.msra.mxu0 0
  %533 = vmatprep.subr.bf16.mxu0 0
  %534 = vmatpush1.bf16.msra.mxu0 0
  %535 = vmatprep.subr.bf16.mxu0 0
  %536 = vmatpush1.bf16.msra.mxu0 0
  %537 = vmatprep.subr.bf16.mxu0 0
  %538 = vmatpush1.bf16.msra.mxu0 0
  %539 = vmatprep.subr.bf16.mxu0 0
  %540 = vmatpush1.bf16.msra.mxu0 0
  %541 = vmatprep.subr.bf16.mxu0 0
  %542 = vmatpush1.bf16.msra.mxu0 %v500
  %543 = vmatprep.subr.bf16.mxu0 0
  %544 = vmatpush1.bf16.msra.mxu0 %v499
  %545 = vmatprep.subr.bf16.mxu0 0
  %546 = vmatpush1.bf16.msra.mxu0 %v498
  %547 = vmatprep.subr.bf16.mxu0 0
  %548 = vmatpush2.bf16.msra.mxu0 0
  %549 = vmatprep.subr.bf16.mxu0 0
  %550 = vmatpush2.bf16.msra.mxu0 0
  %551 = vmatprep.subr.bf16.mxu0 0
  %552 = vmatpush2.bf16.msra.mxu0 0
  %553 = vmatprep.subr.bf16.mxu0 0
  %554 = vmatpush2.bf16.msra.mxu0 0
  %555 = vmatprep.subr.bf16.mxu0 0
  %556 = vmatpush2.bf16.msra.mxu0 0
  %557 = vmatprep.subr.bf16.mxu0 0
  %558 = vmatpush2.bf16.msra.mxu0 0
  %559 = vmatprep.subr.bf16.mxu0 0
  %560 = vmatpush2.bf16.msra.mxu0 0
  %561 = vmatprep.subr.bf16.mxu0 0
  %562 = vmatpush2.bf16.msra.mxu0 0
  %563 = vmatprep.mubr.bf16.mxu0 0
  %564 = vmatmul.mubr.bf16.gmra.mxu0 %v505
  %v565 = vpop.f32.mrf.mxu0
  %v566 = vadd.f32 0.0, %v565
  %v567 = vpop.f32.mrf.mxu0
  %v568 = vpop.f32.mrf.mxu0
  %v569 = vadd.f32 0.0, %v568
  %v570 = vpop.f32.mrf.mxu0
  %571 = vmatprep.mubr.bf16.mxu0 0
  %572 = vmatmul.mubr.bf16.gmra.mxu0 %v508
  %v573 = vpop.f32.mrf.mxu0
  %v574 = vadd.f32 0.0, %v573
  %v575 = vpop.f32.mrf.mxu0
  %v576 = vpop.f32.mrf.mxu0
  %v577 = vadd.f32 0.0, %v576
  %v578 = vpop.f32.mrf.mxu0
  %579 = vmatprep.mubr.bf16.mxu0 0
  %580 = vmatmul.mubr.bf16.gmra.mxu0 %v511
  %v581 = vpop.f32.mrf.mxu0
  %v582 = vadd.f32 0.0, %v581
  %v583 = vpop.f32.mrf.mxu0
  %v584 = vpop.f32.mrf.mxu0
  %v585 = vadd.f32 0.0, %v584
  %v586 = vpop.f32.mrf.mxu0
  %587 = vmatprep.mubr.bf16.mxu0 0
  %588 = vmatmul.mubr.bf16.gmra.mxu0 %v514
  %v589 = vpop.f32.mrf.mxu0
  %v590 = vadd.f32 0.0, %v589
  %v591 = vpop.f32.mrf.mxu0
  %v592 = vpop.f32.mrf.mxu0
  %v593 = vadd.f32 0.0, %v592
  %v594 = vpop.f32.mrf.mxu0
  %595 = vmatprep.mubr.bf16.mxu0 0
  %596 = vmatmul.mubr.bf16.gmra.mxu0 %v517
  %v597 = vpop.f32.mrf.mxu0
  %v598 = vpop.f32.mrf.mxu0
  %v599 = vpop.f32.mrf.mxu0
  %v600 = vpop.f32.mrf.mxu0
  %601 = vmatprep.mubr.bf16.mxu0 0
  %602 = vmatmul.mubr.bf16.gmra.mxu0 %v520
  %v603 = vpop.f32.mrf.mxu0
  %v604 = vadd.f32 0.0, %v603
  %v605 = vpop.f32.mrf.mxu0
  %v606 = vpop.f32.mrf.mxu0
  %v607 = vadd.f32 0.0, %v606
  %v608 = vpop.f32.mrf.mxu0
  %609 = vmatprep.mubr.bf16.mxu0 0
  %610 = vmatmul.mubr.bf16.gmra.mxu0 %v523
  %v611 = vpop.f32.mrf.mxu0
  %v612 = vadd.f32 0.0, %v611
  %v613 = vpop.f32.mrf.mxu0
  %v614 = vpop.f32.mrf.mxu0
  %v615 = vadd.f32 0.0, %v614
  %v616 = vpop.f32.mrf.mxu0
  %617 = vmatprep.mubr.bf16.mxu0 0
  %618 = vmatmul.mubr.bf16.gmra.mxu0 %v526
  %v619 = vpop.f32.mrf.mxu0
  %v620 = vadd.f32 0.0, %v619
  %v621 = vpop.f32.mrf.mxu0
  %v622 = vpop.f32.mrf.mxu0
  %v623 = vadd.f32 0.0, %v622
  %v624 = vpop.f32.mrf.mxu0
  %625 = vmatprep.mubr.bf16.mxu0 0
  %626 = vmatmul.mubr.bf16.gmra.mxu0 %v529
  %v627 = vpop.f32.mrf.mxu0
  %v628 = vadd.f32 0.0, %v627
  %v629 = vpop.f32.mrf.mxu0
  %v630 = vpop.f32.mrf.mxu0
  %v631 = vadd.f32 0.0, %v630
  %v632 = vpop.f32.mrf.mxu0
  %633 = vdwg.mxu0
  %s634 = scalar_lea.vmem %s1, 96
  %v635 = vld [vmem:[%s634] sm:$0xf]
  %v636 = vld [vmem:[%s634 + $0x4] sm:$0xf]
  %v637 = vld [vmem:[%s634 + $0x8] sm:$0xf]
  %v638 = vld [vmem:[%s634 + $0xc] sm:$0xf]
  %v639 = vld [vmem:[%s634 + $0x10] sm:$0xf]
  %v640 = vld [vmem:[%s634 + $0x14] sm:$0xf]
  %v641 = vld [vmem:[%s0 + $0x4] sm:$0xf]
  %v642 = vld [vmem:[%s0 + $0x8] sm:$0xf]
  %v643 = vld [vmem:[%s0 + $0xc] sm:$0xf]
  %v644 = vld [vmem:[%s0 + $0x10] sm:$0xf]
  %v645 = vld [vmem:[%s0 + $0x14] sm:$0xf]
  %v646 = vld [vmem:[%s0 + $0x18] sm:$0xf]
  %v647 = vld [vmem:[%s0 + $0x1c] sm:$0xf]
  %v648 = vld [vmem:[%s0 + $0x20] sm:$0xf]
  %v649 = vld [vmem:[%s0 + $0x24] sm:$0xf]
  %v650 = vld [vmem:[%s0 + $0x28] sm:$0xf]
  %v651 = vld [vmem:[%s0 + $0x2c] sm:$0xf]
  %v652 = vld [vmem:[%s0 + $0x30] sm:$0xf]
  %v653 = vld [vmem:[%s0 + $0x34] sm:$0xf]
  %v654 = vld [vmem:[%s0 + $0x38] sm:$0xf]
  %v655 = vld [vmem:[%s0 + $0x3c] sm:$0xf]
  %v656 = vld [vmem:[%s0 + $0x40] sm:$0xf]
  %v657 = vld [vmem:[%s0 + $0x44] sm:$0xf]
  %v658 = vld [vmem:[%s0 + $0x48] sm:$0xf]
  %v659 = vld [vmem:[%s0 + $0x4c] sm:$0x1]
  %s660 = scalar_lea.vmem %s1, 120
  %v661 = vld [vmem:[%s660] sm:$0xf]
  %v662 = vld [vmem:[%s660 + $0x4] sm:$0xf]
  %v663 = vld [vmem:[%s660 + $0x8] sm:$0xf]
  %v664 = vld [vmem:[%s660 + $0xc] sm:$0xf]
  %v665 = vld [vmem:[%s660 + $0x10] sm:$0xf]
  %v666 = vld [vmem:[%s660 + $0x14] sm:$0xf]
  %v686 = vunpack.c.l.b16 %v641
  %v687 = vunpack.c.l.b16 %v642
  %v688 = vunpack.c.l.b16 %v643
  %v689 = vunpack.c.l.b16 %v644
  %v690 = vunpack.c.l.b16 %v645
  %v691 = vunpack.c.l.b16 %v646
  %v692 = vunpack.c.l.b16 %v647
  %v693 = vunpack.c.l.b16 %v648
  %v694 = vunpack.c.l.b16 %v649
  %v695 = vunpack.c.l.b16 %v650
  %v696 = vunpack.c.l.b16 %v651
  %v697 = vunpack.c.l.b16 %v652
  %v698 = vunpack.c.l.b16 %v653
  %v699 = vunpack.c.l.b16 %v654
  %v700 = vunpack.c.l.b16 %v655
  %v701 = vunpack.c.l.b16 %v656
  %v702 = vunpack.c.l.b16 %v657
  %v703 = vunpack.c.l.b16 %v658
  %v704 = vunpack.c.l.b16 %v659
  %v705 = vpack.c.b16 %v687, %v686
  %v706 = vpack.c.b16 %v689, %v688
  %v707 = vpack.c.b16 %v691, %v690
  %v708 = vpack.c.b16 %v693, %v692
  %v709 = vpack.c.b16 %v695, %v694
  %v710 = vpack.c.b16 %v697, %v696
  %v711 = vpack.c.b16 %v699, %v698
  %v712 = vpack.c.b16 %v701, %v700
  %v713 = vpack.c.b16 %v703, %v702
  %v714 = vpack.c.b16 %v704, %v704
  %vm715 = vsmask.f32 7424
  %v717 = vshrl.u32 %v705, 16
  %v719 = vshll.u32 %v705, 16
  %v721 = vrot.slane %v719, 1
  %v722 = vor.u32 %v717, %v721
  %v724 = vshll.u32 %v706, 16
  %v726 = vrot.slane %v724, 1
  %v727 = vsel %vm715, %v722, %v726
  %v728 = vshrl.u32 %v706, 16
  %v730 = vor.u32 %v728, %v726
  %v732 = vshll.u32 %v707, 16
  %v734 = vrot.slane %v732, 1
  %v735 = vsel %vm715, %v730, %v734
  %v736 = vshrl.u32 %v707, 16
  %v738 = vor.u32 %v736, %v734
  %v740 = vshll.u32 %v708, 16
  %v742 = vrot.slane %v740, 1
  %v743 = vsel %vm715, %v738, %v742
  %v744 = vshrl.u32 %v708, 16
  %v746 = vor.u32 %v744, %v742
  %v748 = vshll.u32 %v709, 16
  %v750 = vrot.slane %v748, 1
  %v751 = vsel %vm715, %v746, %v750
  %v752 = vshrl.u32 %v709, 16
  %v754 = vor.u32 %v752, %v750
  %v756 = vshll.u32 %v710, 16
  %v758 = vrot.slane %v756, 1
  %v759 = vsel %vm715, %v754, %v758
  %v760 = vshrl.u32 %v710, 16
  %v762 = vor.u32 %v760, %v758
  %v764 = vshll.u32 %v711, 16
  %v766 = vrot.slane %v764, 1
  %v767 = vsel %vm715, %v762, %v766
  %v768 = vshrl.u32 %v711, 16
  %v770 = vor.u32 %v768, %v766
  %v772 = vshll.u32 %v712, 16
  %v774 = vrot.slane %v772, 1
  %v775 = vsel %vm715, %v770, %v774
  %v776 = vshrl.u32 %v712, 16
  %v778 = vor.u32 %v776, %v774
  %v780 = vshll.u32 %v713, 16
  %v782 = vrot.slane %v780, 1
  %v783 = vsel %vm715, %v778, %v782
  %v784 = vshrl.u32 %v713, 16
  %v786 = vor.u32 %v784, %v782
  %v788 = vshll.u32 %v714, 16
  %v790 = vrot.slane %v788, 1
  %v791 = vsel %vm715, %v786, %v790
  %v798 = vunpack.c.l.b16 %v661
  %v799 = vunpack.c.l.b16 %v662
  %v800 = vunpack.c.l.b16 %v663
  %v801 = vunpack.c.l.b16 %v664
  %v802 = vunpack.c.l.b16 %v665
  %v803 = vunpack.c.l.b16 %v666
  %v804 = vpack.c.b16 %v799, %v798
  %v805 = vpack.c.b16 %v801, %v800
  %v806 = vpack.c.b16 %v803, %v802
  %v811 = vsel %vm283, %v727, 0
  %v814 = vsel %vm283, %v735, 0
  %v817 = vsel %vm283, %v743, 0
  %v820 = vsel %vm283, %v751, 0
  %v823 = vsel %vm283, %v759, 0
  %v826 = vsel %vm283, %v767, 0
  %v829 = vsel %vm283, %v775, 0
  %v832 = vsel %vm283, %v783, 0
  %v835 = vsel %vm283, %v791, 0
  %837 = vmatprep.subr.bf16.mxu0 0
  %838 = vmatpush1.bf16.msra.mxu0 0
  %839 = vmatprep.subr.bf16.mxu0 0
  %840 = vmatpush1.bf16.msra.mxu0 0
  %841 = vmatprep.subr.bf16.mxu0 0
  %842 = vmatpush1.bf16.msra.mxu0 0
  %843 = vmatprep.subr.bf16.mxu0 0
  %844 = vmatpush1.bf16.msra.mxu0 0
  %845 = vmatprep.subr.bf16.mxu0 0
  %846 = vmatpush1.bf16.msra.mxu0 0
  %847 = vmatprep.subr.bf16.mxu0 0
  %848 = vmatpush1.bf16.msra.mxu0 %v806
  %849 = vmatprep.subr.bf16.mxu0 0
  %850 = vmatpush1.bf16.msra.mxu0 %v805
  %851 = vmatprep.subr.bf16.mxu0 0
  %852 = vmatpush1.bf16.msra.mxu0 %v804
  %853 = vmatprep.subr.bf16.mxu0 0
  %854 = vmatpush2.bf16.msra.mxu0 0
  %855 = vmatprep.subr.bf16.mxu0 0
  %856 = vmatpush2.bf16.msra.mxu0 0
  %857 = vmatprep.subr.bf16.mxu0 0
  %858 = vmatpush2.bf16.msra.mxu0 0
  %859 = vmatprep.subr.bf16.mxu0 0
  %860 = vmatpush2.bf16.msra.mxu0 0
  %861 = vmatprep.subr.bf16.mxu0 0
  %862 = vmatpush2.bf16.msra.mxu0 0
  %863 = vmatprep.subr.bf16.mxu0 0
  %864 = vmatpush2.bf16.msra.mxu0 0
  %865 = vmatprep.subr.bf16.mxu0 0
  %866 = vmatpush2.bf16.msra.mxu0 0
  %867 = vmatprep.subr.bf16.mxu0 0
  %868 = vmatpush2.bf16.msra.mxu0 0
  %869 = vmatprep.mubr.bf16.mxu0 0
  %870 = vmatmul.mubr.bf16.gmra.mxu0 %v811
  %v871 = vpop.f32.mrf.mxu0
  %v872 = vadd.f32 0.0, %v871
  %v873 = vpop.f32.mrf.mxu0
  %v874 = vpop.f32.mrf.mxu0
  %v875 = vadd.f32 0.0, %v874
  %v876 = vpop.f32.mrf.mxu0
  %877 = vmatprep.mubr.bf16.mxu0 0
  %878 = vmatmul.mubr.bf16.gmra.mxu0 %v814
  %v879 = vpop.f32.mrf.mxu0
  %v880 = vadd.f32 0.0, %v879
  %v881 = vpop.f32.mrf.mxu0
  %v882 = vpop.f32.mrf.mxu0
  %v883 = vadd.f32 0.0, %v882
  %v884 = vpop.f32.mrf.mxu0
  %885 = vmatprep.mubr.bf16.mxu0 0
  %886 = vmatmul.mubr.bf16.gmra.mxu0 %v817
  %v887 = vpop.f32.mrf.mxu0
  %v888 = vadd.f32 0.0, %v887
  %v889 = vpop.f32.mrf.mxu0
  %v890 = vpop.f32.mrf.mxu0
  %v891 = vadd.f32 0.0, %v890
  %v892 = vpop.f32.mrf.mxu0
  %893 = vmatprep.mubr.bf16.mxu0 0
  %894 = vmatmul.mubr.bf16.gmra.mxu0 %v820
  %v895 = vpop.f32.mrf.mxu0
  %v896 = vadd.f32 0.0, %v895
  %v897 = vpop.f32.mrf.mxu0
  %v898 = vpop.f32.mrf.mxu0
  %v899 = vadd.f32 0.0, %v898
  %v900 = vpop.f32.mrf.mxu0
  %901 = vmatprep.mubr.bf16.mxu0 0
  %902 = vmatmul.mubr.bf16.gmra.mxu0 %v823
  %v903 = vpop.f32.mrf.mxu0
  %v904 = vpop.f32.mrf.mxu0
  %v905 = vpop.f32.mrf.mxu0
  %v906 = vpop.f32.mrf.mxu0
  %907 = vmatprep.mubr.bf16.mxu0 0
  %908 = vmatmul.mubr.bf16.gmra.mxu0 %v826
  %v909 = vpop.f32.mrf.mxu0
  %v910 = vadd.f32 0.0, %v909
  %v911 = vpop.f32.mrf.mxu0
  %v912 = vpop.f32.mrf.mxu0
  %v913 = vadd.f32 0.0, %v912
  %v914 = vpop.f32.mrf.mxu0
  %915 = vmatprep.mubr.bf16.mxu0 0
  %916 = vmatmul.mubr.bf16.gmra.mxu0 %v829
  %v917 = vpop.f32.mrf.mxu0
  %v918 = vadd.f32 0.0, %v917
  %v919 = vpop.f32.mrf.mxu0
  %v920 = vpop.f32.mrf.mxu0
  %v921 = vadd.f32 0.0, %v920
  %v922 = vpop.f32.mrf.mxu0
  %923 = vmatprep.mubr.bf16.mxu0 0
  %924 = vmatmul.mubr.bf16.gmra.mxu0 %v832
  %v925 = vpop.f32.mrf.mxu0
  %v926 = vadd.f32 0.0, %v925
  %v927 = vpop.f32.mrf.mxu0
  %v928 = vpop.f32.mrf.mxu0
  %v929 = vadd.f32 0.0, %v928
  %v930 = vpop.f32.mrf.mxu0
  %931 = vmatprep.mubr.bf16.mxu0 0
  %932 = vmatmul.mubr.bf16.gmra.mxu0 %v835
  %v933 = vpop.f32.mrf.mxu0
  %v934 = vadd.f32 0.0, %v933
  %v935 = vpop.f32.mrf.mxu0
  %v936 = vpop.f32.mrf.mxu0
  %v937 = vadd.f32 0.0, %v936
  %v938 = vpop.f32.mrf.mxu0
  %939 = vdwg.mxu0
  %v940 = vld [vmem:[%s0 + $0x4] sm:$0xe]
  %s941 = scalar_lea.vmem %s1, 144
  %v942 = vld [vmem:[%s941] sm:$0xf]
  %v943 = vld [vmem:[%s941 + $0x4] sm:$0xf]
  %v944 = vld [vmem:[%s941 + $0x8] sm:$0xf]
  %v945 = vld [vmem:[%s941 + $0xc] sm:$0xf]
  %v946 = vld [vmem:[%s941 + $0x10] sm:$0xf]
  %v947 = vld [vmem:[%s941 + $0x14] sm:$0xf]
  %v948 = vld [vmem:[%s0 + $0x4c] sm:$0x3]
  %s949 = scalar_lea.vmem %s1, 168
  %v950 = vld [vmem:[%s949] sm:$0xf]
  %v951 = vld [vmem:[%s949 + $0x4] sm:$0xf]
  %v952 = vld [vmem:[%s949 + $0x8] sm:$0xf]
  %v953 = vld [vmem:[%s949 + $0xc] sm:$0xf]
  %v954 = vld [vmem:[%s949 + $0x10] sm:$0xf]
  %v955 = vld [vmem:[%s949 + $0x14] sm:$0xf]
  %v958 = vunpack.c.l.b16 %v940
  %v959 = vunpack.c.l.b16 %v948
  %v960 = vpack.c.b16 %v687, %v958
  %v961 = vpack.c.b16 %v959, %v959
  %vm962 = vsmask.f32 6400
  %v964 = vshrl.u32 %v960, 16
  %v966 = vrot.slane %v964, 1
  %v967 = vshll.u32 %v960, 16
  %v969 = vrot.slane %v967, 2
  %v970 = vor.u32 %v966, %v969
  %v971 = vrot.slane %v728, 1
  %v972 = vrot.slane %v724, 2
  %v973 = vor.u32 %v971, %v972
  %v974 = vsel %vm962, %v970, %v973
  %v975 = vrot.slane %v736, 1
  %v976 = vrot.slane %v732, 2
  %v977 = vor.u32 %v975, %v976
  %v978 = vsel %vm962, %v973, %v977
  %v979 = vrot.slane %v744, 1
  %v980 = vrot.slane %v740, 2
  %v981 = vor.u32 %v979, %v980
  %v982 = vsel %vm962, %v977, %v981
  %v983 = vrot.slane %v752, 1
  %v984 = vrot.slane %v748, 2
  %v985 = vor.u32 %v983, %v984
  %v986 = vsel %vm962, %v981, %v985
  %v987 = vrot.slane %v760, 1
  %v988 = vrot.slane %v756, 2
  %v989 = vor.u32 %v987, %v988
  %v990 = vsel %vm962, %v985, %v989
  %v991 = vrot.slane %v768, 1
  %v992 = vrot.slane %v764, 2
  %v993 = vor.u32 %v991, %v992
  %v994 = vsel %vm962, %v989, %v993
  %v995 = vrot.slane %v776, 1
  %v996 = vrot.slane %v772, 2
  %v997 = vor.u32 %v995, %v996
  %v998 = vsel %vm962, %v993, %v997
  %v999 = vrot.slane %v784, 1
  %v1000 = vrot.slane %v780, 2
  %v1001 = vor.u32 %v999, %v1000
  %v1002 = vsel %vm962, %v997, %v1001
  %v1004 = vshrl.u32 %v961, 16
  %v1006 = vrot.slane %v1004, 1
  %v1007 = vshll.u32 %v961, 16
  %v1009 = vrot.slane %v1007, 2
  %v1010 = vor.u32 %v1006, %v1009
  %v1011 = vsel %vm962, %v1001, %v1010
  %v1018 = vunpack.c.l.b16 %v950
  %v1019 = vunpack.c.l.b16 %v951
  %v1020 = vunpack.c.l.b16 %v952
  %v1021 = vunpack.c.l.b16 %v953
  %v1022 = vunpack.c.l.b16 %v954
  %v1023 = vunpack.c.l.b16 %v955
  %v1024 = vpack.c.b16 %v1019, %v1018
  %v1025 = vpack.c.b16 %v1021, %v1020
  %v1026 = vpack.c.b16 %v1023, %v1022
  %v1031 = vsel %vm283, %v974, 0
  %v1034 = vsel %vm283, %v978, 0
  %v1037 = vsel %vm283, %v982, 0
  %v1040 = vsel %vm283, %v986, 0
  %v1043 = vsel %vm283, %v990, 0
  %v1046 = vsel %vm283, %v994, 0
  %v1049 = vsel %vm283, %v998, 0
  %v1052 = vsel %vm283, %v1002, 0
  %v1055 = vsel %vm283, %v1011, 0
  %1057 = vmatprep.subr.bf16.mxu0 0
  %1058 = vmatpush1.bf16.msra.mxu0 0
  %1059 = vmatprep.subr.bf16.mxu0 0
  %1060 = vmatpush1.bf16.msra.mxu0 0
  %1061 = vmatprep.subr.bf16.mxu0 0
  %1062 = vmatpush1.bf16.msra.mxu0 0
  %1063 = vmatprep.subr.bf16.mxu0 0
  %1064 = vmatpush1.bf16.msra.mxu0 0
  %1065 = vmatprep.subr.bf16.mxu0 0
  %1066 = vmatpush1.bf16.msra.mxu0 0
  %1067 = vmatprep.subr.bf16.mxu0 0
  %1068 = vmatpush1.bf16.msra.mxu0 %v1026
  %1069 = vmatprep.subr.bf16.mxu0 0
  %1070 = vmatpush1.bf16.msra.mxu0 %v1025
  %1071 = vmatprep.subr.bf16.mxu0 0
  %1072 = vmatpush1.bf16.msra.mxu0 %v1024
  %1073 = vmatprep.subr.bf16.mxu0 0
  %1074 = vmatpush2.bf16.msra.mxu0 0
  %1075 = vmatprep.subr.bf16.mxu0 0
  %1076 = vmatpush2.bf16.msra.mxu0 0
  %1077 = vmatprep.subr.bf16.mxu0 0
  %1078 = vmatpush2.bf16.msra.mxu0 0
  %1079 = vmatprep.subr.bf16.mxu0 0
  %1080 = vmatpush2.bf16.msra.mxu0 0
  %1081 = vmatprep.subr.bf16.mxu0 0
  %1082 = vmatpush2.bf16.msra.mxu0 0
  %1083 = vmatprep.subr.bf16.mxu0 0
  %1084 = vmatpush2.bf16.msra.mxu0 0
  %1085 = vmatprep.subr.bf16.mxu0 0
  %1086 = vmatpush2.bf16.msra.mxu0 0
  %1087 = vmatprep.subr.bf16.mxu0 0
  %1088 = vmatpush2.bf16.msra.mxu0 0
  %1089 = vmatprep.mubr.bf16.mxu0 0
  %1090 = vmatmul.mubr.bf16.gmra.mxu0 %v1031
  %v1091 = vpop.f32.mrf.mxu0
  %v1092 = vadd.f32 0.0, %v1091
  %v1093 = vpop.f32.mrf.mxu0
  %v1094 = vpop.f32.mrf.mxu0
  %v1095 = vadd.f32 0.0, %v1094
  %v1096 = vpop.f32.mrf.mxu0
  %1097 = vmatprep.mubr.bf16.mxu0 0
  %1098 = vmatmul.mubr.bf16.gmra.mxu0 %v1034
  %v1099 = vpop.f32.mrf.mxu0
  %v1100 = vadd.f32 0.0, %v1099
  %v1101 = vpop.f32.mrf.mxu0
  %v1102 = vpop.f32.mrf.mxu0
  %v1103 = vadd.f32 0.0, %v1102
  %v1104 = vpop.f32.mrf.mxu0
  %1105 = vmatprep.mubr.bf16.mxu0 0
  %1106 = vmatmul.mubr.bf16.gmra.mxu0 %v1037
  %v1107 = vpop.f32.mrf.mxu0
  %v1108 = vadd.f32 0.0, %v1107
  %v1109 = vpop.f32.mrf.mxu0
  %v1110 = vpop.f32.mrf.mxu0
  %v1111 = vadd.f32 0.0, %v1110
  %v1112 = vpop.f32.mrf.mxu0
  %1113 = vmatprep.mubr.bf16.mxu0 0
  %1114 = vmatmul.mubr.bf16.gmra.mxu0 %v1040
  %v1115 = vpop.f32.mrf.mxu0
  %v1116 = vadd.f32 0.0, %v1115
  %v1117 = vpop.f32.mrf.mxu0
  %v1118 = vpop.f32.mrf.mxu0
  %v1119 = vadd.f32 0.0, %v1118
  %v1120 = vpop.f32.mrf.mxu0
  %1121 = vmatprep.mubr.bf16.mxu0 0
  %1122 = vmatmul.mubr.bf16.gmra.mxu0 %v1043
  %v1123 = vpop.f32.mrf.mxu0
  %v1124 = vpop.f32.mrf.mxu0
  %v1125 = vpop.f32.mrf.mxu0
  %v1126 = vpop.f32.mrf.mxu0
  %1127 = vmatprep.mubr.bf16.mxu0 0
  %1128 = vmatmul.mubr.bf16.gmra.mxu0 %v1046
  %v1129 = vpop.f32.mrf.mxu0
  %v1130 = vadd.f32 0.0, %v1129
  %v1131 = vpop.f32.mrf.mxu0
  %v1132 = vpop.f32.mrf.mxu0
  %v1133 = vadd.f32 0.0, %v1132
  %v1134 = vpop.f32.mrf.mxu0
  %1135 = vmatprep.mubr.bf16.mxu0 0
  %1136 = vmatmul.mubr.bf16.gmra.mxu0 %v1049
  %v1137 = vpop.f32.mrf.mxu0
  %v1138 = vadd.f32 0.0, %v1137
  %v1139 = vpop.f32.mrf.mxu0
  %v1140 = vpop.f32.mrf.mxu0
  %v1141 = vadd.f32 0.0, %v1140
  %v1142 = vpop.f32.mrf.mxu0
  %1143 = vmatprep.mubr.bf16.mxu0 0
  %1144 = vmatmul.mubr.bf16.gmra.mxu0 %v1052
  %v1145 = vpop.f32.mrf.mxu0
  %v1146 = vadd.f32 0.0, %v1145
  %v1147 = vpop.f32.mrf.mxu0
  %v1148 = vpop.f32.mrf.mxu0
  %v1149 = vadd.f32 0.0, %v1148
  %v1150 = vpop.f32.mrf.mxu0
  %1151 = vmatprep.mubr.bf16.mxu0 0
  %1152 = vmatmul.mubr.bf16.gmra.mxu0 %v1055
  %v1153 = vpop.f32.mrf.mxu0
  %v1154 = vadd.f32 0.0, %v1153
  %v1155 = vpop.f32.mrf.mxu0
  %v1156 = vpop.f32.mrf.mxu0
  %v1157 = vadd.f32 0.0, %v1156
  %v1158 = vpop.f32.mrf.mxu0
  %1159 = vdwg.mxu0
  %v1160 = vld [vmem:[%s0 + $0x4] sm:$0xc]
  %s1161 = scalar_lea.vmem %s1, 192
  %v1162 = vld [vmem:[%s1161] sm:$0xf]
  %v1163 = vld [vmem:[%s1161 + $0x4] sm:$0xf]
  %v1164 = vld [vmem:[%s1161 + $0x8] sm:$0xf]
  %v1165 = vld [vmem:[%s1161 + $0xc] sm:$0xf]
  %v1166 = vld [vmem:[%s1161 + $0x10] sm:$0xf]
  %v1167 = vld [vmem:[%s1161 + $0x14] sm:$0xf]
  %v1169 = vunpack.c.l.b16 %v1160
  %v1170 = vpack.c.b16 %v687, %v1169
  %vm1171 = vcmask 1045504
  %v1172 = vrot.slane %v1170, 2
  %v1173 = vrot.slane %v706, 2
  %v1174 = vsel %vm1171, %v1172, %v1173
  %v1175 = vrot.slane %v707, 2
  %v1176 = vsel %vm1171, %v1173, %v1175
  %v1177 = vrot.slane %v708, 2
  %v1178 = vsel %vm1171, %v1175, %v1177
  %v1179 = vrot.slane %v709, 2
  %v1180 = vsel %vm1171, %v1177, %v1179
  %v1181 = vrot.slane %v710, 2
  %v1182 = vsel %vm1171, %v1179, %v1181
  %v1183 = vrot.slane %v711, 2
  %v1184 = vsel %vm1171, %v1181, %v1183
  %v1185 = vrot.slane %v712, 2
  %v1186 = vsel %vm1171, %v1183, %v1185
  %v1187 = vrot.slane %v713, 2
  %v1188 = vsel %vm1171, %v1185, %v1187
  %v1189 = vrot.slane %v961, 2
  %v1190 = vsel %vm1171, %v1187, %v1189
  %v1197 = vunpack.c.l.b16 %v1162
  %v1198 = vunpack.c.l.b16 %v1163
  %v1199 = vunpack.c.l.b16 %v1164
  %v1200 = vunpack.c.l.b16 %v1165
  %v1201 = vunpack.c.l.b16 %v1166
  %v1202 = vunpack.c.l.b16 %v1167
  %v1203 = vpack.c.b16 %v1198, %v1197
  %v1204 = vpack.c.b16 %v1200, %v1199
  %v1205 = vpack.c.b16 %v1202, %v1201
  %v1210 = vsel %vm283, %v1174, 0
  %v1213 = vsel %vm283, %v1176, 0
  %v1216 = vsel %vm283, %v1178, 0
  %v1219 = vsel %vm283, %v1180, 0
  %v1222 = vsel %vm283, %v1182, 0
  %v1225 = vsel %vm283, %v1184, 0
  %v1228 = vsel %vm283, %v1186, 0
  %v1231 = vsel %vm283, %v1188, 0
  %v1234 = vsel %vm283, %v1190, 0
  %1236 = vmatprep.subr.bf16.mxu0 0
  %1237 = vmatpush1.bf16.msra.mxu0 0
  %1238 = vmatprep.subr.bf16.mxu0 0
  %1239 = vmatpush1.bf16.msra.mxu0 0
  %1240 = vmatprep.subr.bf16.mxu0 0
  %1241 = vmatpush1.bf16.msra.mxu0 0
  %1242 = vmatprep.subr.bf16.mxu0 0
  %1243 = vmatpush1.bf16.msra.mxu0 0
  %1244 = vmatprep.subr.bf16.mxu0 0
  %1245 = vmatpush1.bf16.msra.mxu0 0
  %1246 = vmatprep.subr.bf16.mxu0 0
  %1247 = vmatpush1.bf16.msra.mxu0 %v1205
  %1248 = vmatprep.subr.bf16.mxu0 0
  %1249 = vmatpush1.bf16.msra.mxu0 %v1204
  %1250 = vmatprep.subr.bf16.mxu0 0
  %1251 = vmatpush1.bf16.msra.mxu0 %v1203
  %1252 = vmatprep.subr.bf16.mxu0 0
  %1253 = vmatpush2.bf16.msra.mxu0 0
  %1254 = vmatprep.subr.bf16.mxu0 0
  %1255 = vmatpush2.bf16.msra.mxu0 0
  %1256 = vmatprep.subr.bf16.mxu0 0
  %1257 = vmatpush2.bf16.msra.mxu0 0
  %1258 = vmatprep.subr.bf16.mxu0 0
  %1259 = vmatpush2.bf16.msra.mxu0 0
  %1260 = vmatprep.subr.bf16.mxu0 0
  %1261 = vmatpush2.bf16.msra.mxu0 0
  %1262 = vmatprep.subr.bf16.mxu0 0
  %1263 = vmatpush2.bf16.msra.mxu0 0
  %1264 = vmatprep.subr.bf16.mxu0 0
  %1265 = vmatpush2.bf16.msra.mxu0 0
  %1266 = vmatprep.subr.bf16.mxu0 0
  %1267 = vmatpush2.bf16.msra.mxu0 0
  %1268 = vmatprep.mubr.bf16.mxu0 0
  %1269 = vmatmul.mubr.bf16.gmra.mxu0 %v1210
  %v1270 = vpop.f32.mrf.mxu0
  %v1271 = vadd.f32 0.0, %v1270
  %v1272 = vpop.f32.mrf.mxu0
  %v1273 = vpop.f32.mrf.mxu0
  %v1274 = vadd.f32 0.0, %v1273
  %v1275 = vpop.f32.mrf.mxu0
  %1276 = vmatprep.mubr.bf16.mxu0 0
  %1277 = vmatmul.mubr.bf16.gmra.mxu0 %v1213
  %v1278 = vpop.f32.mrf.mxu0
  %v1279 = vadd.f32 0.0, %v1278
  %v1280 = vpop.f32.mrf.mxu0
  %v1281 = vpop.f32.mrf.mxu0
  %v1282 = vadd.f32 0.0, %v1281
  %v1283 = vpop.f32.mrf.mxu0
  %1284 = vmatprep.mubr.bf16.mxu0 0
  %1285 = vmatmul.mubr.bf16.gmra.mxu0 %v1216
  %v1286 = vpop.f32.mrf.mxu0
  %v1287 = vadd.f32 0.0, %v1286
  %v1288 = vpop.f32.mrf.mxu0
  %v1289 = vpop.f32.mrf.mxu0
  %v1290 = vadd.f32 0.0, %v1289
  %v1291 = vpop.f32.mrf.mxu0
  %1292 = vmatprep.mubr.bf16.mxu0 0
  %1293 = vmatmul.mubr.bf16.gmra.mxu0 %v1219
  %v1294 = vpop.f32.mrf.mxu0
  %v1295 = vadd.f32 0.0, %v1294
  %v1296 = vpop.f32.mrf.mxu0
  %v1297 = vpop.f32.mrf.mxu0
  %v1298 = vadd.f32 0.0, %v1297
  %v1299 = vpop.f32.mrf.mxu0
  %1300 = vmatprep.mubr.bf16.mxu0 0
  %1301 = vmatmul.mubr.bf16.gmra.mxu0 %v1222
  %v1302 = vpop.f32.mrf.mxu0
  %v1303 = vpop.f32.mrf.mxu0
  %v1304 = vpop.f32.mrf.mxu0
  %v1305 = vpop.f32.mrf.mxu0
  %1306 = vmatprep.mubr.bf16.mxu0 0
  %1307 = vmatmul.mubr.bf16.gmra.mxu0 %v1225
  %v1308 = vpop.f32.mrf.mxu0
  %v1309 = vadd.f32 0.0, %v1308
  %v1310 = vpop.f32.mrf.mxu0
  %v1311 = vpop.f32.mrf.mxu0
  %v1312 = vadd.f32 0.0, %v1311
  %v1313 = vpop.f32.mrf.mxu0
  %1314 = vmatprep.mubr.bf16.mxu0 0
  %1315 = vmatmul.mubr.bf16.gmra.mxu0 %v1228
  %v1316 = vpop.f32.mrf.mxu0
  %v1317 = vadd.f32 0.0, %v1316
  %v1318 = vpop.f32.mrf.mxu0
  %v1319 = vpop.f32.mrf.mxu0
  %v1320 = vadd.f32 0.0, %v1319
  %v1321 = vpop.f32.mrf.mxu0
  %1322 = vmatprep.mubr.bf16.mxu0 0
  %1323 = vmatmul.mubr.bf16.gmra.mxu0 %v1231
  %v1324 = vpop.f32.mrf.mxu0
  %v1325 = vadd.f32 0.0, %v1324
  %v1326 = vpop.f32.mrf.mxu0
  %v1327 = vpop.f32.mrf.mxu0
  %v1328 = vadd.f32 0.0, %v1327
  %v1329 = vpop.f32.mrf.mxu0
  %1330 = vmatprep.mubr.bf16.mxu0 0
  %1331 = vmatmul.mubr.bf16.gmra.mxu0 %v1234
  %v1332 = vpop.f32.mrf.mxu0
  %v1333 = vadd.f32 0.0, %v1332
  %v1334 = vpop.f32.mrf.mxu0
  %v1335 = vpop.f32.mrf.mxu0
  %v1336 = vadd.f32 0.0, %v1335
  %v1337 = vpop.f32.mrf.mxu0
  %1338 = vdwg.mxu0
  %v1340 = vunpack.c.l.b16 %v112
  %v1341 = vpack.c.b16 %v1340, %v1340
  %v1342 = vrot.slane %v165, 2
  %v1343 = vrot.slane %v166, 2
  %v1344 = vsel %vm1171, %v1342, %v1343
  %v1345 = vrot.slane %v167, 2
  %v1346 = vsel %vm1171, %v1343, %v1345
  %v1347 = vrot.slane %v168, 2
  %v1348 = vsel %vm1171, %v1345, %v1347
  %v1349 = vrot.slane %v169, 2
  %v1350 = vsel %vm1171, %v1347, %v1349
  %v1351 = vrot.slane %v170, 2
  %v1352 = vsel %vm1171, %v1349, %v1351
  %v1353 = vrot.slane %v171, 2
  %v1354 = vsel %vm1171, %v1351, %v1353
  %v1355 = vrot.slane %v172, 2
  %v1356 = vsel %vm1171, %v1353, %v1355
  %v1357 = vrot.slane %v173, 2
  %v1358 = vsel %vm1171, %v1355, %v1357
  %v1359 = vrot.slane %v1341, 2
  %v1360 = vsel %vm1171, %v1357, %v1359
  %v1367 = vunpack.c.l.b16 %v113
  %v1368 = vunpack.c.l.b16 %v114
  %v1369 = vunpack.c.l.b16 %v115
  %v1370 = vunpack.c.l.b16 %v116
  %v1371 = vunpack.c.l.b16 %v117
  %v1372 = vunpack.c.l.b16 %v118
  %v1373 = vpack.c.b16 %v1368, %v1367
  %v1374 = vpack.c.b16 %v1370, %v1369
  %v1375 = vpack.c.b16 %v1372, %v1371
  %v1380 = vsel %vm283, %v1344, 0
  %v1383 = vsel %vm283, %v1346, 0
  %v1386 = vsel %vm283, %v1348, 0
  %v1389 = vsel %vm283, %v1350, 0
  %v1392 = vsel %vm283, %v1352, 0
  %v1395 = vsel %vm283, %v1354, 0
  %v1398 = vsel %vm283, %v1356, 0
  %v1401 = vsel %vm283, %v1358, 0
  %v1404 = vsel %vm283, %v1360, 0
  %1406 = vmatprep.subr.bf16.mxu0 0
  %1407 = vmatpush1.bf16.msra.mxu0 0
  %1408 = vmatprep.subr.bf16.mxu0 0
  %1409 = vmatpush1.bf16.msra.mxu0 0
  %1410 = vmatprep.subr.bf16.mxu0 0
  %1411 = vmatpush1.bf16.msra.mxu0 0
  %1412 = vmatprep.subr.bf16.mxu0 0
  %1413 = vmatpush1.bf16.msra.mxu0 0
  %1414 = vmatprep.subr.bf16.mxu0 0
  %1415 = vmatpush1.bf16.msra.mxu0 0
  %1416 = vmatprep.subr.bf16.mxu0 0
  %1417 = vmatpush1.bf16.msra.mxu0 %v1375
  %1418 = vmatprep.subr.bf16.mxu0 0
  %1419 = vmatpush1.bf16.msra.mxu0 %v1374
  %1420 = vmatprep.subr.bf16.mxu0 0
  %1421 = vmatpush1.bf16.msra.mxu0 %v1373
  %1422 = vmatprep.subr.bf16.mxu0 0
  %1423 = vmatpush2.bf16.msra.mxu0 0
  %1424 = vmatprep.subr.bf16.mxu0 0
  %1425 = vmatpush2.bf16.msra.mxu0 0
  %1426 = vmatprep.subr.bf16.mxu0 0
  %1427 = vmatpush2.bf16.msra.mxu0 0
  %1428 = vmatprep.subr.bf16.mxu0 0
  %1429 = vmatpush2.bf16.msra.mxu0 0
  %1430 = vmatprep.subr.bf16.mxu0 0
  %1431 = vmatpush2.bf16.msra.mxu0 0
  %1432 = vmatprep.subr.bf16.mxu0 0
  %1433 = vmatpush2.bf16.msra.mxu0 0
  %1434 = vmatprep.subr.bf16.mxu0 0
  %1435 = vmatpush2.bf16.msra.mxu0 0
  %1436 = vmatprep.subr.bf16.mxu0 0
  %1437 = vmatpush2.bf16.msra.mxu0 0
  %1438 = vmatprep.mubr.bf16.mxu0 0
  %1439 = vmatmul.mubr.bf16.gmra.mxu0 %v1380
  %v1440 = vpop.f32.mrf.mxu0
  %v1441 = vadd.f32 %v346, %v1440
  %v1442 = vpop.f32.mrf.mxu0
  %v1443 = vpop.f32.mrf.mxu0
  %v1444 = vadd.f32 %v349, %v1443
  %v1445 = vpop.f32.mrf.mxu0
  %1446 = vmatprep.mubr.bf16.mxu0 0
  %1447 = vmatmul.mubr.bf16.gmra.mxu0 %v1383
  %v1448 = vpop.f32.mrf.mxu0
  %v1449 = vadd.f32 %v354, %v1448
  %v1450 = vpop.f32.mrf.mxu0
  %v1451 = vpop.f32.mrf.mxu0
  %v1452 = vadd.f32 %v357, %v1451
  %v1453 = vpop.f32.mrf.mxu0
  %1454 = vmatprep.mubr.bf16.mxu0 0
  %1455 = vmatmul.mubr.bf16.gmra.mxu0 %v1386
  %v1456 = vpop.f32.mrf.mxu0
  %v1457 = vadd.f32 %v362, %v1456
  %v1458 = vpop.f32.mrf.mxu0
  %v1459 = vpop.f32.mrf.mxu0
  %v1460 = vadd.f32 %v365, %v1459
  %v1461 = vpop.f32.mrf.mxu0
  %1462 = vmatprep.mubr.bf16.mxu0 0
  %1463 = vmatmul.mubr.bf16.gmra.mxu0 %v1389
  %v1464 = vpop.f32.mrf.mxu0
  %v1465 = vadd.f32 %v370, %v1464
  %v1466 = vpop.f32.mrf.mxu0
  %v1467 = vpop.f32.mrf.mxu0
  %v1468 = vadd.f32 %v373, %v1467
  %v1469 = vpop.f32.mrf.mxu0
  %1470 = vmatprep.mubr.bf16.mxu0 0
  %1471 = vmatmul.mubr.bf16.gmra.mxu0 %v1392
  %v1472 = vpop.f32.mrf.mxu0
  %v1473 = vpop.f32.mrf.mxu0
  %v1474 = vpop.f32.mrf.mxu0
  %v1475 = vpop.f32.mrf.mxu0
  %1476 = vmatprep.mubr.bf16.mxu0 0
  %1477 = vmatmul.mubr.bf16.gmra.mxu0 %v1395
  %v1478 = vpop.f32.mrf.mxu0
  %v1479 = vadd.f32 %v384, %v1478
  %v1480 = vpop.f32.mrf.mxu0
  %v1481 = vpop.f32.mrf.mxu0
  %v1482 = vadd.f32 %v387, %v1481
  %v1483 = vpop.f32.mrf.mxu0
  %1484 = vmatprep.mubr.bf16.mxu0 0
  %1485 = vmatmul.mubr.bf16.gmra.mxu0 %v1398
  %v1486 = vpop.f32.mrf.mxu0
  %v1487 = vadd.f32 %v392, %v1486
  %v1488 = vpop.f32.mrf.mxu0
  %v1489 = vpop.f32.mrf.mxu0
  %v1490 = vadd.f32 %v395, %v1489
  %v1491 = vpop.f32.mrf.mxu0
  %1492 = vmatprep.mubr.bf16.mxu0 0
  %1493 = vmatmul.mubr.bf16.gmra.mxu0 %v1401
  %v1494 = vpop.f32.mrf.mxu0
  %v1495 = vadd.f32 %v400, %v1494
  %v1496 = vpop.f32.mrf.mxu0
  %v1497 = vpop.f32.mrf.mxu0
  %v1498 = vadd.f32 %v403, %v1497
  %v1499 = vpop.f32.mrf.mxu0
  %1500 = vmatprep.mubr.bf16.mxu0 0
  %1501 = vmatmul.mubr.bf16.gmra.mxu0 %v1404
  %v1502 = vpop.f32.mrf.mxu0
  %v1503 = vadd.f32 %v408, %v1502
  %v1504 = vpop.f32.mrf.mxu0
  %v1505 = vpop.f32.mrf.mxu0
  %v1506 = vadd.f32 %v411, %v1505
  %v1507 = vpop.f32.mrf.mxu0
  %1508 = vdwg.mxu0
  %vm1509 = vcmask 1044480
  %v1510 = vrot.slane %v434, 3
  %v1511 = vrot.slane %v166, 3
  %v1512 = vsel %vm1509, %v1510, %v1511
  %v1513 = vrot.slane %v167, 3
  %v1514 = vsel %vm1509, %v1511, %v1513
  %v1515 = vrot.slane %v168, 3
  %v1516 = vsel %vm1509, %v1513, %v1515
  %v1517 = vrot.slane %v169, 3
  %v1518 = vsel %vm1509, %v1515, %v1517
  %v1519 = vrot.slane %v170, 3
  %v1520 = vsel %vm1509, %v1517, %v1519
  %v1521 = vrot.slane %v171, 3
  %v1522 = vsel %vm1509, %v1519, %v1521
  %v1523 = vrot.slane %v172, 3
  %v1524 = vsel %vm1509, %v1521, %v1523
  %v1525 = vrot.slane %v173, 3
  %v1526 = vsel %vm1509, %v1523, %v1525
  %v1527 = vrot.slane %v174, 3
  %v1528 = vsel %vm1509, %v1525, %v1527
  %v1535 = vunpack.c.l.b16 %v416
  %v1536 = vunpack.c.l.b16 %v417
  %v1537 = vunpack.c.l.b16 %v418
  %v1538 = vunpack.c.l.b16 %v419
  %v1539 = vunpack.c.l.b16 %v420
  %v1540 = vunpack.c.l.b16 %v421
  %v1541 = vpack.c.b16 %v1536, %v1535
  %v1542 = vpack.c.b16 %v1538, %v1537
  %v1543 = vpack.c.b16 %v1540, %v1539
  %v1548 = vsel %vm283, %v1512, 0
  %v1551 = vsel %vm283, %v1514, 0
  %v1554 = vsel %vm283, %v1516, 0
  %v1557 = vsel %vm283, %v1518, 0
  %v1560 = vsel %vm283, %v1520, 0
  %v1563 = vsel %vm283, %v1522, 0
  %v1566 = vsel %vm283, %v1524, 0
  %v1569 = vsel %vm283, %v1526, 0
  %v1572 = vsel %vm283, %v1528, 0
  %1574 = vmatprep.subr.bf16.mxu0 0
  %1575 = vmatpush1.bf16.msra.mxu0 0
  %1576 = vmatprep.subr.bf16.mxu0 0
  %1577 = vmatpush1.bf16.msra.mxu0 0
  %1578 = vmatprep.subr.bf16.mxu0 0
  %1579 = vmatpush1.bf16.msra.mxu0 0
  %1580 = vmatprep.subr.bf16.mxu0 0
  %1581 = vmatpush1.bf16.msra.mxu0 0
  %1582 = vmatprep.subr.bf16.mxu0 0
  %1583 = vmatpush1.bf16.msra.mxu0 0
  %1584 = vmatprep.subr.bf16.mxu0 0
  %1585 = vmatpush1.bf16.msra.mxu0 %v1543
  %1586 = vmatprep.subr.bf16.mxu0 0
  %1587 = vmatpush1.bf16.msra.mxu0 %v1542
  %1588 = vmatprep.subr.bf16.mxu0 0
  %1589 = vmatpush1.bf16.msra.mxu0 %v1541
  %1590 = vmatprep.subr.bf16.mxu0 0
  %1591 = vmatpush2.bf16.msra.mxu0 0
  %1592 = vmatprep.subr.bf16.mxu0 0
  %1593 = vmatpush2.bf16.msra.mxu0 0
  %1594 = vmatprep.subr.bf16.mxu0 0
  %1595 = vmatpush2.bf16.msra.mxu0 0
  %1596 = vmatprep.subr.bf16.mxu0 0
  %1597 = vmatpush2.bf16.msra.mxu0 0
  %1598 = vmatprep.subr.bf16.mxu0 0
  %1599 = vmatpush2.bf16.msra.mxu0 0
  %1600 = vmatprep.subr.bf16.mxu0 0
  %1601 = vmatpush2.bf16.msra.mxu0 0
  %1602 = vmatprep.subr.bf16.mxu0 0
  %1603 = vmatpush2.bf16.msra.mxu0 0
  %1604 = vmatprep.subr.bf16.mxu0 0
  %1605 = vmatpush2.bf16.msra.mxu0 0
  %1606 = vmatprep.mubr.bf16.mxu0 0
  %1607 = vmatmul.mubr.bf16.gmra.mxu0 %v1548
  %v1608 = vpop.f32.mrf.mxu0
  %v1609 = vadd.f32 %v566, %v1608
  %v1610 = vpop.f32.mrf.mxu0
  %v1611 = vpop.f32.mrf.mxu0
  %v1612 = vadd.f32 %v569, %v1611
  %v1613 = vpop.f32.mrf.mxu0
  %1614 = vmatprep.mubr.bf16.mxu0 0
  %1615 = vmatmul.mubr.bf16.gmra.mxu0 %v1551
  %v1616 = vpop.f32.mrf.mxu0
  %v1617 = vadd.f32 %v574, %v1616
  %v1618 = vpop.f32.mrf.mxu0
  %v1619 = vpop.f32.mrf.mxu0
  %v1620 = vadd.f32 %v577, %v1619
  %v1621 = vpop.f32.mrf.mxu0
  %1622 = vmatprep.mubr.bf16.mxu0 0
  %1623 = vmatmul.mubr.bf16.gmra.mxu0 %v1554
  %v1624 = vpop.f32.mrf.mxu0
  %v1625 = vadd.f32 %v582, %v1624
  %v1626 = vpop.f32.mrf.mxu0
  %v1627 = vpop.f32.mrf.mxu0
  %v1628 = vadd.f32 %v585, %v1627
  %v1629 = vpop.f32.mrf.mxu0
  %1630 = vmatprep.mubr.bf16.mxu0 0
  %1631 = vmatmul.mubr.bf16.gmra.mxu0 %v1557
  %v1632 = vpop.f32.mrf.mxu0
  %v1633 = vadd.f32 %v590, %v1632
  %v1634 = vpop.f32.mrf.mxu0
  %v1635 = vpop.f32.mrf.mxu0
  %v1636 = vadd.f32 %v593, %v1635
  %v1637 = vpop.f32.mrf.mxu0
  %1638 = vmatprep.mubr.bf16.mxu0 0
  %1639 = vmatmul.mubr.bf16.gmra.mxu0 %v1560
  %v1640 = vpop.f32.mrf.mxu0
  %v1641 = vpop.f32.mrf.mxu0
  %v1642 = vpop.f32.mrf.mxu0
  %v1643 = vpop.f32.mrf.mxu0
  %1644 = vmatprep.mubr.bf16.mxu0 0
  %1645 = vmatmul.mubr.bf16.gmra.mxu0 %v1563
  %v1646 = vpop.f32.mrf.mxu0
  %v1647 = vadd.f32 %v604, %v1646
  %v1648 = vpop.f32.mrf.mxu0
  %v1649 = vpop.f32.mrf.mxu0
  %v1650 = vadd.f32 %v607, %v1649
  %v1651 = vpop.f32.mrf.mxu0
  %1652 = vmatprep.mubr.bf16.mxu0 0
  %1653 = vmatmul.mubr.bf16.gmra.mxu0 %v1566
  %v1654 = vpop.f32.mrf.mxu0
  %v1655 = vadd.f32 %v612, %v1654
  %v1656 = vpop.f32.mrf.mxu0
  %v1657 = vpop.f32.mrf.mxu0
  %v1658 = vadd.f32 %v615, %v1657
  %v1659 = vpop.f32.mrf.mxu0
  %1660 = vmatprep.mubr.bf16.mxu0 0
  %1661 = vmatmul.mubr.bf16.gmra.mxu0 %v1569
  %v1662 = vpop.f32.mrf.mxu0
  %v1663 = vadd.f32 %v620, %v1662
  %v1664 = vpop.f32.mrf.mxu0
  %v1665 = vpop.f32.mrf.mxu0
  %v1666 = vadd.f32 %v623, %v1665
  %v1667 = vpop.f32.mrf.mxu0
  %1668 = vmatprep.mubr.bf16.mxu0 0
  %1669 = vmatmul.mubr.bf16.gmra.mxu0 %v1572
  %v1670 = vpop.f32.mrf.mxu0
  %v1671 = vadd.f32 %v628, %v1670
  %v1672 = vpop.f32.mrf.mxu0
  %v1673 = vpop.f32.mrf.mxu0
  %v1674 = vadd.f32 %v631, %v1673
  %v1675 = vpop.f32.mrf.mxu0
  %1676 = vdwg.mxu0
  %v1677 = vpack.c.b16 %v148, %v147
  %v1678 = vpack.c.b16 %v150, %v149
  %v1679 = vpack.c.b16 %v152, %v151
  %v1680 = vpack.c.b16 %v154, %v153
  %v1681 = vpack.c.b16 %v156, %v155
  %v1682 = vpack.c.b16 %v158, %v157
  %v1683 = vpack.c.b16 %v160, %v159
  %v1684 = vpack.c.b16 %v162, %v161
  %v1685 = vpack.c.b16 %v433, %v163
  %v1692 = vunpack.c.l.b16 %v635
  %v1693 = vunpack.c.l.b16 %v636
  %v1694 = vunpack.c.l.b16 %v637
  %v1695 = vunpack.c.l.b16 %v638
  %v1696 = vunpack.c.l.b16 %v639
  %v1697 = vunpack.c.l.b16 %v640
  %v1698 = vpack.c.b16 %v1693, %v1692
  %v1699 = vpack.c.b16 %v1695, %v1694
  %v1700 = vpack.c.b16 %v1697, %v1696
  %v1705 = vsel %vm283, %v1677, 0
  %v1708 = vsel %vm283, %v1678, 0
  %v1711 = vsel %vm283, %v1679, 0
  %v1714 = vsel %vm283, %v1680, 0
  %v1717 = vsel %vm283, %v1681, 0
  %v1720 = vsel %vm283, %v1682, 0
  %v1723 = vsel %vm283, %v1683, 0
  %v1726 = vsel %vm283, %v1684, 0
  %v1729 = vsel %vm283, %v1685, 0
  %1731 = vmatprep.subr.bf16.mxu0 0
  %1732 = vmatpush1.bf16.msra.mxu0 0
  %1733 = vmatprep.subr.bf16.mxu0 0
  %1734 = vmatpush1.bf16.msra.mxu0 0
  %1735 = vmatprep.subr.bf16.mxu0 0
  %1736 = vmatpush1.bf16.msra.mxu0 0
  %1737 = vmatprep.subr.bf16.mxu0 0
  %1738 = vmatpush1.bf16.msra.mxu0 0
  %1739 = vmatprep.subr.bf16.mxu0 0
  %1740 = vmatpush1.bf16.msra.mxu0 0
  %1741 = vmatprep.subr.bf16.mxu0 0
  %1742 = vmatpush1.bf16.msra.mxu0 %v1700
  %1743 = vmatprep.subr.bf16.mxu0 0
  %1744 = vmatpush1.bf16.msra.mxu0 %v1699
  %1745 = vmatprep.subr.bf16.mxu0 0
  %1746 = vmatpush1.bf16.msra.mxu0 %v1698
  %1747 = vmatprep.subr.bf16.mxu0 0
  %1748 = vmatpush2.bf16.msra.mxu0 0
  %1749 = vmatprep.subr.bf16.mxu0 0
  %1750 = vmatpush2.bf16.msra.mxu0 0
  %1751 = vmatprep.subr.bf16.mxu0 0
  %1752 = vmatpush2.bf16.msra.mxu0 0
  %1753 = vmatprep.subr.bf16.mxu0 0
  %1754 = vmatpush2.bf16.msra.mxu0 0
  %1755 = vmatprep.subr.bf16.mxu0 0
  %1756 = vmatpush2.bf16.msra.mxu0 0
  %1757 = vmatprep.subr.bf16.mxu0 0
  %1758 = vmatpush2.bf16.msra.mxu0 0
  %1759 = vmatprep.subr.bf16.mxu0 0
  %1760 = vmatpush2.bf16.msra.mxu0 0
  %1761 = vmatprep.subr.bf16.mxu0 0
  %1762 = vmatpush2.bf16.msra.mxu0 0
  %1763 = vmatprep.mubr.bf16.mxu0 0
  %1764 = vmatmul.mubr.bf16.gmra.mxu0 %v1705
  %v1765 = vpop.f32.mrf.mxu0
  %v1766 = vadd.f32 %v872, %v1765
  %v1767 = vpop.f32.mrf.mxu0
  %v1768 = vpop.f32.mrf.mxu0
  %v1769 = vadd.f32 %v875, %v1768
  %v1770 = vpop.f32.mrf.mxu0
  %1771 = vmatprep.mubr.bf16.mxu0 0
  %1772 = vmatmul.mubr.bf16.gmra.mxu0 %v1708
  %v1773 = vpop.f32.mrf.mxu0
  %v1774 = vadd.f32 %v880, %v1773
  %v1775 = vpop.f32.mrf.mxu0
  %v1776 = vpop.f32.mrf.mxu0
  %v1777 = vadd.f32 %v883, %v1776
  %v1778 = vpop.f32.mrf.mxu0
  %1779 = vmatprep.mubr.bf16.mxu0 0
  %1780 = vmatmul.mubr.bf16.gmra.mxu0 %v1711
  %v1781 = vpop.f32.mrf.mxu0
  %v1782 = vadd.f32 %v888, %v1781
  %v1783 = vpop.f32.mrf.mxu0
  %v1784 = vpop.f32.mrf.mxu0
  %v1785 = vadd.f32 %v891, %v1784
  %v1786 = vpop.f32.mrf.mxu0
  %1787 = vmatprep.mubr.bf16.mxu0 0
  %1788 = vmatmul.mubr.bf16.gmra.mxu0 %v1714
  %v1789 = vpop.f32.mrf.mxu0
  %v1790 = vadd.f32 %v896, %v1789
  %v1791 = vpop.f32.mrf.mxu0
  %v1792 = vpop.f32.mrf.mxu0
  %v1793 = vadd.f32 %v899, %v1792
  %v1794 = vpop.f32.mrf.mxu0
  %1795 = vmatprep.mubr.bf16.mxu0 0
  %1796 = vmatmul.mubr.bf16.gmra.mxu0 %v1717
  %v1797 = vpop.f32.mrf.mxu0
  %v1798 = vpop.f32.mrf.mxu0
  %v1799 = vpop.f32.mrf.mxu0
  %v1800 = vpop.f32.mrf.mxu0
  %1801 = vmatprep.mubr.bf16.mxu0 0
  %1802 = vmatmul.mubr.bf16.gmra.mxu0 %v1720
  %v1803 = vpop.f32.mrf.mxu0
  %v1804 = vadd.f32 %v910, %v1803
  %v1805 = vpop.f32.mrf.mxu0
  %v1806 = vpop.f32.mrf.mxu0
  %v1807 = vadd.f32 %v913, %v1806
  %v1808 = vpop.f32.mrf.mxu0
  %1809 = vmatprep.mubr.bf16.mxu0 0
  %1810 = vmatmul.mubr.bf16.gmra.mxu0 %v1723
  %v1811 = vpop.f32.mrf.mxu0
  %v1812 = vadd.f32 %v918, %v1811
  %v1813 = vpop.f32.mrf.mxu0
  %v1814 = vpop.f32.mrf.mxu0
  %v1815 = vadd.f32 %v921, %v1814
  %v1816 = vpop.f32.mrf.mxu0
  %1817 = vmatprep.mubr.bf16.mxu0 0
  %1818 = vmatmul.mubr.bf16.gmra.mxu0 %v1726
  %v1819 = vpop.f32.mrf.mxu0
  %v1820 = vadd.f32 %v926, %v1819
  %v1821 = vpop.f32.mrf.mxu0
  %v1822 = vpop.f32.mrf.mxu0
  %v1823 = vadd.f32 %v929, %v1822
  %v1824 = vpop.f32.mrf.mxu0
  %1825 = vmatprep.mubr.bf16.mxu0 0
  %1826 = vmatmul.mubr.bf16.gmra.mxu0 %v1729
  %v1827 = vpop.f32.mrf.mxu0
  %v1828 = vadd.f32 %v934, %v1827
  %v1829 = vpop.f32.mrf.mxu0
  %v1830 = vpop.f32.mrf.mxu0
  %v1831 = vadd.f32 %v937, %v1830
  %v1832 = vpop.f32.mrf.mxu0
  %1833 = vdwg.mxu0
  %vm1834 = vcmask 1046528
  %v1835 = vrot.slane %v960, 1
  %v1836 = vrot.slane %v706, 1
  %v1837 = vsel %vm1834, %v1835, %v1836
  %v1838 = vrot.slane %v707, 1
  %v1839 = vsel %vm1834, %v1836, %v1838
  %v1840 = vrot.slane %v708, 1
  %v1841 = vsel %vm1834, %v1838, %v1840
  %v1842 = vrot.slane %v709, 1
  %v1843 = vsel %vm1834, %v1840, %v1842
  %v1844 = vrot.slane %v710, 1
  %v1845 = vsel %vm1834, %v1842, %v1844
  %v1846 = vrot.slane %v711, 1
  %v1847 = vsel %vm1834, %v1844, %v1846
  %v1848 = vrot.slane %v712, 1
  %v1849 = vsel %vm1834, %v1846, %v1848
  %v1850 = vrot.slane %v713, 1
  %v1851 = vsel %vm1834, %v1848, %v1850
  %v1852 = vrot.slane %v714, 1
  %v1853 = vsel %vm1834, %v1850, %v1852
  %v1860 = vunpack.c.l.b16 %v942
  %v1861 = vunpack.c.l.b16 %v943
  %v1862 = vunpack.c.l.b16 %v944
  %v1863 = vunpack.c.l.b16 %v945
  %v1864 = vunpack.c.l.b16 %v946
  %v1865 = vunpack.c.l.b16 %v947
  %v1866 = vpack.c.b16 %v1861, %v1860
  %v1867 = vpack.c.b16 %v1863, %v1862
  %v1868 = vpack.c.b16 %v1865, %v1864
  %v1873 = vsel %vm283, %v1837, 0
  %v1876 = vsel %vm283, %v1839, 0
  %v1879 = vsel %vm283, %v1841, 0
  %v1882 = vsel %vm283, %v1843, 0
  %v1885 = vsel %vm283, %v1845, 0
  %v1888 = vsel %vm283, %v1847, 0
  %v1891 = vsel %vm283, %v1849, 0
  %v1894 = vsel %vm283, %v1851, 0
  %v1897 = vsel %vm283, %v1853, 0
  %1899 = vmatprep.subr.bf16.mxu0 0
  %1900 = vmatpush1.bf16.msra.mxu0 0
  %1901 = vmatprep.subr.bf16.mxu0 0
  %1902 = vmatpush1.bf16.msra.mxu0 0
  %1903 = vmatprep.subr.bf16.mxu0 0
  %1904 = vmatpush1.bf16.msra.mxu0 0
  %1905 = vmatprep.subr.bf16.mxu0 0
  %1906 = vmatpush1.bf16.msra.mxu0 0
  %1907 = vmatprep.subr.bf16.mxu0 0
  %1908 = vmatpush1.bf16.msra.mxu0 0
  %1909 = vmatprep.subr.bf16.mxu0 0
  %1910 = vmatpush1.bf16.msra.mxu0 %v1868
  %1911 = vmatprep.subr.bf16.mxu0 0
  %1912 = vmatpush1.bf16.msra.mxu0 %v1867
  %1913 = vmatprep.subr.bf16.mxu0 0
  %1914 = vmatpush1.bf16.msra.mxu0 %v1866
  %1915 = vmatprep.subr.bf16.mxu0 0
  %1916 = vmatpush2.bf16.msra.mxu0 0
  %1917 = vmatprep.subr.bf16.mxu0 0
  %1918 = vmatpush2.bf16.msra.mxu0 0
  %1919 = vmatprep.subr.bf16.mxu0 0
  %1920 = vmatpush2.bf16.msra.mxu0 0
  %1921 = vmatprep.subr.bf16.mxu0 0
  %1922 = vmatpush2.bf16.msra.mxu0 0
  %1923 = vmatprep.subr.bf16.mxu0 0
  %1924 = vmatpush2.bf16.msra.mxu0 0
  %1925 = vmatprep.subr.bf16.mxu0 0
  %1926 = vmatpush2.bf16.msra.mxu0 0
  %1927 = vmatprep.subr.bf16.mxu0 0
  %1928 = vmatpush2.bf16.msra.mxu0 0
  %1929 = vmatprep.subr.bf16.mxu0 0
  %1930 = vmatpush2.bf16.msra.mxu0 0
  %1931 = vmatprep.mubr.bf16.mxu0 0
  %1932 = vmatmul.mubr.bf16.gmra.mxu0 %v1873
  %v1933 = vpop.f32.mrf.mxu0
  %v1934 = vadd.f32 %v1092, %v1933
  %v1935 = vpop.f32.mrf.mxu0
  %v1936 = vpop.f32.mrf.mxu0
  %v1937 = vadd.f32 %v1095, %v1936
  %v1938 = vpop.f32.mrf.mxu0
  %1939 = vmatprep.mubr.bf16.mxu0 0
  %1940 = vmatmul.mubr.bf16.gmra.mxu0 %v1876
  %v1941 = vpop.f32.mrf.mxu0
  %v1942 = vadd.f32 %v1100, %v1941
  %v1943 = vpop.f32.mrf.mxu0
  %v1944 = vpop.f32.mrf.mxu0
  %v1945 = vadd.f32 %v1103, %v1944
  %v1946 = vpop.f32.mrf.mxu0
  %1947 = vmatprep.mubr.bf16.mxu0 0
  %1948 = vmatmul.mubr.bf16.gmra.mxu0 %v1879
  %v1949 = vpop.f32.mrf.mxu0
  %v1950 = vadd.f32 %v1108, %v1949
  %v1951 = vpop.f32.mrf.mxu0
  %v1952 = vpop.f32.mrf.mxu0
  %v1953 = vadd.f32 %v1111, %v1952
  %v1954 = vpop.f32.mrf.mxu0
  %1955 = vmatprep.mubr.bf16.mxu0 0
  %1956 = vmatmul.mubr.bf16.gmra.mxu0 %v1882
  %v1957 = vpop.f32.mrf.mxu0
  %v1958 = vadd.f32 %v1116, %v1957
  %v1959 = vpop.f32.mrf.mxu0
  %v1960 = vpop.f32.mrf.mxu0
  %v1961 = vadd.f32 %v1119, %v1960
  %v1962 = vpop.f32.mrf.mxu0
  %1963 = vmatprep.mubr.bf16.mxu0 0
  %1964 = vmatmul.mubr.bf16.gmra.mxu0 %v1885
  %v1965 = vpop.f32.mrf.mxu0
  %v1966 = vpop.f32.mrf.mxu0
  %v1967 = vpop.f32.mrf.mxu0
  %v1968 = vpop.f32.mrf.mxu0
  %1969 = vmatprep.mubr.bf16.mxu0 0
  %1970 = vmatmul.mubr.bf16.gmra.mxu0 %v1888
  %v1971 = vpop.f32.mrf.mxu0
  %v1972 = vadd.f32 %v1130, %v1971
  %v1973 = vpop.f32.mrf.mxu0
  %v1974 = vpop.f32.mrf.mxu0
  %v1975 = vadd.f32 %v1133, %v1974
  %v1976 = vpop.f32.mrf.mxu0
  %1977 = vmatprep.mubr.bf16.mxu0 0
  %1978 = vmatmul.mubr.bf16.gmra.mxu0 %v1891
  %v1979 = vpop.f32.mrf.mxu0
  %v1980 = vadd.f32 %v1138, %v1979
  %v1981 = vpop.f32.mrf.mxu0
  %v1982 = vpop.f32.mrf.mxu0
  %v1983 = vadd.f32 %v1141, %v1982
  %v1984 = vpop.f32.mrf.mxu0
  %1985 = vmatprep.mubr.bf16.mxu0 0
  %1986 = vmatmul.mubr.bf16.gmra.mxu0 %v1894
  %v1987 = vpop.f32.mrf.mxu0
  %v1988 = vadd.f32 %v1146, %v1987
  %v1989 = vpop.f32.mrf.mxu0
  %v1990 = vpop.f32.mrf.mxu0
  %v1991 = vadd.f32 %v1149, %v1990
  %v1992 = vpop.f32.mrf.mxu0
  %1993 = vmatprep.mubr.bf16.mxu0 0
  %1994 = vmatmul.mubr.bf16.gmra.mxu0 %v1897
  %v1995 = vpop.f32.mrf.mxu0
  %v1996 = vadd.f32 %v1154, %v1995
  %v1997 = vpop.f32.mrf.mxu0
  %v1998 = vpop.f32.mrf.mxu0
  %v1999 = vadd.f32 %v1157, %v1998
  %v2000 = vpop.f32.mrf.mxu0
  %2001 = vdwg.mxu0
  %v2002 = vadd.f32 %v1441, %v1609
  %v2003 = vadd.f32 %v1444, %v1612
  %v2004 = vadd.f32 %v1449, %v1617
  %v2005 = vadd.f32 %v1452, %v1620
  %v2006 = vadd.f32 %v1457, %v1625
  %v2007 = vadd.f32 %v1460, %v1628
  %v2008 = vadd.f32 %v1465, %v1633
  %v2009 = vadd.f32 %v1468, %v1636
  %v2010 = vadd.f32 %v1479, %v1647
  %v2011 = vadd.f32 %v1482, %v1650
  %v2012 = vadd.f32 %v1487, %v1655
  %v2013 = vadd.f32 %v1490, %v1658
  %v2014 = vadd.f32 %v1495, %v1663
  %v2015 = vadd.f32 %v1498, %v1666
  %v2016 = vadd.f32 %v1503, %v1671
  %v2017 = vadd.f32 %v1506, %v1674
  %v2018 = vadd.f32 %v1766, %v1934
  %v2019 = vadd.f32 %v1769, %v1937
  %v2020 = vadd.f32 %v1774, %v1942
  %v2021 = vadd.f32 %v1777, %v1945
  %v2022 = vadd.f32 %v1782, %v1950
  %v2023 = vadd.f32 %v1785, %v1953
  %v2024 = vadd.f32 %v1790, %v1958
  %v2025 = vadd.f32 %v1793, %v1961
  %v2026 = vadd.f32 %v1804, %v1972
  %v2027 = vadd.f32 %v1807, %v1975
  %v2028 = vadd.f32 %v1812, %v1980
  %v2029 = vadd.f32 %v1815, %v1983
  %v2030 = vadd.f32 %v1820, %v1988
  %v2031 = vadd.f32 %v1823, %v1991
  %v2032 = vadd.f32 %v1828, %v1996
  %v2033 = vadd.f32 %v1831, %v1999
  %v2034 = vadd.f32 %v2002, %v2018
  %v2035 = vadd.f32 %v2003, %v2019
  %v2036 = vadd.f32 %v2004, %v2020
  %v2037 = vadd.f32 %v2005, %v2021
  %v2038 = vadd.f32 %v2006, %v2022
  %v2039 = vadd.f32 %v2007, %v2023
  %v2040 = vadd.f32 %v2008, %v2024
  %v2041 = vadd.f32 %v2009, %v2025
  %v2042 = vadd.f32 %v2010, %v2026
  %v2043 = vadd.f32 %v2011, %v2027
  %v2044 = vadd.f32 %v2012, %v2028
  %v2045 = vadd.f32 %v2013, %v2029
  %v2046 = vadd.f32 %v2014, %v2030
  %v2047 = vadd.f32 %v2015, %v2031
  %v2048 = vadd.f32 %v2016, %v2032
  %v2049 = vadd.f32 %v2017, %v2033
  %v2050 = vadd.f32 %v2034, %v1271
  %v2051 = vadd.f32 %v2035, %v1274
  %v2052 = vadd.f32 %v2036, %v1279
  %v2053 = vadd.f32 %v2037, %v1282
  %v2054 = vadd.f32 %v2038, %v1287
  %v2055 = vadd.f32 %v2039, %v1290
  %v2056 = vadd.f32 %v2040, %v1295
  %v2057 = vadd.f32 %v2041, %v1298
  %v2058 = vadd.f32 %v2042, %v1309
  %v2059 = vadd.f32 %v2043, %v1312
  %v2060 = vadd.f32 %v2044, %v1317
  %v2061 = vadd.f32 %v2045, %v1320
  %v2062 = vadd.f32 %v2046, %v1325
  %v2063 = vadd.f32 %v2047, %v1328
  %v2064 = vadd.f32 %v2048, %v1333
  %v2065 = vadd.f32 %v2049, %v1336
  %v2066 = vld [vmem:[%s8] sm:$0x1]
  %v2068 = vlaneseq
  %v2069 = vshrl.u32 %v2068, 7
  %v2070 = vsub.s32 0, %v2069
  %v2071 = vrot.slane %v2066, %v2070
  %v2073 = vadd.f32 %v2050, %v2071
  %v2074 = vadd.f32 %v2051, %v2071
  %v2075 = vadd.f32 %v2052, %v2071
  %v2076 = vadd.f32 %v2053, %v2071
  %v2077 = vadd.f32 %v2054, %v2071
  %v2078 = vadd.f32 %v2055, %v2071
  %v2079 = vadd.f32 %v2056, %v2071
  %v2080 = vadd.f32 %v2057, %v2071
  %v2081 = vadd.f32 %v2058, %v2071
  %v2082 = vadd.f32 %v2059, %v2071
  %v2083 = vadd.f32 %v2060, %v2071
  %v2084 = vadd.f32 %v2061, %v2071
  %v2085 = vadd.f32 %v2062, %v2071
  %v2086 = vadd.f32 %v2063, %v2071
  %v2087 = vadd.f32 %v2064, %v2071
  %v2088 = vadd.f32 %v2065, %v2071
  %v2089 = vmax.f32 %v2073, 0.0
  %v2090 = vmax.f32 %v2074, 0.0
  %v2091 = vmax.f32 %v2075, 0.0
  %v2092 = vmax.f32 %v2076, 0.0
  %v2093 = vmax.f32 %v2077, 0.0
  %v2094 = vmax.f32 %v2078, 0.0
  %v2095 = vmax.f32 %v2079, 0.0
  %v2096 = vmax.f32 %v2080, 0.0
  %v2097 = vmax.f32 %v2081, 0.0
  %v2098 = vmax.f32 %v2082, 0.0
  %v2099 = vmax.f32 %v2083, 0.0
  %v2100 = vmax.f32 %v2084, 0.0
  %v2101 = vmax.f32 %v2085, 0.0
  %v2102 = vmax.f32 %v2086, 0.0
  %v2103 = vmax.f32 %v2087, 0.0
  %v2104 = vmax.f32 %v2088, 0.0
  %2105 = vst [vmem:[#allocation2 + $0x8] sm:$0xff] %v2089
  %2106 = vst [vmem:[#allocation2 + $0x10] sm:$0xff] %v2090
  %2107 = vst [vmem:[#allocation2 + $0x18] sm:$0xff] %v2091
  %2108 = vst [vmem:[#allocation2 + $0x20] sm:$0xff] %v2092
  %2109 = vst [vmem:[#allocation2 + $0x28] sm:$0xff] %v2093
  %2110 = vst [vmem:[#allocation2 + $0x30] sm:$0xff] %v2094
  %2111 = vst [vmem:[#allocation2 + $0x38] sm:$0xff] %v2095
  %2112 = vst [vmem:[#allocation2 + $0x40] sm:$0xff] %v2096
  %2113 = vst [vmem:[#allocation2 + $0x58] sm:$0xff] %v2097
  %2114 = vst [vmem:[#allocation2 + $0x60] sm:$0xff] %v2098
  %2115 = vst [vmem:[#allocation2 + $0x68] sm:$0xff] %v2099
  %2116 = vst [vmem:[#allocation2 + $0x70] sm:$0xff] %v2100
  %2117 = vst [vmem:[#allocation2 + $0x78] sm:$0xff] %v2101
  %2118 = vst [vmem:[#allocation2 + $0x80] sm:$0xff] %v2102
  %2119 = vst [vmem:[#allocation2 + $0x88] sm:$0xff] %v2103
  %2120 = vst [vmem:[#allocation2 + $0x90] sm:$0xff] %v2104
  %s2121 = scalar_lea.vmem [#allocation2], 7
  %v2122 = vld [vmem:[%s2121] ss:$2 sm:$0xff]
  %s2123 = scalar_lea.vmem [#allocation2], 23
  %v2124 = vld [vmem:[%s2123] ss:$2 sm:$0xff]
  %s2125 = scalar_lea.vmem [#allocation2], 39
  %v2126 = vld [vmem:[%s2125] ss:$2 sm:$0xff]
  %s2127 = scalar_lea.vmem [#allocation2], 55
  %v2128 = vld [vmem:[%s2127] ss:$2 sm:$0xff]
  %s2129 = scalar_lea.vmem [#allocation2], 71
  %v2130 = vld [vmem:[%s2129] ss:$2 sm:$0xff]
  %s2131 = scalar_lea.vmem [#allocation2], 87
  %v2132 = vld [vmem:[%s2131] ss:$2 sm:$0xff]
  %s2133 = scalar_lea.vmem [#allocation2], 103
  %v2134 = vld [vmem:[%s2133] ss:$2 sm:$0xff]
  %s2135 = scalar_lea.vmem [#allocation2], 119
  %v2136 = vld [vmem:[%s2135] ss:$2 sm:$0xff]
  %s2137 = scalar_lea.vmem [#allocation2], 135
  %v2138 = vld [vmem:[%s2137] ss:$2 sm:$0xff]
  %s2139 = scalar_lea.vmem [#allocation2], 8
  %v2140 = vld [vmem:[%s2139] ss:$2 sm:$0xff]
  %s2141 = scalar_lea.vmem [#allocation2], 24
  %v2142 = vld [vmem:[%s2141] ss:$2 sm:$0xff]
  %s2143 = scalar_lea.vmem [#allocation2], 40
  %v2144 = vld [vmem:[%s2143] ss:$2 sm:$0xff]
  %s2145 = scalar_lea.vmem [#allocation2], 56
  %v2146 = vld [vmem:[%s2145] ss:$2 sm:$0xff]
  %s2147 = scalar_lea.vmem [#allocation2], 72
  %v2148 = vld [vmem:[%s2147] ss:$2 sm:$0xff]
  %s2149 = scalar_lea.vmem [#allocation2], 88
  %v2150 = vld [vmem:[%s2149] ss:$2 sm:$0xff]
  %s2151 = scalar_lea.vmem [#allocation2], 104
  %v2152 = vld [vmem:[%s2151] ss:$2 sm:$0xff]
  %s2153 = scalar_lea.vmem [#allocation2], 120
  %v2154 = vld [vmem:[%s2153] ss:$2 sm:$0xff]
  %s2155 = scalar_lea.vmem [#allocation2], 136
  %v2156 = vld [vmem:[%s2155] ss:$2 sm:$0xff]
  %s2157 = scalar_lea.vmem [#allocation2], 9
  %v2158 = vld [vmem:[%s2157] ss:$2 sm:$0xff]
  %s2159 = scalar_lea.vmem [#allocation2], 25
  %v2160 = vld [vmem:[%s2159] ss:$2 sm:$0xff]
  %s2161 = scalar_lea.vmem [#allocation2], 41
  %v2162 = vld [vmem:[%s2161] ss:$2 sm:$0xff]
  %s2163 = scalar_lea.vmem [#allocation2], 57
  %v2164 = vld [vmem:[%s2163] ss:$2 sm:$0xff]
  %s2165 = scalar_lea.vmem [#allocation2], 73
  %v2166 = vld [vmem:[%s2165] ss:$2 sm:$0xff]
  %s2167 = scalar_lea.vmem [#allocation2], 89
  %v2168 = vld [vmem:[%s2167] ss:$2 sm:$0xff]
  %s2169 = scalar_lea.vmem [#allocation2], 105
  %v2170 = vld [vmem:[%s2169] ss:$2 sm:$0xff]
  %s2171 = scalar_lea.vmem [#allocation2], 121
  %v2172 = vld [vmem:[%s2171] ss:$2 sm:$0xff]
  %s2173 = scalar_lea.vmem [#allocation2], 137
  %v2174 = vld [vmem:[%s2173] ss:$2 sm:$0xff]
  %v2175 = vmax.f32 %v2122, %v2140
  %v2176 = vmax.f32 %v2124, %v2142
  %v2177 = vmax.f32 %v2126, %v2144
  %v2178 = vmax.f32 %v2128, %v2146
  %v2179 = vmax.f32 %v2130, %v2148
  %v2180 = vmax.f32 %v2132, %v2150
  %v2181 = vmax.f32 %v2134, %v2152
  %v2182 = vmax.f32 %v2136, %v2154
  %v2183 = vmax.f32 %v2138, %v2156
  %v2184 = vmax.f32 %v2175, %v2158
  %v2185 = vmax.f32 %v2176, %v2160
  %v2186 = vmax.f32 %v2177, %v2162
  %v2187 = vmax.f32 %v2178, %v2164
  %v2188 = vmax.f32 %v2179, %v2166
  %v2189 = vmax.f32 %v2180, %v2168
  %v2190 = vmax.f32 %v2181, %v2170
  %v2191 = vmax.f32 %v2182, %v2172
  %v2192 = vmax.f32 %v2183, %v2174
  %v2193 = vpack.c.bf16 %v2185, %v2184
  %v2194 = vpack.c.bf16 %v2187, %v2186
  %v2195 = vpack.c.bf16 %v2189, %v2188
  %v2196 = vpack.c.bf16 %v2191, %v2190
  %v2197 = vpack.c.bf16 %v2192, %v2192
  %v2198 = vld [vmem:[%s15] sm:$0xf]
  %v2199 = vld [vmem:[%s15 + $0x4] sm:$0xf]
  %v2200 = vld [vmem:[%s15 + $0x8] sm:$0xf]
  %v2201 = vld [vmem:[%s15 + $0xc] sm:$0xf]
  %v2202 = vld [vmem:[%s15 + $0x10] sm:$0xf]
  %v2203 = vld [vmem:[%s15 + $0x14] sm:$0xf]
  %v2204 = vld [vmem:[%s15 + $0x18] sm:$0xf]
  %v2205 = vld [vmem:[%s15 + $0x1c] sm:$0xf]
  %v2206 = vld [vmem:[%s15 + $0x20] sm:$0xf]
  %v2207 = vld [vmem:[%s15 + $0x24] sm:$0xf]
  %v2208 = vld [vmem:[%s15 + $0x28] sm:$0xf]
  %v2209 = vld [vmem:[%s15 + $0x2c] sm:$0xf]
  %v2210 = vld [vmem:[%s15 + $0x30] sm:$0xf]
  %v2211 = vld [vmem:[%s15 + $0x34] sm:$0xf]
  %v2212 = vld [vmem:[%s15 + $0x38] sm:$0xf]
  %v2213 = vld [vmem:[%s15 + $0x3c] sm:$0xf]
  %v2230 = vunpack.c.l.b16 %v2198
  %v2231 = vunpack.c.l.b16 %v2199
  %v2232 = vunpack.c.l.b16 %v2200
  %v2233 = vunpack.c.l.b16 %v2201
  %v2234 = vunpack.c.l.b16 %v2202
  %v2235 = vunpack.c.l.b16 %v2203
  %v2236 = vunpack.c.l.b16 %v2204
  %v2237 = vunpack.c.l.b16 %v2205
  %v2238 = vunpack.c.l.b16 %v2206
  %v2239 = vunpack.c.l.b16 %v2207
  %v2240 = vunpack.c.l.b16 %v2208
  %v2241 = vunpack.c.l.b16 %v2209
  %v2242 = vunpack.c.l.b16 %v2210
  %v2243 = vunpack.c.l.b16 %v2211
  %v2244 = vunpack.c.l.b16 %v2212
  %v2245 = vunpack.c.l.b16 %v2213
  %v2246 = vpack.c.b16 %v2231, %v2230
  %v2247 = vpack.c.b16 %v2233, %v2232
  %v2248 = vpack.c.b16 %v2235, %v2234
  %v2249 = vpack.c.b16 %v2237, %v2236
  %v2250 = vpack.c.b16 %v2239, %v2238
  %v2251 = vpack.c.b16 %v2241, %v2240
  %v2252 = vpack.c.b16 %v2243, %v2242
  %v2253 = vpack.c.b16 %v2245, %v2244
  %2262 = vmatprep.subr.bf16.mxu0 0
  %2263 = vmatpush1.bf16.msra.mxu0 %v2253
  %2264 = vmatprep.subr.bf16.mxu0 0
  %2265 = vmatpush1.bf16.msra.mxu0 %v2252
  %2266 = vmatprep.subr.bf16.mxu0 0
  %2267 = vmatpush1.bf16.msra.mxu0 %v2251
  %2268 = vmatprep.subr.bf16.mxu0 0
  %2269 = vmatpush1.bf16.msra.mxu0 %v2250
  %2270 = vmatprep.subr.bf16.mxu0 0
  %2271 = vmatpush1.bf16.msra.mxu0 %v2249
  %2272 = vmatprep.subr.bf16.mxu0 0
  %2273 = vmatpush1.bf16.msra.mxu0 %v2248
  %2274 = vmatprep.subr.bf16.mxu0 0
  %2275 = vmatpush1.bf16.msra.mxu0 %v2247
  %2276 = vmatprep.subr.bf16.mxu0 0
  %2277 = vmatpush1.bf16.msra.mxu0 %v2246
  %2278 = vmatprep.subr.bf16.mxu0 0
  %2279 = vmatpush2.bf16.msra.mxu0 0
  %2280 = vmatprep.subr.bf16.mxu0 0
  %2281 = vmatpush2.bf16.msra.mxu0 0
  %2282 = vmatprep.subr.bf16.mxu0 0
  %2283 = vmatpush2.bf16.msra.mxu0 0
  %2284 = vmatprep.subr.bf16.mxu0 0
  %2285 = vmatpush2.bf16.msra.mxu0 0
  %2286 = vmatprep.subr.bf16.mxu0 0
  %2287 = vmatpush2.bf16.msra.mxu0 0
  %2288 = vmatprep.subr.bf16.mxu0 0
  %2289 = vmatpush2.bf16.msra.mxu0 0
  %2290 = vmatprep.subr.bf16.mxu0 0
  %2291 = vmatpush2.bf16.msra.mxu0 0
  %2292 = vmatprep.subr.bf16.mxu0 0
  %2293 = vmatpush2.bf16.msra.mxu0 0
  %2294 = vmatprep.mubr.bf16.mxu0 0
  %2295 = vmatmul.mubr.bf16.gmra.mxu0 %v2193
  %v2296 = vpop.f32.mrf.mxu0
  %v2297 = vadd.f32 0.0, %v2296
  %v2298 = vpop.f32.mrf.mxu0
  %v2299 = vpop.f32.mrf.mxu0
  %v2300 = vadd.f32 0.0, %v2299
  %v2301 = vpop.f32.mrf.mxu0
  %2302 = vmatprep.mubr.bf16.mxu0 0
  %2303 = vmatmul.mubr.bf16.gmra.mxu0 %v2194
  %v2304 = vpop.f32.mrf.mxu0
  %v2305 = vadd.f32 0.0, %v2304
  %v2306 = vpop.f32.mrf.mxu0
  %v2307 = vpop.f32.mrf.mxu0
  %v2308 = vadd.f32 0.0, %v2307
  %v2309 = vpop.f32.mrf.mxu0
  %2310 = vmatprep.mubr.bf16.mxu0 0
  %2311 = vmatmul.mubr.bf16.gmra.mxu0 %v2195
  %v2312 = vpop.f32.mrf.mxu0
  %v2313 = vpop.f32.mrf.mxu0
  %v2314 = vpop.f32.mrf.mxu0
  %v2315 = vadd.f32 0.0, %v2314
  %v2316 = vpop.f32.mrf.mxu0
  %2317 = vmatprep.mubr.bf16.mxu0 0
  %2318 = vmatmul.mubr.bf16.gmra.mxu0 %v2196
  %v2319 = vpop.f32.mrf.mxu0
  %v2320 = vadd.f32 0.0, %v2319
  %v2321 = vpop.f32.mrf.mxu0
  %v2322 = vpop.f32.mrf.mxu0
  %v2323 = vadd.f32 0.0, %v2322
  %v2324 = vpop.f32.mrf.mxu0
  %2325 = vmatprep.mubr.bf16.mxu0 0
  %2326 = vmatmul.mubr.bf16.gmra.mxu0 %v2197
  %v2327 = vpop.f32.mrf.mxu0
  %v2328 = vadd.f32 0.0, %v2327
  %v2329 = vpop.f32.mrf.mxu0
  %v2330 = vpop.f32.mrf.mxu0
  %v2331 = vpop.f32.mrf.mxu0
  %2332 = vdwg.mxu0
  %s2333 = scalar_lea.vmem %s15, 64
  %v2334 = vld [vmem:[%s2333] sm:$0xf]
  %v2335 = vld [vmem:[%s2333 + $0x4] sm:$0xf]
  %v2336 = vld [vmem:[%s2333 + $0x8] sm:$0xf]
  %v2337 = vld [vmem:[%s2333 + $0xc] sm:$0xf]
  %v2338 = vld [vmem:[%s2333 + $0x10] sm:$0xf]
  %v2339 = vld [vmem:[%s2333 + $0x14] sm:$0xf]
  %v2340 = vld [vmem:[%s2333 + $0x18] sm:$0xf]
  %v2341 = vld [vmem:[%s2333 + $0x1c] sm:$0xf]
  %v2342 = vld [vmem:[%s2333 + $0x20] sm:$0xf]
  %v2343 = vld [vmem:[%s2333 + $0x24] sm:$0xf]
  %v2344 = vld [vmem:[%s2333 + $0x28] sm:$0xf]
  %v2345 = vld [vmem:[%s2333 + $0x2c] sm:$0xf]
  %v2346 = vld [vmem:[%s2333 + $0x30] sm:$0xf]
  %v2347 = vld [vmem:[%s2333 + $0x34] sm:$0xf]
  %v2348 = vld [vmem:[%s2333 + $0x38] sm:$0xf]
  %v2349 = vld [vmem:[%s2333 + $0x3c] sm:$0xf]
  %v2366 = vunpack.c.l.b16 %v2334
  %v2367 = vunpack.c.l.b16 %v2335
  %v2368 = vunpack.c.l.b16 %v2336
  %v2369 = vunpack.c.l.b16 %v2337
  %v2370 = vunpack.c.l.b16 %v2338
  %v2371 = vunpack.c.l.b16 %v2339
  %v2372 = vunpack.c.l.b16 %v2340
  %v2373 = vunpack.c.l.b16 %v2341
  %v2374 = vunpack.c.l.b16 %v2342
  %v2375 = vunpack.c.l.b16 %v2343
  %v2376 = vunpack.c.l.b16 %v2344
  %v2377 = vunpack.c.l.b16 %v2345
  %v2378 = vunpack.c.l.b16 %v2346
  %v2379 = vunpack.c.l.b16 %v2347
  %v2380 = vunpack.c.l.b16 %v2348
  %v2381 = vunpack.c.l.b16 %v2349
  %v2382 = vpack.c.b16 %v2367, %v2366
  %v2383 = vpack.c.b16 %v2369, %v2368
  %v2384 = vpack.c.b16 %v2371, %v2370
  %v2385 = vpack.c.b16 %v2373, %v2372
  %v2386 = vpack.c.b16 %v2375, %v2374
  %v2387 = vpack.c.b16 %v2377, %v2376
  %v2388 = vpack.c.b16 %v2379, %v2378
  %v2389 = vpack.c.b16 %v2381, %v2380
  %2398 = vmatprep.subr.bf16.mxu0 0
  %2399 = vmatpush1.bf16.msra.mxu0 %v2389
  %2400 = vmatprep.subr.bf16.mxu0 0
  %2401 = vmatpush1.bf16.msra.mxu0 %v2388
  %2402 = vmatprep.subr.bf16.mxu0 0
  %2403 = vmatpush1.bf16.msra.mxu0 %v2387
  %2404 = vmatprep.subr.bf16.mxu0 0
  %2405 = vmatpush1.bf16.msra.mxu0 %v2386
  %2406 = vmatprep.subr.bf16.mxu0 0
  %2407 = vmatpush1.bf16.msra.mxu0 %v2385
  %2408 = vmatprep.subr.bf16.mxu0 0
  %2409 = vmatpush1.bf16.msra.mxu0 %v2384
  %2410 = vmatprep.subr.bf16.mxu0 0
  %2411 = vmatpush1.bf16.msra.mxu0 %v2383
  %2412 = vmatprep.subr.bf16.mxu0 0
  %2413 = vmatpush1.bf16.msra.mxu0 %v2382
  %2414 = vmatprep.subr.bf16.mxu0 0
  %2415 = vmatpush2.bf16.msra.mxu0 0
  %2416 = vmatprep.subr.bf16.mxu0 0
  %2417 = vmatpush2.bf16.msra.mxu0 0
  %2418 = vmatprep.subr.bf16.mxu0 0
  %2419 = vmatpush2.bf16.msra.mxu0 0
  %2420 = vmatprep.subr.bf16.mxu0 0
  %2421 = vmatpush2.bf16.msra.mxu0 0
  %2422 = vmatprep.subr.bf16.mxu0 0
  %2423 = vmatpush2.bf16.msra.mxu0 0
  %2424 = vmatprep.subr.bf16.mxu0 0
  %2425 = vmatpush2.bf16.msra.mxu0 0
  %2426 = vmatprep.subr.bf16.mxu0 0
  %2427 = vmatpush2.bf16.msra.mxu0 0
  %2428 = vmatprep.subr.bf16.mxu0 0
  %2429 = vmatpush2.bf16.msra.mxu0 0
  %2430 = vmatprep.mubr.bf16.mxu0 0
  %2431 = vmatmul.mubr.bf16.gmra.mxu0 %v2193
  %v2432 = vpop.f32.mrf.mxu0
  %v2433 = vadd.f32 0.0, %v2432
  %v2434 = vpop.f32.mrf.mxu0
  %v2435 = vpop.f32.mrf.mxu0
  %v2436 = vadd.f32 0.0, %v2435
  %v2437 = vpop.f32.mrf.mxu0
  %2438 = vmatprep.mubr.bf16.mxu0 0
  %2439 = vmatmul.mubr.bf16.gmra.mxu0 %v2194
  %v2440 = vpop.f32.mrf.mxu0
  %v2441 = vadd.f32 0.0, %v2440
  %v2442 = vpop.f32.mrf.mxu0
  %v2443 = vpop.f32.mrf.mxu0
  %v2444 = vadd.f32 0.0, %v2443
  %v2445 = vpop.f32.mrf.mxu0
  %2446 = vmatprep.mubr.bf16.mxu0 0
  %2447 = vmatmul.mubr.bf16.gmra.mxu0 %v2195
  %v2448 = vpop.f32.mrf.mxu0
  %v2449 = vpop.f32.mrf.mxu0
  %v2450 = vpop.f32.mrf.mxu0
  %v2451 = vadd.f32 0.0, %v2450
  %v2452 = vpop.f32.mrf.mxu0
  %2453 = vmatprep.mubr.bf16.mxu0 0
  %2454 = vmatmul.mubr.bf16.gmra.mxu0 %v2196
  %v2455 = vpop.f32.mrf.mxu0
  %v2456 = vadd.f32 0.0, %v2455
  %v2457 = vpop.f32.mrf.mxu0
  %v2458 = vpop.f32.mrf.mxu0
  %v2459 = vadd.f32 0.0, %v2458
  %v2460 = vpop.f32.mrf.mxu0
  %2461 = vmatprep.mubr.bf16.mxu0 0
  %2462 = vmatmul.mubr.bf16.gmra.mxu0 %v2197
  %v2463 = vpop.f32.mrf.mxu0
  %v2464 = vadd.f32 0.0, %v2463
  %v2465 = vpop.f32.mrf.mxu0
  %v2466 = vpop.f32.mrf.mxu0
  %v2467 = vpop.f32.mrf.mxu0
  %2468 = vdwg.mxu0
  %v2469 = vmax.f32 %v2297, %v2433
  %v2470 = vmax.f32 %v2300, %v2436
  %v2471 = vmax.f32 %v2305, %v2441
  %v2472 = vmax.f32 %v2308, %v2444
  %v2473 = vmax.f32 %v2315, %v2451
  %v2474 = vmax.f32 %v2320, %v2456
  %v2475 = vmax.f32 %v2323, %v2459
  %v2476 = vmax.f32 %v2328, %v2464
  %s2477 = scalar_lea.vmem %s15, 128
  %v2478 = vld [vmem:[%s2477] sm:$0xf]
  %v2479 = vld [vmem:[%s2477 + $0x4] sm:$0xf]
  %v2480 = vld [vmem:[%s2477 + $0x8] sm:$0xf]
  %v2481 = vld [vmem:[%s2477 + $0xc] sm:$0xf]
  %v2482 = vld [vmem:[%s2477 + $0x10] sm:$0xf]
  %v2483 = vld [vmem:[%s2477 + $0x14] sm:$0xf]
  %v2484 = vld [vmem:[%s2477 + $0x18] sm:$0xf]
  %v2485 = vld [vmem:[%s2477 + $0x1c] sm:$0xf]
  %v2486 = vld [vmem:[%s2477 + $0x20] sm:$0xf]
  %v2487 = vld [vmem:[%s2477 + $0x24] sm:$0xf]
  %v2488 = vld [vmem:[%s2477 + $0x28] sm:$0xf]
  %v2489 = vld [vmem:[%s2477 + $0x2c] sm:$0xf]
  %v2490 = vld [vmem:[%s2477 + $0x30] sm:$0xf]
  %v2491 = vld [vmem:[%s2477 + $0x34] sm:$0xf]
  %v2492 = vld [vmem:[%s2477 + $0x38] sm:$0xf]
  %v2493 = vld [vmem:[%s2477 + $0x3c] sm:$0xf]
  %v2510 = vunpack.c.l.b16 %v2478
  %v2511 = vunpack.c.l.b16 %v2479
  %v2512 = vunpack.c.l.b16 %v2480
  %v2513 = vunpack.c.l.b16 %v2481
  %v2514 = vunpack.c.l.b16 %v2482
  %v2515 = vunpack.c.l.b16 %v2483
  %v2516 = vunpack.c.l.b16 %v2484
  %v2517 = vunpack.c.l.b16 %v2485
  %v2518 = vunpack.c.l.b16 %v2486
  %v2519 = vunpack.c.l.b16 %v2487
  %v2520 = vunpack.c.l.b16 %v2488
  %v2521 = vunpack.c.l.b16 %v2489
  %v2522 = vunpack.c.l.b16 %v2490
  %v2523 = vunpack.c.l.b16 %v2491
  %v2524 = vunpack.c.l.b16 %v2492
  %v2525 = vunpack.c.l.b16 %v2493
  %v2526 = vpack.c.b16 %v2511, %v2510
  %v2527 = vpack.c.b16 %v2513, %v2512
  %v2528 = vpack.c.b16 %v2515, %v2514
  %v2529 = vpack.c.b16 %v2517, %v2516
  %v2530 = vpack.c.b16 %v2519, %v2518
  %v2531 = vpack.c.b16 %v2521, %v2520
  %v2532 = vpack.c.b16 %v2523, %v2522
  %v2533 = vpack.c.b16 %v2525, %v2524
  %2542 = vmatprep.subr.bf16.mxu0 0
  %2543 = vmatpush1.bf16.msra.mxu0 %v2533
  %2544 = vmatprep.subr.bf16.mxu0 0
  %2545 = vmatpush1.bf16.msra.mxu0 %v2532
  %2546 = vmatprep.subr.bf16.mxu0 0
  %2547 = vmatpush1.bf16.msra.mxu0 %v2531
  %2548 = vmatprep.subr.bf16.mxu0 0
  %2549 = vmatpush1.bf16.msra.mxu0 %v2530
  %2550 = vmatprep.subr.bf16.mxu0 0
  %2551 = vmatpush1.bf16.msra.mxu0 %v2529
  %2552 = vmatprep.subr.bf16.mxu0 0
  %2553 = vmatpush1.bf16.msra.mxu0 %v2528
  %2554 = vmatprep.subr.bf16.mxu0 0
  %2555 = vmatpush1.bf16.msra.mxu0 %v2527
  %2556 = vmatprep.subr.bf16.mxu0 0
  %2557 = vmatpush1.bf16.msra.mxu0 %v2526
  %2558 = vmatprep.subr.bf16.mxu0 0
  %2559 = vmatpush2.bf16.msra.mxu0 0
  %2560 = vmatprep.subr.bf16.mxu0 0
  %2561 = vmatpush2.bf16.msra.mxu0 0
  %2562 = vmatprep.subr.bf16.mxu0 0
  %2563 = vmatpush2.bf16.msra.mxu0 0
  %2564 = vmatprep.subr.bf16.mxu0 0
  %2565 = vmatpush2.bf16.msra.mxu0 0
  %2566 = vmatprep.subr.bf16.mxu0 0
  %2567 = vmatpush2.bf16.msra.mxu0 0
  %2568 = vmatprep.subr.bf16.mxu0 0
  %2569 = vmatpush2.bf16.msra.mxu0 0
  %2570 = vmatprep.subr.bf16.mxu0 0
  %2571 = vmatpush2.bf16.msra.mxu0 0
  %2572 = vmatprep.subr.bf16.mxu0 0
  %2573 = vmatpush2.bf16.msra.mxu0 0
  %2574 = vmatprep.mubr.bf16.mxu0 0
  %2575 = vmatmul.mubr.bf16.gmra.mxu0 %v2193
  %v2576 = vpop.f32.mrf.mxu0
  %v2577 = vadd.f32 0.0, %v2576
  %v2578 = vpop.f32.mrf.mxu0
  %v2579 = vpop.f32.mrf.mxu0
  %v2580 = vadd.f32 0.0, %v2579
  %v2581 = vpop.f32.mrf.mxu0
  %2582 = vmatprep.mubr.bf16.mxu0 0
  %2583 = vmatmul.mubr.bf16.gmra.mxu0 %v2194
  %v2584 = vpop.f32.mrf.mxu0
  %v2585 = vadd.f32 0.0, %v2584
  %v2586 = vpop.f32.mrf.mxu0
  %v2587 = vpop.f32.mrf.mxu0
  %v2588 = vadd.f32 0.0, %v2587
  %v2589 = vpop.f32.mrf.mxu0
  %2590 = vmatprep.mubr.bf16.mxu0 0
  %2591 = vmatmul.mubr.bf16.gmra.mxu0 %v2195
  %v2592 = vpop.f32.mrf.mxu0
  %v2593 = vpop.f32.mrf.mxu0
  %v2594 = vpop.f32.mrf.mxu0
  %v2595 = vadd.f32 0.0, %v2594
  %v2596 = vpop.f32.mrf.mxu0
  %2597 = vmatprep.mubr.bf16.mxu0 0
  %2598 = vmatmul.mubr.bf16.gmra.mxu0 %v2196
  %v2599 = vpop.f32.mrf.mxu0
  %v2600 = vadd.f32 0.0, %v2599
  %v2601 = vpop.f32.mrf.mxu0
  %v2602 = vpop.f32.mrf.mxu0
  %v2603 = vadd.f32 0.0, %v2602
  %v2604 = vpop.f32.mrf.mxu0
  %2605 = vmatprep.mubr.bf16.mxu0 0
  %2606 = vmatmul.mubr.bf16.gmra.mxu0 %v2197
  %v2607 = vpop.f32.mrf.mxu0
  %v2608 = vadd.f32 0.0, %v2607
  %v2609 = vpop.f32.mrf.mxu0
  %v2610 = vpop.f32.mrf.mxu0
  %v2611 = vpop.f32.mrf.mxu0
  %2612 = vdwg.mxu0
  %v2613 = vmax.f32 %v2469, %v2577
  %v2614 = vmax.f32 %v2470, %v2580
  %v2615 = vmax.f32 %v2471, %v2585
  %v2616 = vmax.f32 %v2472, %v2588
  %v2617 = vmax.f32 %v2473, %v2595
  %v2618 = vmax.f32 %v2474, %v2600
  %v2619 = vmax.f32 %v2475, %v2603
  %v2620 = vmax.f32 %v2476, %v2608
  %v2621 = vpack.c.bf16 %v2614, %v2613
  %v2622 = vpack.c.bf16 %v2616, %v2615
  %v2625 = vunpack.c.l.b16 %v2621
  %v2626 = vunpack.c.h.b16 %v2621
  %v2627 = vunpack.c.l.b16 %v2622
  %v2628 = vunpack.c.h.b16 %v2622
  %v2629 = vpack.c.b16 %v2625, %v2625
  %v2630 = vpack.c.b16 %v2626, %v2626
  %v2631 = vpack.c.b16 %v2627, %v2627
  %v2632 = vpack.c.b16 %v2628, %v2628
  %2637 = vst.msk [vmem:[#allocation5 + $0x4] sm:$0xf] %vm74, %v2629
  %2638 = vst.msk [vmem:[#allocation5 + $0x8] sm:$0xf] %vm74, %v2630
  %2639 = vst.msk [vmem:[#allocation5 + $0xc] sm:$0xf] %vm74, %v2631
  %2640 = vst.msk [vmem:[#allocation5 + $0x10] sm:$0xf] %vm74, %v2632
  %v2641 = vpack.c.bf16 %v2618, %v2617
  %v2642 = vpack.c.bf16 %v2620, %v2619
  %v2645 = vunpack.c.l.b16 %v2641
  %v2646 = vunpack.c.h.b16 %v2641
  %v2647 = vunpack.c.l.b16 %v2642
  %v2648 = vunpack.c.h.b16 %v2642
  %v2649 = vpack.c.b16 %v2645, %v2645
  %v2650 = vpack.c.b16 %v2646, %v2646
  %v2651 = vpack.c.b16 %v2647, %v2647
  %v2652 = vpack.c.b16 %v2648, %v2648
  %2657 = vst.msk [vmem:[#allocation5 + $0x1c] sm:$0xf] %vm74, %v2649
  %2658 = vst.msk [vmem:[#allocation5 + $0x20] sm:$0xf] %vm74, %v2650
  %2659 = vst.msk [vmem:[#allocation5 + $0x24] sm:$0xf] %vm74, %v2651
  %2660 = vst.msk [vmem:[#allocation5 + $0x28] sm:$0xf] %vm74, %v2652
  %v2661 = vld [vmem:[#allocation5] sm:$0xc]
  %v2662 = vld [vmem:[#allocation5 + $0x4] sm:$0xf]
  %v2663 = vld [vmem:[#allocation5 + $0x8] sm:$0xf]
  %v2664 = vld [vmem:[#allocation5 + $0xc] sm:$0xf]
  %v2665 = vld [vmem:[#allocation5 + $0x10] sm:$0xf]
  %v2666 = vld [vmem:[#allocation5 + $0x14] sm:$0xf]
  %v2667 = vld [vmem:[#allocation5 + $0x18] sm:$0xf]
  %v2668 = vld [vmem:[#allocation5 + $0x1c] sm:$0xf]
  %v2669 = vld [vmem:[#allocation5 + $0x20] sm:$0xf]
  %v2670 = vld [vmem:[#allocation5 + $0x24] sm:$0xf]
  %v2671 = vld [vmem:[#allocation5 + $0x28] sm:$0x3]
  %v2672 = vld [vmem:[%s2] sm:$0xf]
  %v2673 = vld [vmem:[%s2 + $0x4] sm:$0xf]
  %v2674 = vld [vmem:[%s2 + $0x8] sm:$0xf]
  %v2675 = vld [vmem:[%s2 + $0xc] sm:$0xf]
  %v2676 = vld [vmem:[%s2 + $0x10] sm:$0xf]
  %v2677 = vld [vmem:[%s2 + $0x14] sm:$0xf]
  %v2678 = vld [vmem:[%s2 + $0x18] sm:$0xf]
  %v2679 = vld [vmem:[%s2 + $0x1c] sm:$0xf]
  %v2680 = vld [vmem:[#allocation5 + $0x28] sm:$0x7]
  %s2681 = scalar_lea.vmem %s2, 32
  %v2682 = vld [vmem:[%s2681] sm:$0xf]
  %v2683 = vld [vmem:[%s2681 + $0x4] sm:$0xf]
  %v2684 = vld [vmem:[%s2681 + $0x8] sm:$0xf]
  %v2685 = vld [vmem:[%s2681 + $0xc] sm:$0xf]
  %v2686 = vld [vmem:[%s2681 + $0x10] sm:$0xf]
  %v2687 = vld [vmem:[%s2681 + $0x14] sm:$0xf]
  %v2688 = vld [vmem:[%s2681 + $0x18] sm:$0xf]
  %v2689 = vld [vmem:[%s2681 + $0x1c] sm:$0xf]
  %v2701 = vunpack.c.l.b16 %v2661
  %v2702 = vunpack.c.l.b16 %v2662
  %v2703 = vunpack.c.l.b16 %v2663
  %v2704 = vunpack.c.l.b16 %v2664
  %v2705 = vunpack.c.l.b16 %v2665
  %v2706 = vunpack.c.l.b16 %v2666
  %v2707 = vunpack.c.l.b16 %v2667
  %v2708 = vunpack.c.l.b16 %v2668
  %v2709 = vunpack.c.l.b16 %v2669
  %v2710 = vunpack.c.l.b16 %v2670
  %v2711 = vunpack.c.l.b16 %v2680
  %v2712 = vpack.c.b16 %v2702, %v2701
  %v2713 = vpack.c.b16 %v2704, %v2703
  %v2714 = vpack.c.b16 %v2706, %v2705
  %v2715 = vpack.c.b16 %v2708, %v2707
  %v2716 = vpack.c.b16 %v2710, %v2709
  %v2717 = vpack.c.b16 %v2711, %v2711
  %v2719 = vshrl.u32 %v2712, 16
  %v2721 = vrot.slane %v2719, 2
  %v2722 = vshll.u32 %v2712, 16
  %v2724 = vrot.slane %v2722, 3
  %v2725 = vor.u32 %v2721, %v2724
  %v2727 = vshrl.u32 %v2713, 16
  %v2729 = vrot.slane %v2727, 2
  %v2730 = vshll.u32 %v2713, 16
  %v2732 = vrot.slane %v2730, 3
  %v2733 = vor.u32 %v2729, %v2732
  %v2734 = vsel %vm175, %v2725, %v2733
  %v2736 = vshrl.u32 %v2714, 16
  %v2738 = vrot.slane %v2736, 2
  %v2739 = vshll.u32 %v2714, 16
  %v2741 = vrot.slane %v2739, 3
  %v2742 = vor.u32 %v2738, %v2741
  %v2743 = vsel %vm175, %v2733, %v2742
  %v2745 = vshrl.u32 %v2715, 16
  %v2747 = vrot.slane %v2745, 2
  %v2748 = vshll.u32 %v2715, 16
  %v2750 = vrot.slane %v2748, 3
  %v2751 = vor.u32 %v2747, %v2750
  %v2752 = vsel %vm175, %v2742, %v2751
  %v2754 = vshrl.u32 %v2716, 16
  %v2756 = vrot.slane %v2754, 2
  %v2757 = vshll.u32 %v2716, 16
  %v2759 = vrot.slane %v2757, 3
  %v2760 = vor.u32 %v2756, %v2759
  %v2761 = vsel %vm175, %v2751, %v2760
  %v2763 = vshrl.u32 %v2717, 16
  %v2765 = vrot.slane %v2763, 2
  %v2766 = vshll.u32 %v2717, 16
  %v2768 = vrot.slane %v2766, 3
  %v2769 = vor.u32 %v2765, %v2768
  %v2770 = vsel %vm175, %v2760, %v2769
  %v2779 = vunpack.c.l.b16 %v2682
  %v2780 = vunpack.c.l.b16 %v2683
  %v2781 = vunpack.c.l.b16 %v2684
  %v2782 = vunpack.c.l.b16 %v2685
  %v2783 = vunpack.c.l.b16 %v2686
  %v2784 = vunpack.c.l.b16 %v2687
  %v2785 = vunpack.c.l.b16 %v2688
  %v2786 = vunpack.c.l.b16 %v2689
  %v2787 = vpack.c.b16 %v2780, %v2779
  %v2788 = vpack.c.b16 %v2782, %v2781
  %v2789 = vpack.c.b16 %v2784, %v2783
  %v2790 = vpack.c.b16 %v2786, %v2785
  %v2796 = vsel %vm64, %v2734, 0
  %v2799 = vsel %vm64, %v2743, 0
  %v2802 = vsel %vm64, %v2752, 0
  %v2805 = vsel %vm64, %v2761, 0
  %v2808 = vsel %vm64, %v2770, 0
  %2810 = vmatprep.subr.bf16.mxu0 0
  %2811 = vmatpush1.bf16.msra.mxu0 0
  %2812 = vmatprep.subr.bf16.mxu0 0
  %2813 = vmatpush1.bf16.msra.mxu0 0
  %2814 = vmatprep.subr.bf16.mxu0 0
  %2815 = vmatpush1.bf16.msra.mxu0 0
  %2816 = vmatprep.subr.bf16.mxu0 0
  %2817 = vmatpush1.bf16.msra.mxu0 0
  %2818 = vmatprep.subr.bf16.mxu0 0
  %2819 = vmatpush1.bf16.msra.mxu0 %v2790
  %2820 = vmatprep.subr.bf16.mxu0 0
  %2821 = vmatpush1.bf16.msra.mxu0 %v2789
  %2822 = vmatprep.subr.bf16.mxu0 0
  %2823 = vmatpush1.bf16.msra.mxu0 %v2788
  %2824 = vmatprep.subr.bf16.mxu0 0
  %2825 = vmatpush1.bf16.msra.mxu0 %v2787
  %2826 = vmatprep.subr.bf16.mxu0 0
  %2827 = vmatpush2.bf16.msra.mxu0 0
  %2828 = vmatprep.subr.bf16.mxu0 0
  %2829 = vmatpush2.bf16.msra.mxu0 0
  %2830 = vmatprep.subr.bf16.mxu0 0
  %2831 = vmatpush2.bf16.msra.mxu0 0
  %2832 = vmatprep.subr.bf16.mxu0 0
  %2833 = vmatpush2.bf16.msra.mxu0 0
  %2834 = vmatprep.subr.bf16.mxu0 0
  %2835 = vmatpush2.bf16.msra.mxu0 0
  %2836 = vmatprep.subr.bf16.mxu0 0
  %2837 = vmatpush2.bf16.msra.mxu0 0
  %2838 = vmatprep.subr.bf16.mxu0 0
  %2839 = vmatpush2.bf16.msra.mxu0 0
  %2840 = vmatprep.subr.bf16.mxu0 0
  %2841 = vmatpush2.bf16.msra.mxu0 0
  %2842 = vmatprep.mubr.bf16.mxu0 0
  %2843 = vmatmul.mubr.bf16.gmra.mxu0 %v2796
  %v2844 = vpop.f32.mrf.mxu0
  %v2845 = vadd.f32 0.0, %v2844
  %v2846 = vpop.f32.mrf.mxu0
  %v2847 = vpop.f32.mrf.mxu0
  %v2848 = vadd.f32 0.0, %v2847
  %v2849 = vpop.f32.mrf.mxu0
  %2850 = vmatprep.mubr.bf16.mxu0 0
  %2851 = vmatmul.mubr.bf16.gmra.mxu0 %v2799
  %v2852 = vpop.f32.mrf.mxu0
  %v2853 = vadd.f32 0.0, %v2852
  %v2854 = vpop.f32.mrf.mxu0
  %v2855 = vpop.f32.mrf.mxu0
  %v2856 = vadd.f32 0.0, %v2855
  %v2857 = vpop.f32.mrf.mxu0
  %2858 = vmatprep.mubr.bf16.mxu0 0
  %2859 = vmatmul.mubr.bf16.gmra.mxu0 %v2802
  %v2860 = vpop.f32.mrf.mxu0
  %v2861 = vpop.f32.mrf.mxu0
  %v2862 = vpop.f32.mrf.mxu0
  %v2863 = vpop.f32.mrf.mxu0
  %2864 = vmatprep.mubr.bf16.mxu0 0
  %2865 = vmatmul.mubr.bf16.gmra.mxu0 %v2805
  %v2866 = vpop.f32.mrf.mxu0
  %v2867 = vadd.f32 0.0, %v2866
  %v2868 = vpop.f32.mrf.mxu0
  %v2869 = vpop.f32.mrf.mxu0
  %v2870 = vadd.f32 0.0, %v2869
  %v2871 = vpop.f32.mrf.mxu0
  %2872 = vmatprep.mubr.bf16.mxu0 0
  %2873 = vmatmul.mubr.bf16.gmra.mxu0 %v2808
  %v2874 = vpop.f32.mrf.mxu0
  %v2875 = vadd.f32 0.0, %v2874
  %v2876 = vpop.f32.mrf.mxu0
  %v2877 = vpop.f32.mrf.mxu0
  %v2878 = vadd.f32 0.0, %v2877
  %v2879 = vpop.f32.mrf.mxu0
  %2880 = vdwg.mxu0
  %v2881 = vld [vmem:[#allocation5] sm:$0x8]
  %s2882 = scalar_lea.vmem %s2, 64
  %v2883 = vld [vmem:[%s2882] sm:$0xf]
  %v2884 = vld [vmem:[%s2882 + $0x4] sm:$0xf]
  %v2885 = vld [vmem:[%s2882 + $0x8] sm:$0xf]
  %v2886 = vld [vmem:[%s2882 + $0xc] sm:$0xf]
  %v2887 = vld [vmem:[%s2882 + $0x10] sm:$0xf]
  %v2888 = vld [vmem:[%s2882 + $0x14] sm:$0xf]
  %v2889 = vld [vmem:[%s2882 + $0x18] sm:$0xf]
  %v2890 = vld [vmem:[%s2882 + $0x1c] sm:$0xf]
  %v2891 = vld [vmem:[#allocation5 + $0x28] sm:$0xf]
  %s2892 = scalar_lea.vmem %s2, 96
  %v2893 = vld [vmem:[%s2892] sm:$0xf]
  %v2894 = vld [vmem:[%s2892 + $0x4] sm:$0xf]
  %v2895 = vld [vmem:[%s2892 + $0x8] sm:$0xf]
  %v2896 = vld [vmem:[%s2892 + $0xc] sm:$0xf]
  %v2897 = vld [vmem:[%s2892 + $0x10] sm:$0xf]
  %v2898 = vld [vmem:[%s2892 + $0x14] sm:$0xf]
  %v2899 = vld [vmem:[%s2892 + $0x18] sm:$0xf]
  %v2900 = vld [vmem:[%s2892 + $0x1c] sm:$0xf]
  %v2903 = vunpack.c.l.b16 %v2881
  %v2904 = vunpack.c.l.b16 %v2891
  %v2905 = vpack.c.b16 %v2702, %v2903
  %v2906 = vpack.c.b16 %v2904, %v2904
  %v2908 = vshrl.u32 %v2905, 16
  %v2910 = vrot.slane %v2908, 3
  %v2911 = vshll.u32 %v2905, 16
  %v2913 = vrot.slane %v2911, 4
  %v2914 = vor.u32 %v2910, %v2913
  %v2915 = vrot.slane %v2727, 3
  %v2916 = vrot.slane %v2730, 4
  %v2917 = vor.u32 %v2915, %v2916
  %v2918 = vsel %vm436, %v2914, %v2917
  %v2919 = vrot.slane %v2736, 3
  %v2920 = vrot.slane %v2739, 4
  %v2921 = vor.u32 %v2919, %v2920
  %v2922 = vsel %vm436, %v2917, %v2921
  %v2923 = vrot.slane %v2745, 3
  %v2924 = vrot.slane %v2748, 4
  %v2925 = vor.u32 %v2923, %v2924
  %v2926 = vsel %vm436, %v2921, %v2925
  %v2927 = vrot.slane %v2754, 3
  %v2928 = vrot.slane %v2757, 4
  %v2929 = vor.u32 %v2927, %v2928
  %v2930 = vsel %vm436, %v2925, %v2929
  %v2932 = vshrl.u32 %v2906, 16
  %v2934 = vrot.slane %v2932, 3
  %v2935 = vshll.u32 %v2906, 16
  %v2937 = vrot.slane %v2935, 4
  %v2938 = vor.u32 %v2934, %v2937
  %v2939 = vsel %vm436, %v2929, %v2938
  %v2948 = vunpack.c.l.b16 %v2893
  %v2949 = vunpack.c.l.b16 %v2894
  %v2950 = vunpack.c.l.b16 %v2895
  %v2951 = vunpack.c.l.b16 %v2896
  %v2952 = vunpack.c.l.b16 %v2897
  %v2953 = vunpack.c.l.b16 %v2898
  %v2954 = vunpack.c.l.b16 %v2899
  %v2955 = vunpack.c.l.b16 %v2900
  %v2956 = vpack.c.b16 %v2949, %v2948
  %v2957 = vpack.c.b16 %v2951, %v2950
  %v2958 = vpack.c.b16 %v2953, %v2952
  %v2959 = vpack.c.b16 %v2955, %v2954
  %v2965 = vsel %vm64, %v2918, 0
  %v2968 = vsel %vm64, %v2922, 0
  %v2971 = vsel %vm64, %v2926, 0
  %v2974 = vsel %vm64, %v2930, 0
  %v2977 = vsel %vm64, %v2939, 0
  %2979 = vmatprep.subr.bf16.mxu0 0
  %2980 = vmatpush1.bf16.msra.mxu0 0
  %2981 = vmatprep.subr.bf16.mxu0 0
  %2982 = vmatpush1.bf16.msra.mxu0 0
  %2983 = vmatprep.subr.bf16.mxu0 0
  %2984 = vmatpush1.bf16.msra.mxu0 0
  %2985 = vmatprep.subr.bf16.mxu0 0
  %2986 = vmatpush1.bf16.msra.mxu0 0
  %2987 = vmatprep.subr.bf16.mxu0 0
  %2988 = vmatpush1.bf16.msra.mxu0 %v2959
  %2989 = vmatprep.subr.bf16.mxu0 0
  %2990 = vmatpush1.bf16.msra.mxu0 %v2958
  %2991 = vmatprep.subr.bf16.mxu0 0
  %2992 = vmatpush1.bf16.msra.mxu0 %v2957
  %2993 = vmatprep.subr.bf16.mxu0 0
  %2994 = vmatpush1.bf16.msra.mxu0 %v2956
  %2995 = vmatprep.subr.bf16.mxu0 0
  %2996 = vmatpush2.bf16.msra.mxu0 0
  %2997 = vmatprep.subr.bf16.mxu0 0
  %2998 = vmatpush2.bf16.msra.mxu0 0
  %2999 = vmatprep.subr.bf16.mxu0 0
  %3000 = vmatpush2.bf16.msra.mxu0 0
  %3001 = vmatprep.subr.bf16.mxu0 0
  %3002 = vmatpush2.bf16.msra.mxu0 0
  %3003 = vmatprep.subr.bf16.mxu0 0
  %3004 = vmatpush2.bf16.msra.mxu0 0
  %3005 = vmatprep.subr.bf16.mxu0 0
  %3006 = vmatpush2.bf16.msra.mxu0 0
  %3007 = vmatprep.subr.bf16.mxu0 0
  %3008 = vmatpush2.bf16.msra.mxu0 0
  %3009 = vmatprep.subr.bf16.mxu0 0
  %3010 = vmatpush2.bf16.msra.mxu0 0
  %3011 = vmatprep.mubr.bf16.mxu0 0
  %3012 = vmatmul.mubr.bf16.gmra.mxu0 %v2965
  %v3013 = vpop.f32.mrf.mxu0
  %v3014 = vadd.f32 0.0, %v3013
  %v3015 = vpop.f32.mrf.mxu0
  %v3016 = vpop.f32.mrf.mxu0
  %v3017 = vadd.f32 0.0, %v3016
  %v3018 = vpop.f32.mrf.mxu0
  %3019 = vmatprep.mubr.bf16.mxu0 0
  %3020 = vmatmul.mubr.bf16.gmra.mxu0 %v2968
  %v3021 = vpop.f32.mrf.mxu0
  %v3022 = vadd.f32 0.0, %v3021
  %v3023 = vpop.f32.mrf.mxu0
  %v3024 = vpop.f32.mrf.mxu0
  %v3025 = vadd.f32 0.0, %v3024
  %v3026 = vpop.f32.mrf.mxu0
  %3027 = vmatprep.mubr.bf16.mxu0 0
  %3028 = vmatmul.mubr.bf16.gmra.mxu0 %v2971
  %v3029 = vpop.f32.mrf.mxu0
  %v3030 = vpop.f32.mrf.mxu0
  %v3031 = vpop.f32.mrf.mxu0
  %v3032 = vpop.f32.mrf.mxu0
  %3033 = vmatprep.mubr.bf16.mxu0 0
  %3034 = vmatmul.mubr.bf16.gmra.mxu0 %v2974
  %v3035 = vpop.f32.mrf.mxu0
  %v3036 = vadd.f32 0.0, %v3035
  %v3037 = vpop.f32.mrf.mxu0
  %v3038 = vpop.f32.mrf.mxu0
  %v3039 = vadd.f32 0.0, %v3038
  %v3040 = vpop.f32.mrf.mxu0
  %3041 = vmatprep.mubr.bf16.mxu0 0
  %3042 = vmatmul.mubr.bf16.gmra.mxu0 %v2977
  %v3043 = vpop.f32.mrf.mxu0
  %v3044 = vadd.f32 0.0, %v3043
  %v3045 = vpop.f32.mrf.mxu0
  %v3046 = vpop.f32.mrf.mxu0
  %v3047 = vadd.f32 0.0, %v3046
  %v3048 = vpop.f32.mrf.mxu0
  %3049 = vdwg.mxu0
  %s3050 = scalar_lea.vmem %s2, 128
  %v3051 = vld [vmem:[%s3050] sm:$0xf]
  %v3052 = vld [vmem:[%s3050 + $0x4] sm:$0xf]
  %v3053 = vld [vmem:[%s3050 + $0x8] sm:$0xf]
  %v3054 = vld [vmem:[%s3050 + $0xc] sm:$0xf]
  %v3055 = vld [vmem:[%s3050 + $0x10] sm:$0xf]
  %v3056 = vld [vmem:[%s3050 + $0x14] sm:$0xf]
  %v3057 = vld [vmem:[%s3050 + $0x18] sm:$0xf]
  %v3058 = vld [vmem:[%s3050 + $0x1c] sm:$0xf]
  %v3059 = vld [vmem:[#allocation5 + $0x4] sm:$0xf]
  %v3060 = vld [vmem:[#allocation5 + $0x8] sm:$0xf]
  %v3061 = vld [vmem:[#allocation5 + $0xc] sm:$0xf]
  %v3062 = vld [vmem:[#allocation5 + $0x10] sm:$0xf]
  %v3063 = vld [vmem:[#allocation5 + $0x14] sm:$0xf]
  %v3064 = vld [vmem:[#allocation5 + $0x18] sm:$0xf]
  %v3065 = vld [vmem:[#allocation5 + $0x1c] sm:$0xf]
  %v3066 = vld [vmem:[#allocation5 + $0x20] sm:$0xf]
  %v3067 = vld [vmem:[#allocation5 + $0x24] sm:$0xf]
  %v3068 = vld [vmem:[#allocation5 + $0x28] sm:$0xf]
  %v3069 = vld [vmem:[#allocation5 + $0x2c] sm:$0x1]
  %s3070 = scalar_lea.vmem %s2, 160
  %v3071 = vld [vmem:[%s3070] sm:$0xf]
  %v3072 = vld [vmem:[%s3070 + $0x4] sm:$0xf]
  %v3073 = vld [vmem:[%s3070 + $0x8] sm:$0xf]
  %v3074 = vld [vmem:[%s3070 + $0xc] sm:$0xf]
  %v3075 = vld [vmem:[%s3070 + $0x10] sm:$0xf]
  %v3076 = vld [vmem:[%s3070 + $0x14] sm:$0xf]
  %v3077 = vld [vmem:[%s3070 + $0x18] sm:$0xf]
  %v3078 = vld [vmem:[%s3070 + $0x1c] sm:$0xf]
  %v3090 = vunpack.c.l.b16 %v3059
  %v3091 = vunpack.c.l.b16 %v3060
  %v3092 = vunpack.c.l.b16 %v3061
  %v3093 = vunpack.c.l.b16 %v3062
  %v3094 = vunpack.c.l.b16 %v3063
  %v3095 = vunpack.c.l.b16 %v3064
  %v3096 = vunpack.c.l.b16 %v3065
  %v3097 = vunpack.c.l.b16 %v3066
  %v3098 = vunpack.c.l.b16 %v3067
  %v3099 = vunpack.c.l.b16 %v3068
  %v3100 = vunpack.c.l.b16 %v3069
  %v3101 = vpack.c.b16 %v3091, %v3090
  %v3102 = vpack.c.b16 %v3093, %v3092
  %v3103 = vpack.c.b16 %v3095, %v3094
  %v3104 = vpack.c.b16 %v3097, %v3096
  %v3105 = vpack.c.b16 %v3099, %v3098
  %v3106 = vpack.c.b16 %v3100, %v3100
  %v3108 = vshrl.u32 %v3101, 16
  %v3110 = vshll.u32 %v3101, 16
  %v3112 = vrot.slane %v3110, 1
  %v3113 = vor.u32 %v3108, %v3112
  %v3115 = vshll.u32 %v3102, 16
  %v3117 = vrot.slane %v3115, 1
  %v3118 = vsel %vm715, %v3113, %v3117
  %v3119 = vshrl.u32 %v3102, 16
  %v3121 = vor.u32 %v3119, %v3117
  %v3123 = vshll.u32 %v3103, 16
  %v3125 = vrot.slane %v3123, 1
  %v3126 = vsel %vm715, %v3121, %v3125
  %v3127 = vshrl.u32 %v3103, 16
  %v3129 = vor.u32 %v3127, %v3125
  %v3131 = vshll.u32 %v3104, 16
  %v3133 = vrot.slane %v3131, 1
  %v3134 = vsel %vm715, %v3129, %v3133
  %v3135 = vshrl.u32 %v3104, 16
  %v3137 = vor.u32 %v3135, %v3133
  %v3139 = vshll.u32 %v3105, 16
  %v3141 = vrot.slane %v3139, 1
  %v3142 = vsel %vm715, %v3137, %v3141
  %v3143 = vshrl.u32 %v3105, 16
  %v3145 = vor.u32 %v3143, %v3141
  %v3147 = vshll.u32 %v3106, 16
  %v3149 = vrot.slane %v3147, 1
  %v3150 = vsel %vm715, %v3145, %v3149
  %v3159 = vunpack.c.l.b16 %v3071
  %v3160 = vunpack.c.l.b16 %v3072
  %v3161 = vunpack.c.l.b16 %v3073
  %v3162 = vunpack.c.l.b16 %v3074
  %v3163 = vunpack.c.l.b16 %v3075
  %v3164 = vunpack.c.l.b16 %v3076
  %v3165 = vunpack.c.l.b16 %v3077
  %v3166 = vunpack.c.l.b16 %v3078
  %v3167 = vpack.c.b16 %v3160, %v3159
  %v3168 = vpack.c.b16 %v3162, %v3161
  %v3169 = vpack.c.b16 %v3164, %v3163
  %v3170 = vpack.c.b16 %v3166, %v3165
  %v3176 = vsel %vm64, %v3118, 0
  %v3179 = vsel %vm64, %v3126, 0
  %v3182 = vsel %vm64, %v3134, 0
  %v3185 = vsel %vm64, %v3142, 0
  %v3188 = vsel %vm64, %v3150, 0
  %3190 = vmatprep.subr.bf16.mxu0 0
  %3191 = vmatpush1.bf16.msra.mxu0 0
  %3192 = vmatprep.subr.bf16.mxu0 0
  %3193 = vmatpush1.bf16.msra.mxu0 0
  %3194 = vmatprep.subr.bf16.mxu0 0
  %3195 = vmatpush1.bf16.msra.mxu0 0
  %3196 = vmatprep.subr.bf16.mxu0 0
  %3197 = vmatpush1.bf16.msra.mxu0 0
  %3198 = vmatprep.subr.bf16.mxu0 0
  %3199 = vmatpush1.bf16.msra.mxu0 %v3170
  %3200 = vmatprep.subr.bf16.mxu0 0
  %3201 = vmatpush1.bf16.msra.mxu0 %v3169
  %3202 = vmatprep.subr.bf16.mxu0 0
  %3203 = vmatpush1.bf16.msra.mxu0 %v3168
  %3204 = vmatprep.subr.bf16.mxu0 0
  %3205 = vmatpush1.bf16.msra.mxu0 %v3167
  %3206 = vmatprep.subr.bf16.mxu0 0
  %3207 = vmatpush2.bf16.msra.mxu0 0
  %3208 = vmatprep.subr.bf16.mxu0 0
  %3209 = vmatpush2.bf16.msra.mxu0 0
  %3210 = vmatprep.subr.bf16.mxu0 0
  %3211 = vmatpush2.bf16.msra.mxu0 0
  %3212 = vmatprep.subr.bf16.mxu0 0
  %3213 = vmatpush2.bf16.msra.mxu0 0
  %3214 = vmatprep.subr.bf16.mxu0 0
  %3215 = vmatpush2.bf16.msra.mxu0 0
  %3216 = vmatprep.subr.bf16.mxu0 0
  %3217 = vmatpush2.bf16.msra.mxu0 0
  %3218 = vmatprep.subr.bf16.mxu0 0
  %3219 = vmatpush2.bf16.msra.mxu0 0
  %3220 = vmatprep.subr.bf16.mxu0 0
  %3221 = vmatpush2.bf16.msra.mxu0 0
  %3222 = vmatprep.mubr.bf16.mxu0 0
  %3223 = vmatmul.mubr.bf16.gmra.mxu0 %v3176
  %v3224 = vpop.f32.mrf.mxu0
  %v3225 = vadd.f32 0.0, %v3224
  %v3226 = vpop.f32.mrf.mxu0
  %v3227 = vpop.f32.mrf.mxu0
  %v3228 = vadd.f32 0.0, %v3227
  %v3229 = vpop.f32.mrf.mxu0
  %3230 = vmatprep.mubr.bf16.mxu0 0
  %3231 = vmatmul.mubr.bf16.gmra.mxu0 %v3179
  %v3232 = vpop.f32.mrf.mxu0
  %v3233 = vadd.f32 0.0, %v3232
  %v3234 = vpop.f32.mrf.mxu0
  %v3235 = vpop.f32.mrf.mxu0
  %v3236 = vadd.f32 0.0, %v3235
  %v3237 = vpop.f32.mrf.mxu0
  %3238 = vmatprep.mubr.bf16.mxu0 0
  %3239 = vmatmul.mubr.bf16.gmra.mxu0 %v3182
  %v3240 = vpop.f32.mrf.mxu0
  %v3241 = vpop.f32.mrf.mxu0
  %v3242 = vpop.f32.mrf.mxu0
  %v3243 = vpop.f32.mrf.mxu0
  %3244 = vmatprep.mubr.bf16.mxu0 0
  %3245 = vmatmul.mubr.bf16.gmra.mxu0 %v3185
  %v3246 = vpop.f32.mrf.mxu0
  %v3247 = vadd.f32 0.0, %v3246
  %v3248 = vpop.f32.mrf.mxu0
  %v3249 = vpop.f32.mrf.mxu0
  %v3250 = vadd.f32 0.0, %v3249
  %v3251 = vpop.f32.mrf.mxu0
  %3252 = vmatprep.mubr.bf16.mxu0 0
  %3253 = vmatmul.mubr.bf16.gmra.mxu0 %v3188
  %v3254 = vpop.f32.mrf.mxu0
  %v3255 = vadd.f32 0.0, %v3254
  %v3256 = vpop.f32.mrf.mxu0
  %v3257 = vpop.f32.mrf.mxu0
  %v3258 = vadd.f32 0.0, %v3257
  %v3259 = vpop.f32.mrf.mxu0
  %3260 = vdwg.mxu0
  %v3261 = vld [vmem:[#allocation5 + $0x4] sm:$0xe]
  %s3262 = scalar_lea.vmem %s2, 192
  %v3263 = vld [vmem:[%s3262] sm:$0xf]
  %v3264 = vld [vmem:[%s3262 + $0x4] sm:$0xf]
  %v3265 = vld [vmem:[%s3262 + $0x8] sm:$0xf]
  %v3266 = vld [vmem:[%s3262 + $0xc] sm:$0xf]
  %v3267 = vld [vmem:[%s3262 + $0x10] sm:$0xf]
  %v3268 = vld [vmem:[%s3262 + $0x14] sm:$0xf]
  %v3269 = vld [vmem:[%s3262 + $0x18] sm:$0xf]
  %v3270 = vld [vmem:[%s3262 + $0x1c] sm:$0xf]
  %v3271 = vld [vmem:[#allocation5 + $0x2c] sm:$0x3]
  %s3272 = scalar_lea.vmem %s2, 224
  %v3273 = vld [vmem:[%s3272] sm:$0xf]
  %v3274 = vld [vmem:[%s3272 + $0x4] sm:$0xf]
  %v3275 = vld [vmem:[%s3272 + $0x8] sm:$0xf]
  %v3276 = vld [vmem:[%s3272 + $0xc] sm:$0xf]
  %v3277 = vld [vmem:[%s3272 + $0x10] sm:$0xf]
  %v3278 = vld [vmem:[%s3272 + $0x14] sm:$0xf]
  %v3279 = vld [vmem:[%s3272 + $0x18] sm:$0xf]
  %v3280 = vld [vmem:[%s3272 + $0x1c] sm:$0xf]
  %v3283 = vunpack.c.l.b16 %v3261
  %v3284 = vunpack.c.l.b16 %v3271
  %v3285 = vpack.c.b16 %v3091, %v3283
  %v3286 = vpack.c.b16 %v3284, %v3284
  %v3288 = vshrl.u32 %v3285, 16
  %v3290 = vrot.slane %v3288, 1
  %v3291 = vshll.u32 %v3285, 16
  %v3293 = vrot.slane %v3291, 2
  %v3294 = vor.u32 %v3290, %v3293
  %v3295 = vrot.slane %v3119, 1
  %v3296 = vrot.slane %v3115, 2
  %v3297 = vor.u32 %v3295, %v3296
  %v3298 = vsel %vm962, %v3294, %v3297
  %v3299 = vrot.slane %v3127, 1
  %v3300 = vrot.slane %v3123, 2
  %v3301 = vor.u32 %v3299, %v3300
  %v3302 = vsel %vm962, %v3297, %v3301
  %v3303 = vrot.slane %v3135, 1
  %v3304 = vrot.slane %v3131, 2
  %v3305 = vor.u32 %v3303, %v3304
  %v3306 = vsel %vm962, %v3301, %v3305
  %v3307 = vrot.slane %v3143, 1
  %v3308 = vrot.slane %v3139, 2
  %v3309 = vor.u32 %v3307, %v3308
  %v3310 = vsel %vm962, %v3305, %v3309
  %v3312 = vshrl.u32 %v3286, 16
  %v3314 = vrot.slane %v3312, 1
  %v3315 = vshll.u32 %v3286, 16
  %v3317 = vrot.slane %v3315, 2
  %v3318 = vor.u32 %v3314, %v3317
  %v3319 = vsel %vm962, %v3309, %v3318
  %v3328 = vunpack.c.l.b16 %v3273
  %v3329 = vunpack.c.l.b16 %v3274
  %v3330 = vunpack.c.l.b16 %v3275
  %v3331 = vunpack.c.l.b16 %v3276
  %v3332 = vunpack.c.l.b16 %v3277
  %v3333 = vunpack.c.l.b16 %v3278
  %v3334 = vunpack.c.l.b16 %v3279
  %v3335 = vunpack.c.l.b16 %v3280
  %v3336 = vpack.c.b16 %v3329, %v3328
  %v3337 = vpack.c.b16 %v3331, %v3330
  %v3338 = vpack.c.b16 %v3333, %v3332
  %v3339 = vpack.c.b16 %v3335, %v3334
  %v3345 = vsel %vm64, %v3298, 0
  %v3348 = vsel %vm64, %v3302, 0
  %v3351 = vsel %vm64, %v3306, 0
  %v3354 = vsel %vm64, %v3310, 0
  %v3357 = vsel %vm64, %v3319, 0
  %3359 = vmatprep.subr.bf16.mxu0 0
  %3360 = vmatpush1.bf16.msra.mxu0 0
  %3361 = vmatprep.subr.bf16.mxu0 0
  %3362 = vmatpush1.bf16.msra.mxu0 0
  %3363 = vmatprep.subr.bf16.mxu0 0
  %3364 = vmatpush1.bf16.msra.mxu0 0
  %3365 = vmatprep.subr.bf16.mxu0 0
  %3366 = vmatpush1.bf16.msra.mxu0 0
  %3367 = vmatprep.subr.bf16.mxu0 0
  %3368 = vmatpush1.bf16.msra.mxu0 %v3339
  %3369 = vmatprep.subr.bf16.mxu0 0
  %3370 = vmatpush1.bf16.msra.mxu0 %v3338
  %3371 = vmatprep.subr.bf16.mxu0 0
  %3372 = vmatpush1.bf16.msra.mxu0 %v3337
  %3373 = vmatprep.subr.bf16.mxu0 0
  %3374 = vmatpush1.bf16.msra.mxu0 %v3336
  %3375 = vmatprep.subr.bf16.mxu0 0
  %3376 = vmatpush2.bf16.msra.mxu0 0
  %3377 = vmatprep.subr.bf16.mxu0 0
  %3378 = vmatpush2.bf16.msra.mxu0 0
  %3379 = vmatprep.subr.bf16.mxu0 0
  %3380 = vmatpush2.bf16.msra.mxu0 0
  %3381 = vmatprep.subr.bf16.mxu0 0
  %3382 = vmatpush2.bf16.msra.mxu0 0
  %3383 = vmatprep.subr.bf16.mxu0 0
  %3384 = vmatpush2.bf16.msra.mxu0 0
  %3385 = vmatprep.subr.bf16.mxu0 0
  %3386 = vmatpush2.bf16.msra.mxu0 0
  %3387 = vmatprep.subr.bf16.mxu0 0
  %3388 = vmatpush2.bf16.msra.mxu0 0
  %3389 = vmatprep.subr.bf16.mxu0 0
  %3390 = vmatpush2.bf16.msra.mxu0 0
  %3391 = vmatprep.mubr.bf16.mxu0 0
  %3392 = vmatmul.mubr.bf16.gmra.mxu0 %v3345
  %v3393 = vpop.f32.mrf.mxu0
  %v3394 = vadd.f32 0.0, %v3393
  %v3395 = vpop.f32.mrf.mxu0
  %v3396 = vpop.f32.mrf.mxu0
  %v3397 = vadd.f32 0.0, %v3396
  %v3398 = vpop.f32.mrf.mxu0
  %3399 = vmatprep.mubr.bf16.mxu0 0
  %3400 = vmatmul.mubr.bf16.gmra.mxu0 %v3348
  %v3401 = vpop.f32.mrf.mxu0
  %v3402 = vadd.f32 0.0, %v3401
  %v3403 = vpop.f32.mrf.mxu0
  %v3404 = vpop.f32.mrf.mxu0
  %v3405 = vadd.f32 0.0, %v3404
  %v3406 = vpop.f32.mrf.mxu0
  %3407 = vmatprep.mubr.bf16.mxu0 0
  %3408 = vmatmul.mubr.bf16.gmra.mxu0 %v3351
  %v3409 = vpop.f32.mrf.mxu0
  %v3410 = vpop.f32.mrf.mxu0
  %v3411 = vpop.f32.mrf.mxu0
  %v3412 = vpop.f32.mrf.mxu0
  %3413 = vmatprep.mubr.bf16.mxu0 0
  %3414 = vmatmul.mubr.bf16.gmra.mxu0 %v3354
  %v3415 = vpop.f32.mrf.mxu0
  %v3416 = vadd.f32 0.0, %v3415
  %v3417 = vpop.f32.mrf.mxu0
  %v3418 = vpop.f32.mrf.mxu0
  %v3419 = vadd.f32 0.0, %v3418
  %v3420 = vpop.f32.mrf.mxu0
  %3421 = vmatprep.mubr.bf16.mxu0 0
  %3422 = vmatmul.mubr.bf16.gmra.mxu0 %v3357
  %v3423 = vpop.f32.mrf.mxu0
  %v3424 = vadd.f32 0.0, %v3423
  %v3425 = vpop.f32.mrf.mxu0
  %v3426 = vpop.f32.mrf.mxu0
  %v3427 = vadd.f32 0.0, %v3426
  %v3428 = vpop.f32.mrf.mxu0
  %3429 = vdwg.mxu0
  %v3430 = vld [vmem:[#allocation5 + $0x4] sm:$0xc]
  %s3431 = scalar_lea.vmem %s2, 256
  %v3432 = vld [vmem:[%s3431] sm:$0xf]
  %v3433 = vld [vmem:[%s3431 + $0x4] sm:$0xf]
  %v3434 = vld [vmem:[%s3431 + $0x8] sm:$0xf]
  %v3435 = vld [vmem:[%s3431 + $0xc] sm:$0xf]
  %v3436 = vld [vmem:[%s3431 + $0x10] sm:$0xf]
  %v3437 = vld [vmem:[%s3431 + $0x14] sm:$0xf]
  %v3438 = vld [vmem:[%s3431 + $0x18] sm:$0xf]
  %v3439 = vld [vmem:[%s3431 + $0x1c] sm:$0xf]
  %v3441 = vunpack.c.l.b16 %v3430
  %v3442 = vpack.c.b16 %v3091, %v3441
  %v3443 = vrot.slane %v3442, 2
  %v3444 = vrot.slane %v3102, 2
  %v3445 = vsel %vm1171, %v3443, %v3444
  %v3446 = vrot.slane %v3103, 2
  %v3447 = vsel %vm1171, %v3444, %v3446
  %v3448 = vrot.slane %v3104, 2
  %v3449 = vsel %vm1171, %v3446, %v3448
  %v3450 = vrot.slane %v3105, 2
  %v3451 = vsel %vm1171, %v3448, %v3450
  %v3452 = vrot.slane %v3286, 2
  %v3453 = vsel %vm1171, %v3450, %v3452
  %v3462 = vunpack.c.l.b16 %v3432
  %v3463 = vunpack.c.l.b16 %v3433
  %v3464 = vunpack.c.l.b16 %v3434
  %v3465 = vunpack.c.l.b16 %v3435
  %v3466 = vunpack.c.l.b16 %v3436
  %v3467 = vunpack.c.l.b16 %v3437
  %v3468 = vunpack.c.l.b16 %v3438
  %v3469 = vunpack.c.l.b16 %v3439
  %v3470 = vpack.c.b16 %v3463, %v3462
  %v3471 = vpack.c.b16 %v3465, %v3464
  %v3472 = vpack.c.b16 %v3467, %v3466
  %v3473 = vpack.c.b16 %v3469, %v3468
  %v3479 = vsel %vm64, %v3445, 0
  %v3482 = vsel %vm64, %v3447, 0
  %v3485 = vsel %vm64, %v3449, 0
  %v3488 = vsel %vm64, %v3451, 0
  %v3491 = vsel %vm64, %v3453, 0
  %3493 = vmatprep.subr.bf16.mxu0 0
  %3494 = vmatpush1.bf16.msra.mxu0 0
  %3495 = vmatprep.subr.bf16.mxu0 0
  %3496 = vmatpush1.bf16.msra.mxu0 0
  %3497 = vmatprep.subr.bf16.mxu0 0
  %3498 = vmatpush1.bf16.msra.mxu0 0
  %3499 = vmatprep.subr.bf16.mxu0 0
  %3500 = vmatpush1.bf16.msra.mxu0 0
  %3501 = vmatprep.subr.bf16.mxu0 0
  %3502 = vmatpush1.bf16.msra.mxu0 %v3473
  %3503 = vmatprep.subr.bf16.mxu0 0
  %3504 = vmatpush1.bf16.msra.mxu0 %v3472
  %3505 = vmatprep.subr.bf16.mxu0 0
  %3506 = vmatpush1.bf16.msra.mxu0 %v3471
  %3507 = vmatprep.subr.bf16.mxu0 0
  %3508 = vmatpush1.bf16.msra.mxu0 %v3470
  %3509 = vmatprep.subr.bf16.mxu0 0
  %3510 = vmatpush2.bf16.msra.mxu0 0
  %3511 = vmatprep.subr.bf16.mxu0 0
  %3512 = vmatpush2.bf16.msra.mxu0 0
  %3513 = vmatprep.subr.bf16.mxu0 0
  %3514 = vmatpush2.bf16.msra.mxu0 0
  %3515 = vmatprep.subr.bf16.mxu0 0
  %3516 = vmatpush2.bf16.msra.mxu0 0
  %3517 = vmatprep.subr.bf16.mxu0 0
  %3518 = vmatpush2.bf16.msra.mxu0 0
  %3519 = vmatprep.subr.bf16.mxu0 0
  %3520 = vmatpush2.bf16.msra.mxu0 0
  %3521 = vmatprep.subr.bf16.mxu0 0
  %3522 = vmatpush2.bf16.msra.mxu0 0
  %3523 = vmatprep.subr.bf16.mxu0 0
  %3524 = vmatpush2.bf16.msra.mxu0 0
  %3525 = vmatprep.mubr.bf16.mxu0 0
  %3526 = vmatmul.mubr.bf16.gmra.mxu0 %v3479
  %v3527 = vpop.f32.mrf.mxu0
  %v3528 = vadd.f32 0.0, %v3527
  %v3529 = vpop.f32.mrf.mxu0
  %v3530 = vpop.f32.mrf.mxu0
  %v3531 = vadd.f32 0.0, %v3530
  %v3532 = vpop.f32.mrf.mxu0
  %3533 = vmatprep.mubr.bf16.mxu0 0
  %3534 = vmatmul.mubr.bf16.gmra.mxu0 %v3482
  %v3535 = vpop.f32.mrf.mxu0
  %v3536 = vadd.f32 0.0, %v3535
  %v3537 = vpop.f32.mrf.mxu0
  %v3538 = vpop.f32.mrf.mxu0
  %v3539 = vadd.f32 0.0, %v3538
  %v3540 = vpop.f32.mrf.mxu0
  %3541 = vmatprep.mubr.bf16.mxu0 0
  %3542 = vmatmul.mubr.bf16.gmra.mxu0 %v3485
  %v3543 = vpop.f32.mrf.mxu0
  %v3544 = vpop.f32.mrf.mxu0
  %v3545 = vpop.f32.mrf.mxu0
  %v3546 = vpop.f32.mrf.mxu0
  %3547 = vmatprep.mubr.bf16.mxu0 0
  %3548 = vmatmul.mubr.bf16.gmra.mxu0 %v3488
  %v3549 = vpop.f32.mrf.mxu0
  %v3550 = vadd.f32 0.0, %v3549
  %v3551 = vpop.f32.mrf.mxu0
  %v3552 = vpop.f32.mrf.mxu0
  %v3553 = vadd.f32 0.0, %v3552
  %v3554 = vpop.f32.mrf.mxu0
  %3555 = vmatprep.mubr.bf16.mxu0 0
  %3556 = vmatmul.mubr.bf16.gmra.mxu0 %v3491
  %v3557 = vpop.f32.mrf.mxu0
  %v3558 = vadd.f32 0.0, %v3557
  %v3559 = vpop.f32.mrf.mxu0
  %v3560 = vpop.f32.mrf.mxu0
  %v3561 = vadd.f32 0.0, %v3560
  %v3562 = vpop.f32.mrf.mxu0
  %3563 = vdwg.mxu0
  %v3565 = vunpack.c.l.b16 %v2671
  %v3566 = vpack.c.b16 %v3565, %v3565
  %v3567 = vrot.slane %v2712, 2
  %v3568 = vrot.slane %v2713, 2
  %v3569 = vsel %vm1171, %v3567, %v3568
  %v3570 = vrot.slane %v2714, 2
  %v3571 = vsel %vm1171, %v3568, %v3570
  %v3572 = vrot.slane %v2715, 2
  %v3573 = vsel %vm1171, %v3570, %v3572
  %v3574 = vrot.slane %v2716, 2
  %v3575 = vsel %vm1171, %v3572, %v3574
  %v3576 = vrot.slane %v3566, 2
  %v3577 = vsel %vm1171, %v3574, %v3576
  %v3586 = vunpack.c.l.b16 %v2672
  %v3587 = vunpack.c.l.b16 %v2673
  %v3588 = vunpack.c.l.b16 %v2674
  %v3589 = vunpack.c.l.b16 %v2675
  %v3590 = vunpack.c.l.b16 %v2676
  %v3591 = vunpack.c.l.b16 %v2677
  %v3592 = vunpack.c.l.b16 %v2678
  %v3593 = vunpack.c.l.b16 %v2679
  %v3594 = vpack.c.b16 %v3587, %v3586
  %v3595 = vpack.c.b16 %v3589, %v3588
  %v3596 = vpack.c.b16 %v3591, %v3590
  %v3597 = vpack.c.b16 %v3593, %v3592
  %v3603 = vsel %vm64, %v3569, 0
  %v3606 = vsel %vm64, %v3571, 0
  %v3609 = vsel %vm64, %v3573, 0
  %v3612 = vsel %vm64, %v3575, 0
  %v3615 = vsel %vm64, %v3577, 0
  %3617 = vmatprep.subr.bf16.mxu0 0
  %3618 = vmatpush1.bf16.msra.mxu0 0
  %3619 = vmatprep.subr.bf16.mxu0 0
  %3620 = vmatpush1.bf16.msra.mxu0 0
  %3621 = vmatprep.subr.bf16.mxu0 0
  %3622 = vmatpush1.bf16.msra.mxu0 0
  %3623 = vmatprep.subr.bf16.mxu0 0
  %3624 = vmatpush1.bf16.msra.mxu0 0
  %3625 = vmatprep.subr.bf16.mxu0 0
  %3626 = vmatpush1.bf16.msra.mxu0 %v3597
  %3627 = vmatprep.subr.bf16.mxu0 0
  %3628 = vmatpush1.bf16.msra.mxu0 %v3596
  %3629 = vmatprep.subr.bf16.mxu0 0
  %3630 = vmatpush1.bf16.msra.mxu0 %v3595
  %3631 = vmatprep.subr.bf16.mxu0 0
  %3632 = vmatpush1.bf16.msra.mxu0 %v3594
  %3633 = vmatprep.subr.bf16.mxu0 0
  %3634 = vmatpush2.bf16.msra.mxu0 0
  %3635 = vmatprep.subr.bf16.mxu0 0
  %3636 = vmatpush2.bf16.msra.mxu0 0
  %3637 = vmatprep.subr.bf16.mxu0 0
  %3638 = vmatpush2.bf16.msra.mxu0 0
  %3639 = vmatprep.subr.bf16.mxu0 0
  %3640 = vmatpush2.bf16.msra.mxu0 0
  %3641 = vmatprep.subr.bf16.mxu0 0
  %3642 = vmatpush2.bf16.msra.mxu0 0
  %3643 = vmatprep.subr.bf16.mxu0 0
  %3644 = vmatpush2.bf16.msra.mxu0 0
  %3645 = vmatprep.subr.bf16.mxu0 0
  %3646 = vmatpush2.bf16.msra.mxu0 0
  %3647 = vmatprep.subr.bf16.mxu0 0
  %3648 = vmatpush2.bf16.msra.mxu0 0
  %3649 = vmatprep.mubr.bf16.mxu0 0
  %3650 = vmatmul.mubr.bf16.gmra.mxu0 %v3603
  %v3651 = vpop.f32.mrf.mxu0
  %v3652 = vadd.f32 %v2845, %v3651
  %v3653 = vpop.f32.mrf.mxu0
  %v3654 = vpop.f32.mrf.mxu0
  %v3655 = vadd.f32 %v2848, %v3654
  %v3656 = vpop.f32.mrf.mxu0
  %3657 = vmatprep.mubr.bf16.mxu0 0
  %3658 = vmatmul.mubr.bf16.gmra.mxu0 %v3606
  %v3659 = vpop.f32.mrf.mxu0
  %v3660 = vadd.f32 %v2853, %v3659
  %v3661 = vpop.f32.mrf.mxu0
  %v3662 = vpop.f32.mrf.mxu0
  %v3663 = vadd.f32 %v2856, %v3662
  %v3664 = vpop.f32.mrf.mxu0
  %3665 = vmatprep.mubr.bf16.mxu0 0
  %3666 = vmatmul.mubr.bf16.gmra.mxu0 %v3609
  %v3667 = vpop.f32.mrf.mxu0
  %v3668 = vpop.f32.mrf.mxu0
  %v3669 = vpop.f32.mrf.mxu0
  %v3670 = vpop.f32.mrf.mxu0
  %3671 = vmatprep.mubr.bf16.mxu0 0
  %3672 = vmatmul.mubr.bf16.gmra.mxu0 %v3612
  %v3673 = vpop.f32.mrf.mxu0
  %v3674 = vadd.f32 %v2867, %v3673
  %v3675 = vpop.f32.mrf.mxu0
  %v3676 = vpop.f32.mrf.mxu0
  %v3677 = vadd.f32 %v2870, %v3676
  %v3678 = vpop.f32.mrf.mxu0
  %3679 = vmatprep.mubr.bf16.mxu0 0
  %3680 = vmatmul.mubr.bf16.gmra.mxu0 %v3615
  %v3681 = vpop.f32.mrf.mxu0
  %v3682 = vadd.f32 %v2875, %v3681
  %v3683 = vpop.f32.mrf.mxu0
  %v3684 = vpop.f32.mrf.mxu0
  %v3685 = vadd.f32 %v2878, %v3684
  %v3686 = vpop.f32.mrf.mxu0
  %3687 = vdwg.mxu0
  %v3688 = vrot.slane %v2905, 3
  %v3689 = vrot.slane %v2713, 3
  %v3690 = vsel %vm1509, %v3688, %v3689
  %v3691 = vrot.slane %v2714, 3
  %v3692 = vsel %vm1509, %v3689, %v3691
  %v3693 = vrot.slane %v2715, 3
  %v3694 = vsel %vm1509, %v3691, %v3693
  %v3695 = vrot.slane %v2716, 3
  %v3696 = vsel %vm1509, %v3693, %v3695
  %v3697 = vrot.slane %v2717, 3
  %v3698 = vsel %vm1509, %v3695, %v3697
  %v3707 = vunpack.c.l.b16 %v2883
  %v3708 = vunpack.c.l.b16 %v2884
  %v3709 = vunpack.c.l.b16 %v2885
  %v3710 = vunpack.c.l.b16 %v2886
  %v3711 = vunpack.c.l.b16 %v2887
  %v3712 = vunpack.c.l.b16 %v2888
  %v3713 = vunpack.c.l.b16 %v2889
  %v3714 = vunpack.c.l.b16 %v2890
  %v3715 = vpack.c.b16 %v3708, %v3707
  %v3716 = vpack.c.b16 %v3710, %v3709
  %v3717 = vpack.c.b16 %v3712, %v3711
  %v3718 = vpack.c.b16 %v3714, %v3713
  %v3724 = vsel %vm64, %v3690, 0
  %v3727 = vsel %vm64, %v3692, 0
  %v3730 = vsel %vm64, %v3694, 0
  %v3733 = vsel %vm64, %v3696, 0
  %v3736 = vsel %vm64, %v3698, 0
  %3738 = vmatprep.subr.bf16.mxu0 0
  %3739 = vmatpush1.bf16.msra.mxu0 0
  %3740 = vmatprep.subr.bf16.mxu0 0
  %3741 = vmatpush1.bf16.msra.mxu0 0
  %3742 = vmatprep.subr.bf16.mxu0 0
  %3743 = vmatpush1.bf16.msra.mxu0 0
  %3744 = vmatprep.subr.bf16.mxu0 0
  %3745 = vmatpush1.bf16.msra.mxu0 0
  %3746 = vmatprep.subr.bf16.mxu0 0
  %3747 = vmatpush1.bf16.msra.mxu0 %v3718
  %3748 = vmatprep.subr.bf16.mxu0 0
  %3749 = vmatpush1.bf16.msra.mxu0 %v3717
  %3750 = vmatprep.subr.bf16.mxu0 0
  %3751 = vmatpush1.bf16.msra.mxu0 %v3716
  %3752 = vmatprep.subr.bf16.mxu0 0
  %3753 = vmatpush1.bf16.msra.mxu0 %v3715
  %3754 = vmatprep.subr.bf16.mxu0 0
  %3755 = vmatpush2.bf16.msra.mxu0 0
  %3756 = vmatprep.subr.bf16.mxu0 0
  %3757 = vmatpush2.bf16.msra.mxu0 0
  %3758 = vmatprep.subr.bf16.mxu0 0
  %3759 = vmatpush2.bf16.msra.mxu0 0
  %3760 = vmatprep.subr.bf16.mxu0 0
  %3761 = vmatpush2.bf16.msra.mxu0 0
  %3762 = vmatprep.subr.bf16.mxu0 0
  %3763 = vmatpush2.bf16.msra.mxu0 0
  %3764 = vmatprep.subr.bf16.mxu0 0
  %3765 = vmatpush2.bf16.msra.mxu0 0
  %3766 = vmatprep.subr.bf16.mxu0 0
  %3767 = vmatpush2.bf16.msra.mxu0 0
  %3768 = vmatprep.subr.bf16.mxu0 0
  %3769 = vmatpush2.bf16.msra.mxu0 0
  %3770 = vmatprep.mubr.bf16.mxu0 0
  %3771 = vmatmul.mubr.bf16.gmra.mxu0 %v3724
  %v3772 = vpop.f32.mrf.mxu0
  %v3773 = vadd.f32 %v3014, %v3772
  %v3774 = vpop.f32.mrf.mxu0
  %v3775 = vpop.f32.mrf.mxu0
  %v3776 = vadd.f32 %v3017, %v3775
  %v3777 = vpop.f32.mrf.mxu0
  %3778 = vmatprep.mubr.bf16.mxu0 0
  %3779 = vmatmul.mubr.bf16.gmra.mxu0 %v3727
  %v3780 = vpop.f32.mrf.mxu0
  %v3781 = vadd.f32 %v3022, %v3780
  %v3782 = vpop.f32.mrf.mxu0
  %v3783 = vpop.f32.mrf.mxu0
  %v3784 = vadd.f32 %v3025, %v3783
  %v3785 = vpop.f32.mrf.mxu0
  %3786 = vmatprep.mubr.bf16.mxu0 0
  %3787 = vmatmul.mubr.bf16.gmra.mxu0 %v3730
  %v3788 = vpop.f32.mrf.mxu0
  %v3789 = vpop.f32.mrf.mxu0
  %v3790 = vpop.f32.mrf.mxu0
  %v3791 = vpop.f32.mrf.mxu0
  %3792 = vmatprep.mubr.bf16.mxu0 0
  %3793 = vmatmul.mubr.bf16.gmra.mxu0 %v3733
  %v3794 = vpop.f32.mrf.mxu0
  %v3795 = vadd.f32 %v3036, %v3794
  %v3796 = vpop.f32.mrf.mxu0
  %v3797 = vpop.f32.mrf.mxu0
  %v3798 = vadd.f32 %v3039, %v3797
  %v3799 = vpop.f32.mrf.mxu0
  %3800 = vmatprep.mubr.bf16.mxu0 0
  %3801 = vmatmul.mubr.bf16.gmra.mxu0 %v3736
  %v3802 = vpop.f32.mrf.mxu0
  %v3803 = vadd.f32 %v3044, %v3802
  %v3804 = vpop.f32.mrf.mxu0
  %v3805 = vpop.f32.mrf.mxu0
  %v3806 = vadd.f32 %v3047, %v3805
  %v3807 = vpop.f32.mrf.mxu0
  %3808 = vdwg.mxu0
  %v3809 = vpack.c.b16 %v2703, %v2702
  %v3810 = vpack.c.b16 %v2705, %v2704
  %v3811 = vpack.c.b16 %v2707, %v2706
  %v3812 = vpack.c.b16 %v2709, %v2708
  %v3813 = vpack.c.b16 %v2904, %v2710
  %v3822 = vunpack.c.l.b16 %v3051
  %v3823 = vunpack.c.l.b16 %v3052
  %v3824 = vunpack.c.l.b16 %v3053
  %v3825 = vunpack.c.l.b16 %v3054
  %v3826 = vunpack.c.l.b16 %v3055
  %v3827 = vunpack.c.l.b16 %v3056
  %v3828 = vunpack.c.l.b16 %v3057
  %v3829 = vunpack.c.l.b16 %v3058
  %v3830 = vpack.c.b16 %v3823, %v3822
  %v3831 = vpack.c.b16 %v3825, %v3824
  %v3832 = vpack.c.b16 %v3827, %v3826
  %v3833 = vpack.c.b16 %v3829, %v3828
  %v3839 = vsel %vm64, %v3809, 0
  %v3842 = vsel %vm64, %v3810, 0
  %v3845 = vsel %vm64, %v3811, 0
  %v3848 = vsel %vm64, %v3812, 0
  %v3851 = vsel %vm64, %v3813, 0
  %3853 = vmatprep.subr.bf16.mxu0 0
  %3854 = vmatpush1.bf16.msra.mxu0 0
  %3855 = vmatprep.subr.bf16.mxu0 0
  %3856 = vmatpush1.bf16.msra.mxu0 0
  %3857 = vmatprep.subr.bf16.mxu0 0
  %3858 = vmatpush1.bf16.msra.mxu0 0
  %3859 = vmatprep.subr.bf16.mxu0 0
  %3860 = vmatpush1.bf16.msra.mxu0 0
  %3861 = vmatprep.subr.bf16.mxu0 0
  %3862 = vmatpush1.bf16.msra.mxu0 %v3833
  %3863 = vmatprep.subr.bf16.mxu0 0
  %3864 = vmatpush1.bf16.msra.mxu0 %v3832
  %3865 = vmatprep.subr.bf16.mxu0 0
  %3866 = vmatpush1.bf16.msra.mxu0 %v3831
  %3867 = vmatprep.subr.bf16.mxu0 0
  %3868 = vmatpush1.bf16.msra.mxu0 %v3830
  %3869 = vmatprep.subr.bf16.mxu0 0
  %3870 = vmatpush2.bf16.msra.mxu0 0
  %3871 = vmatprep.subr.bf16.mxu0 0
  %3872 = vmatpush2.bf16.msra.mxu0 0
  %3873 = vmatprep.subr.bf16.mxu0 0
  %3874 = vmatpush2.bf16.msra.mxu0 0
  %3875 = vmatprep.subr.bf16.mxu0 0
  %3876 = vmatpush2.bf16.msra.mxu0 0
  %3877 = vmatprep.subr.bf16.mxu0 0
  %3878 = vmatpush2.bf16.msra.mxu0 0
  %3879 = vmatprep.subr.bf16.mxu0 0
  %3880 = vmatpush2.bf16.msra.mxu0 0
  %3881 = vmatprep.subr.bf16.mxu0 0
  %3882 = vmatpush2.bf16.msra.mxu0 0
  %3883 = vmatprep.subr.bf16.mxu0 0
  %3884 = vmatpush2.bf16.msra.mxu0 0
  %3885 = vmatprep.mubr.bf16.mxu0 0
  %3886 = vmatmul.mubr.bf16.gmra.mxu0 %v3839
  %v3887 = vpop.f32.mrf.mxu0
  %v3888 = vadd.f32 %v3225, %v3887
  %v3889 = vpop.f32.mrf.mxu0
  %v3890 = vpop.f32.mrf.mxu0
  %v3891 = vadd.f32 %v3228, %v3890
  %v3892 = vpop.f32.mrf.mxu0
  %3893 = vmatprep.mubr.bf16.mxu0 0
  %3894 = vmatmul.mubr.bf16.gmra.mxu0 %v3842
  %v3895 = vpop.f32.mrf.mxu0
  %v3896 = vadd.f32 %v3233, %v3895
  %v3897 = vpop.f32.mrf.mxu0
  %v3898 = vpop.f32.mrf.mxu0
  %v3899 = vadd.f32 %v3236, %v3898
  %v3900 = vpop.f32.mrf.mxu0
  %3901 = vmatprep.mubr.bf16.mxu0 0
  %3902 = vmatmul.mubr.bf16.gmra.mxu0 %v3845
  %v3903 = vpop.f32.mrf.mxu0
  %v3904 = vpop.f32.mrf.mxu0
  %v3905 = vpop.f32.mrf.mxu0
  %v3906 = vpop.f32.mrf.mxu0
  %3907 = vmatprep.mubr.bf16.mxu0 0
  %3908 = vmatmul.mubr.bf16.gmra.mxu0 %v3848
  %v3909 = vpop.f32.mrf.mxu0
  %v3910 = vadd.f32 %v3247, %v3909
  %v3911 = vpop.f32.mrf.mxu0
  %v3912 = vpop.f32.mrf.mxu0
  %v3913 = vadd.f32 %v3250, %v3912
  %v3914 = vpop.f32.mrf.mxu0
  %3915 = vmatprep.mubr.bf16.mxu0 0
  %3916 = vmatmul.mubr.bf16.gmra.mxu0 %v3851
  %v3917 = vpop.f32.mrf.mxu0
  %v3918 = vadd.f32 %v3255, %v3917
  %v3919 = vpop.f32.mrf.mxu0
  %v3920 = vpop.f32.mrf.mxu0
  %v3921 = vadd.f32 %v3258, %v3920
  %v3922 = vpop.f32.mrf.mxu0
  %3923 = vdwg.mxu0
  %v3924 = vrot.slane %v3285, 1
  %v3925 = vrot.slane %v3102, 1
  %v3926 = vsel %vm1834, %v3924, %v3925
  %v3927 = vrot.slane %v3103, 1
  %v3928 = vsel %vm1834, %v3925, %v3927
  %v3929 = vrot.slane %v3104, 1
  %v3930 = vsel %vm1834, %v3927, %v3929
  %v3931 = vrot.slane %v3105, 1
  %v3932 = vsel %vm1834, %v3929, %v3931
  %v3933 = vrot.slane %v3106, 1
  %v3934 = vsel %vm1834, %v3931, %v3933
  %v3943 = vunpack.c.l.b16 %v3263
  %v3944 = vunpack.c.l.b16 %v3264
  %v3945 = vunpack.c.l.b16 %v3265
  %v3946 = vunpack.c.l.b16 %v3266
  %v3947 = vunpack.c.l.b16 %v3267
  %v3948 = vunpack.c.l.b16 %v3268
  %v3949 = vunpack.c.l.b16 %v3269
  %v3950 = vunpack.c.l.b16 %v3270
  %v3951 = vpack.c.b16 %v3944, %v3943
  %v3952 = vpack.c.b16 %v3946, %v3945
  %v3953 = vpack.c.b16 %v3948, %v3947
  %v3954 = vpack.c.b16 %v3950, %v3949
  %v3960 = vsel %vm64, %v3926, 0
  %v3963 = vsel %vm64, %v3928, 0
  %v3966 = vsel %vm64, %v3930, 0
  %v3969 = vsel %vm64, %v3932, 0
  %v3972 = vsel %vm64, %v3934, 0
  %3974 = vmatprep.subr.bf16.mxu0 0
  %3975 = vmatpush1.bf16.msra.mxu0 0
  %3976 = vmatprep.subr.bf16.mxu0 0
  %3977 = vmatpush1.bf16.msra.mxu0 0
  %3978 = vmatprep.subr.bf16.mxu0 0
  %3979 = vmatpush1.bf16.msra.mxu0 0
  %3980 = vmatprep.subr.bf16.mxu0 0
  %3981 = vmatpush1.bf16.msra.mxu0 0
  %3982 = vmatprep.subr.bf16.mxu0 0
  %3983 = vmatpush1.bf16.msra.mxu0 %v3954
  %3984 = vmatprep.subr.bf16.mxu0 0
  %3985 = vmatpush1.bf16.msra.mxu0 %v3953
  %3986 = vmatprep.subr.bf16.mxu0 0
  %3987 = vmatpush1.bf16.msra.mxu0 %v3952
  %3988 = vmatprep.subr.bf16.mxu0 0
  %3989 = vmatpush1.bf16.msra.mxu0 %v3951
  %3990 = vmatprep.subr.bf16.mxu0 0
  %3991 = vmatpush2.bf16.msra.mxu0 0
  %3992 = vmatprep.subr.bf16.mxu0 0
  %3993 = vmatpush2.bf16.msra.mxu0 0
  %3994 = vmatprep.subr.bf16.mxu0 0
  %3995 = vmatpush2.bf16.msra.mxu0 0
  %3996 = vmatprep.subr.bf16.mxu0 0
  %3997 = vmatpush2.bf16.msra.mxu0 0
  %3998 = vmatprep.subr.bf16.mxu0 0
  %3999 = vmatpush2.bf16.msra.mxu0 0
  %4000 = vmatprep.subr.bf16.mxu0 0
  %4001 = vmatpush2.bf16.msra.mxu0 0
  %4002 = vmatprep.subr.bf16.mxu0 0
  %4003 = vmatpush2.bf16.msra.mxu0 0
  %4004 = vmatprep.subr.bf16.mxu0 0
  %4005 = vmatpush2.bf16.msra.mxu0 0
  %4006 = vmatprep.mubr.bf16.mxu0 0
  %4007 = vmatmul.mubr.bf16.gmra.mxu0 %v3960
  %v4008 = vpop.f32.mrf.mxu0
  %v4009 = vadd.f32 %v3394, %v4008
  %v4010 = vpop.f32.mrf.mxu0
  %v4011 = vpop.f32.mrf.mxu0
  %v4012 = vadd.f32 %v3397, %v4011
  %v4013 = vpop.f32.mrf.mxu0
  %4014 = vmatprep.mubr.bf16.mxu0 0
  %4015 = vmatmul.mubr.bf16.gmra.mxu0 %v3963
  %v4016 = vpop.f32.mrf.mxu0
  %v4017 = vadd.f32 %v3402, %v4016
  %v4018 = vpop.f32.mrf.mxu0
  %v4019 = vpop.f32.mrf.mxu0
  %v4020 = vadd.f32 %v3405, %v4019
  %v4021 = vpop.f32.mrf.mxu0
  %4022 = vmatprep.mubr.bf16.mxu0 0
  %4023 = vmatmul.mubr.bf16.gmra.mxu0 %v3966
  %v4024 = vpop.f32.mrf.mxu0
  %v4025 = vpop.f32.mrf.mxu0
  %v4026 = vpop.f32.mrf.mxu0
  %v4027 = vpop.f32.mrf.mxu0
  %4028 = vmatprep.mubr.bf16.mxu0 0
  %4029 = vmatmul.mubr.bf16.gmra.mxu0 %v3969
  %v4030 = vpop.f32.mrf.mxu0
  %v4031 = vadd.f32 %v3416, %v4030
  %v4032 = vpop.f32.mrf.mxu0
  %v4033 = vpop.f32.mrf.mxu0
  %v4034 = vadd.f32 %v3419, %v4033
  %v4035 = vpop.f32.mrf.mxu0
  %4036 = vmatprep.mubr.bf16.mxu0 0
  %4037 = vmatmul.mubr.bf16.gmra.mxu0 %v3972
  %v4038 = vpop.f32.mrf.mxu0
  %v4039 = vadd.f32 %v3424, %v4038
  %v4040 = vpop.f32.mrf.mxu0
  %v4041 = vpop.f32.mrf.mxu0
  %v4042 = vadd.f32 %v3427, %v4041
  %v4043 = vpop.f32.mrf.mxu0
  %4044 = vdwg.mxu0
  %v4045 = vadd.f32 %v3652, %v3773
  %v4046 = vadd.f32 %v3655, %v3776
  %v4047 = vadd.f32 %v3660, %v3781
  %v4048 = vadd.f32 %v3663, %v3784
  %v4049 = vadd.f32 %v3674, %v3795
  %v4050 = vadd.f32 %v3677, %v3798
  %v4051 = vadd.f32 %v3682, %v3803
  %v4052 = vadd.f32 %v3685, %v3806
  %v4053 = vadd.f32 %v3888, %v4009
  %v4054 = vadd.f32 %v3891, %v4012
  %v4055 = vadd.f32 %v3896, %v4017
  %v4056 = vadd.f32 %v3899, %v4020
  %v4057 = vadd.f32 %v3910, %v4031
  %v4058 = vadd.f32 %v3913, %v4034
  %v4059 = vadd.f32 %v3918, %v4039
  %v4060 = vadd.f32 %v3921, %v4042
  %v4061 = vadd.f32 %v4045, %v4053
  %v4062 = vadd.f32 %v4046, %v4054
  %v4063 = vadd.f32 %v4047, %v4055
  %v4064 = vadd.f32 %v4048, %v4056
  %v4065 = vadd.f32 %v4049, %v4057
  %v4066 = vadd.f32 %v4050, %v4058
  %v4067 = vadd.f32 %v4051, %v4059
  %v4068 = vadd.f32 %v4052, %v4060
  %v4069 = vadd.f32 %v4061, %v3528
  %v4070 = vadd.f32 %v4062, %v3531
  %v4071 = vadd.f32 %v4063, %v3536
  %v4072 = vadd.f32 %v4064, %v3539
  %v4073 = vadd.f32 %v4065, %v3550
  %v4074 = vadd.f32 %v4066, %v3553
  %v4075 = vadd.f32 %v4067, %v3558
  %v4076 = vadd.f32 %v4068, %v3561
  %v4077 = vld [vmem:[%s9] sm:$0x1]
  %v4079 = vlaneseq
  %v4080 = vshrl.u32 %v4079, 7
  %v4081 = vsub.s32 0, %v4080
  %v4082 = vrot.slane %v4077, %v4081
  %v4084 = vadd.f32 %v4069, %v4082
  %v4085 = vadd.f32 %v4070, %v4082
  %v4086 = vadd.f32 %v4071, %v4082
  %v4087 = vadd.f32 %v4072, %v4082
  %v4088 = vadd.f32 %v4073, %v4082
  %v4089 = vadd.f32 %v4074, %v4082
  %v4090 = vadd.f32 %v4075, %v4082
  %v4091 = vadd.f32 %v4076, %v4082
  %v4092 = vmax.f32 %v4084, 0.0
  %v4093 = vmax.f32 %v4085, 0.0
  %v4094 = vmax.f32 %v4086, 0.0
  %v4095 = vmax.f32 %v4087, 0.0
  %v4096 = vmax.f32 %v4088, 0.0
  %v4097 = vmax.f32 %v4089, 0.0
  %v4098 = vmax.f32 %v4090, 0.0
  %v4099 = vmax.f32 %v4091, 0.0
  %4100 = vst.msk [vmem:[#allocation3 + $0x8] sm:$0xff] %vm64, %v4092
  %4101 = vst.msk [vmem:[#allocation3 + $0x10] sm:$0xff] %vm64, %v4093
  %4102 = vst.msk [vmem:[#allocation3 + $0x18] sm:$0xff] %vm64, %v4094
  %4103 = vst.msk [vmem:[#allocation3 + $0x20] sm:$0xff] %vm64, %v4095
  %4104 = vst.msk [vmem:[#allocation3 + $0x38] sm:$0xff] %vm64, %v4096
  %4105 = vst.msk [vmem:[#allocation3 + $0x40] sm:$0xff] %vm64, %v4097
  %4106 = vst.msk [vmem:[#allocation3 + $0x48] sm:$0xff] %vm64, %v4098
  %4107 = vst.msk [vmem:[#allocation3 + $0x50] sm:$0xff] %vm64, %v4099
  %s4108 = scalar_lea.vmem [#allocation3], 7
  %v4109 = vld [vmem:[%s4108] ss:$2 sm:$0xff]
  %s4110 = scalar_lea.vmem [#allocation3], 23
  %v4111 = vld [vmem:[%s4110] ss:$2 sm:$0xff]
  %s4112 = scalar_lea.vmem [#allocation3], 39
  %v4113 = vld [vmem:[%s4112] ss:$2 sm:$0xff]
  %s4114 = scalar_lea.vmem [#allocation3], 55
  %v4115 = vld [vmem:[%s4114] ss:$2 sm:$0xff]
  %s4116 = scalar_lea.vmem [#allocation3], 71
  %v4117 = vld [vmem:[%s4116] ss:$2 sm:$0xff]
  %s4118 = scalar_lea.vmem [#allocation3], 8
  %v4119 = vld [vmem:[%s4118] ss:$2 sm:$0xff]
  %s4120 = scalar_lea.vmem [#allocation3], 24
  %v4121 = vld [vmem:[%s4120] ss:$2 sm:$0xff]
  %s4122 = scalar_lea.vmem [#allocation3], 40
  %v4123 = vld [vmem:[%s4122] ss:$2 sm:$0xff]
  %s4124 = scalar_lea.vmem [#allocation3], 56
  %v4125 = vld [vmem:[%s4124] ss:$2 sm:$0xff]
  %s4126 = scalar_lea.vmem [#allocation3], 72
  %v4127 = vld [vmem:[%s4126] ss:$2 sm:$0xff]
  %s4128 = scalar_lea.vmem [#allocation3], 9
  %v4129 = vld [vmem:[%s4128] ss:$2 sm:$0xff]
  %s4130 = scalar_lea.vmem [#allocation3], 25
  %v4131 = vld [vmem:[%s4130] ss:$2 sm:$0xff]
  %s4132 = scalar_lea.vmem [#allocation3], 41
  %v4133 = vld [vmem:[%s4132] ss:$2 sm:$0xff]
  %s4134 = scalar_lea.vmem [#allocation3], 57
  %v4135 = vld [vmem:[%s4134] ss:$2 sm:$0xff]
  %s4136 = scalar_lea.vmem [#allocation3], 73
  %v4137 = vld [vmem:[%s4136] ss:$2 sm:$0xff]
  %v4138 = vmax.f32 %v4109, %v4119
  %v4139 = vmax.f32 %v4111, %v4121
  %v4140 = vmax.f32 %v4113, %v4123
  %v4141 = vmax.f32 %v4115, %v4125
  %v4142 = vmax.f32 %v4117, %v4127
  %v4143 = vmax.f32 %v4138, %v4129
  %v4144 = vmax.f32 %v4139, %v4131
  %v4145 = vmax.f32 %v4140, %v4133
  %v4146 = vmax.f32 %v4141, %v4135
  %v4147 = vmax.f32 %v4142, %v4137
  %v4148 = vpack.c.bf16 %v4144, %v4143
  %v4149 = vpack.c.bf16 %v4146, %v4145
  %v4150 = vpack.c.bf16 %v4147, %v4147
  %v4151 = vld [vmem:[%s16] sm:$0xf]
  %v4152 = vld [vmem:[%s16 + $0x4] sm:$0xf]
  %v4153 = vld [vmem:[%s16 + $0x8] sm:$0xf]
  %v4154 = vld [vmem:[%s16 + $0xc] sm:$0xf]
  %v4155 = vld [vmem:[%s16 + $0x10] sm:$0xf]
  %v4156 = vld [vmem:[%s16 + $0x14] sm:$0xf]
  %v4157 = vld [vmem:[%s16 + $0x18] sm:$0xf]
  %v4158 = vld [vmem:[%s16 + $0x1c] sm:$0xf]
  %v4167 = vunpack.c.l.b16 %v4151
  %v4168 = vunpack.c.l.b16 %v4152
  %v4169 = vunpack.c.l.b16 %v4153
  %v4170 = vunpack.c.l.b16 %v4154
  %v4171 = vunpack.c.l.b16 %v4155
  %v4172 = vunpack.c.l.b16 %v4156
  %v4173 = vunpack.c.l.b16 %v4157
  %v4174 = vunpack.c.l.b16 %v4158
  %v4175 = vpack.c.b16 %v4168, %v4167
  %v4176 = vpack.c.b16 %v4170, %v4169
  %v4177 = vpack.c.b16 %v4172, %v4171
  %v4178 = vpack.c.b16 %v4174, %v4173
  %v4184 = vsel %vm64, %v4148, 0
  %v4187 = vsel %vm64, %v4149, 0
  %v4190 = vsel %vm64, %v4150, 0
  %4192 = vmatprep.subr.bf16.mxu0 0
  %4193 = vmatpush1.bf16.msra.mxu0 0
  %4194 = vmatprep.subr.bf16.mxu0 0
  %4195 = vmatpush1.bf16.msra.mxu0 0
  %4196 = vmatprep.subr.bf16.mxu0 0
  %4197 = vmatpush1.bf16.msra.mxu0 0
  %4198 = vmatprep.subr.bf16.mxu0 0
  %4199 = vmatpush1.bf16.msra.mxu0 0
  %4200 = vmatprep.subr.bf16.mxu0 0
  %4201 = vmatpush1.bf16.msra.mxu0 %v4178
  %4202 = vmatprep.subr.bf16.mxu0 0
  %4203 = vmatpush1.bf16.msra.mxu0 %v4177
  %4204 = vmatprep.subr.bf16.mxu0 0
  %4205 = vmatpush1.bf16.msra.mxu0 %v4176
  %4206 = vmatprep.subr.bf16.mxu0 0
  %4207 = vmatpush1.bf16.msra.mxu0 %v4175
  %4208 = vmatprep.subr.bf16.mxu0 0
  %4209 = vmatpush2.bf16.msra.mxu0 0
  %4210 = vmatprep.subr.bf16.mxu0 0
  %4211 = vmatpush2.bf16.msra.mxu0 0
  %4212 = vmatprep.subr.bf16.mxu0 0
  %4213 = vmatpush2.bf16.msra.mxu0 0
  %4214 = vmatprep.subr.bf16.mxu0 0
  %4215 = vmatpush2.bf16.msra.mxu0 0
  %4216 = vmatprep.subr.bf16.mxu0 0
  %4217 = vmatpush2.bf16.msra.mxu0 0
  %4218 = vmatprep.subr.bf16.mxu0 0
  %4219 = vmatpush2.bf16.msra.mxu0 0
  %4220 = vmatprep.subr.bf16.mxu0 0
  %4221 = vmatpush2.bf16.msra.mxu0 0
  %4222 = vmatprep.subr.bf16.mxu0 0
  %4223 = vmatpush2.bf16.msra.mxu0 0
  %4224 = vmatprep.mubr.bf16.mxu0 0
  %4225 = vmatmul.mubr.bf16.gmra.mxu0 %v4184
  %v4226 = vpop.f32.mrf.mxu0
  %v4227 = vadd.f32 0.0, %v4226
  %v4228 = vpop.f32.mrf.mxu0
  %v4229 = vpop.f32.mrf.mxu0
  %v4230 = vadd.f32 0.0, %v4229
  %v4231 = vpop.f32.mrf.mxu0
  %4232 = vmatprep.mubr.bf16.mxu0 0
  %4233 = vmatmul.mubr.bf16.gmra.mxu0 %v4187
  %v4234 = vpop.f32.mrf.mxu0
  %v4235 = vpop.f32.mrf.mxu0
  %v4236 = vpop.f32.mrf.mxu0
  %v4237 = vadd.f32 0.0, %v4236
  %v4238 = vpop.f32.mrf.mxu0
  %4239 = vmatprep.mubr.bf16.mxu0 0
  %4240 = vmatmul.mubr.bf16.gmra.mxu0 %v4190
  %v4241 = vpop.f32.mrf.mxu0
  %v4242 = vadd.f32 0.0, %v4241
  %v4243 = vpop.f32.mrf.mxu0
  %v4244 = vpop.f32.mrf.mxu0
  %v4245 = vpop.f32.mrf.mxu0
  %4246 = vdwg.mxu0
  %s4247 = scalar_lea.vmem %s16, 32
  %v4248 = vld [vmem:[%s4247] sm:$0xf]
  %v4249 = vld [vmem:[%s4247 + $0x4] sm:$0xf]
  %v4250 = vld [vmem:[%s4247 + $0x8] sm:$0xf]
  %v4251 = vld [vmem:[%s4247 + $0xc] sm:$0xf]
  %v4252 = vld [vmem:[%s4247 + $0x10] sm:$0xf]
  %v4253 = vld [vmem:[%s4247 + $0x14] sm:$0xf]
  %v4254 = vld [vmem:[%s4247 + $0x18] sm:$0xf]
  %v4255 = vld [vmem:[%s4247 + $0x1c] sm:$0xf]
  %v4264 = vunpack.c.l.b16 %v4248
  %v4265 = vunpack.c.l.b16 %v4249
  %v4266 = vunpack.c.l.b16 %v4250
  %v4267 = vunpack.c.l.b16 %v4251
  %v4268 = vunpack.c.l.b16 %v4252
  %v4269 = vunpack.c.l.b16 %v4253
  %v4270 = vunpack.c.l.b16 %v4254
  %v4271 = vunpack.c.l.b16 %v4255
  %v4272 = vpack.c.b16 %v4265, %v4264
  %v4273 = vpack.c.b16 %v4267, %v4266
  %v4274 = vpack.c.b16 %v4269, %v4268
  %v4275 = vpack.c.b16 %v4271, %v4270
  %4280 = vmatprep.subr.bf16.mxu0 0
  %4281 = vmatpush1.bf16.msra.mxu0 0
  %4282 = vmatprep.subr.bf16.mxu0 0
  %4283 = vmatpush1.bf16.msra.mxu0 0
  %4284 = vmatprep.subr.bf16.mxu0 0
  %4285 = vmatpush1.bf16.msra.mxu0 0
  %4286 = vmatprep.subr.bf16.mxu0 0
  %4287 = vmatpush1.bf16.msra.mxu0 0
  %4288 = vmatprep.subr.bf16.mxu0 0
  %4289 = vmatpush1.bf16.msra.mxu0 %v4275
  %4290 = vmatprep.subr.bf16.mxu0 0
  %4291 = vmatpush1.bf16.msra.mxu0 %v4274
  %4292 = vmatprep.subr.bf16.mxu0 0
  %4293 = vmatpush1.bf16.msra.mxu0 %v4273
  %4294 = vmatprep.subr.bf16.mxu0 0
  %4295 = vmatpush1.bf16.msra.mxu0 %v4272
  %4296 = vmatprep.subr.bf16.mxu0 0
  %4297 = vmatpush2.bf16.msra.mxu0 0
  %4298 = vmatprep.subr.bf16.mxu0 0
  %4299 = vmatpush2.bf16.msra.mxu0 0
  %4300 = vmatprep.subr.bf16.mxu0 0
  %4301 = vmatpush2.bf16.msra.mxu0 0
  %4302 = vmatprep.subr.bf16.mxu0 0
  %4303 = vmatpush2.bf16.msra.mxu0 0
  %4304 = vmatprep.subr.bf16.mxu0 0
  %4305 = vmatpush2.bf16.msra.mxu0 0
  %4306 = vmatprep.subr.bf16.mxu0 0
  %4307 = vmatpush2.bf16.msra.mxu0 0
  %4308 = vmatprep.subr.bf16.mxu0 0
  %4309 = vmatpush2.bf16.msra.mxu0 0
  %4310 = vmatprep.subr.bf16.mxu0 0
  %4311 = vmatpush2.bf16.msra.mxu0 0
  %4312 = vmatprep.mubr.bf16.mxu0 0
  %4313 = vmatmul.mubr.bf16.gmra.mxu0 %v4184
  %v4314 = vpop.f32.mrf.mxu0
  %v4315 = vadd.f32 0.0, %v4314
  %v4316 = vpop.f32.mrf.mxu0
  %v4317 = vpop.f32.mrf.mxu0
  %v4318 = vadd.f32 0.0, %v4317
  %v4319 = vpop.f32.mrf.mxu0
  %4320 = vmatprep.mubr.bf16.mxu0 0
  %4321 = vmatmul.mubr.bf16.gmra.mxu0 %v4187
  %v4322 = vpop.f32.mrf.mxu0
  %v4323 = vpop.f32.mrf.mxu0
  %v4324 = vpop.f32.mrf.mxu0
  %v4325 = vadd.f32 0.0, %v4324
  %v4326 = vpop.f32.mrf.mxu0
  %4327 = vmatprep.mubr.bf16.mxu0 0
  %4328 = vmatmul.mubr.bf16.gmra.mxu0 %v4190
  %v4329 = vpop.f32.mrf.mxu0
  %v4330 = vadd.f32 0.0, %v4329
  %v4331 = vpop.f32.mrf.mxu0
  %v4332 = vpop.f32.mrf.mxu0
  %v4333 = vpop.f32.mrf.mxu0
  %4334 = vdwg.mxu0
  %v4335 = vmax.f32 %v4227, %v4315
  %v4336 = vmax.f32 %v4230, %v4318
  %v4337 = vmax.f32 %v4237, %v4325
  %v4338 = vmax.f32 %v4242, %v4330
  %s4339 = scalar_lea.vmem %s16, 64
  %v4340 = vld [vmem:[%s4339] sm:$0xf]
  %v4341 = vld [vmem:[%s4339 + $0x4] sm:$0xf]
  %v4342 = vld [vmem:[%s4339 + $0x8] sm:$0xf]
  %v4343 = vld [vmem:[%s4339 + $0xc] sm:$0xf]
  %v4344 = vld [vmem:[%s4339 + $0x10] sm:$0xf]
  %v4345 = vld [vmem:[%s4339 + $0x14] sm:$0xf]
  %v4346 = vld [vmem:[%s4339 + $0x18] sm:$0xf]
  %v4347 = vld [vmem:[%s4339 + $0x1c] sm:$0xf]
  %v4356 = vunpack.c.l.b16 %v4340
  %v4357 = vunpack.c.l.b16 %v4341
  %v4358 = vunpack.c.l.b16 %v4342
  %v4359 = vunpack.c.l.b16 %v4343
  %v4360 = vunpack.c.l.b16 %v4344
  %v4361 = vunpack.c.l.b16 %v4345
  %v4362 = vunpack.c.l.b16 %v4346
  %v4363 = vunpack.c.l.b16 %v4347
  %v4364 = vpack.c.b16 %v4357, %v4356
  %v4365 = vpack.c.b16 %v4359, %v4358
  %v4366 = vpack.c.b16 %v4361, %v4360
  %v4367 = vpack.c.b16 %v4363, %v4362
  %4372 = vmatprep.subr.bf16.mxu0 0
  %4373 = vmatpush1.bf16.msra.mxu0 0
  %4374 = vmatprep.subr.bf16.mxu0 0
  %4375 = vmatpush1.bf16.msra.mxu0 0
  %4376 = vmatprep.subr.bf16.mxu0 0
  %4377 = vmatpush1.bf16.msra.mxu0 0
  %4378 = vmatprep.subr.bf16.mxu0 0
  %4379 = vmatpush1.bf16.msra.mxu0 0
  %4380 = vmatprep.subr.bf16.mxu0 0
  %4381 = vmatpush1.bf16.msra.mxu0 %v4367
  %4382 = vmatprep.subr.bf16.mxu0 0
  %4383 = vmatpush1.bf16.msra.mxu0 %v4366
  %4384 = vmatprep.subr.bf16.mxu0 0
  %4385 = vmatpush1.bf16.msra.mxu0 %v4365
  %4386 = vmatprep.subr.bf16.mxu0 0
  %4387 = vmatpush1.bf16.msra.mxu0 %v4364
  %4388 = vmatprep.subr.bf16.mxu0 0
  %4389 = vmatpush2.bf16.msra.mxu0 0
  %4390 = vmatprep.subr.bf16.mxu0 0
  %4391 = vmatpush2.bf16.msra.mxu0 0
  %4392 = vmatprep.subr.bf16.mxu0 0
  %4393 = vmatpush2.bf16.msra.mxu0 0
  %4394 = vmatprep.subr.bf16.mxu0 0
  %4395 = vmatpush2.bf16.msra.mxu0 0
  %4396 = vmatprep.subr.bf16.mxu0 0
  %4397 = vmatpush2.bf16.msra.mxu0 0
  %4398 = vmatprep.subr.bf16.mxu0 0
  %4399 = vmatpush2.bf16.msra.mxu0 0
  %4400 = vmatprep.subr.bf16.mxu0 0
  %4401 = vmatpush2.bf16.msra.mxu0 0
  %4402 = vmatprep.subr.bf16.mxu0 0
  %4403 = vmatpush2.bf16.msra.mxu0 0
  %4404 = vmatprep.mubr.bf16.mxu0 0
  %4405 = vmatmul.mubr.bf16.gmra.mxu0 %v4184
  %v4406 = vpop.f32.mrf.mxu0
  %v4407 = vadd.f32 0.0, %v4406
  %v4408 = vpop.f32.mrf.mxu0
  %v4409 = vpop.f32.mrf.mxu0
  %v4410 = vadd.f32 0.0, %v4409
  %v4411 = vpop.f32.mrf.mxu0
  %4412 = vmatprep.mubr.bf16.mxu0 0
  %4413 = vmatmul.mubr.bf16.gmra.mxu0 %v4187
  %v4414 = vpop.f32.mrf.mxu0
  %v4415 = vpop.f32.mrf.mxu0
  %v4416 = vpop.f32.mrf.mxu0
  %v4417 = vadd.f32 0.0, %v4416
  %v4418 = vpop.f32.mrf.mxu0
  %4419 = vmatprep.mubr.bf16.mxu0 0
  %4420 = vmatmul.mubr.bf16.gmra.mxu0 %v4190
  %v4421 = vpop.f32.mrf.mxu0
  %v4422 = vadd.f32 0.0, %v4421
  %v4423 = vpop.f32.mrf.mxu0
  %v4424 = vpop.f32.mrf.mxu0
  %v4425 = vpop.f32.mrf.mxu0
  %4426 = vdwg.mxu0
  %v4427 = vmax.f32 %v4335, %v4407
  %v4428 = vmax.f32 %v4336, %v4410
  %v4429 = vmax.f32 %v4337, %v4417
  %v4430 = vmax.f32 %v4338, %v4422
  %v4431 = vpack.c.bf16 %v4428, %v4427
  %v4433 = vunpack.c.l.b16 %v4431
  %v4434 = vunpack.c.h.b16 %v4431
  %v4435 = vpack.c.b16 %v4433, %v4433
  %v4436 = vpack.c.b16 %v4434, %v4434
  %4439 = vst.msk [vmem:[#allocation6 + $0x4] sm:$0xf] %vm79, %v4435
  %4440 = vst.msk [vmem:[#allocation6 + $0x8] sm:$0xf] %vm79, %v4436
  %v4441 = vpack.c.bf16 %v4430, %v4429
  %v4443 = vunpack.c.l.b16 %v4441
  %v4444 = vunpack.c.h.b16 %v4441
  %v4445 = vpack.c.b16 %v4443, %v4443
  %v4446 = vpack.c.b16 %v4444, %v4444
  %4449 = vst.msk [vmem:[#allocation6 + $0x14] sm:$0xf] %vm79, %v4445
  %4450 = vst.msk [vmem:[#allocation6 + $0x18] sm:$0xf] %vm79, %v4446
  %v4451 = vld [vmem:[#allocation6] sm:$0xc]
  %v4452 = vld [vmem:[#allocation6 + $0x4] sm:$0xf]
  %v4453 = vld [vmem:[#allocation6 + $0x8] sm:$0xf]
  %v4454 = vld [vmem:[#allocation6 + $0xc] sm:$0xf]
  %v4455 = vld [vmem:[#allocation6 + $0x10] sm:$0xf]
  %v4456 = vld [vmem:[#allocation6 + $0x14] sm:$0xf]
  %v4457 = vld [vmem:[#allocation6 + $0x18] sm:$0x3]
  %v4458 = vld [vmem:[%s3] sm:$0xf]
  %v4459 = vld [vmem:[%s3 + $0x4] sm:$0xf]
  %v4460 = vld [vmem:[%s3 + $0x8] sm:$0xf]
  %v4461 = vld [vmem:[%s3 + $0xc] sm:$0xf]
  %v4462 = vld [vmem:[#allocation6 + $0x18] sm:$0x7]
  %s4463 = scalar_lea.vmem %s3, 16
  %v4464 = vld [vmem:[%s4463] sm:$0xf]
  %v4465 = vld [vmem:[%s4463 + $0x4] sm:$0xf]
  %v4466 = vld [vmem:[%s4463 + $0x8] sm:$0xf]
  %v4467 = vld [vmem:[%s4463 + $0xc] sm:$0xf]
  %v4475 = vunpack.c.l.b16 %v4451
  %v4476 = vunpack.c.l.b16 %v4452
  %v4477 = vunpack.c.l.b16 %v4453
  %v4478 = vunpack.c.l.b16 %v4454
  %v4479 = vunpack.c.l.b16 %v4455
  %v4480 = vunpack.c.l.b16 %v4456
  %v4481 = vunpack.c.l.b16 %v4462
  %v4482 = vpack.c.b16 %v4476, %v4475
  %v4483 = vpack.c.b16 %v4478, %v4477
  %v4484 = vpack.c.b16 %v4480, %v4479
  %v4485 = vpack.c.b16 %v4481, %v4481
  %v4487 = vshrl.u32 %v4482, 16
  %v4489 = vrot.slane %v4487, 2
  %v4490 = vshll.u32 %v4482, 16
  %v4492 = vrot.slane %v4490, 3
  %v4493 = vor.u32 %v4489, %v4492
  %v4495 = vshrl.u32 %v4483, 16
  %v4497 = vrot.slane %v4495, 2
  %v4498 = vshll.u32 %v4483, 16
  %v4500 = vrot.slane %v4498, 3
  %v4501 = vor.u32 %v4497, %v4500
  %v4502 = vsel %vm175, %v4493, %v4501
  %v4504 = vshrl.u32 %v4484, 16
  %v4506 = vrot.slane %v4504, 2
  %v4507 = vshll.u32 %v4484, 16
  %v4509 = vrot.slane %v4507, 3
  %v4510 = vor.u32 %v4506, %v4509
  %v4511 = vsel %vm175, %v4501, %v4510
  %v4513 = vshrl.u32 %v4485, 16
  %v4515 = vrot.slane %v4513, 2
  %v4516 = vshll.u32 %v4485, 16
  %v4518 = vrot.slane %v4516, 3
  %v4519 = vor.u32 %v4515, %v4518
  %v4520 = vsel %vm175, %v4510, %v4519
  %v4525 = vunpack.c.l.b16 %v4464
  %v4526 = vunpack.c.l.b16 %v4465
  %v4527 = vunpack.c.l.b16 %v4466
  %v4528 = vunpack.c.l.b16 %v4467
  %v4529 = vpack.c.b16 %v4526, %v4525
  %v4530 = vpack.c.b16 %v4528, %v4527
  %v4534 = vsel %vm69, %v4502, 0
  %v4537 = vsel %vm69, %v4511, 0
  %v4540 = vsel %vm69, %v4520, 0
  %4542 = vmatprep.subr.bf16.mxu0 0
  %4543 = vmatpush1.bf16.msra.mxu0 0
  %4544 = vmatprep.subr.bf16.mxu0 0
  %4545 = vmatpush1.bf16.msra.mxu0 0
  %4546 = vmatprep.subr.bf16.mxu0 0
  %4547 = vmatpush1.bf16.msra.mxu0 0
  %4548 = vmatprep.subr.bf16.mxu0 0
  %4549 = vmatpush1.bf16.msra.mxu0 0
  %4550 = vmatprep.subr.bf16.mxu0 0
  %4551 = vmatpush1.bf16.msra.mxu0 0
  %4552 = vmatprep.subr.bf16.mxu0 0
  %4553 = vmatpush1.bf16.msra.mxu0 0
  %4554 = vmatprep.subr.bf16.mxu0 0
  %4555 = vmatpush1.bf16.msra.mxu0 %v4530
  %4556 = vmatprep.subr.bf16.mxu0 0
  %4557 = vmatpush1.bf16.msra.mxu0 %v4529
  %4558 = vmatprep.subr.bf16.mxu0 0
  %4559 = vmatpush2.bf16.msra.mxu0 0
  %4560 = vmatprep.subr.bf16.mxu0 0
  %4561 = vmatpush2.bf16.msra.mxu0 0
  %4562 = vmatprep.subr.bf16.mxu0 0
  %4563 = vmatpush2.bf16.msra.mxu0 0
  %4564 = vmatprep.subr.bf16.mxu0 0
  %4565 = vmatpush2.bf16.msra.mxu0 0
  %4566 = vmatprep.subr.bf16.mxu0 0
  %4567 = vmatpush2.bf16.msra.mxu0 0
  %4568 = vmatprep.subr.bf16.mxu0 0
  %4569 = vmatpush2.bf16.msra.mxu0 0
  %4570 = vmatprep.subr.bf16.mxu0 0
  %4571 = vmatpush2.bf16.msra.mxu0 0
  %4572 = vmatprep.subr.bf16.mxu0 0
  %4573 = vmatpush2.bf16.msra.mxu0 0
  %4574 = vmatprep.mubr.bf16.mxu0 0
  %4575 = vmatmul.mubr.bf16.gmra.mxu0 %v4534
  %v4576 = vpop.f32.mrf.mxu0
  %v4577 = vadd.f32 0.0, %v4576
  %v4578 = vpop.f32.mrf.mxu0
  %v4579 = vpop.f32.mrf.mxu0
  %v4580 = vadd.f32 0.0, %v4579
  %v4581 = vpop.f32.mrf.mxu0
  %4582 = vmatprep.mubr.bf16.mxu0 0
  %4583 = vmatmul.mubr.bf16.gmra.mxu0 %v4537
  %v4584 = vpop.f32.mrf.mxu0
  %v4585 = vpop.f32.mrf.mxu0
  %v4586 = vpop.f32.mrf.mxu0
  %v4587 = vpop.f32.mrf.mxu0
  %4588 = vmatprep.mubr.bf16.mxu0 0
  %4589 = vmatmul.mubr.bf16.gmra.mxu0 %v4540
  %v4590 = vpop.f32.mrf.mxu0
  %v4591 = vadd.f32 0.0, %v4590
  %v4592 = vpop.f32.mrf.mxu0
  %v4593 = vpop.f32.mrf.mxu0
  %v4594 = vadd.f32 0.0, %v4593
  %v4595 = vpop.f32.mrf.mxu0
  %4596 = vdwg.mxu0
  %v4597 = vld [vmem:[#allocation6] sm:$0x8]
  %s4598 = scalar_lea.vmem %s3, 32
  %v4599 = vld [vmem:[%s4598] sm:$0xf]
  %v4600 = vld [vmem:[%s4598 + $0x4] sm:$0xf]
  %v4601 = vld [vmem:[%s4598 + $0x8] sm:$0xf]
  %v4602 = vld [vmem:[%s4598 + $0xc] sm:$0xf]
  %v4603 = vld [vmem:[#allocation6 + $0x18] sm:$0xf]
  %s4604 = scalar_lea.vmem %s3, 48
  %v4605 = vld [vmem:[%s4604] sm:$0xf]
  %v4606 = vld [vmem:[%s4604 + $0x4] sm:$0xf]
  %v4607 = vld [vmem:[%s4604 + $0x8] sm:$0xf]
  %v4608 = vld [vmem:[%s4604 + $0xc] sm:$0xf]
  %v4611 = vunpack.c.l.b16 %v4597
  %v4612 = vunpack.c.l.b16 %v4603
  %v4613 = vpack.c.b16 %v4476, %v4611
  %v4614 = vpack.c.b16 %v4612, %v4612
  %v4616 = vshrl.u32 %v4613, 16
  %v4618 = vrot.slane %v4616, 3
  %v4619 = vshll.u32 %v4613, 16
  %v4621 = vrot.slane %v4619, 4
  %v4622 = vor.u32 %v4618, %v4621
  %v4623 = vrot.slane %v4495, 3
  %v4624 = vrot.slane %v4498, 4
  %v4625 = vor.u32 %v4623, %v4624
  %v4626 = vsel %vm436, %v4622, %v4625
  %v4627 = vrot.slane %v4504, 3
  %v4628 = vrot.slane %v4507, 4
  %v4629 = vor.u32 %v4627, %v4628
  %v4630 = vsel %vm436, %v4625, %v4629
  %v4632 = vshrl.u32 %v4614, 16
  %v4634 = vrot.slane %v4632, 3
  %v4635 = vshll.u32 %v4614, 16
  %v4637 = vrot.slane %v4635, 4
  %v4638 = vor.u32 %v4634, %v4637
  %v4639 = vsel %vm436, %v4629, %v4638
  %v4644 = vunpack.c.l.b16 %v4605
  %v4645 = vunpack.c.l.b16 %v4606
  %v4646 = vunpack.c.l.b16 %v4607
  %v4647 = vunpack.c.l.b16 %v4608
  %v4648 = vpack.c.b16 %v4645, %v4644
  %v4649 = vpack.c.b16 %v4647, %v4646
  %v4653 = vsel %vm69, %v4626, 0
  %v4656 = vsel %vm69, %v4630, 0
  %v4659 = vsel %vm69, %v4639, 0
  %4661 = vmatprep.subr.bf16.mxu0 0
  %4662 = vmatpush1.bf16.msra.mxu0 0
  %4663 = vmatprep.subr.bf16.mxu0 0
  %4664 = vmatpush1.bf16.msra.mxu0 0
  %4665 = vmatprep.subr.bf16.mxu0 0
  %4666 = vmatpush1.bf16.msra.mxu0 0
  %4667 = vmatprep.subr.bf16.mxu0 0
  %4668 = vmatpush1.bf16.msra.mxu0 0
  %4669 = vmatprep.subr.bf16.mxu0 0
  %4670 = vmatpush1.bf16.msra.mxu0 0
  %4671 = vmatprep.subr.bf16.mxu0 0
  %4672 = vmatpush1.bf16.msra.mxu0 0
  %4673 = vmatprep.subr.bf16.mxu0 0
  %4674 = vmatpush1.bf16.msra.mxu0 %v4649
  %4675 = vmatprep.subr.bf16.mxu0 0
  %4676 = vmatpush1.bf16.msra.mxu0 %v4648
  %4677 = vmatprep.subr.bf16.mxu0 0
  %4678 = vmatpush2.bf16.msra.mxu0 0
  %4679 = vmatprep.subr.bf16.mxu0 0
  %4680 = vmatpush2.bf16.msra.mxu0 0
  %4681 = vmatprep.subr.bf16.mxu0 0
  %4682 = vmatpush2.bf16.msra.mxu0 0
  %4683 = vmatprep.subr.bf16.mxu0 0
  %4684 = vmatpush2.bf16.msra.mxu0 0
  %4685 = vmatprep.subr.bf16.mxu0 0
  %4686 = vmatpush2.bf16.msra.mxu0 0
  %4687 = vmatprep.subr.bf16.mxu0 0
  %4688 = vmatpush2.bf16.msra.mxu0 0
  %4689 = vmatprep.subr.bf16.mxu0 0
  %4690 = vmatpush2.bf16.msra.mxu0 0
  %4691 = vmatprep.subr.bf16.mxu0 0
  %4692 = vmatpush2.bf16.msra.mxu0 0
  %4693 = vmatprep.mubr.bf16.mxu0 0
  %4694 = vmatmul.mubr.bf16.gmra.mxu0 %v4653
  %v4695 = vpop.f32.mrf.mxu0
  %v4696 = vadd.f32 0.0, %v4695
  %v4697 = vpop.f32.mrf.mxu0
  %v4698 = vpop.f32.mrf.mxu0
  %v4699 = vadd.f32 0.0, %v4698
  %v4700 = vpop.f32.mrf.mxu0
  %4701 = vmatprep.mubr.bf16.mxu0 0
  %4702 = vmatmul.mubr.bf16.gmra.mxu0 %v4656
  %v4703 = vpop.f32.mrf.mxu0
  %v4704 = vpop.f32.mrf.mxu0
  %v4705 = vpop.f32.mrf.mxu0
  %v4706 = vpop.f32.mrf.mxu0
  %4707 = vmatprep.mubr.bf16.mxu0 0
  %4708 = vmatmul.mubr.bf16.gmra.mxu0 %v4659
  %v4709 = vpop.f32.mrf.mxu0
  %v4710 = vadd.f32 0.0, %v4709
  %v4711 = vpop.f32.mrf.mxu0
  %v4712 = vpop.f32.mrf.mxu0
  %v4713 = vadd.f32 0.0, %v4712
  %v4714 = vpop.f32.mrf.mxu0
  %4715 = vdwg.mxu0
  %s4716 = scalar_lea.vmem %s3, 64
  %v4717 = vld [vmem:[%s4716] sm:$0xf]
  %v4718 = vld [vmem:[%s4716 + $0x4] sm:$0xf]
  %v4719 = vld [vmem:[%s4716 + $0x8] sm:$0xf]
  %v4720 = vld [vmem:[%s4716 + $0xc] sm:$0xf]
  %v4721 = vld [vmem:[#allocation6 + $0x4] sm:$0xf]
  %v4722 = vld [vmem:[#allocation6 + $0x8] sm:$0xf]
  %v4723 = vld [vmem:[#allocation6 + $0xc] sm:$0xf]
  %v4724 = vld [vmem:[#allocation6 + $0x10] sm:$0xf]
  %v4725 = vld [vmem:[#allocation6 + $0x14] sm:$0xf]
  %v4726 = vld [vmem:[#allocation6 + $0x18] sm:$0xf]
  %v4727 = vld [vmem:[#allocation6 + $0x1c] sm:$0x1]
  %s4728 = scalar_lea.vmem %s3, 80
  %v4729 = vld [vmem:[%s4728] sm:$0xf]
  %v4730 = vld [vmem:[%s4728 + $0x4] sm:$0xf]
  %v4731 = vld [vmem:[%s4728 + $0x8] sm:$0xf]
  %v4732 = vld [vmem:[%s4728 + $0xc] sm:$0xf]
  %v4740 = vunpack.c.l.b16 %v4721
  %v4741 = vunpack.c.l.b16 %v4722
  %v4742 = vunpack.c.l.b16 %v4723
  %v4743 = vunpack.c.l.b16 %v4724
  %v4744 = vunpack.c.l.b16 %v4725
  %v4745 = vunpack.c.l.b16 %v4726
  %v4746 = vunpack.c.l.b16 %v4727
  %v4747 = vpack.c.b16 %v4741, %v4740
  %v4748 = vpack.c.b16 %v4743, %v4742
  %v4749 = vpack.c.b16 %v4745, %v4744
  %v4750 = vpack.c.b16 %v4746, %v4746
  %v4752 = vshrl.u32 %v4747, 16
  %v4754 = vshll.u32 %v4747, 16
  %v4756 = vrot.slane %v4754, 1
  %v4757 = vor.u32 %v4752, %v4756
  %v4759 = vshll.u32 %v4748, 16
  %v4761 = vrot.slane %v4759, 1
  %v4762 = vsel %vm715, %v4757, %v4761
  %v4763 = vshrl.u32 %v4748, 16
  %v4765 = vor.u32 %v4763, %v4761
  %v4767 = vshll.u32 %v4749, 16
  %v4769 = vrot.slane %v4767, 1
  %v4770 = vsel %vm715, %v4765, %v4769
  %v4771 = vshrl.u32 %v4749, 16
  %v4773 = vor.u32 %v4771, %v4769
  %v4775 = vshll.u32 %v4750, 16
  %v4777 = vrot.slane %v4775, 1
  %v4778 = vsel %vm715, %v4773, %v4777
  %v4783 = vunpack.c.l.b16 %v4729
  %v4784 = vunpack.c.l.b16 %v4730
  %v4785 = vunpack.c.l.b16 %v4731
  %v4786 = vunpack.c.l.b16 %v4732
  %v4787 = vpack.c.b16 %v4784, %v4783
  %v4788 = vpack.c.b16 %v4786, %v4785
  %v4792 = vsel %vm69, %v4762, 0
  %v4795 = vsel %vm69, %v4770, 0
  %v4798 = vsel %vm69, %v4778, 0
  %4800 = vmatprep.subr.bf16.mxu0 0
  %4801 = vmatpush1.bf16.msra.mxu0 0
  %4802 = vmatprep.subr.bf16.mxu0 0
  %4803 = vmatpush1.bf16.msra.mxu0 0
  %4804 = vmatprep.subr.bf16.mxu0 0
  %4805 = vmatpush1.bf16.msra.mxu0 0
  %4806 = vmatprep.subr.bf16.mxu0 0
  %4807 = vmatpush1.bf16.msra.mxu0 0
  %4808 = vmatprep.subr.bf16.mxu0 0
  %4809 = vmatpush1.bf16.msra.mxu0 0
  %4810 = vmatprep.subr.bf16.mxu0 0
  %4811 = vmatpush1.bf16.msra.mxu0 0
  %4812 = vmatprep.subr.bf16.mxu0 0
  %4813 = vmatpush1.bf16.msra.mxu0 %v4788
  %4814 = vmatprep.subr.bf16.mxu0 0
  %4815 = vmatpush1.bf16.msra.mxu0 %v4787
  %4816 = vmatprep.subr.bf16.mxu0 0
  %4817 = vmatpush2.bf16.msra.mxu0 0
  %4818 = vmatprep.subr.bf16.mxu0 0
  %4819 = vmatpush2.bf16.msra.mxu0 0
  %4820 = vmatprep.subr.bf16.mxu0 0
  %4821 = vmatpush2.bf16.msra.mxu0 0
  %4822 = vmatprep.subr.bf16.mxu0 0
  %4823 = vmatpush2.bf16.msra.mxu0 0
  %4824 = vmatprep.subr.bf16.mxu0 0
  %4825 = vmatpush2.bf16.msra.mxu0 0
  %4826 = vmatprep.subr.bf16.mxu0 0
  %4827 = vmatpush2.bf16.msra.mxu0 0
  %4828 = vmatprep.subr.bf16.mxu0 0
  %4829 = vmatpush2.bf16.msra.mxu0 0
  %4830 = vmatprep.subr.bf16.mxu0 0
  %4831 = vmatpush2.bf16.msra.mxu0 0
  %4832 = vmatprep.mubr.bf16.mxu0 0
  %4833 = vmatmul.mubr.bf16.gmra.mxu0 %v4792
  %v4834 = vpop.f32.mrf.mxu0
  %v4835 = vadd.f32 0.0, %v4834
  %v4836 = vpop.f32.mrf.mxu0
  %v4837 = vpop.f32.mrf.mxu0
  %v4838 = vadd.f32 0.0, %v4837
  %v4839 = vpop.f32.mrf.mxu0
  %4840 = vmatprep.mubr.bf16.mxu0 0
  %4841 = vmatmul.mubr.bf16.gmra.mxu0 %v4795
  %v4842 = vpop.f32.mrf.mxu0
  %v4843 = vpop.f32.mrf.mxu0
  %v4844 = vpop.f32.mrf.mxu0
  %v4845 = vpop.f32.mrf.mxu0
  %4846 = vmatprep.mubr.bf16.mxu0 0
  %4847 = vmatmul.mubr.bf16.gmra.mxu0 %v4798
  %v4848 = vpop.f32.mrf.mxu0
  %v4849 = vadd.f32 0.0, %v4848
  %v4850 = vpop.f32.mrf.mxu0
  %v4851 = vpop.f32.mrf.mxu0
  %v4852 = vadd.f32 0.0, %v4851
  %v4853 = vpop.f32.mrf.mxu0
  %4854 = vdwg.mxu0
  %v4855 = vld [vmem:[#allocation6 + $0x4] sm:$0xe]
  %s4856 = scalar_lea.vmem %s3, 96
  %v4857 = vld [vmem:[%s4856] sm:$0xf]
  %v4858 = vld [vmem:[%s4856 + $0x4] sm:$0xf]
  %v4859 = vld [vmem:[%s4856 + $0x8] sm:$0xf]
  %v4860 = vld [vmem:[%s4856 + $0xc] sm:$0xf]
  %v4861 = vld [vmem:[#allocation6 + $0x1c] sm:$0x3]
  %s4862 = scalar_lea.vmem %s3, 112
  %v4863 = vld [vmem:[%s4862] sm:$0xf]
  %v4864 = vld [vmem:[%s4862 + $0x4] sm:$0xf]
  %v4865 = vld [vmem:[%s4862 + $0x8] sm:$0xf]
  %v4866 = vld [vmem:[%s4862 + $0xc] sm:$0xf]
  %v4869 = vunpack.c.l.b16 %v4855
  %v4870 = vunpack.c.l.b16 %v4861
  %v4871 = vpack.c.b16 %v4741, %v4869
  %v4872 = vpack.c.b16 %v4870, %v4870
  %v4874 = vshrl.u32 %v4871, 16
  %v4876 = vrot.slane %v4874, 1
  %v4877 = vshll.u32 %v4871, 16
  %v4879 = vrot.slane %v4877, 2
  %v4880 = vor.u32 %v4876, %v4879
  %v4881 = vrot.slane %v4763, 1
  %v4882 = vrot.slane %v4759, 2
  %v4883 = vor.u32 %v4881, %v4882
  %v4884 = vsel %vm962, %v4880, %v4883
  %v4885 = vrot.slane %v4771, 1
  %v4886 = vrot.slane %v4767, 2
  %v4887 = vor.u32 %v4885, %v4886
  %v4888 = vsel %vm962, %v4883, %v4887
  %v4890 = vshrl.u32 %v4872, 16
  %v4892 = vrot.slane %v4890, 1
  %v4893 = vshll.u32 %v4872, 16
  %v4895 = vrot.slane %v4893, 2
  %v4896 = vor.u32 %v4892, %v4895
  %v4897 = vsel %vm962, %v4887, %v4896
  %v4902 = vunpack.c.l.b16 %v4863
  %v4903 = vunpack.c.l.b16 %v4864
  %v4904 = vunpack.c.l.b16 %v4865
  %v4905 = vunpack.c.l.b16 %v4866
  %v4906 = vpack.c.b16 %v4903, %v4902
  %v4907 = vpack.c.b16 %v4905, %v4904
  %v4911 = vsel %vm69, %v4884, 0
  %v4914 = vsel %vm69, %v4888, 0
  %v4917 = vsel %vm69, %v4897, 0
  %4919 = vmatprep.subr.bf16.mxu0 0
  %4920 = vmatpush1.bf16.msra.mxu0 0
  %4921 = vmatprep.subr.bf16.mxu0 0
  %4922 = vmatpush1.bf16.msra.mxu0 0
  %4923 = vmatprep.subr.bf16.mxu0 0
  %4924 = vmatpush1.bf16.msra.mxu0 0
  %4925 = vmatprep.subr.bf16.mxu0 0
  %4926 = vmatpush1.bf16.msra.mxu0 0
  %4927 = vmatprep.subr.bf16.mxu0 0
  %4928 = vmatpush1.bf16.msra.mxu0 0
  %4929 = vmatprep.subr.bf16.mxu0 0
  %4930 = vmatpush1.bf16.msra.mxu0 0
  %4931 = vmatprep.subr.bf16.mxu0 0
  %4932 = vmatpush1.bf16.msra.mxu0 %v4907
  %4933 = vmatprep.subr.bf16.mxu0 0
  %4934 = vmatpush1.bf16.msra.mxu0 %v4906
  %4935 = vmatprep.subr.bf16.mxu0 0
  %4936 = vmatpush2.bf16.msra.mxu0 0
  %4937 = vmatprep.subr.bf16.mxu0 0
  %4938 = vmatpush2.bf16.msra.mxu0 0
  %4939 = vmatprep.subr.bf16.mxu0 0
  %4940 = vmatpush2.bf16.msra.mxu0 0
  %4941 = vmatprep.subr.bf16.mxu0 0
  %4942 = vmatpush2.bf16.msra.mxu0 0
  %4943 = vmatprep.subr.bf16.mxu0 0
  %4944 = vmatpush2.bf16.msra.mxu0 0
  %4945 = vmatprep.subr.bf16.mxu0 0
  %4946 = vmatpush2.bf16.msra.mxu0 0
  %4947 = vmatprep.subr.bf16.mxu0 0
  %4948 = vmatpush2.bf16.msra.mxu0 0
  %4949 = vmatprep.subr.bf16.mxu0 0
  %4950 = vmatpush2.bf16.msra.mxu0 0
  %4951 = vmatprep.mubr.bf16.mxu0 0
  %4952 = vmatmul.mubr.bf16.gmra.mxu0 %v4911
  %v4953 = vpop.f32.mrf.mxu0
  %v4954 = vadd.f32 0.0, %v4953
  %v4955 = vpop.f32.mrf.mxu0
  %v4956 = vpop.f32.mrf.mxu0
  %v4957 = vadd.f32 0.0, %v4956
  %v4958 = vpop.f32.mrf.mxu0
  %4959 = vmatprep.mubr.bf16.mxu0 0
  %4960 = vmatmul.mubr.bf16.gmra.mxu0 %v4914
  %v4961 = vpop.f32.mrf.mxu0
  %v4962 = vpop.f32.mrf.mxu0
  %v4963 = vpop.f32.mrf.mxu0
  %v4964 = vpop.f32.mrf.mxu0
  %4965 = vmatprep.mubr.bf16.mxu0 0
  %4966 = vmatmul.mubr.bf16.gmra.mxu0 %v4917
  %v4967 = vpop.f32.mrf.mxu0
  %v4968 = vadd.f32 0.0, %v4967
  %v4969 = vpop.f32.mrf.mxu0
  %v4970 = vpop.f32.mrf.mxu0
  %v4971 = vadd.f32 0.0, %v4970
  %v4972 = vpop.f32.mrf.mxu0
  %4973 = vdwg.mxu0
  %v4974 = vld [vmem:[#allocation6 + $0x4] sm:$0xc]
  %s4975 = scalar_lea.vmem %s3, 128
  %v4976 = vld [vmem:[%s4975] sm:$0xf]
  %v4977 = vld [vmem:[%s4975 + $0x4] sm:$0xf]
  %v4978 = vld [vmem:[%s4975 + $0x8] sm:$0xf]
  %v4979 = vld [vmem:[%s4975 + $0xc] sm:$0xf]
  %v4981 = vunpack.c.l.b16 %v4974
  %v4982 = vpack.c.b16 %v4741, %v4981
  %v4983 = vrot.slane %v4982, 2
  %v4984 = vrot.slane %v4748, 2
  %v4985 = vsel %vm1171, %v4983, %v4984
  %v4986 = vrot.slane %v4749, 2
  %v4987 = vsel %vm1171, %v4984, %v4986
  %v4988 = vrot.slane %v4872, 2
  %v4989 = vsel %vm1171, %v4986, %v4988
  %v4994 = vunpack.c.l.b16 %v4976
  %v4995 = vunpack.c.l.b16 %v4977
  %v4996 = vunpack.c.l.b16 %v4978
  %v4997 = vunpack.c.l.b16 %v4979
  %v4998 = vpack.c.b16 %v4995, %v4994
  %v4999 = vpack.c.b16 %v4997, %v4996
  %v5003 = vsel %vm69, %v4985, 0
  %v5006 = vsel %vm69, %v4987, 0
  %v5009 = vsel %vm69, %v4989, 0
  %5011 = vmatprep.subr.bf16.mxu0 0
  %5012 = vmatpush1.bf16.msra.mxu0 0
  %5013 = vmatprep.subr.bf16.mxu0 0
  %5014 = vmatpush1.bf16.msra.mxu0 0
  %5015 = vmatprep.subr.bf16.mxu0 0
  %5016 = vmatpush1.bf16.msra.mxu0 0
  %5017 = vmatprep.subr.bf16.mxu0 0
  %5018 = vmatpush1.bf16.msra.mxu0 0
  %5019 = vmatprep.subr.bf16.mxu0 0
  %5020 = vmatpush1.bf16.msra.mxu0 0
  %5021 = vmatprep.subr.bf16.mxu0 0
  %5022 = vmatpush1.bf16.msra.mxu0 0
  %5023 = vmatprep.subr.bf16.mxu0 0
  %5024 = vmatpush1.bf16.msra.mxu0 %v4999
  %5025 = vmatprep.subr.bf16.mxu0 0
  %5026 = vmatpush1.bf16.msra.mxu0 %v4998
  %5027 = vmatprep.subr.bf16.mxu0 0
  %5028 = vmatpush2.bf16.msra.mxu0 0
  %5029 = vmatprep.subr.bf16.mxu0 0
  %5030 = vmatpush2.bf16.msra.mxu0 0
  %5031 = vmatprep.subr.bf16.mxu0 0
  %5032 = vmatpush2.bf16.msra.mxu0 0
  %5033 = vmatprep.subr.bf16.mxu0 0
  %5034 = vmatpush2.bf16.msra.mxu0 0
  %5035 = vmatprep.subr.bf16.mxu0 0
  %5036 = vmatpush2.bf16.msra.mxu0 0
  %5037 = vmatprep.subr.bf16.mxu0 0
  %5038 = vmatpush2.bf16.msra.mxu0 0
  %5039 = vmatprep.subr.bf16.mxu0 0
  %5040 = vmatpush2.bf16.msra.mxu0 0
  %5041 = vmatprep.subr.bf16.mxu0 0
  %5042 = vmatpush2.bf16.msra.mxu0 0
  %5043 = vmatprep.mubr.bf16.mxu0 0
  %5044 = vmatmul.mubr.bf16.gmra.mxu0 %v5003
  %v5045 = vpop.f32.mrf.mxu0
  %v5046 = vadd.f32 0.0, %v5045
  %v5047 = vpop.f32.mrf.mxu0
  %v5048 = vpop.f32.mrf.mxu0
  %v5049 = vadd.f32 0.0, %v5048
  %v5050 = vpop.f32.mrf.mxu0
  %5051 = vmatprep.mubr.bf16.mxu0 0
  %5052 = vmatmul.mubr.bf16.gmra.mxu0 %v5006
  %v5053 = vpop.f32.mrf.mxu0
  %v5054 = vpop.f32.mrf.mxu0
  %v5055 = vpop.f32.mrf.mxu0
  %v5056 = vpop.f32.mrf.mxu0
  %5057 = vmatprep.mubr.bf16.mxu0 0
  %5058 = vmatmul.mubr.bf16.gmra.mxu0 %v5009
  %v5059 = vpop.f32.mrf.mxu0
  %v5060 = vadd.f32 0.0, %v5059
  %v5061 = vpop.f32.mrf.mxu0
  %v5062 = vpop.f32.mrf.mxu0
  %v5063 = vadd.f32 0.0, %v5062
  %v5064 = vpop.f32.mrf.mxu0
  %5065 = vdwg.mxu0
  %v5067 = vunpack.c.l.b16 %v4457
  %v5068 = vpack.c.b16 %v5067, %v5067
  %v5069 = vrot.slane %v4482, 2
  %v5070 = vrot.slane %v4483, 2
  %v5071 = vsel %vm1171, %v5069, %v5070
  %v5072 = vrot.slane %v4484, 2
  %v5073 = vsel %vm1171, %v5070, %v5072
  %v5074 = vrot.slane %v5068, 2
  %v5075 = vsel %vm1171, %v5072, %v5074
  %v5080 = vunpack.c.l.b16 %v4458
  %v5081 = vunpack.c.l.b16 %v4459
  %v5082 = vunpack.c.l.b16 %v4460
  %v5083 = vunpack.c.l.b16 %v4461
  %v5084 = vpack.c.b16 %v5081, %v5080
  %v5085 = vpack.c.b16 %v5083, %v5082
  %v5089 = vsel %vm69, %v5071, 0
  %v5092 = vsel %vm69, %v5073, 0
  %v5095 = vsel %vm69, %v5075, 0
  %5097 = vmatprep.subr.bf16.mxu0 0
  %5098 = vmatpush1.bf16.msra.mxu0 0
  %5099 = vmatprep.subr.bf16.mxu0 0
  %5100 = vmatpush1.bf16.msra.mxu0 0
  %5101 = vmatprep.subr.bf16.mxu0 0
  %5102 = vmatpush1.bf16.msra.mxu0 0
  %5103 = vmatprep.subr.bf16.mxu0 0
  %5104 = vmatpush1.bf16.msra.mxu0 0
  %5105 = vmatprep.subr.bf16.mxu0 0
  %5106 = vmatpush1.bf16.msra.mxu0 0
  %5107 = vmatprep.subr.bf16.mxu0 0
  %5108 = vmatpush1.bf16.msra.mxu0 0
  %5109 = vmatprep.subr.bf16.mxu0 0
  %5110 = vmatpush1.bf16.msra.mxu0 %v5085
  %5111 = vmatprep.subr.bf16.mxu0 0
  %5112 = vmatpush1.bf16.msra.mxu0 %v5084
  %5113 = vmatprep.subr.bf16.mxu0 0
  %5114 = vmatpush2.bf16.msra.mxu0 0
  %5115 = vmatprep.subr.bf16.mxu0 0
  %5116 = vmatpush2.bf16.msra.mxu0 0
  %5117 = vmatprep.subr.bf16.mxu0 0
  %5118 = vmatpush2.bf16.msra.mxu0 0
  %5119 = vmatprep.subr.bf16.mxu0 0
  %5120 = vmatpush2.bf16.msra.mxu0 0
  %5121 = vmatprep.subr.bf16.mxu0 0
  %5122 = vmatpush2.bf16.msra.mxu0 0
  %5123 = vmatprep.subr.bf16.mxu0 0
  %5124 = vmatpush2.bf16.msra.mxu0 0
  %5125 = vmatprep.subr.bf16.mxu0 0
  %5126 = vmatpush2.bf16.msra.mxu0 0
  %5127 = vmatprep.subr.bf16.mxu0 0
  %5128 = vmatpush2.bf16.msra.mxu0 0
  %5129 = vmatprep.mubr.bf16.mxu0 0
  %5130 = vmatmul.mubr.bf16.gmra.mxu0 %v5089
  %v5131 = vpop.f32.mrf.mxu0
  %v5132 = vadd.f32 %v4577, %v5131
  %v5133 = vpop.f32.mrf.mxu0
  %v5134 = vpop.f32.mrf.mxu0
  %v5135 = vadd.f32 %v4580, %v5134
  %v5136 = vpop.f32.mrf.mxu0
  %5137 = vmatprep.mubr.bf16.mxu0 0
  %5138 = vmatmul.mubr.bf16.gmra.mxu0 %v5092
  %v5139 = vpop.f32.mrf.mxu0
  %v5140 = vpop.f32.mrf.mxu0
  %v5141 = vpop.f32.mrf.mxu0
  %v5142 = vpop.f32.mrf.mxu0
  %5143 = vmatprep.mubr.bf16.mxu0 0
  %5144 = vmatmul.mubr.bf16.gmra.mxu0 %v5095
  %v5145 = vpop.f32.mrf.mxu0
  %v5146 = vadd.f32 %v4591, %v5145
  %v5147 = vpop.f32.mrf.mxu0
  %v5148 = vpop.f32.mrf.mxu0
  %v5149 = vadd.f32 %v4594, %v5148
  %v5150 = vpop.f32.mrf.mxu0
  %5151 = vdwg.mxu0
  %v5152 = vrot.slane %v4613, 3
  %v5153 = vrot.slane %v4483, 3
  %v5154 = vsel %vm1509, %v5152, %v5153
  %v5155 = vrot.slane %v4484, 3
  %v5156 = vsel %vm1509, %v5153, %v5155
  %v5157 = vrot.slane %v4485, 3
  %v5158 = vsel %vm1509, %v5155, %v5157
  %v5163 = vunpack.c.l.b16 %v4599
  %v5164 = vunpack.c.l.b16 %v4600
  %v5165 = vunpack.c.l.b16 %v4601
  %v5166 = vunpack.c.l.b16 %v4602
  %v5167 = vpack.c.b16 %v5164, %v5163
  %v5168 = vpack.c.b16 %v5166, %v5165
  %v5172 = vsel %vm69, %v5154, 0
  %v5175 = vsel %vm69, %v5156, 0
  %v5178 = vsel %vm69, %v5158, 0
  %5180 = vmatprep.subr.bf16.mxu0 0
  %5181 = vmatpush1.bf16.msra.mxu0 0
  %5182 = vmatprep.subr.bf16.mxu0 0
  %5183 = vmatpush1.bf16.msra.mxu0 0
  %5184 = vmatprep.subr.bf16.mxu0 0
  %5185 = vmatpush1.bf16.msra.mxu0 0
  %5186 = vmatprep.subr.bf16.mxu0 0
  %5187 = vmatpush1.bf16.msra.mxu0 0
  %5188 = vmatprep.subr.bf16.mxu0 0
  %5189 = vmatpush1.bf16.msra.mxu0 0
  %5190 = vmatprep.subr.bf16.mxu0 0
  %5191 = vmatpush1.bf16.msra.mxu0 0
  %5192 = vmatprep.subr.bf16.mxu0 0
  %5193 = vmatpush1.bf16.msra.mxu0 %v5168
  %5194 = vmatprep.subr.bf16.mxu0 0
  %5195 = vmatpush1.bf16.msra.mxu0 %v5167
  %5196 = vmatprep.subr.bf16.mxu0 0
  %5197 = vmatpush2.bf16.msra.mxu0 0
  %5198 = vmatprep.subr.bf16.mxu0 0
  %5199 = vmatpush2.bf16.msra.mxu0 0
  %5200 = vmatprep.subr.bf16.mxu0 0
  %5201 = vmatpush2.bf16.msra.mxu0 0
  %5202 = vmatprep.subr.bf16.mxu0 0
  %5203 = vmatpush2.bf16.msra.mxu0 0
  %5204 = vmatprep.subr.bf16.mxu0 0
  %5205 = vmatpush2.bf16.msra.mxu0 0
  %5206 = vmatprep.subr.bf16.mxu0 0
  %5207 = vmatpush2.bf16.msra.mxu0 0
  %5208 = vmatprep.subr.bf16.mxu0 0
  %5209 = vmatpush2.bf16.msra.mxu0 0
  %5210 = vmatprep.subr.bf16.mxu0 0
  %5211 = vmatpush2.bf16.msra.mxu0 0
  %5212 = vmatprep.mubr.bf16.mxu0 0
  %5213 = vmatmul.mubr.bf16.gmra.mxu0 %v5172
  %v5214 = vpop.f32.mrf.mxu0
  %v5215 = vadd.f32 %v4696, %v5214
  %v5216 = vpop.f32.mrf.mxu0
  %v5217 = vpop.f32.mrf.mxu0
  %v5218 = vadd.f32 %v4699, %v5217
  %v5219 = vpop.f32.mrf.mxu0
  %5220 = vmatprep.mubr.bf16.mxu0 0
  %5221 = vmatmul.mubr.bf16.gmra.mxu0 %v5175
  %v5222 = vpop.f32.mrf.mxu0
  %v5223 = vpop.f32.mrf.mxu0
  %v5224 = vpop.f32.mrf.mxu0
  %v5225 = vpop.f32.mrf.mxu0
  %5226 = vmatprep.mubr.bf16.mxu0 0
  %5227 = vmatmul.mubr.bf16.gmra.mxu0 %v5178
  %v5228 = vpop.f32.mrf.mxu0
  %v5229 = vadd.f32 %v4710, %v5228
  %v5230 = vpop.f32.mrf.mxu0
  %v5231 = vpop.f32.mrf.mxu0
  %v5232 = vadd.f32 %v4713, %v5231
  %v5233 = vpop.f32.mrf.mxu0
  %5234 = vdwg.mxu0
  %v5235 = vpack.c.b16 %v4477, %v4476
  %v5236 = vpack.c.b16 %v4479, %v4478
  %v5237 = vpack.c.b16 %v4612, %v4480
  %v5242 = vunpack.c.l.b16 %v4717
  %v5243 = vunpack.c.l.b16 %v4718
  %v5244 = vunpack.c.l.b16 %v4719
  %v5245 = vunpack.c.l.b16 %v4720
  %v5246 = vpack.c.b16 %v5243, %v5242
  %v5247 = vpack.c.b16 %v5245, %v5244
  %v5251 = vsel %vm69, %v5235, 0
  %v5254 = vsel %vm69, %v5236, 0
  %v5257 = vsel %vm69, %v5237, 0
  %5259 = vmatprep.subr.bf16.mxu0 0
  %5260 = vmatpush1.bf16.msra.mxu0 0
  %5261 = vmatprep.subr.bf16.mxu0 0
  %5262 = vmatpush1.bf16.msra.mxu0 0
  %5263 = vmatprep.subr.bf16.mxu0 0
  %5264 = vmatpush1.bf16.msra.mxu0 0
  %5265 = vmatprep.subr.bf16.mxu0 0
  %5266 = vmatpush1.bf16.msra.mxu0 0
  %5267 = vmatprep.subr.bf16.mxu0 0
  %5268 = vmatpush1.bf16.msra.mxu0 0
  %5269 = vmatprep.subr.bf16.mxu0 0
  %5270 = vmatpush1.bf16.msra.mxu0 0
  %5271 = vmatprep.subr.bf16.mxu0 0
  %5272 = vmatpush1.bf16.msra.mxu0 %v5247
  %5273 = vmatprep.subr.bf16.mxu0 0
  %5274 = vmatpush1.bf16.msra.mxu0 %v5246
  %5275 = vmatprep.subr.bf16.mxu0 0
  %5276 = vmatpush2.bf16.msra.mxu0 0
  %5277 = vmatprep.subr.bf16.mxu0 0
  %5278 = vmatpush2.bf16.msra.mxu0 0
  %5279 = vmatprep.subr.bf16.mxu0 0
  %5280 = vmatpush2.bf16.msra.mxu0 0
  %5281 = vmatprep.subr.bf16.mxu0 0
  %5282 = vmatpush2.bf16.msra.mxu0 0
  %5283 = vmatprep.subr.bf16.mxu0 0
  %5284 = vmatpush2.bf16.msra.mxu0 0
  %5285 = vmatprep.subr.bf16.mxu0 0
  %5286 = vmatpush2.bf16.msra.mxu0 0
  %5287 = vmatprep.subr.bf16.mxu0 0
  %5288 = vmatpush2.bf16.msra.mxu0 0
  %5289 = vmatprep.subr.bf16.mxu0 0
  %5290 = vmatpush2.bf16.msra.mxu0 0
  %5291 = vmatprep.mubr.bf16.mxu0 0
  %5292 = vmatmul.mubr.bf16.gmra.mxu0 %v5251
  %v5293 = vpop.f32.mrf.mxu0
  %v5294 = vadd.f32 %v4835, %v5293
  %v5295 = vpop.f32.mrf.mxu0
  %v5296 = vpop.f32.mrf.mxu0
  %v5297 = vadd.f32 %v4838, %v5296
  %v5298 = vpop.f32.mrf.mxu0
  %5299 = vmatprep.mubr.bf16.mxu0 0
  %5300 = vmatmul.mubr.bf16.gmra.mxu0 %v5254
  %v5301 = vpop.f32.mrf.mxu0
  %v5302 = vpop.f32.mrf.mxu0
  %v5303 = vpop.f32.mrf.mxu0
  %v5304 = vpop.f32.mrf.mxu0
  %5305 = vmatprep.mubr.bf16.mxu0 0
  %5306 = vmatmul.mubr.bf16.gmra.mxu0 %v5257
  %v5307 = vpop.f32.mrf.mxu0
  %v5308 = vadd.f32 %v4849, %v5307
  %v5309 = vpop.f32.mrf.mxu0
  %v5310 = vpop.f32.mrf.mxu0
  %v5311 = vadd.f32 %v4852, %v5310
  %v5312 = vpop.f32.mrf.mxu0
  %5313 = vdwg.mxu0
  %v5314 = vrot.slane %v4871, 1
  %v5315 = vrot.slane %v4748, 1
  %v5316 = vsel %vm1834, %v5314, %v5315
  %v5317 = vrot.slane %v4749, 1
  %v5318 = vsel %vm1834, %v5315, %v5317
  %v5319 = vrot.slane %v4750, 1
  %v5320 = vsel %vm1834, %v5317, %v5319
  %v5325 = vunpack.c.l.b16 %v4857
  %v5326 = vunpack.c.l.b16 %v4858
  %v5327 = vunpack.c.l.b16 %v4859
  %v5328 = vunpack.c.l.b16 %v4860
  %v5329 = vpack.c.b16 %v5326, %v5325
  %v5330 = vpack.c.b16 %v5328, %v5327
  %v5334 = vsel %vm69, %v5316, 0
  %v5337 = vsel %vm69, %v5318, 0
  %v5340 = vsel %vm69, %v5320, 0
  %5342 = vmatprep.subr.bf16.mxu0 0
  %5343 = vmatpush1.bf16.msra.mxu0 0
  %5344 = vmatprep.subr.bf16.mxu0 0
  %5345 = vmatpush1.bf16.msra.mxu0 0
  %5346 = vmatprep.subr.bf16.mxu0 0
  %5347 = vmatpush1.bf16.msra.mxu0 0
  %5348 = vmatprep.subr.bf16.mxu0 0
  %5349 = vmatpush1.bf16.msra.mxu0 0
  %5350 = vmatprep.subr.bf16.mxu0 0
  %5351 = vmatpush1.bf16.msra.mxu0 0
  %5352 = vmatprep.subr.bf16.mxu0 0
  %5353 = vmatpush1.bf16.msra.mxu0 0
  %5354 = vmatprep.subr.bf16.mxu0 0
  %5355 = vmatpush1.bf16.msra.mxu0 %v5330
  %5356 = vmatprep.subr.bf16.mxu0 0
  %5357 = vmatpush1.bf16.msra.mxu0 %v5329
  %5358 = vmatprep.subr.bf16.mxu0 0
  %5359 = vmatpush2.bf16.msra.mxu0 0
  %5360 = vmatprep.subr.bf16.mxu0 0
  %5361 = vmatpush2.bf16.msra.mxu0 0
  %5362 = vmatprep.subr.bf16.mxu0 0
  %5363 = vmatpush2.bf16.msra.mxu0 0
  %5364 = vmatprep.subr.bf16.mxu0 0
  %5365 = vmatpush2.bf16.msra.mxu0 0
  %5366 = vmatprep.subr.bf16.mxu0 0
  %5367 = vmatpush2.bf16.msra.mxu0 0
  %5368 = vmatprep.subr.bf16.mxu0 0
  %5369 = vmatpush2.bf16.msra.mxu0 0
  %5370 = vmatprep.subr.bf16.mxu0 0
  %5371 = vmatpush2.bf16.msra.mxu0 0
  %5372 = vmatprep.subr.bf16.mxu0 0
  %5373 = vmatpush2.bf16.msra.mxu0 0
  %5374 = vmatprep.mubr.bf16.mxu0 0
  %5375 = vmatmul.mubr.bf16.gmra.mxu0 %v5334
  %v5376 = vpop.f32.mrf.mxu0
  %v5377 = vadd.f32 %v4954, %v5376
  %v5378 = vpop.f32.mrf.mxu0
  %v5379 = vpop.f32.mrf.mxu0
  %v5380 = vadd.f32 %v4957, %v5379
  %v5381 = vpop.f32.mrf.mxu0
  %5382 = vmatprep.mubr.bf16.mxu0 0
  %5383 = vmatmul.mubr.bf16.gmra.mxu0 %v5337
  %v5384 = vpop.f32.mrf.mxu0
  %v5385 = vpop.f32.mrf.mxu0
  %v5386 = vpop.f32.mrf.mxu0
  %v5387 = vpop.f32.mrf.mxu0
  %5388 = vmatprep.mubr.bf16.mxu0 0
  %5389 = vmatmul.mubr.bf16.gmra.mxu0 %v5340
  %v5390 = vpop.f32.mrf.mxu0
  %v5391 = vadd.f32 %v4968, %v5390
  %v5392 = vpop.f32.mrf.mxu0
  %v5393 = vpop.f32.mrf.mxu0
  %v5394 = vadd.f32 %v4971, %v5393
  %v5395 = vpop.f32.mrf.mxu0
  %5396 = vdwg.mxu0
  %v5397 = vadd.f32 %v5132, %v5215
  %v5398 = vadd.f32 %v5135, %v5218
  %v5399 = vadd.f32 %v5146, %v5229
  %v5400 = vadd.f32 %v5149, %v5232
  %v5401 = vadd.f32 %v5294, %v5377
  %v5402 = vadd.f32 %v5297, %v5380
  %v5403 = vadd.f32 %v5308, %v5391
  %v5404 = vadd.f32 %v5311, %v5394
  %v5405 = vadd.f32 %v5397, %v5401
  %v5406 = vadd.f32 %v5398, %v5402
  %v5407 = vadd.f32 %v5399, %v5403
  %v5408 = vadd.f32 %v5400, %v5404
  %v5409 = vadd.f32 %v5405, %v5046
  %v5410 = vadd.f32 %v5406, %v5049
  %v5411 = vadd.f32 %v5407, %v5060
  %v5412 = vadd.f32 %v5408, %v5063
  %v5413 = vld [vmem:[%s10] sm:$0x1]
  %v5415 = vlaneseq
  %v5416 = vshrl.u32 %v5415, 7
  %v5417 = vsub.s32 0, %v5416
  %v5418 = vrot.slane %v5413, %v5417
  %v5420 = vadd.f32 %v5409, %v5418
  %v5421 = vadd.f32 %v5410, %v5418
  %v5422 = vadd.f32 %v5411, %v5418
  %v5423 = vadd.f32 %v5412, %v5418
  %v5424 = vmax.f32 %v5420, 0.0
  %v5425 = vmax.f32 %v5421, 0.0
  %v5426 = vmax.f32 %v5422, 0.0
  %v5427 = vmax.f32 %v5423, 0.0
  %5428 = vst.msk [vmem:[#allocation4 + $0x8] sm:$0xff] %vm69, %v5424
  %5429 = vst.msk [vmem:[#allocation4 + $0x10] sm:$0xff] %vm69, %v5425
  %5430 = vst.msk [vmem:[#allocation4 + $0x28] sm:$0xff] %vm69, %v5426
  %5431 = vst.msk [vmem:[#allocation4 + $0x30] sm:$0xff] %vm69, %v5427
  %s5432 = scalar_lea.vmem [#allocation4], 7
  %v5433 = vld [vmem:[%s5432] ss:$2 sm:$0xff]
  %s5434 = scalar_lea.vmem [#allocation4], 23
  %v5435 = vld [vmem:[%s5434] ss:$2 sm:$0xff]
  %s5436 = scalar_lea.vmem [#allocation4], 39
  %v5437 = vld [vmem:[%s5436] ss:$2 sm:$0xff]
  %s5438 = scalar_lea.vmem [#allocation4], 8
  %v5439 = vld [vmem:[%s5438] ss:$2 sm:$0xff]
  %s5440 = scalar_lea.vmem [#allocation4], 24
  %v5441 = vld [vmem:[%s5440] ss:$2 sm:$0xff]
  %s5442 = scalar_lea.vmem [#allocation4], 40
  %v5443 = vld [vmem:[%s5442] ss:$2 sm:$0xff]
  %s5444 = scalar_lea.vmem [#allocation4], 9
  %v5445 = vld [vmem:[%s5444] ss:$2 sm:$0xff]
  %s5446 = scalar_lea.vmem [#allocation4], 25
  %v5447 = vld [vmem:[%s5446] ss:$2 sm:$0xff]
  %s5448 = scalar_lea.vmem [#allocation4], 41
  %v5449 = vld [vmem:[%s5448] ss:$2 sm:$0xff]
  %v5450 = vmax.f32 %v5433, %v5439
  %v5451 = vmax.f32 %v5435, %v5441
  %v5452 = vmax.f32 %v5437, %v5443
  %v5453 = vmax.f32 %v5450, %v5445
  %v5454 = vmax.f32 %v5451, %v5447
  %v5455 = vmax.f32 %v5452, %v5449
  %v5456 = vpack.c.bf16 %v5454, %v5453
  %v5457 = vpack.c.bf16 %v5455, %v5455
  %v5458 = vld [vmem:[%s17] sm:$0xf]
  %v5459 = vld [vmem:[%s17 + $0x4] sm:$0xf]
  %v5460 = vld [vmem:[%s17 + $0x8] sm:$0xf]
  %v5461 = vld [vmem:[%s17 + $0xc] sm:$0xf]
  %v5466 = vunpack.c.l.b16 %v5458
  %v5467 = vunpack.c.l.b16 %v5459
  %v5468 = vunpack.c.l.b16 %v5460
  %v5469 = vunpack.c.l.b16 %v5461
  %v5470 = vpack.c.b16 %v5467, %v5466
  %v5471 = vpack.c.b16 %v5469, %v5468
  %v5475 = vsel %vm69, %v5456, 0
  %v5478 = vsel %vm69, %v5457, 0
  %5480 = vmatprep.subr.bf16.mxu0 0
  %5481 = vmatpush1.bf16.msra.mxu0 0
  %5482 = vmatprep.subr.bf16.mxu0 0
  %5483 = vmatpush1.bf16.msra.mxu0 0
  %5484 = vmatprep.subr.bf16.mxu0 0
  %5485 = vmatpush1.bf16.msra.mxu0 0
  %5486 = vmatprep.subr.bf16.mxu0 0
  %5487 = vmatpush1.bf16.msra.mxu0 0
  %5488 = vmatprep.subr.bf16.mxu0 0
  %5489 = vmatpush1.bf16.msra.mxu0 0
  %5490 = vmatprep.subr.bf16.mxu0 0
  %5491 = vmatpush1.bf16.msra.mxu0 0
  %5492 = vmatprep.subr.bf16.mxu0 0
  %5493 = vmatpush1.bf16.msra.mxu0 %v5471
  %5494 = vmatprep.subr.bf16.mxu0 0
  %5495 = vmatpush1.bf16.msra.mxu0 %v5470
  %5496 = vmatprep.subr.bf16.mxu0 0
  %5497 = vmatpush2.bf16.msra.mxu0 0
  %5498 = vmatprep.subr.bf16.mxu0 0
  %5499 = vmatpush2.bf16.msra.mxu0 0
  %5500 = vmatprep.subr.bf16.mxu0 0
  %5501 = vmatpush2.bf16.msra.mxu0 0
  %5502 = vmatprep.subr.bf16.mxu0 0
  %5503 = vmatpush2.bf16.msra.mxu0 0
  %5504 = vmatprep.subr.bf16.mxu0 0
  %5505 = vmatpush2.bf16.msra.mxu0 0
  %5506 = vmatprep.subr.bf16.mxu0 0
  %5507 = vmatpush2.bf16.msra.mxu0 0
  %5508 = vmatprep.subr.bf16.mxu0 0
  %5509 = vmatpush2.bf16.msra.mxu0 0
  %5510 = vmatprep.subr.bf16.mxu0 0
  %5511 = vmatpush2.bf16.msra.mxu0 0
  %5512 = vmatprep.mubr.bf16.mxu0 0
  %5513 = vmatmul.mubr.bf16.gmra.mxu0 %v5475
  %v5514 = vpop.f32.mrf.mxu0
  %v5515 = vadd.f32 0.0, %v5514
  %v5516 = vpop.f32.mrf.mxu0
  %v5517 = vpop.f32.mrf.mxu0
  %v5518 = vpop.f32.mrf.mxu0
  %5519 = vmatprep.mubr.bf16.mxu0 0
  %5520 = vmatmul.mubr.bf16.gmra.mxu0 %v5478
  %v5521 = vpop.f32.mrf.mxu0
  %v5522 = vadd.f32 0.0, %v5521
  %v5523 = vpop.f32.mrf.mxu0
  %v5524 = vpop.f32.mrf.mxu0
  %v5525 = vpop.f32.mrf.mxu0
  %5526 = vdwg.mxu0
  %s5527 = scalar_lea.vmem %s17, 16
  %v5528 = vld [vmem:[%s5527] sm:$0xf]
  %v5529 = vld [vmem:[%s5527 + $0x4] sm:$0xf]
  %v5530 = vld [vmem:[%s5527 + $0x8] sm:$0xf]
  %v5531 = vld [vmem:[%s5527 + $0xc] sm:$0xf]
  %v5536 = vunpack.c.l.b16 %v5528
  %v5537 = vunpack.c.l.b16 %v5529
  %v5538 = vunpack.c.l.b16 %v5530
  %v5539 = vunpack.c.l.b16 %v5531
  %v5540 = vpack.c.b16 %v5537, %v5536
  %v5541 = vpack.c.b16 %v5539, %v5538
  %5544 = vmatprep.subr.bf16.mxu0 0
  %5545 = vmatpush1.bf16.msra.mxu0 0
  %5546 = vmatprep.subr.bf16.mxu0 0
  %5547 = vmatpush1.bf16.msra.mxu0 0
  %5548 = vmatprep.subr.bf16.mxu0 0
  %5549 = vmatpush1.bf16.msra.mxu0 0
  %5550 = vmatprep.subr.bf16.mxu0 0
  %5551 = vmatpush1.bf16.msra.mxu0 0
  %5552 = vmatprep.subr.bf16.mxu0 0
  %5553 = vmatpush1.bf16.msra.mxu0 0
  %5554 = vmatprep.subr.bf16.mxu0 0
  %5555 = vmatpush1.bf16.msra.mxu0 0
  %5556 = vmatprep.subr.bf16.mxu0 0
  %5557 = vmatpush1.bf16.msra.mxu0 %v5541
  %5558 = vmatprep.subr.bf16.mxu0 0
  %5559 = vmatpush1.bf16.msra.mxu0 %v5540
  %5560 = vmatprep.subr.bf16.mxu0 0
  %5561 = vmatpush2.bf16.msra.mxu0 0
  %5562 = vmatprep.subr.bf16.mxu0 0
  %5563 = vmatpush2.bf16.msra.mxu0 0
  %5564 = vmatprep.subr.bf16.mxu0 0
  %5565 = vmatpush2.bf16.msra.mxu0 0
  %5566 = vmatprep.subr.bf16.mxu0 0
  %5567 = vmatpush2.bf16.msra.mxu0 0
  %5568 = vmatprep.subr.bf16.mxu0 0
  %5569 = vmatpush2.bf16.msra.mxu0 0
  %5570 = vmatprep.subr.bf16.mxu0 0
  %5571 = vmatpush2.bf16.msra.mxu0 0
  %5572 = vmatprep.subr.bf16.mxu0 0
  %5573 = vmatpush2.bf16.msra.mxu0 0
  %5574 = vmatprep.subr.bf16.mxu0 0
  %5575 = vmatpush2.bf16.msra.mxu0 0
  %5576 = vmatprep.mubr.bf16.mxu0 0
  %5577 = vmatmul.mubr.bf16.gmra.mxu0 %v5475
  %v5578 = vpop.f32.mrf.mxu0
  %v5579 = vadd.f32 0.0, %v5578
  %v5580 = vpop.f32.mrf.mxu0
  %v5581 = vpop.f32.mrf.mxu0
  %v5582 = vpop.f32.mrf.mxu0
  %5583 = vmatprep.mubr.bf16.mxu0 0
  %5584 = vmatmul.mubr.bf16.gmra.mxu0 %v5478
  %v5585 = vpop.f32.mrf.mxu0
  %v5586 = vadd.f32 0.0, %v5585
  %v5587 = vpop.f32.mrf.mxu0
  %v5588 = vpop.f32.mrf.mxu0
  %v5589 = vpop.f32.mrf.mxu0
  %5590 = vdwg.mxu0
  %v5591 = vmax.f32 %v5515, %v5579
  %v5592 = vmax.f32 %v5522, %v5586
  %s5593 = scalar_lea.vmem %s17, 32
  %v5594 = vld [vmem:[%s5593] sm:$0xf]
  %v5595 = vld [vmem:[%s5593 + $0x4] sm:$0xf]
  %v5596 = vld [vmem:[%s5593 + $0x8] sm:$0xf]
  %v5597 = vld [vmem:[%s5593 + $0xc] sm:$0xf]
  %v5602 = vunpack.c.l.b16 %v5594
  %v5603 = vunpack.c.l.b16 %v5595
  %v5604 = vunpack.c.l.b16 %v5596
  %v5605 = vunpack.c.l.b16 %v5597
  %v5606 = vpack.c.b16 %v5603, %v5602
  %v5607 = vpack.c.b16 %v5605, %v5604
  %5610 = vmatprep.subr.bf16.mxu0 0
  %5611 = vmatpush1.bf16.msra.mxu0 0
  %5612 = vmatprep.subr.bf16.mxu0 0
  %5613 = vmatpush1.bf16.msra.mxu0 0
  %5614 = vmatprep.subr.bf16.mxu0 0
  %5615 = vmatpush1.bf16.msra.mxu0 0
  %5616 = vmatprep.subr.bf16.mxu0 0
  %5617 = vmatpush1.bf16.msra.mxu0 0
  %5618 = vmatprep.subr.bf16.mxu0 0
  %5619 = vmatpush1.bf16.msra.mxu0 0
  %5620 = vmatprep.subr.bf16.mxu0 0
  %5621 = vmatpush1.bf16.msra.mxu0 0
  %5622 = vmatprep.subr.bf16.mxu0 0
  %5623 = vmatpush1.bf16.msra.mxu0 %v5607
  %5624 = vmatprep.subr.bf16.mxu0 0
  %5625 = vmatpush1.bf16.msra.mxu0 %v5606
  %5626 = vmatprep.subr.bf16.mxu0 0
  %5627 = vmatpush2.bf16.msra.mxu0 0
  %5628 = vmatprep.subr.bf16.mxu0 0
  %5629 = vmatpush2.bf16.msra.mxu0 0
  %5630 = vmatprep.subr.bf16.mxu0 0
  %5631 = vmatpush2.bf16.msra.mxu0 0
  %5632 = vmatprep.subr.bf16.mxu0 0
  %5633 = vmatpush2.bf16.msra.mxu0 0
  %5634 = vmatprep.subr.bf16.mxu0 0
  %5635 = vmatpush2.bf16.msra.mxu0 0
  %5636 = vmatprep.subr.bf16.mxu0 0
  %5637 = vmatpush2.bf16.msra.mxu0 0
  %5638 = vmatprep.subr.bf16.mxu0 0
  %5639 = vmatpush2.bf16.msra.mxu0 0
  %5640 = vmatprep.subr.bf16.mxu0 0
  %5641 = vmatpush2.bf16.msra.mxu0 0
  %5642 = vmatprep.mubr.bf16.mxu0 0
  %5643 = vmatmul.mubr.bf16.gmra.mxu0 %v5475
  %v5644 = vpop.f32.mrf.mxu0
  %v5645 = vadd.f32 0.0, %v5644
  %v5646 = vpop.f32.mrf.mxu0
  %v5647 = vpop.f32.mrf.mxu0
  %v5648 = vpop.f32.mrf.mxu0
  %5649 = vmatprep.mubr.bf16.mxu0 0
  %5650 = vmatmul.mubr.bf16.gmra.mxu0 %v5478
  %v5651 = vpop.f32.mrf.mxu0
  %v5652 = vadd.f32 0.0, %v5651
  %v5653 = vpop.f32.mrf.mxu0
  %v5654 = vpop.f32.mrf.mxu0
  %v5655 = vpop.f32.mrf.mxu0
  %5656 = vdwg.mxu0
  %v5657 = vmax.f32 %v5591, %v5645
  %v5658 = vmax.f32 %v5592, %v5652
  %v5659 = vpack.c.bf16 %v5657, %v5657
  %5660 = vst.msk [vmem:[#allocation7 + $0x4] sm:$0xf] %vm84, %v5659
  %v5661 = vpack.c.bf16 %v5658, %v5658
  %5662 = vst.msk [vmem:[#allocation7 + $0x10] sm:$0xf] %vm84, %v5661
  %v5663 = vld [vmem:[#allocation7] sm:$0x8]
  %v5664 = vld [vmem:[#allocation7 + $0x4] sm:$0xf]
  %v5665 = vld [vmem:[#allocation7 + $0x8] sm:$0xf]
  %v5666 = vld [vmem:[#allocation7 + $0xc] sm:$0xf]
  %v5667 = vld [vmem:[#allocation7 + $0x10] sm:$0x7]
  %v5668 = vld [vmem:[%s4] sm:$0xf]
  %v5669 = vld [vmem:[%s4 + $0x4] sm:$0xf]
  %v5670 = vld [vmem:[#allocation7 + $0x10] sm:$0xf]
  %s5671 = scalar_lea.vmem %s4, 8
  %v5672 = vld [vmem:[%s5671] sm:$0xf]
  %v5673 = vld [vmem:[%s5671 + $0x4] sm:$0xf]
  %v5679 = vunpack.c.l.b16 %v5663
  %v5680 = vunpack.c.l.b16 %v5664
  %v5681 = vunpack.c.l.b16 %v5665
  %v5682 = vunpack.c.l.b16 %v5666
  %v5683 = vunpack.c.l.b16 %v5670
  %v5684 = vpack.c.b16 %v5680, %v5679
  %v5685 = vpack.c.b16 %v5682, %v5681
  %v5686 = vpack.c.b16 %v5683, %v5683
  %v5688 = vshrl.u32 %v5684, 16
  %v5690 = vrot.slane %v5688, 3
  %v5691 = vshll.u32 %v5684, 16
  %v5693 = vrot.slane %v5691, 4
  %v5694 = vor.u32 %v5690, %v5693
  %v5696 = vshrl.u32 %v5685, 16
  %v5698 = vrot.slane %v5696, 3
  %v5699 = vshll.u32 %v5685, 16
  %v5701 = vrot.slane %v5699, 4
  %v5702 = vor.u32 %v5698, %v5701
  %v5703 = vsel %vm436, %v5694, %v5702
  %v5705 = vshrl.u32 %v5686, 16
  %v5707 = vrot.slane %v5705, 3
  %v5708 = vshll.u32 %v5686, 16
  %v5710 = vrot.slane %v5708, 4
  %v5711 = vor.u32 %v5707, %v5710
  %v5712 = vsel %vm436, %v5702, %v5711
  %v5715 = vunpack.c.l.b16 %v5672
  %v5716 = vunpack.c.l.b16 %v5673
  %v5717 = vpack.c.b16 %v5716, %v5715
  %vm5719 = vcmask 130048
  %v5721 = vsel %vm5719, %v5703, 0
  %v5724 = vsel %vm5719, %v5712, 0
  %5726 = vmatprep.subr.bf16.mxu0 0
  %5727 = vmatpush1.bf16.msra.mxu0 0
  %5728 = vmatprep.subr.bf16.mxu0 0
  %5729 = vmatpush1.bf16.msra.mxu0 0
  %5730 = vmatprep.subr.bf16.mxu0 0
  %5731 = vmatpush1.bf16.msra.mxu0 0
  %5732 = vmatprep.subr.bf16.mxu0 0
  %5733 = vmatpush1.bf16.msra.mxu0 0
  %5734 = vmatprep.subr.bf16.mxu0 0
  %5735 = vmatpush1.bf16.msra.mxu0 0
  %5736 = vmatprep.subr.bf16.mxu0 0
  %5737 = vmatpush1.bf16.msra.mxu0 0
  %5738 = vmatprep.subr.bf16.mxu0 0
  %5739 = vmatpush1.bf16.msra.mxu0 0
  %5740 = vmatprep.subr.bf16.mxu0 0
  %5741 = vmatpush1.bf16.msra.mxu0 %v5717
  %5742 = vmatprep.subr.bf16.mxu0 0
  %5743 = vmatpush2.bf16.msra.mxu0 0
  %5744 = vmatprep.subr.bf16.mxu0 0
  %5745 = vmatpush2.bf16.msra.mxu0 0
  %5746 = vmatprep.subr.bf16.mxu0 0
  %5747 = vmatpush2.bf16.msra.mxu0 0
  %5748 = vmatprep.subr.bf16.mxu0 0
  %5749 = vmatpush2.bf16.msra.mxu0 0
  %5750 = vmatprep.subr.bf16.mxu0 0
  %5751 = vmatpush2.bf16.msra.mxu0 0
  %5752 = vmatprep.subr.bf16.mxu0 0
  %5753 = vmatpush2.bf16.msra.mxu0 0
  %5754 = vmatprep.subr.bf16.mxu0 0
  %5755 = vmatpush2.bf16.msra.mxu0 0
  %5756 = vmatprep.subr.bf16.mxu0 0
  %5757 = vmatpush2.bf16.msra.mxu0 0
  %5758 = vmatprep.mubr.bf16.mxu0 0
  %5759 = vmatmul.mubr.bf16.gmra.mxu0 %v5721
  %v5760 = vpop.f32.mrf.mxu0
  %v5761 = vadd.f32 0.0, %v5760
  %v5762 = vpop.f32.mrf.mxu0
  %v5763 = vpop.f32.mrf.mxu0
  %v5764 = vpop.f32.mrf.mxu0
  %5765 = vmatprep.mubr.bf16.mxu0 0
  %5766 = vmatmul.mubr.bf16.gmra.mxu0 %v5724
  %v5767 = vpop.f32.mrf.mxu0
  %v5768 = vpop.f32.mrf.mxu0
  %v5769 = vpop.f32.mrf.mxu0
  %v5770 = vadd.f32 0.0, %v5769
  %v5771 = vpop.f32.mrf.mxu0
  %5772 = vdwg.mxu0
  %s5773 = scalar_lea.vmem %s4, 16
  %v5774 = vld [vmem:[%s5773] sm:$0xf]
  %v5775 = vld [vmem:[%s5773 + $0x4] sm:$0xf]
  %v5776 = vld [vmem:[#allocation7 + $0x4] sm:$0xf]
  %v5777 = vld [vmem:[#allocation7 + $0x8] sm:$0xf]
  %v5778 = vld [vmem:[#allocation7 + $0xc] sm:$0xf]
  %v5779 = vld [vmem:[#allocation7 + $0x10] sm:$0xf]
  %v5780 = vld [vmem:[#allocation7 + $0x14] sm:$0x1]
  %s5781 = scalar_lea.vmem %s4, 24
  %v5782 = vld [vmem:[%s5781] sm:$0xf]
  %v5783 = vld [vmem:[%s5781 + $0x4] sm:$0xf]
  %v5789 = vunpack.c.l.b16 %v5776
  %v5790 = vunpack.c.l.b16 %v5777
  %v5791 = vunpack.c.l.b16 %v5778
  %v5792 = vunpack.c.l.b16 %v5779
  %v5793 = vunpack.c.l.b16 %v5780
  %v5794 = vpack.c.b16 %v5790, %v5789
  %v5795 = vpack.c.b16 %v5792, %v5791
  %v5796 = vpack.c.b16 %v5793, %v5793
  %v5798 = vshrl.u32 %v5794, 16
  %v5800 = vshll.u32 %v5794, 16
  %v5802 = vrot.slane %v5800, 1
  %v5803 = vor.u32 %v5798, %v5802
  %v5805 = vshll.u32 %v5795, 16
  %v5807 = vrot.slane %v5805, 1
  %v5808 = vsel %vm715, %v5803, %v5807
  %v5809 = vshrl.u32 %v5795, 16
  %v5811 = vor.u32 %v5809, %v5807
  %v5813 = vshll.u32 %v5796, 16
  %v5815 = vrot.slane %v5813, 1
  %v5816 = vsel %vm715, %v5811, %v5815
  %v5819 = vunpack.c.l.b16 %v5782
  %v5820 = vunpack.c.l.b16 %v5783
  %v5821 = vpack.c.b16 %v5820, %v5819
  %v5824 = vsel %vm5719, %v5808, 0
  %v5827 = vsel %vm5719, %v5816, 0
  %5829 = vmatprep.subr.bf16.mxu0 0
  %5830 = vmatpush1.bf16.msra.mxu0 0
  %5831 = vmatprep.subr.bf16.mxu0 0
  %5832 = vmatpush1.bf16.msra.mxu0 0
  %5833 = vmatprep.subr.bf16.mxu0 0
  %5834 = vmatpush1.bf16.msra.mxu0 0
  %5835 = vmatprep.subr.bf16.mxu0 0
  %5836 = vmatpush1.bf16.msra.mxu0 0
  %5837 = vmatprep.subr.bf16.mxu0 0
  %5838 = vmatpush1.bf16.msra.mxu0 0
  %5839 = vmatprep.subr.bf16.mxu0 0
  %5840 = vmatpush1.bf16.msra.mxu0 0
  %5841 = vmatprep.subr.bf16.mxu0 0
  %5842 = vmatpush1.bf16.msra.mxu0 0
  %5843 = vmatprep.subr.bf16.mxu0 0
  %5844 = vmatpush1.bf16.msra.mxu0 %v5821
  %5845 = vmatprep.subr.bf16.mxu0 0
  %5846 = vmatpush2.bf16.msra.mxu0 0
  %5847 = vmatprep.subr.bf16.mxu0 0
  %5848 = vmatpush2.bf16.msra.mxu0 0
  %5849 = vmatprep.subr.bf16.mxu0 0
  %5850 = vmatpush2.bf16.msra.mxu0 0
  %5851 = vmatprep.subr.bf16.mxu0 0
  %5852 = vmatpush2.bf16.msra.mxu0 0
  %5853 = vmatprep.subr.bf16.mxu0 0
  %5854 = vmatpush2.bf16.msra.mxu0 0
  %5855 = vmatprep.subr.bf16.mxu0 0
  %5856 = vmatpush2.bf16.msra.mxu0 0
  %5857 = vmatprep.subr.bf16.mxu0 0
  %5858 = vmatpush2.bf16.msra.mxu0 0
  %5859 = vmatprep.subr.bf16.mxu0 0
  %5860 = vmatpush2.bf16.msra.mxu0 0
  %5861 = vmatprep.mubr.bf16.mxu0 0
  %5862 = vmatmul.mubr.bf16.gmra.mxu0 %v5824
  %v5863 = vpop.f32.mrf.mxu0
  %v5864 = vadd.f32 0.0, %v5863
  %v5865 = vpop.f32.mrf.mxu0
  %v5866 = vpop.f32.mrf.mxu0
  %v5867 = vpop.f32.mrf.mxu0
  %5868 = vmatprep.mubr.bf16.mxu0 0
  %5869 = vmatmul.mubr.bf16.gmra.mxu0 %v5827
  %v5870 = vpop.f32.mrf.mxu0
  %v5871 = vpop.f32.mrf.mxu0
  %v5872 = vpop.f32.mrf.mxu0
  %v5873 = vadd.f32 0.0, %v5872
  %v5874 = vpop.f32.mrf.mxu0
  %5875 = vdwg.mxu0
  %v5876 = vld [vmem:[#allocation7 + $0x4] sm:$0xe]
  %s5877 = scalar_lea.vmem %s4, 32
  %v5878 = vld [vmem:[%s5877] sm:$0xf]
  %v5879 = vld [vmem:[%s5877 + $0x4] sm:$0xf]
  %v5881 = vunpack.c.l.b16 %v5876
  %v5882 = vpack.c.b16 %v5790, %v5881
  %v5883 = vrot.slane %v5882, 1
  %v5884 = vrot.slane %v5795, 1
  %v5885 = vsel %vm1834, %v5883, %v5884
  %v5886 = vrot.slane %v5796, 1
  %v5887 = vsel %vm1834, %v5884, %v5886
  %v5890 = vunpack.c.l.b16 %v5878
  %v5891 = vunpack.c.l.b16 %v5879
  %v5892 = vpack.c.b16 %v5891, %v5890
  %v5895 = vsel %vm5719, %v5885, 0
  %v5898 = vsel %vm5719, %v5887, 0
  %5900 = vmatprep.subr.bf16.mxu0 0
  %5901 = vmatpush1.bf16.msra.mxu0 0
  %5902 = vmatprep.subr.bf16.mxu0 0
  %5903 = vmatpush1.bf16.msra.mxu0 0
  %5904 = vmatprep.subr.bf16.mxu0 0
  %5905 = vmatpush1.bf16.msra.mxu0 0
  %5906 = vmatprep.subr.bf16.mxu0 0
  %5907 = vmatpush1.bf16.msra.mxu0 0
  %5908 = vmatprep.subr.bf16.mxu0 0
  %5909 = vmatpush1.bf16.msra.mxu0 0
  %5910 = vmatprep.subr.bf16.mxu0 0
  %5911 = vmatpush1.bf16.msra.mxu0 0
  %5912 = vmatprep.subr.bf16.mxu0 0
  %5913 = vmatpush1.bf16.msra.mxu0 0
  %5914 = vmatprep.subr.bf16.mxu0 0
  %5915 = vmatpush1.bf16.msra.mxu0 %v5892
  %5916 = vmatprep.subr.bf16.mxu0 0
  %5917 = vmatpush2.bf16.msra.mxu0 0
  %5918 = vmatprep.subr.bf16.mxu0 0
  %5919 = vmatpush2.bf16.msra.mxu0 0
  %5920 = vmatprep.subr.bf16.mxu0 0
  %5921 = vmatpush2.bf16.msra.mxu0 0
  %5922 = vmatprep.subr.bf16.mxu0 0
  %5923 = vmatpush2.bf16.msra.mxu0 0
  %5924 = vmatprep.subr.bf16.mxu0 0
  %5925 = vmatpush2.bf16.msra.mxu0 0
  %5926 = vmatprep.subr.bf16.mxu0 0
  %5927 = vmatpush2.bf16.msra.mxu0 0
  %5928 = vmatprep.subr.bf16.mxu0 0
  %5929 = vmatpush2.bf16.msra.mxu0 0
  %5930 = vmatprep.subr.bf16.mxu0 0
  %5931 = vmatpush2.bf16.msra.mxu0 0
  %5932 = vmatprep.mubr.bf16.mxu0 0
  %5933 = vmatmul.mubr.bf16.gmra.mxu0 %v5895
  %v5934 = vpop.f32.mrf.mxu0
  %v5935 = vadd.f32 0.0, %v5934
  %v5936 = vpop.f32.mrf.mxu0
  %v5937 = vpop.f32.mrf.mxu0
  %v5938 = vpop.f32.mrf.mxu0
  %5939 = vmatprep.mubr.bf16.mxu0 0
  %5940 = vmatmul.mubr.bf16.gmra.mxu0 %v5898
  %v5941 = vpop.f32.mrf.mxu0
  %v5942 = vpop.f32.mrf.mxu0
  %v5943 = vpop.f32.mrf.mxu0
  %v5944 = vadd.f32 0.0, %v5943
  %v5945 = vpop.f32.mrf.mxu0
  %5946 = vdwg.mxu0
  %v5948 = vunpack.c.l.b16 %v5667
  %v5949 = vpack.c.b16 %v5948, %v5948
  %v5950 = vrot.slane %v5684, 3
  %v5951 = vrot.slane %v5685, 3
  %v5952 = vsel %vm1509, %v5950, %v5951
  %v5953 = vrot.slane %v5949, 3
  %v5954 = vsel %vm1509, %v5951, %v5953
  %v5957 = vunpack.c.l.b16 %v5668
  %v5958 = vunpack.c.l.b16 %v5669
  %v5959 = vpack.c.b16 %v5958, %v5957
  %v5962 = vsel %vm5719, %v5952, 0
  %v5965 = vsel %vm5719, %v5954, 0
  %5967 = vmatprep.subr.bf16.mxu0 0
  %5968 = vmatpush1.bf16.msra.mxu0 0
  %5969 = vmatprep.subr.bf16.mxu0 0
  %5970 = vmatpush1.bf16.msra.mxu0 0
  %5971 = vmatprep.subr.bf16.mxu0 0
  %5972 = vmatpush1.bf16.msra.mxu0 0
  %5973 = vmatprep.subr.bf16.mxu0 0
  %5974 = vmatpush1.bf16.msra.mxu0 0
  %5975 = vmatprep.subr.bf16.mxu0 0
  %5976 = vmatpush1.bf16.msra.mxu0 0
  %5977 = vmatprep.subr.bf16.mxu0 0
  %5978 = vmatpush1.bf16.msra.mxu0 0
  %5979 = vmatprep.subr.bf16.mxu0 0
  %5980 = vmatpush1.bf16.msra.mxu0 0
  %5981 = vmatprep.subr.bf16.mxu0 0
  %5982 = vmatpush1.bf16.msra.mxu0 %v5959
  %5983 = vmatprep.subr.bf16.mxu0 0
  %5984 = vmatpush2.bf16.msra.mxu0 0
  %5985 = vmatprep.subr.bf16.mxu0 0
  %5986 = vmatpush2.bf16.msra.mxu0 0
  %5987 = vmatprep.subr.bf16.mxu0 0
  %5988 = vmatpush2.bf16.msra.mxu0 0
  %5989 = vmatprep.subr.bf16.mxu0 0
  %5990 = vmatpush2.bf16.msra.mxu0 0
  %5991 = vmatprep.subr.bf16.mxu0 0
  %5992 = vmatpush2.bf16.msra.mxu0 0
  %5993 = vmatprep.subr.bf16.mxu0 0
  %5994 = vmatpush2.bf16.msra.mxu0 0
  %5995 = vmatprep.subr.bf16.mxu0 0
  %5996 = vmatpush2.bf16.msra.mxu0 0
  %5997 = vmatprep.subr.bf16.mxu0 0
  %5998 = vmatpush2.bf16.msra.mxu0 0
  %5999 = vmatprep.mubr.bf16.mxu0 0
  %6000 = vmatmul.mubr.bf16.gmra.mxu0 %v5962
  %v6001 = vpop.f32.mrf.mxu0
  %v6002 = vadd.f32 %v5761, %v6001
  %v6003 = vpop.f32.mrf.mxu0
  %v6004 = vpop.f32.mrf.mxu0
  %v6005 = vpop.f32.mrf.mxu0
  %6006 = vmatprep.mubr.bf16.mxu0 0
  %6007 = vmatmul.mubr.bf16.gmra.mxu0 %v5965
  %v6008 = vpop.f32.mrf.mxu0
  %v6009 = vpop.f32.mrf.mxu0
  %v6010 = vpop.f32.mrf.mxu0
  %v6011 = vadd.f32 %v5770, %v6010
  %v6012 = vpop.f32.mrf.mxu0
  %6013 = vdwg.mxu0
  %v6014 = vpack.c.b16 %v5681, %v5680
  %v6015 = vpack.c.b16 %v5683, %v5682
  %v6018 = vunpack.c.l.b16 %v5774
  %v6019 = vunpack.c.l.b16 %v5775
  %v6020 = vpack.c.b16 %v6019, %v6018
  %v6023 = vsel %vm5719, %v6014, 0
  %v6026 = vsel %vm5719, %v6015, 0
  %6028 = vmatprep.subr.bf16.mxu0 0
  %6029 = vmatpush1.bf16.msra.mxu0 0
  %6030 = vmatprep.subr.bf16.mxu0 0
  %6031 = vmatpush1.bf16.msra.mxu0 0
  %6032 = vmatprep.subr.bf16.mxu0 0
  %6033 = vmatpush1.bf16.msra.mxu0 0
  %6034 = vmatprep.subr.bf16.mxu0 0
  %6035 = vmatpush1.bf16.msra.mxu0 0
  %6036 = vmatprep.subr.bf16.mxu0 0
  %6037 = vmatpush1.bf16.msra.mxu0 0
  %6038 = vmatprep.subr.bf16.mxu0 0
  %6039 = vmatpush1.bf16.msra.mxu0 0
  %6040 = vmatprep.subr.bf16.mxu0 0
  %6041 = vmatpush1.bf16.msra.mxu0 0
  %6042 = vmatprep.subr.bf16.mxu0 0
  %6043 = vmatpush1.bf16.msra.mxu0 %v6020
  %6044 = vmatprep.subr.bf16.mxu0 0
  %6045 = vmatpush2.bf16.msra.mxu0 0
  %6046 = vmatprep.subr.bf16.mxu0 0
  %6047 = vmatpush2.bf16.msra.mxu0 0
  %6048 = vmatprep.subr.bf16.mxu0 0
  %6049 = vmatpush2.bf16.msra.mxu0 0
  %6050 = vmatprep.subr.bf16.mxu0 0
  %6051 = vmatpush2.bf16.msra.mxu0 0
  %6052 = vmatprep.subr.bf16.mxu0 0
  %6053 = vmatpush2.bf16.msra.mxu0 0
  %6054 = vmatprep.subr.bf16.mxu0 0
  %6055 = vmatpush2.bf16.msra.mxu0 0
  %6056 = vmatprep.subr.bf16.mxu0 0
  %6057 = vmatpush2.bf16.msra.mxu0 0
  %6058 = vmatprep.subr.bf16.mxu0 0
  %6059 = vmatpush2.bf16.msra.mxu0 0
  %6060 = vmatprep.mubr.bf16.mxu0 0
  %6061 = vmatmul.mubr.bf16.gmra.mxu0 %v6023
  %v6062 = vpop.f32.mrf.mxu0
  %v6063 = vadd.f32 %v5864, %v6062
  %v6064 = vpop.f32.mrf.mxu0
  %v6065 = vpop.f32.mrf.mxu0
  %v6066 = vpop.f32.mrf.mxu0
  %6067 = vmatprep.mubr.bf16.mxu0 0
  %6068 = vmatmul.mubr.bf16.gmra.mxu0 %v6026
  %v6069 = vpop.f32.mrf.mxu0
  %v6070 = vpop.f32.mrf.mxu0
  %v6071 = vpop.f32.mrf.mxu0
  %v6072 = vadd.f32 %v5873, %v6071
  %v6073 = vpop.f32.mrf.mxu0
  %6074 = vdwg.mxu0
  %v6075 = vadd.f32 %v6002, %v6063
  %v6076 = vadd.f32 %v6011, %v6072
  %v6077 = vadd.f32 %v6075, %v5935
  %v6078 = vadd.f32 %v6076, %v5944
  %v6079 = vld [vmem:[%s11] sm:$0x1]
  %v6081 = vlaneseq
  %v6082 = vshrl.u32 %v6081, 7
  %v6083 = vsub.s32 0, %v6082
  %v6084 = vrot.slane %v6079, %v6083
  %v6086 = vadd.f32 %v6077, %v6084
  %v6087 = vadd.f32 %v6078, %v6084
  %v6088 = vmax.f32 %v6086, 0.0
  %v6089 = vmax.f32 %v6087, 0.0
  %v6090 = vpack.c.bf16 %v6088, %v6088
  %6091 = vst.msk [vmem:[#allocation8 + $0x4] sm:$0xf] %vm89, %v6090
  %v6092 = vpack.c.bf16 %v6089, %v6089
  %6093 = vst.msk [vmem:[#allocation8 + $0x10] sm:$0xf] %vm89, %v6092
  %v6094 = vld [vmem:[#allocation8] sm:$0xc]
  %v6095 = vld [vmem:[#allocation8 + $0x4] sm:$0xf]
  %v6096 = vld [vmem:[#allocation8 + $0x8] sm:$0xf]
  %v6097 = vld [vmem:[#allocation8 + $0xc] sm:$0xf]
  %v6098 = vld [vmem:[#allocation8 + $0x10] sm:$0x3]
  %v6099 = vld [vmem:[%s5] sm:$0x3]
  %v6100 = vld [vmem:[#allocation8 + $0x10] sm:$0x7]
  %s6101 = scalar_lea.vmem %s5, 2
  %v6102 = vld [vmem:[%s6101] sm:$0x3]
  %v6108 = vunpack.c.l.b16 %v6094
  %v6109 = vunpack.c.l.b16 %v6095
  %v6110 = vunpack.c.l.b16 %v6096
  %v6111 = vunpack.c.l.b16 %v6097
  %v6112 = vunpack.c.l.b16 %v6100
  %v6113 = vpack.c.b16 %v6109, %v6108
  %v6114 = vpack.c.b16 %v6111, %v6110
  %v6115 = vpack.c.b16 %v6112, %v6112
  %v6117 = vshrl.u32 %v6113, 16
  %v6119 = vrot.slane %v6117, 2
  %v6120 = vshll.u32 %v6113, 16
  %v6122 = vrot.slane %v6120, 3
  %v6123 = vor.u32 %v6119, %v6122
  %v6125 = vshrl.u32 %v6114, 16
  %v6127 = vrot.slane %v6125, 2
  %v6128 = vshll.u32 %v6114, 16
  %v6130 = vrot.slane %v6128, 3
  %v6131 = vor.u32 %v6127, %v6130
  %v6132 = vsel %vm175, %v6123, %v6131
  %v6134 = vshrl.u32 %v6115, 16
  %v6136 = vrot.slane %v6134, 2
  %v6137 = vshll.u32 %v6115, 16
  %v6139 = vrot.slane %v6137, 3
  %v6140 = vor.u32 %v6136, %v6139
  %v6141 = vsel %vm175, %v6131, %v6140
  %vm6142 = vcmask 31744
  %v6144 = vsel %vm6142, %v6132, 0
  %v6147 = vsel %vm6142, %v6141, 0
  %vm6149 = vcmask 1041408
  %v6151 = vsel %vm6149, %v6102, 0
  %6153 = vmatprep.subr.bf16.mxu0 0
  %6154 = vmatpush1.bf16.msra.mxu0 0
  %6155 = vmatprep.subr.bf16.mxu0 0
  %6156 = vmatpush1.bf16.msra.mxu0 0
  %6157 = vmatprep.subr.bf16.mxu0 0
  %6158 = vmatpush1.bf16.msra.mxu0 0
  %6159 = vmatprep.subr.bf16.mxu0 0
  %6160 = vmatpush1.bf16.msra.mxu0 0
  %6161 = vmatprep.subr.bf16.mxu0 0
  %6162 = vmatpush1.bf16.msra.mxu0 0
  %6163 = vmatprep.subr.bf16.mxu0 0
  %6164 = vmatpush1.bf16.msra.mxu0 0
  %6165 = vmatprep.subr.bf16.mxu0 0
  %6166 = vmatpush1.bf16.msra.mxu0 0
  %6167 = vmatprep.subr.bf16.mxu0 0
  %6168 = vmatpush1.bf16.msra.mxu0 %v6151
  %6169 = vmatprep.subr.bf16.mxu0 0
  %6170 = vmatpush2.bf16.msra.mxu0 0
  %6171 = vmatprep.subr.bf16.mxu0 0
  %6172 = vmatpush2.bf16.msra.mxu0 0
  %6173 = vmatprep.subr.bf16.mxu0 0
  %6174 = vmatpush2.bf16.msra.mxu0 0
  %6175 = vmatprep.subr.bf16.mxu0 0
  %6176 = vmatpush2.bf16.msra.mxu0 0
  %6177 = vmatprep.subr.bf16.mxu0 0
  %6178 = vmatpush2.bf16.msra.mxu0 0
  %6179 = vmatprep.subr.bf16.mxu0 0
  %6180 = vmatpush2.bf16.msra.mxu0 0
  %6181 = vmatprep.subr.bf16.mxu0 0
  %6182 = vmatpush2.bf16.msra.mxu0 0
  %6183 = vmatprep.subr.bf16.mxu0 0
  %6184 = vmatpush2.bf16.msra.mxu0 0
  %6185 = vmatprep.mubr.bf16.mxu0 0
  %6186 = vmatmul.mubr.bf16.gmra.mxu0 %v6144
  %v6187 = vpop.f32.mrf.mxu0
  %v6188 = vadd.f32 0.0, %v6187
  %v6189 = vpop.f32.mrf.mxu0
  %v6190 = vpop.f32.mrf.mxu0
  %v6191 = vadd.f32 0.0, %v6190
  %v6192 = vpop.f32.mrf.mxu0
  %6193 = vmatprep.mubr.bf16.mxu0 0
  %6194 = vmatmul.mubr.bf16.gmra.mxu0 %v6147
  %v6195 = vpop.f32.mrf.mxu0
  %v6196 = vadd.f32 0.0, %v6195
  %v6197 = vpop.f32.mrf.mxu0
  %v6198 = vpop.f32.mrf.mxu0
  %v6199 = vadd.f32 0.0, %v6198
  %v6200 = vpop.f32.mrf.mxu0
  %6201 = vdwg.mxu0
  %v6202 = vld [vmem:[#allocation8] sm:$0x8]
  %s6203 = scalar_lea.vmem %s5, 4
  %v6204 = vld [vmem:[%s6203] sm:$0x3]
  %v6205 = vld [vmem:[#allocation8 + $0x10] sm:$0xf]
  %s6206 = scalar_lea.vmem %s5, 6
  %v6207 = vld [vmem:[%s6206] sm:$0x3]
  %v6210 = vunpack.c.l.b16 %v6202
  %v6211 = vunpack.c.l.b16 %v6205
  %v6212 = vpack.c.b16 %v6109, %v6210
  %v6213 = vpack.c.b16 %v6211, %v6211
  %v6215 = vshrl.u32 %v6212, 16
  %v6217 = vrot.slane %v6215, 3
  %v6218 = vshll.u32 %v6212, 16
  %v6220 = vrot.slane %v6218, 4
  %v6221 = vor.u32 %v6217, %v6220
  %v6222 = vrot.slane %v6125, 3
  %v6223 = vrot.slane %v6128, 4
  %v6224 = vor.u32 %v6222, %v6223
  %v6225 = vsel %vm436, %v6221, %v6224
  %v6227 = vshrl.u32 %v6213, 16
  %v6229 = vrot.slane %v6227, 3
  %v6230 = vshll.u32 %v6213, 16
  %v6232 = vrot.slane %v6230, 4
  %v6233 = vor.u32 %v6229, %v6232
  %v6234 = vsel %vm436, %v6224, %v6233
  %v6236 = vsel %vm6142, %v6225, 0
  %v6239 = vsel %vm6142, %v6234, 0
  %v6242 = vsel %vm6149, %v6207, 0
  %6244 = vmatprep.subr.bf16.mxu0 0
  %6245 = vmatpush1.bf16.msra.mxu0 0
  %6246 = vmatprep.subr.bf16.mxu0 0
  %6247 = vmatpush1.bf16.msra.mxu0 0
  %6248 = vmatprep.subr.bf16.mxu0 0
  %6249 = vmatpush1.bf16.msra.mxu0 0
  %6250 = vmatprep.subr.bf16.mxu0 0
  %6251 = vmatpush1.bf16.msra.mxu0 0
  %6252 = vmatprep.subr.bf16.mxu0 0
  %6253 = vmatpush1.bf16.msra.mxu0 0
  %6254 = vmatprep.subr.bf16.mxu0 0
  %6255 = vmatpush1.bf16.msra.mxu0 0
  %6256 = vmatprep.subr.bf16.mxu0 0
  %6257 = vmatpush1.bf16.msra.mxu0 0
  %6258 = vmatprep.subr.bf16.mxu0 0
  %6259 = vmatpush1.bf16.msra.mxu0 %v6242
  %6260 = vmatprep.subr.bf16.mxu0 0
  %6261 = vmatpush2.bf16.msra.mxu0 0
  %6262 = vmatprep.subr.bf16.mxu0 0
  %6263 = vmatpush2.bf16.msra.mxu0 0
  %6264 = vmatprep.subr.bf16.mxu0 0
  %6265 = vmatpush2.bf16.msra.mxu0 0
  %6266 = vmatprep.subr.bf16.mxu0 0
  %6267 = vmatpush2.bf16.msra.mxu0 0
  %6268 = vmatprep.subr.bf16.mxu0 0
  %6269 = vmatpush2.bf16.msra.mxu0 0
  %6270 = vmatprep.subr.bf16.mxu0 0
  %6271 = vmatpush2.bf16.msra.mxu0 0
  %6272 = vmatprep.subr.bf16.mxu0 0
  %6273 = vmatpush2.bf16.msra.mxu0 0
  %6274 = vmatprep.subr.bf16.mxu0 0
  %6275 = vmatpush2.bf16.msra.mxu0 0
  %6276 = vmatprep.mubr.bf16.mxu0 0
  %6277 = vmatmul.mubr.bf16.gmra.mxu0 %v6236
  %v6278 = vpop.f32.mrf.mxu0
  %v6279 = vadd.f32 0.0, %v6278
  %v6280 = vpop.f32.mrf.mxu0
  %v6281 = vpop.f32.mrf.mxu0
  %v6282 = vadd.f32 0.0, %v6281
  %v6283 = vpop.f32.mrf.mxu0
  %6284 = vmatprep.mubr.bf16.mxu0 0
  %6285 = vmatmul.mubr.bf16.gmra.mxu0 %v6239
  %v6286 = vpop.f32.mrf.mxu0
  %v6287 = vadd.f32 0.0, %v6286
  %v6288 = vpop.f32.mrf.mxu0
  %v6289 = vpop.f32.mrf.mxu0
  %v6290 = vadd.f32 0.0, %v6289
  %v6291 = vpop.f32.mrf.mxu0
  %6292 = vdwg.mxu0
  %s6293 = scalar_lea.vmem %s5, 8
  %v6294 = vld [vmem:[%s6293] sm:$0x3]
  %v6295 = vld [vmem:[#allocation8 + $0x4] sm:$0xf]
  %v6296 = vld [vmem:[#allocation8 + $0x8] sm:$0xf]
  %v6297 = vld [vmem:[#allocation8 + $0xc] sm:$0xf]
  %v6298 = vld [vmem:[#allocation8 + $0x10] sm:$0xf]
  %v6299 = vld [vmem:[#allocation8 + $0x14] sm:$0x1]
  %s6300 = scalar_lea.vmem %s5, 10
  %v6301 = vld [vmem:[%s6300] sm:$0x3]
  %v6307 = vunpack.c.l.b16 %v6295
  %v6308 = vunpack.c.l.b16 %v6296
  %v6309 = vunpack.c.l.b16 %v6297
  %v6310 = vunpack.c.l.b16 %v6298
  %v6311 = vunpack.c.l.b16 %v6299
  %v6312 = vpack.c.b16 %v6308, %v6307
  %v6313 = vpack.c.b16 %v6310, %v6309
  %v6314 = vpack.c.b16 %v6311, %v6311
  %v6316 = vshrl.u32 %v6312, 16
  %v6318 = vshll.u32 %v6312, 16
  %v6320 = vrot.slane %v6318, 1
  %v6321 = vor.u32 %v6316, %v6320
  %v6323 = vshll.u32 %v6313, 16
  %v6325 = vrot.slane %v6323, 1
  %v6326 = vsel %vm715, %v6321, %v6325
  %v6327 = vshrl.u32 %v6313, 16
  %v6329 = vor.u32 %v6327, %v6325
  %v6331 = vshll.u32 %v6314, 16
  %v6333 = vrot.slane %v6331, 1
  %v6334 = vsel %vm715, %v6329, %v6333
  %v6336 = vsel %vm6142, %v6326, 0
  %v6339 = vsel %vm6142, %v6334, 0
  %v6342 = vsel %vm6149, %v6301, 0
  %6344 = vmatprep.subr.bf16.mxu0 0
  %6345 = vmatpush1.bf16.msra.mxu0 0
  %6346 = vmatprep.subr.bf16.mxu0 0
  %6347 = vmatpush1.bf16.msra.mxu0 0
  %6348 = vmatprep.subr.bf16.mxu0 0
  %6349 = vmatpush1.bf16.msra.mxu0 0
  %6350 = vmatprep.subr.bf16.mxu0 0
  %6351 = vmatpush1.bf16.msra.mxu0 0
  %6352 = vmatprep.subr.bf16.mxu0 0
  %6353 = vmatpush1.bf16.msra.mxu0 0
  %6354 = vmatprep.subr.bf16.mxu0 0
  %6355 = vmatpush1.bf16.msra.mxu0 0
  %6356 = vmatprep.subr.bf16.mxu0 0
  %6357 = vmatpush1.bf16.msra.mxu0 0
  %6358 = vmatprep.subr.bf16.mxu0 0
  %6359 = vmatpush1.bf16.msra.mxu0 %v6342
  %6360 = vmatprep.subr.bf16.mxu0 0
  %6361 = vmatpush2.bf16.msra.mxu0 0
  %6362 = vmatprep.subr.bf16.mxu0 0
  %6363 = vmatpush2.bf16.msra.mxu0 0
  %6364 = vmatprep.subr.bf16.mxu0 0
  %6365 = vmatpush2.bf16.msra.mxu0 0
  %6366 = vmatprep.subr.bf16.mxu0 0
  %6367 = vmatpush2.bf16.msra.mxu0 0
  %6368 = vmatprep.subr.bf16.mxu0 0
  %6369 = vmatpush2.bf16.msra.mxu0 0
  %6370 = vmatprep.subr.bf16.mxu0 0
  %6371 = vmatpush2.bf16.msra.mxu0 0
  %6372 = vmatprep.subr.bf16.mxu0 0
  %6373 = vmatpush2.bf16.msra.mxu0 0
  %6374 = vmatprep.subr.bf16.mxu0 0
  %6375 = vmatpush2.bf16.msra.mxu0 0
  %6376 = vmatprep.mubr.bf16.mxu0 0
  %6377 = vmatmul.mubr.bf16.gmra.mxu0 %v6336
  %v6378 = vpop.f32.mrf.mxu0
  %v6379 = vadd.f32 0.0, %v6378
  %v6380 = vpop.f32.mrf.mxu0
  %v6381 = vpop.f32.mrf.mxu0
  %v6382 = vadd.f32 0.0, %v6381
  %v6383 = vpop.f32.mrf.mxu0
  %6384 = vmatprep.mubr.bf16.mxu0 0
  %6385 = vmatmul.mubr.bf16.gmra.mxu0 %v6339
  %v6386 = vpop.f32.mrf.mxu0
  %v6387 = vadd.f32 0.0, %v6386
  %v6388 = vpop.f32.mrf.mxu0
  %v6389 = vpop.f32.mrf.mxu0
  %v6390 = vadd.f32 0.0, %v6389
  %v6391 = vpop.f32.mrf.mxu0
  %6392 = vdwg.mxu0
  %v6393 = vld [vmem:[#allocation8 + $0x4] sm:$0xe]
  %s6394 = scalar_lea.vmem %s5, 12
  %v6395 = vld [vmem:[%s6394] sm:$0x3]
  %v6396 = vld [vmem:[#allocation8 + $0x14] sm:$0x3]
  %s6397 = scalar_lea.vmem %s5, 14
  %v6398 = vld [vmem:[%s6397] sm:$0x3]
  %v6401 = vunpack.c.l.b16 %v6393
  %v6402 = vunpack.c.l.b16 %v6396
  %v6403 = vpack.c.b16 %v6308, %v6401
  %v6404 = vpack.c.b16 %v6402, %v6402
  %v6406 = vshrl.u32 %v6403, 16
  %v6408 = vrot.slane %v6406, 1
  %v6409 = vshll.u32 %v6403, 16
  %v6411 = vrot.slane %v6409, 2
  %v6412 = vor.u32 %v6408, %v6411
  %v6413 = vrot.slane %v6327, 1
  %v6414 = vrot.slane %v6323, 2
  %v6415 = vor.u32 %v6413, %v6414
  %v6416 = vsel %vm962, %v6412, %v6415
  %v6418 = vshrl.u32 %v6404, 16
  %v6420 = vrot.slane %v6418, 1
  %v6421 = vshll.u32 %v6404, 16
  %v6423 = vrot.slane %v6421, 2
  %v6424 = vor.u32 %v6420, %v6423
  %v6425 = vsel %vm962, %v6415, %v6424
  %v6427 = vsel %vm6142, %v6416, 0
  %v6430 = vsel %vm6142, %v6425, 0
  %v6433 = vsel %vm6149, %v6398, 0
  %6435 = vmatprep.subr.bf16.mxu0 0
  %6436 = vmatpush1.bf16.msra.mxu0 0
  %6437 = vmatprep.subr.bf16.mxu0 0
  %6438 = vmatpush1.bf16.msra.mxu0 0
  %6439 = vmatprep.subr.bf16.mxu0 0
  %6440 = vmatpush1.bf16.msra.mxu0 0
  %6441 = vmatprep.subr.bf16.mxu0 0
  %6442 = vmatpush1.bf16.msra.mxu0 0
  %6443 = vmatprep.subr.bf16.mxu0 0
  %6444 = vmatpush1.bf16.msra.mxu0 0
  %6445 = vmatprep.subr.bf16.mxu0 0
  %6446 = vmatpush1.bf16.msra.mxu0 0
  %6447 = vmatprep.subr.bf16.mxu0 0
  %6448 = vmatpush1.bf16.msra.mxu0 0
  %6449 = vmatprep.subr.bf16.mxu0 0
  %6450 = vmatpush1.bf16.msra.mxu0 %v6433
  %6451 = vmatprep.subr.bf16.mxu0 0
  %6452 = vmatpush2.bf16.msra.mxu0 0
  %6453 = vmatprep.subr.bf16.mxu0 0
  %6454 = vmatpush2.bf16.msra.mxu0 0
  %6455 = vmatprep.subr.bf16.mxu0 0
  %6456 = vmatpush2.bf16.msra.mxu0 0
  %6457 = vmatprep.subr.bf16.mxu0 0
  %6458 = vmatpush2.bf16.msra.mxu0 0
  %6459 = vmatprep.subr.bf16.mxu0 0
  %6460 = vmatpush2.bf16.msra.mxu0 0
  %6461 = vmatprep.subr.bf16.mxu0 0
  %6462 = vmatpush2.bf16.msra.mxu0 0
  %6463 = vmatprep.subr.bf16.mxu0 0
  %6464 = vmatpush2.bf16.msra.mxu0 0
  %6465 = vmatprep.subr.bf16.mxu0 0
  %6466 = vmatpush2.bf16.msra.mxu0 0
  %6467 = vmatprep.mubr.bf16.mxu0 0
  %6468 = vmatmul.mubr.bf16.gmra.mxu0 %v6427
  %v6469 = vpop.f32.mrf.mxu0
  %v6470 = vadd.f32 0.0, %v6469
  %v6471 = vpop.f32.mrf.mxu0
  %v6472 = vpop.f32.mrf.mxu0
  %v6473 = vadd.f32 0.0, %v6472
  %v6474 = vpop.f32.mrf.mxu0
  %6475 = vmatprep.mubr.bf16.mxu0 0
  %6476 = vmatmul.mubr.bf16.gmra.mxu0 %v6430
  %v6477 = vpop.f32.mrf.mxu0
  %v6478 = vadd.f32 0.0, %v6477
  %v6479 = vpop.f32.mrf.mxu0
  %v6480 = vpop.f32.mrf.mxu0
  %v6481 = vadd.f32 0.0, %v6480
  %v6482 = vpop.f32.mrf.mxu0
  %6483 = vdwg.mxu0
  %v6484 = vld [vmem:[#allocation8 + $0x4] sm:$0xc]
  %s6485 = scalar_lea.vmem %s5, 16
  %v6486 = vld [vmem:[%s6485] sm:$0x3]
  %v6488 = vunpack.c.l.b16 %v6484
  %v6489 = vpack.c.b16 %v6308, %v6488
  %v6490 = vrot.slane %v6489, 2
  %v6491 = vrot.slane %v6313, 2
  %v6492 = vsel %vm1171, %v6490, %v6491
  %v6493 = vrot.slane %v6404, 2
  %v6494 = vsel %vm1171, %v6491, %v6493
  %v6496 = vsel %vm6142, %v6492, 0
  %v6499 = vsel %vm6142, %v6494, 0
  %v6502 = vsel %vm6149, %v6486, 0
  %6504 = vmatprep.subr.bf16.mxu0 0
  %6505 = vmatpush1.bf16.msra.mxu0 0
  %6506 = vmatprep.subr.bf16.mxu0 0
  %6507 = vmatpush1.bf16.msra.mxu0 0
  %6508 = vmatprep.subr.bf16.mxu0 0
  %6509 = vmatpush1.bf16.msra.mxu0 0
  %6510 = vmatprep.subr.bf16.mxu0 0
  %6511 = vmatpush1.bf16.msra.mxu0 0
  %6512 = vmatprep.subr.bf16.mxu0 0
  %6513 = vmatpush1.bf16.msra.mxu0 0
  %6514 = vmatprep.subr.bf16.mxu0 0
  %6515 = vmatpush1.bf16.msra.mxu0 0
  %6516 = vmatprep.subr.bf16.mxu0 0
  %6517 = vmatpush1.bf16.msra.mxu0 0
  %6518 = vmatprep.subr.bf16.mxu0 0
  %6519 = vmatpush1.bf16.msra.mxu0 %v6502
  %6520 = vmatprep.subr.bf16.mxu0 0
  %6521 = vmatpush2.bf16.msra.mxu0 0
  %6522 = vmatprep.subr.bf16.mxu0 0
  %6523 = vmatpush2.bf16.msra.mxu0 0
  %6524 = vmatprep.subr.bf16.mxu0 0
  %6525 = vmatpush2.bf16.msra.mxu0 0
  %6526 = vmatprep.subr.bf16.mxu0 0
  %6527 = vmatpush2.bf16.msra.mxu0 0
  %6528 = vmatprep.subr.bf16.mxu0 0
  %6529 = vmatpush2.bf16.msra.mxu0 0
  %6530 = vmatprep.subr.bf16.mxu0 0
  %6531 = vmatpush2.bf16.msra.mxu0 0
  %6532 = vmatprep.subr.bf16.mxu0 0
  %6533 = vmatpush2.bf16.msra.mxu0 0
  %6534 = vmatprep.subr.bf16.mxu0 0
  %6535 = vmatpush2.bf16.msra.mxu0 0
  %6536 = vmatprep.mubr.bf16.mxu0 0
  %6537 = vmatmul.mubr.bf16.gmra.mxu0 %v6496
  %v6538 = vpop.f32.mrf.mxu0
  %v6539 = vadd.f32 0.0, %v6538
  %v6540 = vpop.f32.mrf.mxu0
  %v6541 = vpop.f32.mrf.mxu0
  %v6542 = vadd.f32 0.0, %v6541
  %v6543 = vpop.f32.mrf.mxu0
  %6544 = vmatprep.mubr.bf16.mxu0 0
  %6545 = vmatmul.mubr.bf16.gmra.mxu0 %v6499
  %v6546 = vpop.f32.mrf.mxu0
  %v6547 = vadd.f32 0.0, %v6546
  %v6548 = vpop.f32.mrf.mxu0
  %v6549 = vpop.f32.mrf.mxu0
  %v6550 = vadd.f32 0.0, %v6549
  %v6551 = vpop.f32.mrf.mxu0
  %6552 = vdwg.mxu0
  %v6554 = vunpack.c.l.b16 %v6098
  %v6555 = vpack.c.b16 %v6554, %v6554
  %v6556 = vrot.slane %v6113, 2
  %v6557 = vrot.slane %v6114, 2
  %v6558 = vsel %vm1171, %v6556, %v6557
  %v6559 = vrot.slane %v6555, 2
  %v6560 = vsel %vm1171, %v6557, %v6559
  %v6562 = vsel %vm6142, %v6558, 0
  %v6565 = vsel %vm6142, %v6560, 0
  %v6568 = vsel %vm6149, %v6099, 0
  %6570 = vmatprep.subr.bf16.mxu0 0
  %6571 = vmatpush1.bf16.msra.mxu0 0
  %6572 = vmatprep.subr.bf16.mxu0 0
  %6573 = vmatpush1.bf16.msra.mxu0 0
  %6574 = vmatprep.subr.bf16.mxu0 0
  %6575 = vmatpush1.bf16.msra.mxu0 0
  %6576 = vmatprep.subr.bf16.mxu0 0
  %6577 = vmatpush1.bf16.msra.mxu0 0
  %6578 = vmatprep.subr.bf16.mxu0 0
  %6579 = vmatpush1.bf16.msra.mxu0 0
  %6580 = vmatprep.subr.bf16.mxu0 0
  %6581 = vmatpush1.bf16.msra.mxu0 0
  %6582 = vmatprep.subr.bf16.mxu0 0
  %6583 = vmatpush1.bf16.msra.mxu0 0
  %6584 = vmatprep.subr.bf16.mxu0 0
  %6585 = vmatpush1.bf16.msra.mxu0 %v6568
  %6586 = vmatprep.subr.bf16.mxu0 0
  %6587 = vmatpush2.bf16.msra.mxu0 0
  %6588 = vmatprep.subr.bf16.mxu0 0
  %6589 = vmatpush2.bf16.msra.mxu0 0
  %6590 = vmatprep.subr.bf16.mxu0 0
  %6591 = vmatpush2.bf16.msra.mxu0 0
  %6592 = vmatprep.subr.bf16.mxu0 0
  %6593 = vmatpush2.bf16.msra.mxu0 0
  %6594 = vmatprep.subr.bf16.mxu0 0
  %6595 = vmatpush2.bf16.msra.mxu0 0
  %6596 = vmatprep.subr.bf16.mxu0 0
  %6597 = vmatpush2.bf16.msra.mxu0 0
  %6598 = vmatprep.subr.bf16.mxu0 0
  %6599 = vmatpush2.bf16.msra.mxu0 0
  %6600 = vmatprep.subr.bf16.mxu0 0
  %6601 = vmatpush2.bf16.msra.mxu0 0
  %6602 = vmatprep.mubr.bf16.mxu0 0
  %6603 = vmatmul.mubr.bf16.gmra.mxu0 %v6562
  %v6604 = vpop.f32.mrf.mxu0
  %v6605 = vadd.f32 %v6188, %v6604
  %v6606 = vpop.f32.mrf.mxu0
  %v6607 = vpop.f32.mrf.mxu0
  %v6608 = vadd.f32 %v6191, %v6607
  %v6609 = vpop.f32.mrf.mxu0
  %6610 = vmatprep.mubr.bf16.mxu0 0
  %6611 = vmatmul.mubr.bf16.gmra.mxu0 %v6565
  %v6612 = vpop.f32.mrf.mxu0
  %v6613 = vadd.f32 %v6196, %v6612
  %v6614 = vpop.f32.mrf.mxu0
  %v6615 = vpop.f32.mrf.mxu0
  %v6616 = vadd.f32 %v6199, %v6615
  %v6617 = vpop.f32.mrf.mxu0
  %6618 = vdwg.mxu0
  %v6619 = vrot.slane %v6212, 3
  %v6620 = vrot.slane %v6114, 3
  %v6621 = vsel %vm1509, %v6619, %v6620
  %v6622 = vrot.slane %v6115, 3
  %v6623 = vsel %vm1509, %v6620, %v6622
  %v6625 = vsel %vm6142, %v6621, 0
  %v6628 = vsel %vm6142, %v6623, 0
  %v6631 = vsel %vm6149, %v6204, 0
  %6633 = vmatprep.subr.bf16.mxu0 0
  %6634 = vmatpush1.bf16.msra.mxu0 0
  %6635 = vmatprep.subr.bf16.mxu0 0
  %6636 = vmatpush1.bf16.msra.mxu0 0
  %6637 = vmatprep.subr.bf16.mxu0 0
  %6638 = vmatpush1.bf16.msra.mxu0 0
  %6639 = vmatprep.subr.bf16.mxu0 0
  %6640 = vmatpush1.bf16.msra.mxu0 0
  %6641 = vmatprep.subr.bf16.mxu0 0
  %6642 = vmatpush1.bf16.msra.mxu0 0
  %6643 = vmatprep.subr.bf16.mxu0 0
  %6644 = vmatpush1.bf16.msra.mxu0 0
  %6645 = vmatprep.subr.bf16.mxu0 0
  %6646 = vmatpush1.bf16.msra.mxu0 0
  %6647 = vmatprep.subr.bf16.mxu0 0
  %6648 = vmatpush1.bf16.msra.mxu0 %v6631
  %6649 = vmatprep.subr.bf16.mxu0 0
  %6650 = vmatpush2.bf16.msra.mxu0 0
  %6651 = vmatprep.subr.bf16.mxu0 0
  %6652 = vmatpush2.bf16.msra.mxu0 0
  %6653 = vmatprep.subr.bf16.mxu0 0
  %6654 = vmatpush2.bf16.msra.mxu0 0
  %6655 = vmatprep.subr.bf16.mxu0 0
  %6656 = vmatpush2.bf16.msra.mxu0 0
  %6657 = vmatprep.subr.bf16.mxu0 0
  %6658 = vmatpush2.bf16.msra.mxu0 0
  %6659 = vmatprep.subr.bf16.mxu0 0
  %6660 = vmatpush2.bf16.msra.mxu0 0
  %6661 = vmatprep.subr.bf16.mxu0 0
  %6662 = vmatpush2.bf16.msra.mxu0 0
  %6663 = vmatprep.subr.bf16.mxu0 0
  %6664 = vmatpush2.bf16.msra.mxu0 0
  %6665 = vmatprep.mubr.bf16.mxu0 0
  %6666 = vmatmul.mubr.bf16.gmra.mxu0 %v6625
  %v6667 = vpop.f32.mrf.mxu0
  %v6668 = vadd.f32 %v6279, %v6667
  %v6669 = vpop.f32.mrf.mxu0
  %v6670 = vpop.f32.mrf.mxu0
  %v6671 = vadd.f32 %v6282, %v6670
  %v6672 = vpop.f32.mrf.mxu0
  %6673 = vmatprep.mubr.bf16.mxu0 0
  %6674 = vmatmul.mubr.bf16.gmra.mxu0 %v6628
  %v6675 = vpop.f32.mrf.mxu0
  %v6676 = vadd.f32 %v6287, %v6675
  %v6677 = vpop.f32.mrf.mxu0
  %v6678 = vpop.f32.mrf.mxu0
  %v6679 = vadd.f32 %v6290, %v6678
  %v6680 = vpop.f32.mrf.mxu0
  %6681 = vdwg.mxu0
  %v6682 = vpack.c.b16 %v6110, %v6109
  %v6683 = vpack.c.b16 %v6211, %v6111
  %v6685 = vsel %vm6142, %v6682, 0
  %v6688 = vsel %vm6142, %v6683, 0
  %v6691 = vsel %vm6149, %v6294, 0
  %6693 = vmatprep.subr.bf16.mxu0 0
  %6694 = vmatpush1.bf16.msra.mxu0 0
  %6695 = vmatprep.subr.bf16.mxu0 0
  %6696 = vmatpush1.bf16.msra.mxu0 0
  %6697 = vmatprep.subr.bf16.mxu0 0
  %6698 = vmatpush1.bf16.msra.mxu0 0
  %6699 = vmatprep.subr.bf16.mxu0 0
  %6700 = vmatpush1.bf16.msra.mxu0 0
  %6701 = vmatprep.subr.bf16.mxu0 0
  %6702 = vmatpush1.bf16.msra.mxu0 0
  %6703 = vmatprep.subr.bf16.mxu0 0
  %6704 = vmatpush1.bf16.msra.mxu0 0
  %6705 = vmatprep.subr.bf16.mxu0 0
  %6706 = vmatpush1.bf16.msra.mxu0 0
  %6707 = vmatprep.subr.bf16.mxu0 0
  %6708 = vmatpush1.bf16.msra.mxu0 %v6691
  %6709 = vmatprep.subr.bf16.mxu0 0
  %6710 = vmatpush2.bf16.msra.mxu0 0
  %6711 = vmatprep.subr.bf16.mxu0 0
  %6712 = vmatpush2.bf16.msra.mxu0 0
  %6713 = vmatprep.subr.bf16.mxu0 0
  %6714 = vmatpush2.bf16.msra.mxu0 0
  %6715 = vmatprep.subr.bf16.mxu0 0
  %6716 = vmatpush2.bf16.msra.mxu0 0
  %6717 = vmatprep.subr.bf16.mxu0 0
  %6718 = vmatpush2.bf16.msra.mxu0 0
  %6719 = vmatprep.subr.bf16.mxu0 0
  %6720 = vmatpush2.bf16.msra.mxu0 0
  %6721 = vmatprep.subr.bf16.mxu0 0
  %6722 = vmatpush2.bf16.msra.mxu0 0
  %6723 = vmatprep.subr.bf16.mxu0 0
  %6724 = vmatpush2.bf16.msra.mxu0 0
  %6725 = vmatprep.mubr.bf16.mxu0 0
  %6726 = vmatmul.mubr.bf16.gmra.mxu0 %v6685
  %v6727 = vpop.f32.mrf.mxu0
  %v6728 = vadd.f32 %v6379, %v6727
  %v6729 = vpop.f32.mrf.mxu0
  %v6730 = vpop.f32.mrf.mxu0
  %v6731 = vadd.f32 %v6382, %v6730
  %v6732 = vpop.f32.mrf.mxu0
  %6733 = vmatprep.mubr.bf16.mxu0 0
  %6734 = vmatmul.mubr.bf16.gmra.mxu0 %v6688
  %v6735 = vpop.f32.mrf.mxu0
  %v6736 = vadd.f32 %v6387, %v6735
  %v6737 = vpop.f32.mrf.mxu0
  %v6738 = vpop.f32.mrf.mxu0
  %v6739 = vadd.f32 %v6390, %v6738
  %v6740 = vpop.f32.mrf.mxu0
  %6741 = vdwg.mxu0
  %v6742 = vrot.slane %v6403, 1
  %v6743 = vrot.slane %v6313, 1
  %v6744 = vsel %vm1834, %v6742, %v6743
  %v6745 = vrot.slane %v6314, 1
  %v6746 = vsel %vm1834, %v6743, %v6745
  %v6748 = vsel %vm6142, %v6744, 0
  %v6751 = vsel %vm6142, %v6746, 0
  %v6754 = vsel %vm6149, %v6395, 0
  %6756 = vmatprep.subr.bf16.mxu0 0
  %6757 = vmatpush1.bf16.msra.mxu0 0
  %6758 = vmatprep.subr.bf16.mxu0 0
  %6759 = vmatpush1.bf16.msra.mxu0 0
  %6760 = vmatprep.subr.bf16.mxu0 0
  %6761 = vmatpush1.bf16.msra.mxu0 0
  %6762 = vmatprep.subr.bf16.mxu0 0
  %6763 = vmatpush1.bf16.msra.mxu0 0
  %6764 = vmatprep.subr.bf16.mxu0 0
  %6765 = vmatpush1.bf16.msra.mxu0 0
  %6766 = vmatprep.subr.bf16.mxu0 0
  %6767 = vmatpush1.bf16.msra.mxu0 0
  %6768 = vmatprep.subr.bf16.mxu0 0
  %6769 = vmatpush1.bf16.msra.mxu0 0
  %6770 = vmatprep.subr.bf16.mxu0 0
  %6771 = vmatpush1.bf16.msra.mxu0 %v6754
  %6772 = vmatprep.subr.bf16.mxu0 0
  %6773 = vmatpush2.bf16.msra.mxu0 0
  %6774 = vmatprep.subr.bf16.mxu0 0
  %6775 = vmatpush2.bf16.msra.mxu0 0
  %6776 = vmatprep.subr.bf16.mxu0 0
  %6777 = vmatpush2.bf16.msra.mxu0 0
  %6778 = vmatprep.subr.bf16.mxu0 0
  %6779 = vmatpush2.bf16.msra.mxu0 0
  %6780 = vmatprep.subr.bf16.mxu0 0
  %6781 = vmatpush2.bf16.msra.mxu0 0
  %6782 = vmatprep.subr.bf16.mxu0 0
  %6783 = vmatpush2.bf16.msra.mxu0 0
  %6784 = vmatprep.subr.bf16.mxu0 0
  %6785 = vmatpush2.bf16.msra.mxu0 0
  %6786 = vmatprep.subr.bf16.mxu0 0
  %6787 = vmatpush2.bf16.msra.mxu0 0
  %6788 = vmatprep.mubr.bf16.mxu0 0
  %6789 = vmatmul.mubr.bf16.gmra.mxu0 %v6748
  %v6790 = vpop.f32.mrf.mxu0
  %v6791 = vadd.f32 %v6470, %v6790
  %v6792 = vpop.f32.mrf.mxu0
  %v6793 = vpop.f32.mrf.mxu0
  %v6794 = vadd.f32 %v6473, %v6793
  %v6795 = vpop.f32.mrf.mxu0
  %6796 = vmatprep.mubr.bf16.mxu0 0
  %6797 = vmatmul.mubr.bf16.gmra.mxu0 %v6751
  %v6798 = vpop.f32.mrf.mxu0
  %v6799 = vadd.f32 %v6478, %v6798
  %v6800 = vpop.f32.mrf.mxu0
  %v6801 = vpop.f32.mrf.mxu0
  %v6802 = vadd.f32 %v6481, %v6801
  %v6803 = vpop.f32.mrf.mxu0
  %6804 = vdwg.mxu0
  %v6805 = vadd.f32 %v6605, %v6668
  %v6806 = vadd.f32 %v6608, %v6671
  %v6807 = vadd.f32 %v6613, %v6676
  %v6808 = vadd.f32 %v6616, %v6679
  %v6809 = vadd.f32 %v6728, %v6791
  %v6810 = vadd.f32 %v6731, %v6794
  %v6811 = vadd.f32 %v6736, %v6799
  %v6812 = vadd.f32 %v6739, %v6802
  %v6813 = vadd.f32 %v6805, %v6809
  %v6814 = vadd.f32 %v6806, %v6810
  %v6815 = vadd.f32 %v6807, %v6811
  %v6816 = vadd.f32 %v6808, %v6812
  %v6817 = vadd.f32 %v6813, %v6539
  %v6818 = vadd.f32 %v6814, %v6542
  %v6819 = vadd.f32 %v6815, %v6547
  %v6820 = vadd.f32 %v6816, %v6550
  %v6821 = vld [vmem:[%s12] sm:$0x1]
  %v6823 = vlaneseq
  %v6824 = vshrl.u32 %v6823, 7
  %v6825 = vsub.s32 0, %v6824
  %v6826 = vrot.slane %v6821, %v6825
  %v6828 = vadd.f32 %v6817, %v6826
  %v6829 = vadd.f32 %v6818, %v6826
  %v6830 = vadd.f32 %v6819, %v6826
  %v6831 = vadd.f32 %v6820, %v6826
  %v6832 = vmax.f32 %v6828, 0.0
  %v6833 = vmax.f32 %v6829, 0.0
  %v6834 = vmax.f32 %v6830, 0.0
  %v6835 = vmax.f32 %v6831, 0.0
  %v6836 = vpack.c.bf16 %v6833, %v6832
  %v6837 = vpack.c.bf16 %v6835, %v6834
  %v6838 = vld [vmem:[%s6] sm:$0xf]
  %v6839 = vld [vmem:[%s6 + $0x4] sm:$0xf]
  %v6840 = vld [vmem:[%s6 + $0x8] sm:$0xf]
  %v6841 = vld [vmem:[%s6 + $0xc] sm:$0xf]
  %v6842 = vld [vmem:[%s6 + $0x10] sm:$0xf]
  %v6843 = vld [vmem:[%s6 + $0x14] sm:$0xf]
  %v6844 = vld [vmem:[%s6 + $0x18] sm:$0xf]
  %v6845 = vld [vmem:[%s6 + $0x1c] sm:$0xf]
  %v6846 = vld [vmem:[%s13] sm:$0x1]
  %v6848 = vlaneseq
  %v6849 = vshrl.u32 %v6848, 7
  %v6850 = vsub.s32 0, %v6849
  %v6851 = vrot.slane %v6846, %v6850
  %v6861 = vunpack.c.l.b16 %v6838
  %v6862 = vunpack.c.l.b16 %v6839
  %v6863 = vunpack.c.l.b16 %v6840
  %v6864 = vunpack.c.l.b16 %v6841
  %v6865 = vunpack.c.l.b16 %v6842
  %v6866 = vunpack.c.l.b16 %v6843
  %v6867 = vunpack.c.l.b16 %v6844
  %v6868 = vunpack.c.l.b16 %v6845
  %v6869 = vpack.c.b16 %v6862, %v6861
  %v6870 = vpack.c.b16 %v6864, %v6863
  %v6871 = vpack.c.b16 %v6866, %v6865
  %v6872 = vpack.c.b16 %v6868, %v6867
  %v6878 = vsel %vm64, %v6836, 0
  %v6881 = vsel %vm64, %v6837, 0
  %6883 = vmatprep.subr.bf16.mxu0 0
  %6884 = vmatpush1.bf16.msra.mxu0 0
  %6885 = vmatprep.subr.bf16.mxu0 0
  %6886 = vmatpush1.bf16.msra.mxu0 0
  %6887 = vmatprep.subr.bf16.mxu0 0
  %6888 = vmatpush1.bf16.msra.mxu0 0
  %6889 = vmatprep.subr.bf16.mxu0 0
  %6890 = vmatpush1.bf16.msra.mxu0 0
  %6891 = vmatprep.subr.bf16.mxu0 0
  %6892 = vmatpush1.bf16.msra.mxu0 %v6872
  %6893 = vmatprep.subr.bf16.mxu0 0
  %6894 = vmatpush1.bf16.msra.mxu0 %v6871
  %6895 = vmatprep.subr.bf16.mxu0 0
  %6896 = vmatpush1.bf16.msra.mxu0 %v6870
  %6897 = vmatprep.subr.bf16.mxu0 0
  %6898 = vmatpush1.bf16.msra.mxu0 %v6869
  %6899 = vmatprep.subr.bf16.mxu0 0
  %6900 = vmatpush2.bf16.msra.mxu0 0
  %6901 = vmatprep.subr.bf16.mxu0 0
  %6902 = vmatpush2.bf16.msra.mxu0 0
  %6903 = vmatprep.subr.bf16.mxu0 0
  %6904 = vmatpush2.bf16.msra.mxu0 0
  %6905 = vmatprep.subr.bf16.mxu0 0
  %6906 = vmatpush2.bf16.msra.mxu0 0
  %6907 = vmatprep.subr.bf16.mxu0 0
  %6908 = vmatpush2.bf16.msra.mxu0 0
  %6909 = vmatprep.subr.bf16.mxu0 0
  %6910 = vmatpush2.bf16.msra.mxu0 0
  %6911 = vmatprep.subr.bf16.mxu0 0
  %6912 = vmatpush2.bf16.msra.mxu0 0
  %6913 = vmatprep.subr.bf16.mxu0 0
  %6914 = vmatpush2.bf16.msra.mxu0 0
  %6915 = vmatprep.mubr.bf16.mxu0 0
  %6916 = vmatmul.mubr.bf16.gmra.mxu0 %v6878
  %v6917 = vpop.f32.mrf.mxu0
  %v6918 = vadd.f32 %v6851, %v6917
  %v6919 = vpop.f32.mrf.mxu0
  %v6920 = vpop.f32.mrf.mxu0
  %v6921 = vadd.f32 %v6851, %v6920
  %v6922 = vpop.f32.mrf.mxu0
  %6923 = vmatprep.mubr.bf16.mxu0 0
  %6924 = vmatmul.mubr.bf16.gmra.mxu0 %v6881
  %v6925 = vpop.f32.mrf.mxu0
  %v6926 = vadd.f32 %v6851, %v6925
  %v6927 = vpop.f32.mrf.mxu0
  %v6928 = vpop.f32.mrf.mxu0
  %v6929 = vadd.f32 %v6851, %v6928
  %v6930 = vpop.f32.mrf.mxu0
  %6931 = vdwg.mxu0
  %v6932 = vmax.f32 %v6918, 0.0
  %v6933 = vmax.f32 %v6921, 0.0
  %v6934 = vmax.f32 %v6926, 0.0
  %v6935 = vmax.f32 %v6929, 0.0
  %v6936 = vpack.c.bf16 %v6933, %v6932
  %v6937 = vpack.c.bf16 %v6935, %v6934
  %v6938 = vld [vmem:[%s7] sm:$0xf]
  %v6939 = vld [vmem:[%s7 + $0x4] sm:$0xf]
  %v6940 = vld [vmem:[%s7 + $0x8] sm:$0xf]
  %v6941 = vld [vmem:[%s7 + $0xc] sm:$0xf]
  %v6942 = vld [vmem:[%s7 + $0x10] sm:$0xf]
  %v6943 = vld [vmem:[%s7 + $0x14] sm:$0xf]
  %v6944 = vld [vmem:[%s7 + $0x18] sm:$0xf]
  %v6945 = vld [vmem:[%s7 + $0x1c] sm:$0xf]
  %v6946 = vld [vmem:[%s14] sm:$0x1]
  %v6948 = vlaneseq
  %v6949 = vshrl.u32 %v6948, 7
  %v6950 = vsub.s32 0, %v6949
  %v6951 = vrot.slane %v6946, %v6950
  %v6961 = vunpack.c.l.b16 %v6938
  %v6962 = vunpack.c.l.b16 %v6939
  %v6963 = vunpack.c.l.b16 %v6940
  %v6964 = vunpack.c.l.b16 %v6941
  %v6965 = vunpack.c.l.b16 %v6942
  %v6966 = vunpack.c.l.b16 %v6943
  %v6967 = vunpack.c.l.b16 %v6944
  %v6968 = vunpack.c.l.b16 %v6945
  %v6969 = vpack.c.b16 %v6962, %v6961
  %v6970 = vpack.c.b16 %v6964, %v6963
  %v6971 = vpack.c.b16 %v6966, %v6965
  %v6972 = vpack.c.b16 %v6968, %v6967
  %v6978 = vsel %vm64, %v6936, 0
  %v6981 = vsel %vm64, %v6937, 0
  %6983 = vmatprep.subr.bf16.mxu0 0
  %6984 = vmatpush1.bf16.msra.mxu0 0
  %6985 = vmatprep.subr.bf16.mxu0 0
  %6986 = vmatpush1.bf16.msra.mxu0 0
  %6987 = vmatprep.subr.bf16.mxu0 0
  %6988 = vmatpush1.bf16.msra.mxu0 0
  %6989 = vmatprep.subr.bf16.mxu0 0
  %6990 = vmatpush1.bf16.msra.mxu0 0
  %6991 = vmatprep.subr.bf16.mxu0 0
  %6992 = vmatpush1.bf16.msra.mxu0 %v6972
  %6993 = vmatprep.subr.bf16.mxu0 0
  %6994 = vmatpush1.bf16.msra.mxu0 %v6971
  %6995 = vmatprep.subr.bf16.mxu0 0
  %6996 = vmatpush1.bf16.msra.mxu0 %v6970
  %6997 = vmatprep.subr.bf16.mxu0 0
  %6998 = vmatpush1.bf16.msra.mxu0 %v6969
  %6999 = vmatprep.subr.bf16.mxu0 0
  %7000 = vmatpush2.bf16.msra.mxu0 0
  %7001 = vmatprep.subr.bf16.mxu0 0
  %7002 = vmatpush2.bf16.msra.mxu0 0
  %7003 = vmatprep.subr.bf16.mxu0 0
  %7004 = vmatpush2.bf16.msra.mxu0 0
  %7005 = vmatprep.subr.bf16.mxu0 0
  %7006 = vmatpush2.bf16.msra.mxu0 0
  %7007 = vmatprep.subr.bf16.mxu0 0
  %7008 = vmatpush2.bf16.msra.mxu0 0
  %7009 = vmatprep.subr.bf16.mxu0 0
  %7010 = vmatpush2.bf16.msra.mxu0 0
  %7011 = vmatprep.subr.bf16.mxu0 0
  %7012 = vmatpush2.bf16.msra.mxu0 0
  %7013 = vmatprep.subr.bf16.mxu0 0
  %7014 = vmatpush2.bf16.msra.mxu0 0
  %7015 = vmatprep.mubr.bf16.mxu0 0
  %7016 = vmatmul.mubr.bf16.gmra.mxu0 %v6978
  %v7017 = vpop.f32.mrf.mxu0
  %v7018 = vadd.f32 %v6951, %v7017
  %v7019 = vpop.f32.mrf.mxu0
  %v7020 = vpop.f32.mrf.mxu0
  %v7021 = vadd.f32 %v6951, %v7020
  %v7022 = vpop.f32.mrf.mxu0
  %7023 = vmatprep.mubr.bf16.mxu0 0
  %7024 = vmatmul.mubr.bf16.gmra.mxu0 %v6981
  %v7025 = vpop.f32.mrf.mxu0
  %v7026 = vadd.f32 %v6951, %v7025
  %v7027 = vpop.f32.mrf.mxu0
  %v7028 = vpop.f32.mrf.mxu0
  %v7029 = vadd.f32 %v6951, %v7028
  %v7030 = vpop.f32.mrf.mxu0
  %7031 = vdwg.mxu0
  %vm7032 = vcmask 64512
  %7033 = vst.msk [vmem:[%s18] sm:$0xff] %vm7032, %v7018
  %7034 = vst.msk [vmem:[%s18 + $0x8] sm:$0xff] %vm7032, %v7021
  %7035 = vst.msk [vmem:[%s18 + $0x10] sm:$0xff] %vm7032, %v7026
  %7036 = vst.msk [vmem:[%s18 + $0x18] sm:$0xff] %vm7032, %v7029
  // Predicated region
  $region74: #{first_stage_pallas.1} parent=0 // pred_check
    _
  $region75: #{first_stage_pallas.1} parent=0 // pred_check_branch
    %7038 = sbr.rel (0) target = $region77
  $region76: #{first_stage_pallas.1} parent=0 // pred_region
    _
  $region77: #{first_stage_pallas.1} parent=0 // pred_fallthru
    _
  // Predicated region
  $region78: #{first_stage_pallas.1} parent=0 // pred_check
    _
  $region79: #{first_stage_pallas.1} parent=0 // pred_check_branch
    %7040 = sbr.rel (0) target = $region81
  $region80: #{first_stage_pallas.1} parent=0 // pred_region
    _
  $region81: #{first_stage_pallas.1} parent=0 // pred_fallthru
    _

</llo_original>
